<compile_context>
chip_gen: v7x
topology: tpu7x:2x2x1
jax: 0.10.0
libtpu: 0.0.40
codegen_flags: <defaults>
</compile_context>

<pallas_src>
import functools
import math

import numpy as np
import jax
import jax.numpy as jnp
from jax.experimental import pallas as pl
from jax.experimental.pallas import tpu as pltpu

LANES = 128                      # lane-dense width for FC weights / logits
MATMUL_DTYPE = jnp.bfloat16      # MXU input dtype; accumulation stays f32

_IMG = 28 * 28                   # 784 input pixels (C=1)
# conv1 pre-pool activations, corner-major: 4 corners x (12*12*6 = 864 valid
# columns, padded to 896 = 7*128 so the pooling adds are lane-aligned).
_C1_BLOCK = 896
_C1_COLS = 4 * _C1_BLOCK         # 3584
# conv2 pre-pool activations, corner-major: 4 corners x (4*4*16 = 256 columns,
# already a multiple of 128).
_C2_BLOCK = 256
_C2_COLS = 4 * _C2_BLOCK         # 1024


# ------------------------------ small helpers ------------------------------

def _round_up(x, m):
    return ((x + m - 1) // m) * m


def _np_pad2d(a, rows, cols):
    return np.pad(a, ((0, rows - a.shape[0]), (0, cols - a.shape[1])))


def _pick_batch_tile(batch):
    """Batch tile: multiple of 8, capped at 64 (keeps worst-case VMEM ~17 MB),
    and >=2 grid steps once the batch is big enough to split across
    TensorCores (v7x megacore)."""
    bp = _round_up(batch, 8)
    if bp <= 8:
        return bp
    if bp <= 128:
        return min(64, _round_up(bp // 2, 8))
    return 64


# ------------------------------ Pallas kernel -------------------------------

def _lenet5_fused_kernel(x_ref, w1_ref, b1_ref, w2_ref, b2_ref,
                         fw1_ref, fb1_ref, fw2_ref, fb2_ref, fw3_ref, fb3_ref,
                         o_ref):
    """Whole LeNet5 forward for one batch tile, VMEM-resident end to end.

    x_ref : (Bt, 784)  bf16  flattened 28x28 images (row-major h*28+w)
    w1/b1 : (784, 3584) bf16 / (1, 3584) f32  conv1 lowered to a dense matmul,
            columns grouped corner-major per 2x2 pool window
    w2/b2 : (896, 1024) bf16 / (1, 1024) f32  conv2 lowered the same way
    fw*/fb*: lane-dense-padded FC weights (bf16) / biases (f32)
    o_ref : (Bt, 128)  f32   padded logits (valid classes in low lanes)

    MXU inputs are bf16; bias add / tanh / pooling / accumulation stay f32
    (v5e has no bf16 VPU/EUP).  The 2x2 average pool is 3 lane-aligned adds
    over the corner-major column blocks.
    """
    f32 = jnp.float32

    def pool4(h, blk):
        return (h[:, 0:blk] + h[:, blk:2 * blk]
                + h[:, 2 * blk:3 * blk] + h[:, 3 * blk:4 * blk]) * 0.25

    # conv1 + tanh + avgpool2   (one MXU matmul + 3 lane-aligned adds)
    h = jnp.dot(x_ref[...], w1_ref[...], preferred_element_type=f32)
    h = pool4(jnp.tanh(h + b1_ref[...]), _C1_BLOCK)                # (Bt, 896)

    # conv2 + tanh + avgpool2
    h = jnp.dot(h.astype(MATMUL_DTYPE), w2_ref[...], preferred_element_type=f32)
    h = pool4(jnp.tanh(h + b2_ref[...]), _C2_BLOCK)                # (Bt, 256)

    # fc1 + tanh -> fc2 + tanh -> fc3 (flatten permutation folded into fw1)
    h = jnp.dot(h.astype(MATMUL_DTYPE), fw1_ref[...], preferred_element_type=f32)
    h = jnp.tanh(h + fb1_ref[...])
    h = jnp.dot(h.astype(MATMUL_DTYPE), fw2_ref[...], preferred_element_type=f32)
    h = jnp.tanh(h + fb2_ref[...])
    o_ref[...] = jnp.dot(h.astype(MATMUL_DTYPE), fw3_ref[...],
                         preferred_element_type=f32) + fb3_ref[...]


# ------------------------------ kernel wrapper ------------------------------

def lenet5_fused_pallas(x2d, p, bt):
    """x2d: (B_pad, 784) bf16 -> (B_pad, 128) f32 padded logits; one call."""
    b_pad = x2d.shape[0]
    grid = (b_pad // bt,)
    ws = [p["w1"], p["b1"], p["w2"], p["b2"],
          p["fw1"], p["fb1"], p["fw2"], p["fb2"], p["fw3"], p["fb3"]]
    param_bytes = sum(a.size * a.dtype.itemsize for a in ws)
    cost = pl.CostEstimate(
        flops=2 * b_pad * (_IMG * _C1_COLS + _C1_BLOCK * _C2_COLS
                           + _C2_BLOCK * LANES + 2 * LANES * LANES),
        transcendentals=b_pad * (_C1_COLS + _C2_COLS + 2 * LANES),
        bytes_accessed=(x2d.size * x2d.dtype.itemsize + param_bytes
                        + b_pad * LANES * 4),
    )

    def full(a):
        return pl.BlockSpec(a.shape, lambda i: (0, 0))   # VMEM-resident weight

    return pl.pallas_call(
        _lenet5_fused_kernel,
        out_shape=jax.ShapeDtypeStruct((b_pad, LANES), jnp.float32),
        grid=grid,
        in_specs=[pl.BlockSpec((bt, _IMG), lambda i: (i, 0))]
                 + [full(a) for a in ws],
        out_specs=pl.BlockSpec((bt, LANES), lambda i: (i, 0)),
        compiler_params=pltpu.CompilerParams(
            # "parallel" lets the batch-tile axis shard across v7x's two
            # TensorCores; pltpu.CORE_PARALLEL is the knob to evaluate there.
            dimension_semantics=("parallel",),
            # Weights ~7.6 MB bf16 (<=15.2 MB if double-buffered) + per-tile
            # activations: well under v7x's 64 MiB physical VMEM.
            vmem_limit_bytes=32 * 1024 * 1024),
        cost_estimate=cost,
    )(x2d, *ws)


# ------------------------------ LeNet5 params -------------------------------

def init_lenet5_params(key, n_classes):
    """PyTorch-default-style U(-1/sqrt(fan_in), 1/sqrt(fan_in)) init (torch layouts)."""
    def u(k, shape, fan_in):
        bound = 1.0 / math.sqrt(fan_in)
        return jax.random.uniform(k, shape, jnp.float32, -bound, bound)

    ks = jax.random.split(key, 10)
    return {
        "conv1_w": u(ks[0], (6, 1, 5, 5), 25),
        "conv1_b": u(ks[1], (6,), 25),
        "conv2_w": u(ks[2], (16, 6, 5, 5), 150),
        "conv2_b": u(ks[3], (16,), 150),
        "fc1_w": u(ks[4], (120, 256), 256),     # torch Linear weight: (out, in)
        "fc1_b": u(ks[5], (120,), 256),
        "fc2_w": u(ks[6], (84, 120), 120),
        "fc2_b": u(ks[7], (84,), 120),
        "fc3_w": u(ks[8], (n_classes, 84), 84),
        "fc3_b": u(ks[9], (n_classes,), 84),
    }


def prepare_params(params):
    """One-time lowering of torch-layout params into the fused kernel operands.

    Both convs (and their 2x2 avg-pool corner gather) become dense,
    corner-major matmul weights; the torch (C,H,W) flatten permutation is
    folded into fc1's weight; everything is padded lane-dense and cast to the
    MXU dtype.  No per-forward weight transposes or im2col remain.
    """
    p = {k: np.asarray(v, np.float32) for k, v in params.items()}
    dh = np.array([0, 0, 1, 1])          # 2x2 pool-window corner offsets
    dw = np.array([0, 1, 0, 1])

    # conv1 (1->6, 5x5) on 28x28 -> 24x24 pre-pool -> pooled 12x12.
    # dense row = input pixel h*28+w ; col = corner*896 + (hp*12+wp)*6 + c.
    w1d = np.zeros((_IMG, _C1_COLS), np.float32)
    b1d = np.zeros((1, _C1_COLS), np.float32)
    cn, hp, wp, co, di, dj = np.meshgrid(
        np.arange(4), np.arange(12), np.arange(12), np.arange(6),
        np.arange(5), np.arange(5), indexing="ij")
    rows = (2 * hp + dh[cn] + di) * 28 + (2 * wp + dw[cn] + dj)
    cols = cn * _C1_BLOCK + (hp * 12 + wp) * 6 + co
    w1d[rows, cols] = p["conv1_w"][co, 0, di, dj]
    b1d[0, cols] = p["conv1_b"][co]

    # conv2 (6->16, 5x5) on pooled 12x12x6 -> 8x8 pre-pool -> pooled 4x4.
    # row = (i1*12 + j1)*6 + c_in  (matches conv1's pooled column layout);
    # col = corner*256 + (hp*4+wp)*16 + c_out  (== (h,w,c) flatten order).
    w2d = np.zeros((_C1_BLOCK, _C2_COLS), np.float32)
    b2d = np.zeros((1, _C2_COLS), np.float32)
    cn, hp, wp, co, ci, di, dj = np.meshgrid(
        np.arange(4), np.arange(4), np.arange(4), np.arange(16), np.arange(6),
        np.arange(5), np.arange(5), indexing="ij")
    rows = ((2 * hp + dh[cn] + di) * 12 + (2 * wp + dw[cn] + dj)) * 6 + ci
    cols = cn * _C2_BLOCK + (hp * 4 + wp) * 16 + co
    w2d[rows, cols] = p["conv2_w"][co, ci, di, dj]
    b2d[0, cols] = p["conv2_b"][co]

    # fc1: fold the torch (C,H,W)-order flatten into the weight so the kernel
    # consumes the pooled conv2 activations in their natural (h, w, c) order.
    j = np.arange(256)
    h_, w_, c_ = j // 64, (j // 16) % 4, j % 16
    perm = c_ * 16 + h_ * 4 + w_
    fw1 = _np_pad2d(p["fc1_w"][:, perm].T, 256, LANES)
    fb1 = _np_pad2d(p["fc1_b"].reshape(1, -1), 1, LANES)
    fw2 = _np_pad2d(p["fc2_w"].T, LANES, LANES)
    fb2 = _np_pad2d(p["fc2_b"].reshape(1, -1), 1, LANES)
    fw3 = _np_pad2d(p["fc3_w"].T, LANES, LANES)
    fb3 = _np_pad2d(p["fc3_b"].reshape(1, -1), 1, LANES)

    mxu = lambda a: jnp.asarray(a, MATMUL_DTYPE)
    f32 = lambda a: jnp.asarray(a, jnp.float32)
    return {"w1": mxu(w1d), "b1": f32(b1d), "w2": mxu(w2d), "b2": f32(b2d),
            "fw1": mxu(fw1), "fb1": f32(fb1), "fw2": mxu(fw2), "fb2": f32(fb2),
            "fw3": mxu(fw3), "fb3": f32(fb3)}


# ------------------------------ LeNet5 forward ------------------------------

def lenet5_forward(prepped, x_nchw, *, n_classes):
    b = x_nchw.shape[0]
    assert x_nchw.shape[1:] == (1, 28, 28), x_nchw.shape
    # NCHW, C=1: flatten to (B, 784) row-major (h, w); cast to bf16 ONCE before
    # anything else touches HBM (review: cast before the glue, not after).
    x2d = x_nchw.reshape(b, _IMG).astype(MATMUL_DTYPE)
    bt = _pick_batch_tile(b)
    b_pad = _round_up(b, bt)
    if b_pad != b:
        x2d = jnp.pad(x2d, ((0, b_pad - b), (0, 0)))
    logits = lenet5_fused_pallas(x2d, prepped, bt)       # (B_pad, 128) f32
    return logits[:b, :n_classes]


# ------------------------------ pure-JAX reference --------------------------

def lenet5_reference(params, x_nchw):
    """Pure-JAX f32 reference of the PyTorch LeNet5 forward (validation only)."""
    def avgpool2(t):
        b, c, hh, ww = t.shape
        return t.reshape(b, c, hh // 2, 2, ww // 2, 2).mean(axis=(3, 5))

    dn = ("NCHW", "OIHW", "NCHW")
    h = jax.lax.conv_general_dilated(x_nchw, params["conv1_w"], (1, 1), "VALID",
                                     dimension_numbers=dn)
    h = avgpool2(jnp.tanh(h + params["conv1_b"][None, :, None, None]))
    h = jax.lax.conv_general_dilated(h, params["conv2_w"], (1, 1), "VALID",
                                     dimension_numbers=dn)
    h = avgpool2(jnp.tanh(h + params["conv2_b"][None, :, None, None]))
    h = h.reshape(h.shape[0], -1)                         # torch flatten (C,H,W)
    h = jnp.tanh(h @ params["fc1_w"].T + params["fc1_b"])
    h = jnp.tanh(h @ params["fc2_w"].T + params["fc2_b"])
    return h @ params["fc3_w"].T + params["fc3_b"]


# ---------------------------------- main ------------------------------------

if __name__ == "__main__":
    n_classes = 10
    batch = 2  # LeNet5's Linear(256, ...) forces 28x28 single-channel input.

    key = jax.random.PRNGKey(0)
    k_params, k_x = jax.random.split(key)
    params = init_lenet5_params(k_params, n_classes)
    prepped = prepare_params(params)                 # one-time, outside the jit
    x = jax.random.normal(k_x, (batch, 1, 28, 28), dtype=jnp.float32)

    fwd = jax.jit(functools.partial(lenet5_forward, n_classes=n_classes))
    logits = jax.block_until_ready(fwd(prepped, x))

    assert logits.shape == (batch, n_classes), logits.shape
    assert logits.dtype == jnp.float32
    assert bool(jnp.all(jnp.isfinite(logits)))

    # Numerics check vs the pure-JAX f32 reference; bf16 MXU inputs give
    # ~1e-2-level relative drift, so tolerances are set accordingly.
    ref = jax.block_until_ready(jax.jit(lenet5_reference)(params, x))
    np.testing.assert_allclose(np.asarray(logits), np.asarray(ref),
                               rtol=0.05, atol=0.03)

    print("KERNEL_OK")
</pallas_src>

<mosaic_0001>
module attributes {stable_mosaic.version = 11 : i64} {
  func.func @_lenet5_fused_kernel(%arg0: i32, %arg1: memref<8x784xbf16, #tpu.memory_space<vmem>>, %arg2: memref<784x3584xbf16, #tpu.memory_space<vmem>>, %arg3: memref<1x3584xf32, #tpu.memory_space<vmem>>, %arg4: memref<896x1024xbf16, #tpu.memory_space<vmem>>, %arg5: memref<1x1024xf32, #tpu.memory_space<vmem>>, %arg6: memref<256x128xbf16, #tpu.memory_space<vmem>>, %arg7: memref<1x128xf32, #tpu.memory_space<vmem>>, %arg8: memref<128x128xbf16, #tpu.memory_space<vmem>>, %arg9: memref<1x128xf32, #tpu.memory_space<vmem>>, %arg10: memref<128x128xbf16, #tpu.memory_space<vmem>>, %arg11: memref<1x128xf32, #tpu.memory_space<vmem>>, %arg12: memref<8x128xf32, #tpu.memory_space<vmem>>) attributes {dimension_semantics = [#tpu.dimension_semantics<parallel>], iteration_bounds = array<i64: 1>, scalar_prefetch = 0 : i64, scratch_operands = 0 : i64, tpu.core_type = #tpu.core_type<tc>, window_params = [{transform_indices = @transform_0, window_bounds = array<i64: 8, 784>}, {pipeline_mode = #tpu.pipeline_mode<synchronous>, transform_indices = @transform_1, window_bounds = array<i64: 784, 3584>}, {pipeline_mode = #tpu.pipeline_mode<synchronous>, transform_indices = @transform_2, window_bounds = array<i64: 1, 3584>}, {pipeline_mode = #tpu.pipeline_mode<synchronous>, transform_indices = @transform_3, window_bounds = array<i64: 896, 1024>}, {pipeline_mode = #tpu.pipeline_mode<synchronous>, transform_indices = @transform_4, window_bounds = array<i64: 1, 1024>}, {pipeline_mode = #tpu.pipeline_mode<synchronous>, transform_indices = @transform_5, window_bounds = array<i64: 256, 128>}, {pipeline_mode = #tpu.pipeline_mode<synchronous>, transform_indices = @transform_6, window_bounds = array<i64: 1, 128>}, {pipeline_mode = #tpu.pipeline_mode<synchronous>, transform_indices = @transform_7, window_bounds = array<i64: 128, 128>}, {pipeline_mode = #tpu.pipeline_mode<synchronous>, transform_indices = @transform_8, window_bounds = array<i64: 1, 128>}, {pipeline_mode = #tpu.pipeline_mode<synchronous>, transform_indices = @transform_9, window_bounds = array<i64: 128, 128>}, {pipeline_mode = #tpu.pipeline_mode<synchronous>, transform_indices = @transform_10, window_bounds = array<i64: 1, 128>}, {transform_indices = @transform_11, window_bounds = array<i64: 8, 128>}]} {
    %c0 = arith.constant 0 : index
    %c0_0 = arith.constant 0 : index
    %0 = vector.load %arg1[%c0, %c0_0] : memref<8x784xbf16, #tpu.memory_space<vmem>>, vector<8x784xbf16>
    %c0_1 = arith.constant 0 : index
    %c0_2 = arith.constant 0 : index
    %1 = vector.load %arg2[%c0_1, %c0_2] : memref<784x3584xbf16, #tpu.memory_space<vmem>>, vector<784x3584xbf16>
    %cst = arith.constant dense<0.000000e+00> : vector<8x3584xf32>
    %2 = tpu.matmul %0, %1, %cst {dimension_numbers = #tpu.dot_dimension_numbers<[1], [0], [0], [1], [0, 0, 1, 1], [], []>} : vector<8x784xbf16>, vector<784x3584xbf16>, vector<8x3584xf32> -> vector<8x3584xf32>
    %c0_3 = arith.constant 0 : index
    %c0_4 = arith.constant 0 : index
    %3 = vector.load %arg3[%c0_3, %c0_4] : memref<1x3584xf32, #tpu.memory_space<vmem>>, vector<1x3584xf32>
    %4 = vector.broadcast %3 : vector<1x3584xf32> to vector<8x3584xf32>
    %5 = arith.addf %2, %4 : vector<8x3584xf32>
    %6 = math.tanh %5 : vector<8x3584xf32>
    %7 = vector.extract_strided_slice %6 {offsets = [0, 0], sizes = [8, 896], strides = [1, 1]} : vector<8x3584xf32> to vector<8x896xf32>
    %8 = vector.extract_strided_slice %6 {offsets = [0, 896], sizes = [8, 896], strides = [1, 1]} : vector<8x3584xf32> to vector<8x896xf32>
    %9 = arith.addf %7, %8 : vector<8x896xf32>
    %10 = vector.extract_strided_slice %6 {offsets = [0, 1792], sizes = [8, 896], strides = [1, 1]} : vector<8x3584xf32> to vector<8x896xf32>
    %11 = arith.addf %9, %10 : vector<8x896xf32>
    %12 = vector.extract_strided_slice %6 {offsets = [0, 2688], sizes = [8, 896], strides = [1, 1]} : vector<8x3584xf32> to vector<8x896xf32>
    %13 = arith.addf %11, %12 : vector<8x896xf32>
    %cst_5 = arith.constant 2.500000e-01 : f32
    %14 = vector.broadcast %cst_5 : f32 to vector<8x896xf32>
    %15 = arith.mulf %13, %14 : vector<8x896xf32>
    %16 = arith.truncf %15 : vector<8x896xf32> to vector<8x896xbf16>
    %c0_6 = arith.constant 0 : index
    %c0_7 = arith.constant 0 : index
    %17 = vector.load %arg4[%c0_6, %c0_7] : memref<896x1024xbf16, #tpu.memory_space<vmem>>, vector<896x1024xbf16>
    %cst_8 = arith.constant dense<0.000000e+00> : vector<8x1024xf32>
    %18 = tpu.matmul %16, %17, %cst_8 {dimension_numbers = #tpu.dot_dimension_numbers<[1], [0], [0], [1], [0, 0, 1, 1], [], []>} : vector<8x896xbf16>, vector<896x1024xbf16>, vector<8x1024xf32> -> vector<8x1024xf32>
    %c0_9 = arith.constant 0 : index
    %c0_10 = arith.constant 0 : index
    %19 = vector.load %arg5[%c0_9, %c0_10] : memref<1x1024xf32, #tpu.memory_space<vmem>>, vector<1x1024xf32>
    %20 = vector.broadcast %19 : vector<1x1024xf32> to vector<8x1024xf32>
    %21 = arith.addf %18, %20 : vector<8x1024xf32>
    %22 = math.tanh %21 : vector<8x1024xf32>
    %23 = vector.extract_strided_slice %22 {offsets = [0, 0], sizes = [8, 256], strides = [1, 1]} : vector<8x1024xf32> to vector<8x256xf32>
    %24 = vector.extract_strided_slice %22 {offsets = [0, 256], sizes = [8, 256], strides = [1, 1]} : vector<8x1024xf32> to vector<8x256xf32>
    %25 = arith.addf %23, %24 : vector<8x256xf32>
    %26 = vector.extract_strided_slice %22 {offsets = [0, 512], sizes = [8, 256], strides = [1, 1]} : vector<8x1024xf32> to vector<8x256xf32>
    %27 = arith.addf %25, %26 : vector<8x256xf32>
    %28 = vector.extract_strided_slice %22 {offsets = [0, 768], sizes = [8, 256], strides = [1, 1]} : vector<8x1024xf32> to vector<8x256xf32>
    %29 = arith.addf %27, %28 : vector<8x256xf32>
    %cst_11 = arith.constant 2.500000e-01 : f32
    %30 = vector.broadcast %cst_11 : f32 to vector<8x256xf32>
    %31 = arith.mulf %29, %30 : vector<8x256xf32>
    %32 = arith.truncf %31 : vector<8x256xf32> to vector<8x256xbf16>
    %c0_12 = arith.constant 0 : index
    %c0_13 = arith.constant 0 : index
    %33 = vector.load %arg6[%c0_12, %c0_13] : memref<256x128xbf16, #tpu.memory_space<vmem>>, vector<256x128xbf16>
    %cst_14 = arith.constant dense<0.000000e+00> : vector<8x128xf32>
    %34 = tpu.matmul %32, %33, %cst_14 {dimension_numbers = #tpu.dot_dimension_numbers<[1], [0], [0], [1], [0, 0, 1, 1], [], []>} : vector<8x256xbf16>, vector<256x128xbf16>, vector<8x128xf32> -> vector<8x128xf32>
    %c0_15 = arith.constant 0 : index
    %c0_16 = arith.constant 0 : index
    %35 = vector.load %arg7[%c0_15, %c0_16] : memref<1x128xf32, #tpu.memory_space<vmem>>, vector<1x128xf32>
    %36 = vector.broadcast %35 : vector<1x128xf32> to vector<8x128xf32>
    %37 = arith.addf %34, %36 : vector<8x128xf32>
    %38 = math.tanh %37 : vector<8x128xf32>
    %39 = arith.truncf %38 : vector<8x128xf32> to vector<8x128xbf16>
    %c0_17 = arith.constant 0 : index
    %c0_18 = arith.constant 0 : index
    %40 = vector.load %arg8[%c0_17, %c0_18] : memref<128x128xbf16, #tpu.memory_space<vmem>>, vector<128x128xbf16>
    %cst_19 = arith.constant dense<0.000000e+00> : vector<8x128xf32>
    %41 = tpu.matmul %39, %40, %cst_19 {dimension_numbers = #tpu.dot_dimension_numbers<[1], [0], [0], [1], [0, 0, 1, 1], [], []>} : vector<8x128xbf16>, vector<128x128xbf16>, vector<8x128xf32> -> vector<8x128xf32>
    %c0_20 = arith.constant 0 : index
    %c0_21 = arith.constant 0 : index
    %42 = vector.load %arg9[%c0_20, %c0_21] : memref<1x128xf32, #tpu.memory_space<vmem>>, vector<1x128xf32>
    %43 = vector.broadcast %42 : vector<1x128xf32> to vector<8x128xf32>
    %44 = arith.addf %41, %43 : vector<8x128xf32>
    %45 = math.tanh %44 : vector<8x128xf32>
    %46 = arith.truncf %45 : vector<8x128xf32> to vector<8x128xbf16>
    %c0_22 = arith.constant 0 : index
    %c0_23 = arith.constant 0 : index
    %47 = vector.load %arg10[%c0_22, %c0_23] : memref<128x128xbf16, #tpu.memory_space<vmem>>, vector<128x128xbf16>
    %cst_24 = arith.constant dense<0.000000e+00> : vector<8x128xf32>
    %48 = tpu.matmul %46, %47, %cst_24 {dimension_numbers = #tpu.dot_dimension_numbers<[1], [0], [0], [1], [0, 0, 1, 1], [], []>} : vector<8x128xbf16>, vector<128x128xbf16>, vector<8x128xf32> -> vector<8x128xf32>
    %c0_25 = arith.constant 0 : index
    %c0_26 = arith.constant 0 : index
    %49 = vector.load %arg11[%c0_25, %c0_26] : memref<1x128xf32, #tpu.memory_space<vmem>>, vector<1x128xf32>
    %50 = vector.broadcast %49 : vector<1x128xf32> to vector<8x128xf32>
    %51 = arith.addf %48, %50 : vector<8x128xf32>
    %c0_27 = arith.constant 0 : index
    %c0_28 = arith.constant 0 : index
    %52 = vector.load %arg12[%c0_27, %c0_28] : memref<8x128xf32, #tpu.memory_space<vmem>>, vector<8x128xf32>
    tpu.vector_store %arg12[%c0_27, %c0_28], %51 {strides = array<i32>} : memref<8x128xf32, #tpu.memory_space<vmem>>, vector<8x128xf32>,
    return
  }
  func.func @transform_0(%arg0: i32) -> (i32, i32) {
    %c0_i32 = arith.constant 0 : i32
    %c0_i32_0 = arith.constant 0 : i32
    return %arg0, %c0_i32 : i32, i32
  }
  func.func @transform_1(%arg0: i32) -> (i32, i32) {
    %c0_i32 = arith.constant 0 : i32
    %c0_i32_0 = arith.constant 0 : i32
    %c0_i32_1 = arith.constant 0 : i32
    return %c0_i32, %c0_i32_0 : i32, i32
  }
  func.func @transform_2(%arg0: i32) -> (i32, i32) {
    %c0_i32 = arith.constant 0 : i32
    %c0_i32_0 = arith.constant 0 : i32
    %c0_i32_1 = arith.constant 0 : i32
    return %c0_i32, %c0_i32_0 : i32, i32
  }
  func.func @transform_3(%arg0: i32) -> (i32, i32) {
    %c0_i32 = arith.constant 0 : i32
    %c0_i32_0 = arith.constant 0 : i32
    %c0_i32_1 = arith.constant 0 : i32
    return %c0_i32, %c0_i32_0 : i32, i32
  }
  func.func @transform_4(%arg0: i32) -> (i32, i32) {
    %c0_i32 = arith.constant 0 : i32
    %c0_i32_0 = arith.constant 0 : i32
    %c0_i32_1 = arith.constant 0 : i32
    return %c0_i32, %c0_i32_0 : i32, i32
  }
  func.func @transform_5(%arg0: i32) -> (i32, i32) {
    %c0_i32 = arith.constant 0 : i32
    %c0_i32_0 = arith.constant 0 : i32
    %c0_i32_1 = arith.constant 0 : i32
    return %c0_i32, %c0_i32_0 : i32, i32
  }
  func.func @transform_6(%arg0: i32) -> (i32, i32) {
    %c0_i32 = arith.constant 0 : i32
    %c0_i32_0 = arith.constant 0 : i32
    %c0_i32_1 = arith.constant 0 : i32
    return %c0_i32, %c0_i32_0 : i32, i32
  }
  func.func @transform_7(%arg0: i32) -> (i32, i32) {
    %c0_i32 = arith.constant 0 : i32
    %c0_i32_0 = arith.constant 0 : i32
    %c0_i32_1 = arith.constant 0 : i32
    return %c0_i32, %c0_i32_0 : i32, i32
  }
  func.func @transform_8(%arg0: i32) -> (i32, i32) {
    %c0_i32 = arith.constant 0 : i32
    %c0_i32_0 = arith.constant 0 : i32
    %c0_i32_1 = arith.constant 0 : i32
    return %c0_i32, %c0_i32_0 : i32, i32
  }
  func.func @transform_9(%arg0: i32) -> (i32, i32) {
    %c0_i32 = arith.constant 0 : i32
    %c0_i32_0 = arith.constant 0 : i32
    %c0_i32_1 = arith.constant 0 : i32
    return %c0_i32, %c0_i32_0 : i32, i32
  }
  func.func @transform_10(%arg0: i32) -> (i32, i32) {
    %c0_i32 = arith.constant 0 : i32
    %c0_i32_0 = arith.constant 0 : i32
    %c0_i32_1 = arith.constant 0 : i32
    return %c0_i32, %c0_i32_0 : i32, i32
  }
  func.func @transform_11(%arg0: i32) -> (i32, i32) {
    %c0_i32 = arith.constant 0 : i32
    %c0_i32_0 = arith.constant 0 : i32
    return %arg0, %c0_i32 : i32, i32
  }
}

</mosaic_0001>

<llo_original>
// kernel: lenet5_forward.1
$region0: #{lenet5_forward.1}
  #allocation0 [shape = 'u32[]', space=smem, size = 0x4, offset = 0x4, fixed_abs, tag = 'smem constant byte address 0x4 - core index']
  #allocation1 [shape = 'u32[144,128]{1,0:T(1,128)}', space=vmem, size = 0x12000, scoped, tag = 'internal scratch']
  %s0 = inlined_call_operand.vmem [shape: bf16[8,784], index: 0, kind: input, shape index: {}]
  %s1 = inlined_call_operand.hbm [shape: bf16[784,3584], index: 1, kind: input, shape index: {}]
  %s2 = inlined_call_operand.hbm [shape: f32[1,3584], index: 2, kind: input, shape index: {}]
  %s3 = inlined_call_operand.hbm [shape: bf16[896,1024], index: 3, kind: input, shape index: {}]
  %s4 = inlined_call_operand.hbm [shape: f32[1,1024], index: 4, kind: input, shape index: {}]
  %s5 = inlined_call_operand.hbm [shape: bf16[256,128], index: 5, kind: input, shape index: {}]
  %s6 = inlined_call_operand.hbm [shape: f32[1,128], index: 6, kind: input, shape index: {}]
  %s7 = inlined_call_operand.hbm [shape: bf16[128,128], index: 7, kind: input, shape index: {}]
  %s8 = inlined_call_operand.hbm [shape: f32[1,128], index: 8, kind: input, shape index: {}]
  %s9 = inlined_call_operand.hbm [shape: bf16[128,128], index: 9, kind: input, shape index: {}]
  %s10 = inlined_call_operand.hbm [shape: f32[1,128], index: 10, kind: input, shape index: {}]
  %s11 = inlined_call_operand.vmem [shape: f32[8,128], index: 11, kind: output, shape index: {}]
  %s12 = sld [smem:[#allocation0]]
  $region94: #{lenet5_forward.1} parent=0
    _
  %s14 = ssub.s32 1, %s12
  %s15 = scalar_select 0, %s14, %s12
  $region1: #{lenet5_forward.1} parent=0
    #allocation2 [shape = 'u8[5619712]{0}', space=vmem, size = 0x55c000, scoped, tag = 'input window, operand 1, single buffered']
    #allocation3 [shape = 's32[1]{0}', space=sflag, size = 0x4, scoped, tag = 'scoped memory for lenet5_forward.1']
    #allocation4 [shape = 'u8[14336]{0}', space=vmem, size = 0x3800, scoped, tag = 'input window, operand 2, single buffered']
    #allocation5 [shape = 's32[1]{0}', space=sflag, size = 0x4, scoped, tag = 'scoped memory for lenet5_forward.1']
    #allocation6 [shape = 'u8[1835008]{0}', space=vmem, size = 0x1c0000, scoped, tag = 'input window, operand 3, single buffered']
    #allocation7 [shape = 'u8[4096]{0}', space=vmem, size = 0x1000, scoped, tag = 'input window, operand 4, single buffered']
    #allocation8 [shape = 's32[1]{0}', space=sflag, size = 0x4, scoped, tag = 'scoped memory for lenet5_forward.1']
    #allocation9 [shape = 'u8[65536]{0}', space=vmem, size = 0x10000, scoped, tag = 'input window, operand 5, single buffered']
    #allocation10 [shape = 'u8[512]{0}', space=vmem, size = 0x400, scoped, tag = 'input window, operand 6, single buffered']
    #allocation11 [shape = 's32[1]{0}', space=sflag, size = 0x4, scoped, tag = 'scoped memory for lenet5_forward.1']
    #allocation12 [shape = 'u8[32768]{0}', space=vmem, size = 0x8000, scoped, tag = 'input window, operand 7, single buffered']
    #allocation13 [shape = 'u8[512]{0}', space=vmem, size = 0x400, scoped, tag = 'input window, operand 8, single buffered']
    #allocation14 [shape = 's32[1]{0}', space=sflag, size = 0x4, scoped, tag = 'scoped memory for lenet5_forward.1']
    #allocation15 [shape = 'u8[32768]{0}', space=vmem, size = 0x8000, scoped, tag = 'input window, operand 9, single buffered']
    #allocation16 [shape = 'u8[512]{0}', space=vmem, size = 0x400, scoped, tag = 'input window, operand 10, single buffered']
    #allocation17 [shape = 's32[1]{0}', space=sflag, size = 0x4, scoped, tag = 'scoped memory for lenet5_forward.1']
    %16 = vsyncpa [#allocation3], 0
    %17 = vsyncpa [#allocation5], 0
    %18 = vsyncpa [#allocation8], 0
    %19 = vsyncpa [#allocation11], 0
    %20 = vsyncpa [#allocation14], 0
    %21 = vsyncpa [#allocation17], 0
    // Predicated region
    $region2: #{lenet5_forward.1} parent=1 // pred_check
      _
    $region3: #{lenet5_forward.1} parent=1 // pred_check_branch
      %23 = sbr.rel (0) target = $region5
    $region4: #{lenet5_forward.1} parent=1 // pred_region
      _
    $region5: #{lenet5_forward.1} parent=1 // pred_fallthru
      _
    // Predicated region
    $region6: #{lenet5_forward.1} parent=1 // pred_check
      _
    $region7: #{lenet5_forward.1} parent=1 // pred_check_branch
      %25 = sbr.rel (0) target = $region9
    $region8: #{lenet5_forward.1} parent=1 // pred_region
      %s27 = ssub.s32 175616, 175616
      %28 = vsyncadd [#allocation3], %s27
      %s29 = sshll.u32 [#allocation2], 4
      %s30 = int_to_ptr.vmem [resolvable:$true] %s29
      %35 = dma.hbm_to_vmem [thread:$0]  %s1, 175616, %s30, [#allocation3], 1792, 1792, 112
    $region9: #{lenet5_forward.1} parent=1 // pred_fallthru
      _
    // Predicated region
    $region10: #{lenet5_forward.1} parent=1 // pred_check
      _
    $region11: #{lenet5_forward.1} parent=1 // pred_check_branch
      %37 = sbr.rel (0) target = $region13
    $region12: #{lenet5_forward.1} parent=1 // pred_region
      %s39 = ssub.s32 448, 448
      %40 = vsyncadd [#allocation5], %s39
      %s42 = sshll.u32 [#allocation4], 4
      %s43 = int_to_ptr.vmem [resolvable:$true] %s42
      %45 = dma.hbm_to_vmem [thread:$0]  %s2, 448, %s43, [#allocation5]
    $region13: #{lenet5_forward.1} parent=1 // pred_fallthru
      _
    // Predicated region
    $region14: #{lenet5_forward.1} parent=1 // pred_check
      _
    $region15: #{lenet5_forward.1} parent=1 // pred_check_branch
      %47 = sbr.rel (0) target = $region17
    $region16: #{lenet5_forward.1} parent=1 // pred_region
      %s49 = ssub.s32 57344, 57344
      %50 = vsyncadd [#allocation5], %s49
      %s51 = sshll.u32 [#allocation6], 4
      %s52 = int_to_ptr.vmem [resolvable:$true] %s51
      %57 = dma.hbm_to_vmem [thread:$0]  %s3, 57344, %s52, [#allocation5], 512, 512, 32
    $region17: #{lenet5_forward.1} parent=1 // pred_fallthru
      _
    // Predicated region
    $region18: #{lenet5_forward.1} parent=1 // pred_check
      _
    $region19: #{lenet5_forward.1} parent=1 // pred_check_branch
      %59 = sbr.rel (0) target = $region21
    $region20: #{lenet5_forward.1} parent=1 // pred_region
      %s61 = ssub.s32 128, 128
      %62 = vsyncadd [#allocation8], %s61
      %s64 = sshll.u32 [#allocation7], 4
      %s65 = int_to_ptr.vmem [resolvable:$true] %s64
      %67 = dma.hbm_to_vmem [thread:$0]  %s4, 128, %s65, [#allocation8]
    $region21: #{lenet5_forward.1} parent=1 // pred_fallthru
      _
    // Predicated region
    $region22: #{lenet5_forward.1} parent=1 // pred_check
      _
    $region23: #{lenet5_forward.1} parent=1 // pred_check_branch
      %69 = sbr.rel (0) target = $region25
    $region24: #{lenet5_forward.1} parent=1 // pred_region
      %s71 = ssub.s32 2048, 2048
      %72 = vsyncadd [#allocation8], %s71
      %s73 = sshll.u32 [#allocation9], 4
      %s74 = int_to_ptr.vmem [resolvable:$true] %s73
      %79 = dma.hbm_to_vmem [thread:$0]  %s5, 2048, %s74, [#allocation8], 64, 64, 4
    $region25: #{lenet5_forward.1} parent=1 // pred_fallthru
      _
    // Predicated region
    $region26: #{lenet5_forward.1} parent=1 // pred_check
      _
    $region27: #{lenet5_forward.1} parent=1 // pred_check_branch
      %81 = sbr.rel (0) target = $region29
    $region28: #{lenet5_forward.1} parent=1 // pred_region
      %s83 = ssub.s32 16, 16
      %84 = vsyncadd [#allocation11], %s83
      %s86 = sshll.u32 [#allocation10], 4
      %s87 = int_to_ptr.vmem [resolvable:$true] %s86
      %89 = dma.hbm_to_vmem [thread:$0]  %s6, 16, %s87, [#allocation11]
    $region29: #{lenet5_forward.1} parent=1 // pred_fallthru
      _
    // Predicated region
    $region30: #{lenet5_forward.1} parent=1 // pred_check
      _
    $region31: #{lenet5_forward.1} parent=1 // pred_check_branch
      %91 = sbr.rel (0) target = $region33
    $region32: #{lenet5_forward.1} parent=1 // pred_region
      %s93 = ssub.s32 1024, 1024
      %94 = vsyncadd [#allocation11], %s93
      %s95 = sshll.u32 [#allocation12], 4
      %s96 = int_to_ptr.vmem [resolvable:$true] %s95
      %101 = dma.hbm_to_vmem [thread:$0]  %s7, 1024, %s96, [#allocation11], 64, 64, 4
    $region33: #{lenet5_forward.1} parent=1 // pred_fallthru
      _
    // Predicated region
    $region34: #{lenet5_forward.1} parent=1 // pred_check
      _
    $region35: #{lenet5_forward.1} parent=1 // pred_check_branch
      %103 = sbr.rel (0) target = $region37
    $region36: #{lenet5_forward.1} parent=1 // pred_region
      %s105 = ssub.s32 16, 16
      %106 = vsyncadd [#allocation14], %s105
      %s108 = sshll.u32 [#allocation13], 4
      %s109 = int_to_ptr.vmem [resolvable:$true] %s108
      %111 = dma.hbm_to_vmem [thread:$0]  %s8, 16, %s109, [#allocation14]
    $region37: #{lenet5_forward.1} parent=1 // pred_fallthru
      _
    // Predicated region
    $region38: #{lenet5_forward.1} parent=1 // pred_check
      _
    $region39: #{lenet5_forward.1} parent=1 // pred_check_branch
      %113 = sbr.rel (0) target = $region41
    $region40: #{lenet5_forward.1} parent=1 // pred_region
      %s115 = ssub.s32 1024, 1024
      %116 = vsyncadd [#allocation14], %s115
      %s117 = sshll.u32 [#allocation15], 4
      %s118 = int_to_ptr.vmem [resolvable:$true] %s117
      %123 = dma.hbm_to_vmem [thread:$0]  %s9, 1024, %s118, [#allocation14], 64, 64, 4
    $region41: #{lenet5_forward.1} parent=1 // pred_fallthru
      _
    // Predicated region
    $region42: #{lenet5_forward.1} parent=1 // pred_check
      _
    $region43: #{lenet5_forward.1} parent=1 // pred_check_branch
      %125 = sbr.rel (0) target = $region45
    $region44: #{lenet5_forward.1} parent=1 // pred_region
      %s127 = ssub.s32 16, 16
      %128 = vsyncadd [#allocation17], %s127
      %s130 = sshll.u32 [#allocation16], 4
      %s131 = int_to_ptr.vmem [resolvable:$true] %s130
      %133 = dma.hbm_to_vmem [thread:$0]  %s10, 16, %s131, [#allocation17]
    $region45: #{lenet5_forward.1} parent=1 // pred_fallthru
      _
    // Predicated region
    $region46: #{lenet5_forward.1} parent=1 // pred_check
      _
    $region47: #{lenet5_forward.1} parent=1 // pred_check_branch
      %135 = sbr.rel (0) target = $region49
    $region48: #{lenet5_forward.1} parent=1 // pred_region
      %136 = dma.done [#allocation3], 175616
    $region49: #{lenet5_forward.1} parent=1 // pred_fallthru
      _
    // Predicated region
    $region50: #{lenet5_forward.1} parent=1 // pred_check
      _
    $region51: #{lenet5_forward.1} parent=1 // pred_check_branch
      %138 = sbr.rel (0) target = $region53
    $region52: #{lenet5_forward.1} parent=1 // pred_region
      %139 = dma.done [#allocation5], 448
    $region53: #{lenet5_forward.1} parent=1 // pred_fallthru
      _
    // Predicated region
    $region54: #{lenet5_forward.1} parent=1 // pred_check
      _
    $region55: #{lenet5_forward.1} parent=1 // pred_check_branch
      %141 = sbr.rel (0) target = $region57
    $region56: #{lenet5_forward.1} parent=1 // pred_region
      %142 = dma.done [#allocation5], 57344
    $region57: #{lenet5_forward.1} parent=1 // pred_fallthru
      _
    // Predicated region
    $region58: #{lenet5_forward.1} parent=1 // pred_check
      _
    $region59: #{lenet5_forward.1} parent=1 // pred_check_branch
      %144 = sbr.rel (0) target = $region61
    $region60: #{lenet5_forward.1} parent=1 // pred_region
      %145 = dma.done [#allocation8], 128
    $region61: #{lenet5_forward.1} parent=1 // pred_fallthru
      _
    // Predicated region
    $region62: #{lenet5_forward.1} parent=1 // pred_check
      _
    $region63: #{lenet5_forward.1} parent=1 // pred_check_branch
      %147 = sbr.rel (0) target = $region65
    $region64: #{lenet5_forward.1} parent=1 // pred_region
      %148 = dma.done [#allocation8], 2048
    $region65: #{lenet5_forward.1} parent=1 // pred_fallthru
      _
    // Predicated region
    $region66: #{lenet5_forward.1} parent=1 // pred_check
      _
    $region67: #{lenet5_forward.1} parent=1 // pred_check_branch
      %150 = sbr.rel (0) target = $region69
    $region68: #{lenet5_forward.1} parent=1 // pred_region
      %151 = dma.done [#allocation11], 16
    $region69: #{lenet5_forward.1} parent=1 // pred_fallthru
      _
    // Predicated region
    $region70: #{lenet5_forward.1} parent=1 // pred_check
      _
    $region71: #{lenet5_forward.1} parent=1 // pred_check_branch
      %153 = sbr.rel (0) target = $region73
    $region72: #{lenet5_forward.1} parent=1 // pred_region
      %154 = dma.done [#allocation11], 1024
    $region73: #{lenet5_forward.1} parent=1 // pred_fallthru
      _
    // Predicated region
    $region74: #{lenet5_forward.1} parent=1 // pred_check
      _
    $region75: #{lenet5_forward.1} parent=1 // pred_check_branch
      %156 = sbr.rel (0) target = $region77
    $region76: #{lenet5_forward.1} parent=1 // pred_region
      %157 = dma.done [#allocation14], 16
    $region77: #{lenet5_forward.1} parent=1 // pred_fallthru
      _
    // Predicated region
    $region78: #{lenet5_forward.1} parent=1 // pred_check
      _
    $region79: #{lenet5_forward.1} parent=1 // pred_check_branch
      %159 = sbr.rel (0) target = $region81
    $region80: #{lenet5_forward.1} parent=1 // pred_region
      %160 = dma.done [#allocation14], 1024
    $region81: #{lenet5_forward.1} parent=1 // pred_fallthru
      _
    // Predicated region
    $region82: #{lenet5_forward.1} parent=1 // pred_check
      _
    $region83: #{lenet5_forward.1} parent=1 // pred_check_branch
      %162 = sbr.rel (0) target = $region85
    $region84: #{lenet5_forward.1} parent=1 // pred_region
      %163 = dma.done [#allocation17], 16
    $region85: #{lenet5_forward.1} parent=1 // pred_fallthru
      _
    %v165 = vld [vmem:[%s0] sm:$0xff]
    %v166 = vld [vmem:[%s0 + $0x8] sm:$0xff]
    %v167 = vld [vmem:[%s0 + $0x10] sm:$0xff]
    %v168 = vld [vmem:[%s0 + $0x18] sm:$0xf]
    %v169 = vld [vmem:[#allocation2] sm:$0xff]
    %v170 = vld [vmem:[#allocation2 + $0x8] sm:$0xff]
    %v171 = vld [vmem:[#allocation2 + $0x10] sm:$0xff]
    %v172 = vld [vmem:[#allocation2 + $0x18] sm:$0xff]
    %v173 = vld [vmem:[#allocation2 + $0x20] sm:$0xff]
    %v174 = vld [vmem:[#allocation2 + $0x28] sm:$0xff]
    %v175 = vld [vmem:[#allocation2 + $0x30] sm:$0xff]
    %v176 = vld [vmem:[#allocation2 + $0x38] sm:$0xff]
    %v177 = vld [vmem:[#allocation2 + $0x40] sm:$0xff]
    %v178 = vld [vmem:[#allocation2 + $0x48] sm:$0xff]
    %v179 = vld [vmem:[#allocation2 + $0x50] sm:$0xff]
    %v180 = vld [vmem:[#allocation2 + $0x58] sm:$0xff]
    %v181 = vld [vmem:[#allocation2 + $0x60] sm:$0xff]
    %v182 = vld [vmem:[#allocation2 + $0x68] sm:$0xff]
    %v183 = vld [vmem:[#allocation2 + $0x70] sm:$0xff]
    %v184 = vld [vmem:[#allocation2 + $0x78] sm:$0xff]
    %v185 = vld [vmem:[#allocation2 + $0x80] sm:$0xff]
    %v186 = vld [vmem:[#allocation2 + $0x88] sm:$0xff]
    %v187 = vld [vmem:[#allocation2 + $0x90] sm:$0xff]
    %v188 = vld [vmem:[#allocation2 + $0x98] sm:$0xff]
    %v189 = vld [vmem:[#allocation2 + $0xa0] sm:$0xff]
    %v190 = vld [vmem:[#allocation2 + $0xa8] sm:$0xff]
    %v191 = vld [vmem:[#allocation2 + $0xb0] sm:$0xff]
    %v192 = vld [vmem:[#allocation2 + $0xb8] sm:$0xff]
    %v193 = vld [vmem:[#allocation2 + $0xc0] sm:$0xff]
    %v194 = vld [vmem:[#allocation2 + $0xc8] sm:$0xff]
    %v195 = vld [vmem:[#allocation2 + $0xd0] sm:$0xff]
    %v196 = vld [vmem:[#allocation2 + $0xd8] sm:$0xff]
    %v197 = vld [vmem:[#allocation2 + $0xe0] sm:$0xff]
    %v198 = vld [vmem:[#allocation2 + $0xe8] sm:$0xff]
    %v199 = vld [vmem:[#allocation2 + $0xf0] sm:$0xff]
    %v200 = vld [vmem:[#allocation2 + $0xf8] sm:$0xff]
    %v201 = vld [vmem:[#allocation2 + $0x100] sm:$0xff]
    %v202 = vld [vmem:[#allocation2 + $0x108] sm:$0xff]
    %v203 = vld [vmem:[#allocation2 + $0x110] sm:$0xff]
    %v204 = vld [vmem:[#allocation2 + $0x118] sm:$0xff]
    %v205 = vld [vmem:[#allocation2 + $0x120] sm:$0xff]
    %v206 = vld [vmem:[#allocation2 + $0x128] sm:$0xff]
    %v207 = vld [vmem:[#allocation2 + $0x130] sm:$0xff]
    %v208 = vld [vmem:[#allocation2 + $0x138] sm:$0xff]
    %v209 = vld [vmem:[#allocation2 + $0x140] sm:$0xff]
    %v210 = vld [vmem:[#allocation2 + $0x148] sm:$0xff]
    %v211 = vld [vmem:[#allocation2 + $0x150] sm:$0xff]
    %v212 = vld [vmem:[#allocation2 + $0x158] sm:$0xff]
    %v213 = vld [vmem:[#allocation2 + $0x160] sm:$0xff]
    %v214 = vld [vmem:[#allocation2 + $0x168] sm:$0xff]
    %v215 = vld [vmem:[#allocation2 + $0x170] sm:$0xff]
    %v216 = vld [vmem:[#allocation2 + $0x178] sm:$0xff]
    %v217 = vld [vmem:[#allocation2 + $0x180] sm:$0xff]
    %v218 = vld [vmem:[#allocation2 + $0x188] sm:$0xff]
    %v219 = vld [vmem:[#allocation2 + $0x190] sm:$0xff]
    %v220 = vld [vmem:[#allocation2 + $0x198] sm:$0xff]
    %v221 = vld [vmem:[#allocation2 + $0x1a0] sm:$0xff]
    %v222 = vld [vmem:[#allocation2 + $0x1a8] sm:$0xff]
    %v223 = vld [vmem:[#allocation2 + $0x1b0] sm:$0xff]
    %v224 = vld [vmem:[#allocation2 + $0x1b8] sm:$0xff]
    %v225 = vld [vmem:[#allocation2 + $0x1c0] sm:$0xff]
    %v226 = vld [vmem:[#allocation2 + $0x1c8] sm:$0xff]
    %v227 = vld [vmem:[#allocation2 + $0x1d0] sm:$0xff]
    %v228 = vld [vmem:[#allocation2 + $0x1d8] sm:$0xff]
    %v229 = vld [vmem:[#allocation2 + $0x1e0] sm:$0xff]
    %v230 = vld [vmem:[#allocation2 + $0x1e8] sm:$0xff]
    %v231 = vld [vmem:[#allocation2 + $0x1f0] sm:$0xff]
    %v232 = vld [vmem:[#allocation2 + $0x1f8] sm:$0xff]
    %v233 = vld [vmem:[#allocation2 + $0x200] sm:$0xff]
    %v234 = vld [vmem:[#allocation2 + $0x208] sm:$0xff]
    %v235 = vld [vmem:[#allocation2 + $0x210] sm:$0xff]
    %v236 = vld [vmem:[#allocation2 + $0x218] sm:$0xff]
    %v237 = vld [vmem:[#allocation2 + $0x220] sm:$0xff]
    %v238 = vld [vmem:[#allocation2 + $0x228] sm:$0xff]
    %v239 = vld [vmem:[#allocation2 + $0x230] sm:$0xff]
    %v240 = vld [vmem:[#allocation2 + $0x238] sm:$0xff]
    %v241 = vld [vmem:[#allocation2 + $0x240] sm:$0xff]
    %v242 = vld [vmem:[#allocation2 + $0x248] sm:$0xff]
    %v243 = vld [vmem:[#allocation2 + $0x250] sm:$0xff]
    %v244 = vld [vmem:[#allocation2 + $0x258] sm:$0xff]
    %v245 = vld [vmem:[#allocation2 + $0x260] sm:$0xff]
    %v246 = vld [vmem:[#allocation2 + $0x268] sm:$0xff]
    %v247 = vld [vmem:[#allocation2 + $0x270] sm:$0xff]
    %v248 = vld [vmem:[#allocation2 + $0x278] sm:$0xff]
    %v249 = vld [vmem:[#allocation2 + $0x280] sm:$0xff]
    %v250 = vld [vmem:[#allocation2 + $0x288] sm:$0xff]
    %v251 = vld [vmem:[#allocation2 + $0x290] sm:$0xff]
    %v252 = vld [vmem:[#allocation2 + $0x298] sm:$0xff]
    %v253 = vld [vmem:[#allocation2 + $0x2a0] sm:$0xff]
    %v254 = vld [vmem:[#allocation2 + $0x2a8] sm:$0xff]
    %v255 = vld [vmem:[#allocation2 + $0x2b0] sm:$0xff]
    %v256 = vld [vmem:[#allocation2 + $0x2b8] sm:$0xff]
    %v257 = vld [vmem:[#allocation2 + $0x2c0] sm:$0xff]
    %v258 = vld [vmem:[#allocation2 + $0x2c8] sm:$0xff]
    %v259 = vld [vmem:[#allocation2 + $0x2d0] sm:$0xff]
    %v260 = vld [vmem:[#allocation2 + $0x2d8] sm:$0xff]
    %v261 = vld [vmem:[#allocation2 + $0x2e0] sm:$0xff]
    %v262 = vld [vmem:[#allocation2 + $0x2e8] sm:$0xff]
    %v263 = vld [vmem:[#allocation2 + $0x2f0] sm:$0xff]
    %v264 = vld [vmem:[#allocation2 + $0x2f8] sm:$0xff]
    %v265 = vld [vmem:[#allocation2 + $0x300] sm:$0xff]
    %v266 = vld [vmem:[#allocation2 + $0x308] sm:$0xff]
    %v267 = vld [vmem:[#allocation2 + $0x310] sm:$0xff]
    %v268 = vld [vmem:[#allocation2 + $0x318] sm:$0xff]
    %v269 = vld [vmem:[#allocation2 + $0x320] sm:$0xff]
    %v270 = vld [vmem:[#allocation2 + $0x328] sm:$0xff]
    %v271 = vld [vmem:[#allocation2 + $0x330] sm:$0xff]
    %v272 = vld [vmem:[#allocation2 + $0x338] sm:$0xff]
    %v273 = vld [vmem:[#allocation2 + $0x340] sm:$0xff]
    %v274 = vld [vmem:[#allocation2 + $0x348] sm:$0xff]
    %v275 = vld [vmem:[#allocation2 + $0x350] sm:$0xff]
    %v276 = vld [vmem:[#allocation2 + $0x358] sm:$0xff]
    %v277 = vld [vmem:[#allocation2 + $0x360] sm:$0xff]
    %v278 = vld [vmem:[#allocation2 + $0x368] sm:$0xff]
    %v279 = vld [vmem:[#allocation2 + $0x370] sm:$0xff]
    %v280 = vld [vmem:[#allocation2 + $0x378] sm:$0xff]
    %v281 = vld [vmem:[#allocation2 + $0x380] sm:$0xff]
    %v282 = vld [vmem:[#allocation2 + $0x388] sm:$0xff]
    %v283 = vld [vmem:[#allocation2 + $0x390] sm:$0xff]
    %v284 = vld [vmem:[#allocation2 + $0x398] sm:$0xff]
    %v285 = vld [vmem:[#allocation2 + $0x3a0] sm:$0xff]
    %v286 = vld [vmem:[#allocation2 + $0x3a8] sm:$0xff]
    %v287 = vld [vmem:[#allocation2 + $0x3b0] sm:$0xff]
    %v288 = vld [vmem:[#allocation2 + $0x3b8] sm:$0xff]
    %v289 = vld [vmem:[#allocation2 + $0x3c0] sm:$0xff]
    %v290 = vld [vmem:[#allocation2 + $0x3c8] sm:$0xff]
    %v291 = vld [vmem:[#allocation2 + $0x3d0] sm:$0xff]
    %v292 = vld [vmem:[#allocation2 + $0x3d8] sm:$0xff]
    %v293 = vld [vmem:[#allocation2 + $0x3e0] sm:$0xff]
    %v294 = vld [vmem:[#allocation2 + $0x3e8] sm:$0xff]
    %v295 = vld [vmem:[#allocation2 + $0x3f0] sm:$0xff]
    %v296 = vld [vmem:[#allocation2 + $0x3f8] sm:$0xff]
    %v297 = vld [vmem:[#allocation2 + $0x400] sm:$0xff]
    %v298 = vld [vmem:[#allocation2 + $0x408] sm:$0xff]
    %v299 = vld [vmem:[#allocation2 + $0x410] sm:$0xff]
    %v300 = vld [vmem:[#allocation2 + $0x418] sm:$0xff]
    %v301 = vld [vmem:[#allocation2 + $0x420] sm:$0xff]
    %v302 = vld [vmem:[#allocation2 + $0x428] sm:$0xff]
    %v303 = vld [vmem:[#allocation2 + $0x430] sm:$0xff]
    %v304 = vld [vmem:[#allocation2 + $0x438] sm:$0xff]
    %v305 = vld [vmem:[#allocation2 + $0x440] sm:$0xff]
    %v306 = vld [vmem:[#allocation2 + $0x448] sm:$0xff]
    %v307 = vld [vmem:[#allocation2 + $0x450] sm:$0xff]
    %v308 = vld [vmem:[#allocation2 + $0x458] sm:$0xff]
    %v309 = vld [vmem:[#allocation2 + $0x460] sm:$0xff]
    %v310 = vld [vmem:[#allocation2 + $0x468] sm:$0xff]
    %v311 = vld [vmem:[#allocation2 + $0x470] sm:$0xff]
    %v312 = vld [vmem:[#allocation2 + $0x478] sm:$0xff]
    %v313 = vld [vmem:[#allocation2 + $0x480] sm:$0xff]
    %v314 = vld [vmem:[#allocation2 + $0x488] sm:$0xff]
    %v315 = vld [vmem:[#allocation2 + $0x490] sm:$0xff]
    %v316 = vld [vmem:[#allocation2 + $0x498] sm:$0xff]
    %v317 = vld [vmem:[#allocation2 + $0x4a0] sm:$0xff]
    %v318 = vld [vmem:[#allocation2 + $0x4a8] sm:$0xff]
    %v319 = vld [vmem:[#allocation2 + $0x4b0] sm:$0xff]
    %v320 = vld [vmem:[#allocation2 + $0x4b8] sm:$0xff]
    %v321 = vld [vmem:[#allocation2 + $0x4c0] sm:$0xff]
    %v322 = vld [vmem:[#allocation2 + $0x4c8] sm:$0xff]
    %v323 = vld [vmem:[#allocation2 + $0x4d0] sm:$0xff]
    %v324 = vld [vmem:[#allocation2 + $0x4d8] sm:$0xff]
    %v325 = vld [vmem:[#allocation2 + $0x4e0] sm:$0xff]
    %v326 = vld [vmem:[#allocation2 + $0x4e8] sm:$0xff]
    %v327 = vld [vmem:[#allocation2 + $0x4f0] sm:$0xff]
    %v328 = vld [vmem:[#allocation2 + $0x4f8] sm:$0xff]
    %v329 = vld [vmem:[#allocation2 + $0x500] sm:$0xff]
    %v330 = vld [vmem:[#allocation2 + $0x508] sm:$0xff]
    %v331 = vld [vmem:[#allocation2 + $0x510] sm:$0xff]
    %v332 = vld [vmem:[#allocation2 + $0x518] sm:$0xff]
    %v333 = vld [vmem:[#allocation2 + $0x520] sm:$0xff]
    %v334 = vld [vmem:[#allocation2 + $0x528] sm:$0xff]
    %v335 = vld [vmem:[#allocation2 + $0x530] sm:$0xff]
    %v336 = vld [vmem:[#allocation2 + $0x538] sm:$0xff]
    %v337 = vld [vmem:[#allocation2 + $0x540] sm:$0xff]
    %v338 = vld [vmem:[#allocation2 + $0x548] sm:$0xff]
    %v339 = vld [vmem:[#allocation2 + $0x550] sm:$0xff]
    %v340 = vld [vmem:[#allocation2 + $0x558] sm:$0xff]
    %v341 = vld [vmem:[#allocation2 + $0x560] sm:$0xff]
    %v342 = vld [vmem:[#allocation2 + $0x568] sm:$0xff]
    %v343 = vld [vmem:[#allocation2 + $0x570] sm:$0xff]
    %v344 = vld [vmem:[#allocation2 + $0x578] sm:$0xff]
    %v345 = vld [vmem:[#allocation2 + $0x580] sm:$0xff]
    %v346 = vld [vmem:[#allocation2 + $0x588] sm:$0xff]
    %v347 = vld [vmem:[#allocation2 + $0x590] sm:$0xff]
    %v348 = vld [vmem:[#allocation2 + $0x598] sm:$0xff]
    %v349 = vld [vmem:[#allocation2 + $0x5a0] sm:$0xff]
    %v350 = vld [vmem:[#allocation2 + $0x5a8] sm:$0xff]
    %v351 = vld [vmem:[#allocation2 + $0x5b0] sm:$0xff]
    %v352 = vld [vmem:[#allocation2 + $0x5b8] sm:$0xff]
    %v353 = vld [vmem:[#allocation2 + $0x5c0] sm:$0xff]
    %v354 = vld [vmem:[#allocation2 + $0x5c8] sm:$0xff]
    %v355 = vld [vmem:[#allocation2 + $0x5d0] sm:$0xff]
    %v356 = vld [vmem:[#allocation2 + $0x5d8] sm:$0xff]
    %v357 = vld [vmem:[#allocation2 + $0x5e0] sm:$0xff]
    %v358 = vld [vmem:[#allocation2 + $0x5e8] sm:$0xff]
    %v359 = vld [vmem:[#allocation2 + $0x5f0] sm:$0xff]
    %v360 = vld [vmem:[#allocation2 + $0x5f8] sm:$0xff]
    %v361 = vld [vmem:[#allocation2 + $0x600] sm:$0xff]
    %v362 = vld [vmem:[#allocation2 + $0x608] sm:$0xff]
    %v363 = vld [vmem:[#allocation2 + $0x610] sm:$0xff]
    %v364 = vld [vmem:[#allocation2 + $0x618] sm:$0xff]
    %v365 = vld [vmem:[#allocation2 + $0x620] sm:$0xff]
    %v366 = vld [vmem:[#allocation2 + $0x628] sm:$0xff]
    %v367 = vld [vmem:[#allocation2 + $0x630] sm:$0xff]
    %v368 = vld [vmem:[#allocation2 + $0x638] sm:$0xff]
    %v369 = vld [vmem:[#allocation2 + $0x640] sm:$0xff]
    %v370 = vld [vmem:[#allocation2 + $0x648] sm:$0xff]
    %v371 = vld [vmem:[#allocation2 + $0x650] sm:$0xff]
    %v372 = vld [vmem:[#allocation2 + $0x658] sm:$0xff]
    %v373 = vld [vmem:[#allocation2 + $0x660] sm:$0xff]
    %v374 = vld [vmem:[#allocation2 + $0x668] sm:$0xff]
    %v375 = vld [vmem:[#allocation2 + $0x670] sm:$0xff]
    %v376 = vld [vmem:[#allocation2 + $0x678] sm:$0xff]
    %v377 = vld [vmem:[#allocation2 + $0x680] sm:$0xff]
    %v378 = vld [vmem:[#allocation2 + $0x688] sm:$0xff]
    %v379 = vld [vmem:[#allocation2 + $0x690] sm:$0xff]
    %v380 = vld [vmem:[#allocation2 + $0x698] sm:$0xff]
    %v381 = vld [vmem:[#allocation2 + $0x6a0] sm:$0xff]
    %v382 = vld [vmem:[#allocation2 + $0x6a8] sm:$0xff]
    %v383 = vld [vmem:[#allocation2 + $0x6b0] sm:$0xff]
    %v384 = vld [vmem:[#allocation2 + $0x6b8] sm:$0xff]
    %v385 = vld [vmem:[#allocation2 + $0x6c0] sm:$0xff]
    %v386 = vld [vmem:[#allocation2 + $0x6c8] sm:$0xff]
    %v387 = vld [vmem:[#allocation2 + $0x6d0] sm:$0xff]
    %v388 = vld [vmem:[#allocation2 + $0x6d8] sm:$0xff]
    %v389 = vld [vmem:[#allocation2 + $0x6e0] sm:$0xff]
    %v390 = vld [vmem:[#allocation2 + $0x6e8] sm:$0xff]
    %v391 = vld [vmem:[#allocation2 + $0x6f0] sm:$0xff]
    %v392 = vld [vmem:[#allocation2 + $0x6f8] sm:$0xff]
    %v393 = vld [vmem:[#allocation2 + $0x700] sm:$0xff]
    %v394 = vld [vmem:[#allocation2 + $0x708] sm:$0xff]
    %v395 = vld [vmem:[#allocation2 + $0x710] sm:$0xff]
    %v396 = vld [vmem:[#allocation2 + $0x718] sm:$0xff]
    %v397 = vld [vmem:[#allocation2 + $0x720] sm:$0xff]
    %v398 = vld [vmem:[#allocation2 + $0x728] sm:$0xff]
    %v399 = vld [vmem:[#allocation2 + $0x730] sm:$0xff]
    %v400 = vld [vmem:[#allocation2 + $0x738] sm:$0xff]
    %v401 = vld [vmem:[#allocation2 + $0x740] sm:$0xff]
    %v402 = vld [vmem:[#allocation2 + $0x748] sm:$0xff]
    %v403 = vld [vmem:[#allocation2 + $0x750] sm:$0xff]
    %v404 = vld [vmem:[#allocation2 + $0x758] sm:$0xff]
    %v405 = vld [vmem:[#allocation2 + $0x760] sm:$0xff]
    %v406 = vld [vmem:[#allocation2 + $0x768] sm:$0xff]
    %v407 = vld [vmem:[#allocation2 + $0x770] sm:$0xff]
    %v408 = vld [vmem:[#allocation2 + $0x778] sm:$0xff]
    %v409 = vld [vmem:[#allocation2 + $0x780] sm:$0xff]
    %v410 = vld [vmem:[#allocation2 + $0x788] sm:$0xff]
    %v411 = vld [vmem:[#allocation2 + $0x790] sm:$0xff]
    %v412 = vld [vmem:[#allocation2 + $0x798] sm:$0xff]
    %v413 = vld [vmem:[#allocation2 + $0x7a0] sm:$0xff]
    %v414 = vld [vmem:[#allocation2 + $0x7a8] sm:$0xff]
    %v415 = vld [vmem:[#allocation2 + $0x7b0] sm:$0xff]
    %v416 = vld [vmem:[#allocation2 + $0x7b8] sm:$0xff]
    %v417 = vld [vmem:[#allocation2 + $0x7c0] sm:$0xff]
    %v418 = vld [vmem:[#allocation2 + $0x7c8] sm:$0xff]
    %v419 = vld [vmem:[#allocation2 + $0x7d0] sm:$0xff]
    %v420 = vld [vmem:[#allocation2 + $0x7d8] sm:$0xff]
    %v421 = vld [vmem:[#allocation2 + $0x7e0] sm:$0xff]
    %v422 = vld [vmem:[#allocation2 + $0x7e8] sm:$0xff]
    %v423 = vld [vmem:[#allocation2 + $0x7f0] sm:$0xff]
    %v424 = vld [vmem:[#allocation2 + $0x7f8] sm:$0xff]
    %v425 = vld [vmem:[#allocation2 + $0x800] sm:$0xff]
    %v426 = vld [vmem:[#allocation2 + $0x808] sm:$0xff]
    %v427 = vld [vmem:[#allocation2 + $0x810] sm:$0xff]
    %v428 = vld [vmem:[#allocation2 + $0x818] sm:$0xff]
    %v429 = vld [vmem:[#allocation2 + $0x820] sm:$0xff]
    %v430 = vld [vmem:[#allocation2 + $0x828] sm:$0xff]
    %v431 = vld [vmem:[#allocation2 + $0x830] sm:$0xff]
    %v432 = vld [vmem:[#allocation2 + $0x838] sm:$0xff]
    %v433 = vld [vmem:[#allocation2 + $0x840] sm:$0xff]
    %v434 = vld [vmem:[#allocation2 + $0x848] sm:$0xff]
    %v435 = vld [vmem:[#allocation2 + $0x850] sm:$0xff]
    %v436 = vld [vmem:[#allocation2 + $0x858] sm:$0xff]
    %v437 = vld [vmem:[#allocation2 + $0x860] sm:$0xff]
    %v438 = vld [vmem:[#allocation2 + $0x868] sm:$0xff]
    %v439 = vld [vmem:[#allocation2 + $0x870] sm:$0xff]
    %v440 = vld [vmem:[#allocation2 + $0x878] sm:$0xff]
    %v441 = vld [vmem:[#allocation2 + $0x880] sm:$0xff]
    %v442 = vld [vmem:[#allocation2 + $0x888] sm:$0xff]
    %v443 = vld [vmem:[#allocation2 + $0x890] sm:$0xff]
    %v444 = vld [vmem:[#allocation2 + $0x898] sm:$0xff]
    %v445 = vld [vmem:[#allocation2 + $0x8a0] sm:$0xff]
    %v446 = vld [vmem:[#allocation2 + $0x8a8] sm:$0xff]
    %v447 = vld [vmem:[#allocation2 + $0x8b0] sm:$0xff]
    %v448 = vld [vmem:[#allocation2 + $0x8b8] sm:$0xff]
    %v449 = vld [vmem:[#allocation2 + $0x8c0] sm:$0xff]
    %v450 = vld [vmem:[#allocation2 + $0x8c8] sm:$0xff]
    %v451 = vld [vmem:[#allocation2 + $0x8d0] sm:$0xff]
    %v452 = vld [vmem:[#allocation2 + $0x8d8] sm:$0xff]
    %v453 = vld [vmem:[#allocation2 + $0x8e0] sm:$0xff]
    %v454 = vld [vmem:[#allocation2 + $0x8e8] sm:$0xff]
    %v455 = vld [vmem:[#allocation2 + $0x8f0] sm:$0xff]
    %v456 = vld [vmem:[#allocation2 + $0x8f8] sm:$0xff]
    %v457 = vld [vmem:[#allocation2 + $0x900] sm:$0xff]
    %v458 = vld [vmem:[#allocation2 + $0x908] sm:$0xff]
    %v459 = vld [vmem:[#allocation2 + $0x910] sm:$0xff]
    %v460 = vld [vmem:[#allocation2 + $0x918] sm:$0xff]
    %v461 = vld [vmem:[#allocation2 + $0x920] sm:$0xff]
    %v462 = vld [vmem:[#allocation2 + $0x928] sm:$0xff]
    %v463 = vld [vmem:[#allocation2 + $0x930] sm:$0xff]
    %v464 = vld [vmem:[#allocation2 + $0x938] sm:$0xff]
    %v465 = vld [vmem:[#allocation2 + $0x940] sm:$0xff]
    %v466 = vld [vmem:[#allocation2 + $0x948] sm:$0xff]
    %v467 = vld [vmem:[#allocation2 + $0x950] sm:$0xff]
    %v468 = vld [vmem:[#allocation2 + $0x958] sm:$0xff]
    %v469 = vld [vmem:[#allocation2 + $0x960] sm:$0xff]
    %v470 = vld [vmem:[#allocation2 + $0x968] sm:$0xff]
    %v471 = vld [vmem:[#allocation2 + $0x970] sm:$0xff]
    %v472 = vld [vmem:[#allocation2 + $0x978] sm:$0xff]
    %v473 = vld [vmem:[#allocation2 + $0x980] sm:$0xff]
    %v474 = vld [vmem:[#allocation2 + $0x988] sm:$0xff]
    %v475 = vld [vmem:[#allocation2 + $0x990] sm:$0xff]
    %v476 = vld [vmem:[#allocation2 + $0x998] sm:$0xff]
    %v477 = vld [vmem:[#allocation2 + $0x9a0] sm:$0xff]
    %v478 = vld [vmem:[#allocation2 + $0x9a8] sm:$0xff]
    %v479 = vld [vmem:[#allocation2 + $0x9b0] sm:$0xff]
    %v480 = vld [vmem:[#allocation2 + $0x9b8] sm:$0xff]
    %v481 = vld [vmem:[#allocation2 + $0x9c0] sm:$0xff]
    %v482 = vld [vmem:[#allocation2 + $0x9c8] sm:$0xff]
    %v483 = vld [vmem:[#allocation2 + $0x9d0] sm:$0xff]
    %v484 = vld [vmem:[#allocation2 + $0x9d8] sm:$0xff]
    %v485 = vld [vmem:[#allocation2 + $0x9e0] sm:$0xff]
    %v486 = vld [vmem:[#allocation2 + $0x9e8] sm:$0xff]
    %v487 = vld [vmem:[#allocation2 + $0x9f0] sm:$0xff]
    %v488 = vld [vmem:[#allocation2 + $0x9f8] sm:$0xff]
    %v489 = vld [vmem:[#allocation2 + $0xa00] sm:$0xff]
    %v490 = vld [vmem:[#allocation2 + $0xa08] sm:$0xff]
    %v491 = vld [vmem:[#allocation2 + $0xa10] sm:$0xff]
    %v492 = vld [vmem:[#allocation2 + $0xa18] sm:$0xff]
    %v493 = vld [vmem:[#allocation2 + $0xa20] sm:$0xff]
    %v494 = vld [vmem:[#allocation2 + $0xa28] sm:$0xff]
    %v495 = vld [vmem:[#allocation2 + $0xa30] sm:$0xff]
    %v496 = vld [vmem:[#allocation2 + $0xa38] sm:$0xff]
    %v497 = vld [vmem:[#allocation2 + $0xa40] sm:$0xff]
    %v498 = vld [vmem:[#allocation2 + $0xa48] sm:$0xff]
    %v499 = vld [vmem:[#allocation2 + $0xa50] sm:$0xff]
    %v500 = vld [vmem:[#allocation2 + $0xa58] sm:$0xff]
    %v501 = vld [vmem:[#allocation2 + $0xa60] sm:$0xff]
    %v502 = vld [vmem:[#allocation2 + $0xa68] sm:$0xff]
    %v503 = vld [vmem:[#allocation2 + $0xa70] sm:$0xff]
    %v504 = vld [vmem:[#allocation2 + $0xa78] sm:$0xff]
    %v505 = vld [vmem:[#allocation2 + $0xa80] sm:$0xff]
    %v506 = vld [vmem:[#allocation2 + $0xa88] sm:$0xff]
    %v507 = vld [vmem:[#allocation2 + $0xa90] sm:$0xff]
    %v508 = vld [vmem:[#allocation2 + $0xa98] sm:$0xff]
    %v509 = vld [vmem:[#allocation2 + $0xaa0] sm:$0xff]
    %v510 = vld [vmem:[#allocation2 + $0xaa8] sm:$0xff]
    %v511 = vld [vmem:[#allocation2 + $0xab0] sm:$0xff]
    %v512 = vld [vmem:[#allocation2 + $0xab8] sm:$0xff]
    %v513 = vld [vmem:[#allocation2 + $0xac0] sm:$0xff]
    %v514 = vld [vmem:[#allocation2 + $0xac8] sm:$0xff]
    %v515 = vld [vmem:[#allocation2 + $0xad0] sm:$0xff]
    %v516 = vld [vmem:[#allocation2 + $0xad8] sm:$0xff]
    %v517 = vld [vmem:[#allocation2 + $0xae0] sm:$0xff]
    %v518 = vld [vmem:[#allocation2 + $0xae8] sm:$0xff]
    %v519 = vld [vmem:[#allocation2 + $0xaf0] sm:$0xff]
    %v520 = vld [vmem:[#allocation2 + $0xaf8] sm:$0xff]
    %v521 = vld [vmem:[#allocation2 + $0xb00] sm:$0xff]
    %v522 = vld [vmem:[#allocation2 + $0xb08] sm:$0xff]
    %v523 = vld [vmem:[#allocation2 + $0xb10] sm:$0xff]
    %v524 = vld [vmem:[#allocation2 + $0xb18] sm:$0xff]
    %v525 = vld [vmem:[#allocation2 + $0xb20] sm:$0xff]
    %v526 = vld [vmem:[#allocation2 + $0xb28] sm:$0xff]
    %v527 = vld [vmem:[#allocation2 + $0xb30] sm:$0xff]
    %v528 = vld [vmem:[#allocation2 + $0xb38] sm:$0xff]
    %v529 = vld [vmem:[#allocation2 + $0xb40] sm:$0xff]
    %v530 = vld [vmem:[#allocation2 + $0xb48] sm:$0xff]
    %v531 = vld [vmem:[#allocation2 + $0xb50] sm:$0xff]
    %v532 = vld [vmem:[#allocation2 + $0xb58] sm:$0xff]
    %v533 = vld [vmem:[#allocation2 + $0xb60] sm:$0xff]
    %v534 = vld [vmem:[#allocation2 + $0xb68] sm:$0xff]
    %v535 = vld [vmem:[#allocation2 + $0xb70] sm:$0xff]
    %v536 = vld [vmem:[#allocation2 + $0xb78] sm:$0xff]
    %v537 = vld [vmem:[#allocation2 + $0xb80] sm:$0xff]
    %v538 = vld [vmem:[#allocation2 + $0xb88] sm:$0xff]
    %v539 = vld [vmem:[#allocation2 + $0xb90] sm:$0xff]
    %v540 = vld [vmem:[#allocation2 + $0xb98] sm:$0xff]
    %v541 = vld [vmem:[#allocation2 + $0xba0] sm:$0xff]
    %v542 = vld [vmem:[#allocation2 + $0xba8] sm:$0xff]
    %v543 = vld [vmem:[#allocation2 + $0xbb0] sm:$0xff]
    %v544 = vld [vmem:[#allocation2 + $0xbb8] sm:$0xff]
    %v545 = vld [vmem:[#allocation2 + $0xbc0] sm:$0xff]
    %v546 = vld [vmem:[#allocation2 + $0xbc8] sm:$0xff]
    %v547 = vld [vmem:[#allocation2 + $0xbd0] sm:$0xff]
    %v548 = vld [vmem:[#allocation2 + $0xbd8] sm:$0xff]
    %v549 = vld [vmem:[#allocation2 + $0xbe0] sm:$0xff]
    %v550 = vld [vmem:[#allocation2 + $0xbe8] sm:$0xff]
    %v551 = vld [vmem:[#allocation2 + $0xbf0] sm:$0xff]
    %v552 = vld [vmem:[#allocation2 + $0xbf8] sm:$0xff]
    %v553 = vld [vmem:[#allocation2 + $0xc00] sm:$0xff]
    %v554 = vld [vmem:[#allocation2 + $0xc08] sm:$0xff]
    %v555 = vld [vmem:[#allocation2 + $0xc10] sm:$0xff]
    %v556 = vld [vmem:[#allocation2 + $0xc18] sm:$0xff]
    %v557 = vld [vmem:[#allocation2 + $0xc20] sm:$0xff]
    %v558 = vld [vmem:[#allocation2 + $0xc28] sm:$0xff]
    %v559 = vld [vmem:[#allocation2 + $0xc30] sm:$0xff]
    %v560 = vld [vmem:[#allocation2 + $0xc38] sm:$0xff]
    %v561 = vld [vmem:[#allocation2 + $0xc40] sm:$0xff]
    %v562 = vld [vmem:[#allocation2 + $0xc48] sm:$0xff]
    %v563 = vld [vmem:[#allocation2 + $0xc50] sm:$0xff]
    %v564 = vld [vmem:[#allocation2 + $0xc58] sm:$0xff]
    %v565 = vld [vmem:[#allocation2 + $0xc60] sm:$0xff]
    %v566 = vld [vmem:[#allocation2 + $0xc68] sm:$0xff]
    %v567 = vld [vmem:[#allocation2 + $0xc70] sm:$0xff]
    %v568 = vld [vmem:[#allocation2 + $0xc78] sm:$0xff]
    %v569 = vld [vmem:[#allocation2 + $0xc80] sm:$0xff]
    %v570 = vld [vmem:[#allocation2 + $0xc88] sm:$0xff]
    %v571 = vld [vmem:[#allocation2 + $0xc90] sm:$0xff]
    %v572 = vld [vmem:[#allocation2 + $0xc98] sm:$0xff]
    %v573 = vld [vmem:[#allocation2 + $0xca0] sm:$0xff]
    %v574 = vld [vmem:[#allocation2 + $0xca8] sm:$0xff]
    %v575 = vld [vmem:[#allocation2 + $0xcb0] sm:$0xff]
    %v576 = vld [vmem:[#allocation2 + $0xcb8] sm:$0xff]
    %v577 = vld [vmem:[#allocation2 + $0xcc0] sm:$0xff]
    %v578 = vld [vmem:[#allocation2 + $0xcc8] sm:$0xff]
    %v579 = vld [vmem:[#allocation2 + $0xcd0] sm:$0xff]
    %v580 = vld [vmem:[#allocation2 + $0xcd8] sm:$0xff]
    %v581 = vld [vmem:[#allocation2 + $0xce0] sm:$0xff]
    %v582 = vld [vmem:[#allocation2 + $0xce8] sm:$0xff]
    %v583 = vld [vmem:[#allocation2 + $0xcf0] sm:$0xff]
    %v584 = vld [vmem:[#allocation2 + $0xcf8] sm:$0xff]
    %v585 = vld [vmem:[#allocation2 + $0xd00] sm:$0xff]
    %v586 = vld [vmem:[#allocation2 + $0xd08] sm:$0xff]
    %v587 = vld [vmem:[#allocation2 + $0xd10] sm:$0xff]
    %v588 = vld [vmem:[#allocation2 + $0xd18] sm:$0xff]
    %v589 = vld [vmem:[#allocation2 + $0xd20] sm:$0xff]
    %v590 = vld [vmem:[#allocation2 + $0xd28] sm:$0xff]
    %v591 = vld [vmem:[#allocation2 + $0xd30] sm:$0xff]
    %v592 = vld [vmem:[#allocation2 + $0xd38] sm:$0xff]
    %v593 = vld [vmem:[#allocation2 + $0xd40] sm:$0xff]
    %v594 = vld [vmem:[#allocation2 + $0xd48] sm:$0xff]
    %v595 = vld [vmem:[#allocation2 + $0xd50] sm:$0xff]
    %v596 = vld [vmem:[#allocation2 + $0xd58] sm:$0xff]
    %v597 = vld [vmem:[#allocation2 + $0xd60] sm:$0xff]
    %v598 = vld [vmem:[#allocation2 + $0xd68] sm:$0xff]
    %v599 = vld [vmem:[#allocation2 + $0xd70] sm:$0xff]
    %v600 = vld [vmem:[#allocation2 + $0xd78] sm:$0xff]
    %v601 = vld [vmem:[#allocation2 + $0xd80] sm:$0xff]
    %v602 = vld [vmem:[#allocation2 + $0xd88] sm:$0xff]
    %v603 = vld [vmem:[#allocation2 + $0xd90] sm:$0xff]
    %v604 = vld [vmem:[#allocation2 + $0xd98] sm:$0xff]
    %v605 = vld [vmem:[#allocation2 + $0xda0] sm:$0xff]
    %v606 = vld [vmem:[#allocation2 + $0xda8] sm:$0xff]
    %v607 = vld [vmem:[#allocation2 + $0xdb0] sm:$0xff]
    %v608 = vld [vmem:[#allocation2 + $0xdb8] sm:$0xff]
    %v609 = vld [vmem:[#allocation2 + $0xdc0] sm:$0xff]
    %v610 = vld [vmem:[#allocation2 + $0xdc8] sm:$0xff]
    %v611 = vld [vmem:[#allocation2 + $0xdd0] sm:$0xff]
    %v612 = vld [vmem:[#allocation2 + $0xdd8] sm:$0xff]
    %v613 = vld [vmem:[#allocation2 + $0xde0] sm:$0xff]
    %v614 = vld [vmem:[#allocation2 + $0xde8] sm:$0xff]
    %v615 = vld [vmem:[#allocation2 + $0xdf0] sm:$0xff]
    %v616 = vld [vmem:[#allocation2 + $0xdf8] sm:$0xff]
    %v617 = vld [vmem:[#allocation2 + $0xe00] sm:$0xff]
    %v618 = vld [vmem:[#allocation2 + $0xe08] sm:$0xff]
    %v619 = vld [vmem:[#allocation2 + $0xe10] sm:$0xff]
    %v620 = vld [vmem:[#allocation2 + $0xe18] sm:$0xff]
    %v621 = vld [vmem:[#allocation2 + $0xe20] sm:$0xff]
    %v622 = vld [vmem:[#allocation2 + $0xe28] sm:$0xff]
    %v623 = vld [vmem:[#allocation2 + $0xe30] sm:$0xff]
    %v624 = vld [vmem:[#allocation2 + $0xe38] sm:$0xff]
    %v625 = vld [vmem:[#allocation2 + $0xe40] sm:$0xff]
    %v626 = vld [vmem:[#allocation2 + $0xe48] sm:$0xff]
    %v627 = vld [vmem:[#allocation2 + $0xe50] sm:$0xff]
    %v628 = vld [vmem:[#allocation2 + $0xe58] sm:$0xff]
    %v629 = vld [vmem:[#allocation2 + $0xe60] sm:$0xff]
    %v630 = vld [vmem:[#allocation2 + $0xe68] sm:$0xff]
    %v631 = vld [vmem:[#allocation2 + $0xe70] sm:$0xff]
    %v632 = vld [vmem:[#allocation2 + $0xe78] sm:$0xff]
    %v633 = vld [vmem:[#allocation2 + $0xe80] sm:$0xff]
    %v634 = vld [vmem:[#allocation2 + $0xe88] sm:$0xff]
    %v635 = vld [vmem:[#allocation2 + $0xe90] sm:$0xff]
    %v636 = vld [vmem:[#allocation2 + $0xe98] sm:$0xff]
    %v637 = vld [vmem:[#allocation2 + $0xea0] sm:$0xff]
    %v638 = vld [vmem:[#allocation2 + $0xea8] sm:$0xff]
    %v639 = vld [vmem:[#allocation2 + $0xeb0] sm:$0xff]
    %v640 = vld [vmem:[#allocation2 + $0xeb8] sm:$0xff]
    %v641 = vld [vmem:[#allocation2 + $0xec0] sm:$0xff]
    %v642 = vld [vmem:[#allocation2 + $0xec8] sm:$0xff]
    %v643 = vld [vmem:[#allocation2 + $0xed0] sm:$0xff]
    %v644 = vld [vmem:[#allocation2 + $0xed8] sm:$0xff]
    %v645 = vld [vmem:[#allocation2 + $0xee0] sm:$0xff]
    %v646 = vld [vmem:[#allocation2 + $0xee8] sm:$0xff]
    %v647 = vld [vmem:[#allocation2 + $0xef0] sm:$0xff]
    %v648 = vld [vmem:[#allocation2 + $0xef8] sm:$0xff]
    %v649 = vld [vmem:[#allocation2 + $0xf00] sm:$0xff]
    %v650 = vld [vmem:[#allocation2 + $0xf08] sm:$0xff]
    %v651 = vld [vmem:[#allocation2 + $0xf10] sm:$0xff]
    %v652 = vld [vmem:[#allocation2 + $0xf18] sm:$0xff]
    %v653 = vld [vmem:[#allocation2 + $0xf20] sm:$0xff]
    %v654 = vld [vmem:[#allocation2 + $0xf28] sm:$0xff]
    %v655 = vld [vmem:[#allocation2 + $0xf30] sm:$0xff]
    %v656 = vld [vmem:[#allocation2 + $0xf38] sm:$0xff]
    %v657 = vld [vmem:[#allocation2 + $0xf40] sm:$0xff]
    %v658 = vld [vmem:[#allocation2 + $0xf48] sm:$0xff]
    %v659 = vld [vmem:[#allocation2 + $0xf50] sm:$0xff]
    %v660 = vld [vmem:[#allocation2 + $0xf58] sm:$0xff]
    %v661 = vld [vmem:[#allocation2 + $0xf60] sm:$0xff]
    %v662 = vld [vmem:[#allocation2 + $0xf68] sm:$0xff]
    %v663 = vld [vmem:[#allocation2 + $0xf70] sm:$0xff]
    %v664 = vld [vmem:[#allocation2 + $0xf78] sm:$0xff]
    %v665 = vld [vmem:[#allocation2 + $0xf80] sm:$0xff]
    %v666 = vld [vmem:[#allocation2 + $0xf88] sm:$0xff]
    %v667 = vld [vmem:[#allocation2 + $0xf90] sm:$0xff]
    %v668 = vld [vmem:[#allocation2 + $0xf98] sm:$0xff]
    %v669 = vld [vmem:[#allocation2 + $0xfa0] sm:$0xff]
    %v670 = vld [vmem:[#allocation2 + $0xfa8] sm:$0xff]
    %v671 = vld [vmem:[#allocation2 + $0xfb0] sm:$0xff]
    %v672 = vld [vmem:[#allocation2 + $0xfb8] sm:$0xff]
    %v673 = vld [vmem:[#allocation2 + $0xfc0] sm:$0xff]
    %v674 = vld [vmem:[#allocation2 + $0xfc8] sm:$0xff]
    %v675 = vld [vmem:[#allocation2 + $0xfd0] sm:$0xff]
    %v676 = vld [vmem:[#allocation2 + $0xfd8] sm:$0xff]
    %v677 = vld [vmem:[#allocation2 + $0xfe0] sm:$0xff]
    %v678 = vld [vmem:[#allocation2 + $0xfe8] sm:$0xff]
    %v679 = vld [vmem:[#allocation2 + $0xff0] sm:$0xff]
    %v680 = vld [vmem:[#allocation2 + $0xff8] sm:$0xff]
    %v681 = vld [vmem:[#allocation2 + $0x1000] sm:$0xff]
    %v682 = vld [vmem:[#allocation2 + $0x1008] sm:$0xff]
    %v683 = vld [vmem:[#allocation2 + $0x1010] sm:$0xff]
    %v684 = vld [vmem:[#allocation2 + $0x1018] sm:$0xff]
    %v685 = vld [vmem:[#allocation2 + $0x1020] sm:$0xff]
    %v686 = vld [vmem:[#allocation2 + $0x1028] sm:$0xff]
    %v687 = vld [vmem:[#allocation2 + $0x1030] sm:$0xff]
    %v688 = vld [vmem:[#allocation2 + $0x1038] sm:$0xff]
    %v689 = vld [vmem:[#allocation2 + $0x1040] sm:$0xff]
    %v690 = vld [vmem:[#allocation2 + $0x1048] sm:$0xff]
    %v691 = vld [vmem:[#allocation2 + $0x1050] sm:$0xff]
    %v692 = vld [vmem:[#allocation2 + $0x1058] sm:$0xff]
    %v693 = vld [vmem:[#allocation2 + $0x1060] sm:$0xff]
    %v694 = vld [vmem:[#allocation2 + $0x1068] sm:$0xff]
    %v695 = vld [vmem:[#allocation2 + $0x1070] sm:$0xff]
    %v696 = vld [vmem:[#allocation2 + $0x1078] sm:$0xff]
    %v697 = vld [vmem:[#allocation2 + $0x1080] sm:$0xff]
    %v698 = vld [vmem:[#allocation2 + $0x1088] sm:$0xff]
    %v699 = vld [vmem:[#allocation2 + $0x1090] sm:$0xff]
    %v700 = vld [vmem:[#allocation2 + $0x1098] sm:$0xff]
    %v701 = vld [vmem:[#allocation2 + $0x10a0] sm:$0xff]
    %v702 = vld [vmem:[#allocation2 + $0x10a8] sm:$0xff]
    %v703 = vld [vmem:[#allocation2 + $0x10b0] sm:$0xff]
    %v704 = vld [vmem:[#allocation2 + $0x10b8] sm:$0xff]
    %v705 = vld [vmem:[#allocation2 + $0x10c0] sm:$0xff]
    %v706 = vld [vmem:[#allocation2 + $0x10c8] sm:$0xff]
    %v707 = vld [vmem:[#allocation2 + $0x10d0] sm:$0xff]
    %v708 = vld [vmem:[#allocation2 + $0x10d8] sm:$0xff]
    %v709 = vld [vmem:[#allocation2 + $0x10e0] sm:$0xff]
    %v710 = vld [vmem:[#allocation2 + $0x10e8] sm:$0xff]
    %v711 = vld [vmem:[#allocation2 + $0x10f0] sm:$0xff]
    %v712 = vld [vmem:[#allocation2 + $0x10f8] sm:$0xff]
    %v713 = vld [vmem:[#allocation2 + $0x1100] sm:$0xff]
    %v714 = vld [vmem:[#allocation2 + $0x1108] sm:$0xff]
    %v715 = vld [vmem:[#allocation2 + $0x1110] sm:$0xff]
    %v716 = vld [vmem:[#allocation2 + $0x1118] sm:$0xff]
    %v717 = vld [vmem:[#allocation2 + $0x1120] sm:$0xff]
    %v718 = vld [vmem:[#allocation2 + $0x1128] sm:$0xff]
    %v719 = vld [vmem:[#allocation2 + $0x1130] sm:$0xff]
    %v720 = vld [vmem:[#allocation2 + $0x1138] sm:$0xff]
    %v721 = vld [vmem:[#allocation2 + $0x1140] sm:$0xff]
    %v722 = vld [vmem:[#allocation2 + $0x1148] sm:$0xff]
    %v723 = vld [vmem:[#allocation2 + $0x1150] sm:$0xff]
    %v724 = vld [vmem:[#allocation2 + $0x1158] sm:$0xff]
    %v725 = vld [vmem:[#allocation2 + $0x1160] sm:$0xff]
    %v726 = vld [vmem:[#allocation2 + $0x1168] sm:$0xff]
    %v727 = vld [vmem:[#allocation2 + $0x1170] sm:$0xff]
    %v728 = vld [vmem:[#allocation2 + $0x1178] sm:$0xff]
    %v729 = vld [vmem:[#allocation2 + $0x1180] sm:$0xff]
    %v730 = vld [vmem:[#allocation2 + $0x1188] sm:$0xff]
    %v731 = vld [vmem:[#allocation2 + $0x1190] sm:$0xff]
    %v732 = vld [vmem:[#allocation2 + $0x1198] sm:$0xff]
    %v733 = vld [vmem:[#allocation2 + $0x11a0] sm:$0xff]
    %v734 = vld [vmem:[#allocation2 + $0x11a8] sm:$0xff]
    %v735 = vld [vmem:[#allocation2 + $0x11b0] sm:$0xff]
    %v736 = vld [vmem:[#allocation2 + $0x11b8] sm:$0xff]
    %v737 = vld [vmem:[#allocation2 + $0x11c0] sm:$0xff]
    %v738 = vld [vmem:[#allocation2 + $0x11c8] sm:$0xff]
    %v739 = vld [vmem:[#allocation2 + $0x11d0] sm:$0xff]
    %v740 = vld [vmem:[#allocation2 + $0x11d8] sm:$0xff]
    %v741 = vld [vmem:[#allocation2 + $0x11e0] sm:$0xff]
    %v742 = vld [vmem:[#allocation2 + $0x11e8] sm:$0xff]
    %v743 = vld [vmem:[#allocation2 + $0x11f0] sm:$0xff]
    %v744 = vld [vmem:[#allocation2 + $0x11f8] sm:$0xff]
    %v745 = vld [vmem:[#allocation2 + $0x1200] sm:$0xff]
    %v746 = vld [vmem:[#allocation2 + $0x1208] sm:$0xff]
    %v747 = vld [vmem:[#allocation2 + $0x1210] sm:$0xff]
    %v748 = vld [vmem:[#allocation2 + $0x1218] sm:$0xff]
    %v749 = vld [vmem:[#allocation2 + $0x1220] sm:$0xff]
    %v750 = vld [vmem:[#allocation2 + $0x1228] sm:$0xff]
    %v751 = vld [vmem:[#allocation2 + $0x1230] sm:$0xff]
    %v752 = vld [vmem:[#allocation2 + $0x1238] sm:$0xff]
    %v753 = vld [vmem:[#allocation2 + $0x1240] sm:$0xff]
    %v754 = vld [vmem:[#allocation2 + $0x1248] sm:$0xff]
    %v755 = vld [vmem:[#allocation2 + $0x1250] sm:$0xff]
    %v756 = vld [vmem:[#allocation2 + $0x1258] sm:$0xff]
    %v757 = vld [vmem:[#allocation2 + $0x1260] sm:$0xff]
    %v758 = vld [vmem:[#allocation2 + $0x1268] sm:$0xff]
    %v759 = vld [vmem:[#allocation2 + $0x1270] sm:$0xff]
    %v760 = vld [vmem:[#allocation2 + $0x1278] sm:$0xff]
    %v761 = vld [vmem:[#allocation2 + $0x1280] sm:$0xff]
    %v762 = vld [vmem:[#allocation2 + $0x1288] sm:$0xff]
    %v763 = vld [vmem:[#allocation2 + $0x1290] sm:$0xff]
    %v764 = vld [vmem:[#allocation2 + $0x1298] sm:$0xff]
    %v765 = vld [vmem:[#allocation2 + $0x12a0] sm:$0xff]
    %v766 = vld [vmem:[#allocation2 + $0x12a8] sm:$0xff]
    %v767 = vld [vmem:[#allocation2 + $0x12b0] sm:$0xff]
    %v768 = vld [vmem:[#allocation2 + $0x12b8] sm:$0xff]
    %v769 = vld [vmem:[#allocation2 + $0x12c0] sm:$0xff]
    %v770 = vld [vmem:[#allocation2 + $0x12c8] sm:$0xff]
    %v771 = vld [vmem:[#allocation2 + $0x12d0] sm:$0xff]
    %v772 = vld [vmem:[#allocation2 + $0x12d8] sm:$0xff]
    %v773 = vld [vmem:[#allocation2 + $0x12e0] sm:$0xff]
    %v774 = vld [vmem:[#allocation2 + $0x12e8] sm:$0xff]
    %v775 = vld [vmem:[#allocation2 + $0x12f0] sm:$0xff]
    %v776 = vld [vmem:[#allocation2 + $0x12f8] sm:$0xff]
    %v777 = vld [vmem:[#allocation2 + $0x1300] sm:$0xff]
    %v778 = vld [vmem:[#allocation2 + $0x1308] sm:$0xff]
    %v779 = vld [vmem:[#allocation2 + $0x1310] sm:$0xff]
    %v780 = vld [vmem:[#allocation2 + $0x1318] sm:$0xff]
    %v781 = vld [vmem:[#allocation2 + $0x1320] sm:$0xff]
    %v782 = vld [vmem:[#allocation2 + $0x1328] sm:$0xff]
    %v783 = vld [vmem:[#allocation2 + $0x1330] sm:$0xff]
    %v784 = vld [vmem:[#allocation2 + $0x1338] sm:$0xff]
    %v785 = vld [vmem:[#allocation2 + $0x1340] sm:$0xff]
    %v786 = vld [vmem:[#allocation2 + $0x1348] sm:$0xff]
    %v787 = vld [vmem:[#allocation2 + $0x1350] sm:$0xff]
    %v788 = vld [vmem:[#allocation2 + $0x1358] sm:$0xff]
    %v789 = vld [vmem:[#allocation2 + $0x1360] sm:$0xff]
    %v790 = vld [vmem:[#allocation2 + $0x1368] sm:$0xff]
    %v791 = vld [vmem:[#allocation2 + $0x1370] sm:$0xff]
    %v792 = vld [vmem:[#allocation2 + $0x1378] sm:$0xff]
    %v793 = vld [vmem:[#allocation2 + $0x1380] sm:$0xff]
    %v794 = vld [vmem:[#allocation2 + $0x1388] sm:$0xff]
    %v795 = vld [vmem:[#allocation2 + $0x1390] sm:$0xff]
    %v796 = vld [vmem:[#allocation2 + $0x1398] sm:$0xff]
    %v797 = vld [vmem:[#allocation2 + $0x13a0] sm:$0xff]
    %v798 = vld [vmem:[#allocation2 + $0x13a8] sm:$0xff]
    %v799 = vld [vmem:[#allocation2 + $0x13b0] sm:$0xff]
    %v800 = vld [vmem:[#allocation2 + $0x13b8] sm:$0xff]
    %v801 = vld [vmem:[#allocation2 + $0x13c0] sm:$0xff]
    %v802 = vld [vmem:[#allocation2 + $0x13c8] sm:$0xff]
    %v803 = vld [vmem:[#allocation2 + $0x13d0] sm:$0xff]
    %v804 = vld [vmem:[#allocation2 + $0x13d8] sm:$0xff]
    %v805 = vld [vmem:[#allocation2 + $0x13e0] sm:$0xff]
    %v806 = vld [vmem:[#allocation2 + $0x13e8] sm:$0xff]
    %v807 = vld [vmem:[#allocation2 + $0x13f0] sm:$0xff]
    %v808 = vld [vmem:[#allocation2 + $0x13f8] sm:$0xff]
    %v809 = vld [vmem:[#allocation2 + $0x1400] sm:$0xff]
    %v810 = vld [vmem:[#allocation2 + $0x1408] sm:$0xff]
    %v811 = vld [vmem:[#allocation2 + $0x1410] sm:$0xff]
    %v812 = vld [vmem:[#allocation2 + $0x1418] sm:$0xff]
    %v813 = vld [vmem:[#allocation2 + $0x1420] sm:$0xff]
    %v814 = vld [vmem:[#allocation2 + $0x1428] sm:$0xff]
    %v815 = vld [vmem:[#allocation2 + $0x1430] sm:$0xff]
    %v816 = vld [vmem:[#allocation2 + $0x1438] sm:$0xff]
    %v817 = vld [vmem:[#allocation2 + $0x1440] sm:$0xff]
    %v818 = vld [vmem:[#allocation2 + $0x1448] sm:$0xff]
    %v819 = vld [vmem:[#allocation2 + $0x1450] sm:$0xff]
    %v820 = vld [vmem:[#allocation2 + $0x1458] sm:$0xff]
    %v821 = vld [vmem:[#allocation2 + $0x1460] sm:$0xff]
    %v822 = vld [vmem:[#allocation2 + $0x1468] sm:$0xff]
    %v823 = vld [vmem:[#allocation2 + $0x1470] sm:$0xff]
    %v824 = vld [vmem:[#allocation2 + $0x1478] sm:$0xff]
    %v825 = vld [vmem:[#allocation2 + $0x1480] sm:$0xff]
    %v826 = vld [vmem:[#allocation2 + $0x1488] sm:$0xff]
    %v827 = vld [vmem:[#allocation2 + $0x1490] sm:$0xff]
    %v828 = vld [vmem:[#allocation2 + $0x1498] sm:$0xff]
    %v829 = vld [vmem:[#allocation2 + $0x14a0] sm:$0xff]
    %v830 = vld [vmem:[#allocation2 + $0x14a8] sm:$0xff]
    %v831 = vld [vmem:[#allocation2 + $0x14b0] sm:$0xff]
    %v832 = vld [vmem:[#allocation2 + $0x14b8] sm:$0xff]
    %v833 = vld [vmem:[#allocation2 + $0x14c0] sm:$0xff]
    %v834 = vld [vmem:[#allocation2 + $0x14c8] sm:$0xff]
    %v835 = vld [vmem:[#allocation2 + $0x14d0] sm:$0xff]
    %v836 = vld [vmem:[#allocation2 + $0x14d8] sm:$0xff]
    %v837 = vld [vmem:[#allocation2 + $0x14e0] sm:$0xff]
    %v838 = vld [vmem:[#allocation2 + $0x14e8] sm:$0xff]
    %v839 = vld [vmem:[#allocation2 + $0x14f0] sm:$0xff]
    %v840 = vld [vmem:[#allocation2 + $0x14f8] sm:$0xff]
    %v841 = vld [vmem:[#allocation2 + $0x1500] sm:$0xff]
    %v842 = vld [vmem:[#allocation2 + $0x1508] sm:$0xff]
    %v843 = vld [vmem:[#allocation2 + $0x1510] sm:$0xff]
    %v844 = vld [vmem:[#allocation2 + $0x1518] sm:$0xff]
    %v845 = vld [vmem:[#allocation2 + $0x1520] sm:$0xff]
    %v846 = vld [vmem:[#allocation2 + $0x1528] sm:$0xff]
    %v847 = vld [vmem:[#allocation2 + $0x1530] sm:$0xff]
    %v848 = vld [vmem:[#allocation2 + $0x1538] sm:$0xff]
    %v849 = vld [vmem:[#allocation2 + $0x1540] sm:$0xff]
    %v850 = vld [vmem:[#allocation2 + $0x1548] sm:$0xff]
    %v851 = vld [vmem:[#allocation2 + $0x1550] sm:$0xff]
    %v852 = vld [vmem:[#allocation2 + $0x1558] sm:$0xff]
    %v853 = vld [vmem:[#allocation2 + $0x1560] sm:$0xff]
    %v854 = vld [vmem:[#allocation2 + $0x1568] sm:$0xff]
    %v855 = vld [vmem:[#allocation2 + $0x1570] sm:$0xff]
    %v856 = vld [vmem:[#allocation2 + $0x1578] sm:$0xff]
    %v857 = vld [vmem:[#allocation2 + $0x1580] sm:$0xff]
    %v858 = vld [vmem:[#allocation2 + $0x1588] sm:$0xff]
    %v859 = vld [vmem:[#allocation2 + $0x1590] sm:$0xff]
    %v860 = vld [vmem:[#allocation2 + $0x1598] sm:$0xff]
    %v861 = vld [vmem:[#allocation2 + $0x15a0] sm:$0xff]
    %v862 = vld [vmem:[#allocation2 + $0x15a8] sm:$0xff]
    %v863 = vld [vmem:[#allocation2 + $0x15b0] sm:$0xff]
    %v864 = vld [vmem:[#allocation2 + $0x15b8] sm:$0xff]
    %v865 = vld [vmem:[#allocation2 + $0x15c0] sm:$0xff]
    %v866 = vld [vmem:[#allocation2 + $0x15c8] sm:$0xff]
    %v867 = vld [vmem:[#allocation2 + $0x15d0] sm:$0xff]
    %v868 = vld [vmem:[#allocation2 + $0x15d8] sm:$0xff]
    %v869 = vld [vmem:[#allocation2 + $0x15e0] sm:$0xff]
    %v870 = vld [vmem:[#allocation2 + $0x15e8] sm:$0xff]
    %v871 = vld [vmem:[#allocation2 + $0x15f0] sm:$0xff]
    %v872 = vld [vmem:[#allocation2 + $0x15f8] sm:$0xff]
    %v873 = vld [vmem:[#allocation2 + $0x1600] sm:$0xff]
    %v874 = vld [vmem:[#allocation2 + $0x1608] sm:$0xff]
    %v875 = vld [vmem:[#allocation2 + $0x1610] sm:$0xff]
    %v876 = vld [vmem:[#allocation2 + $0x1618] sm:$0xff]
    %v877 = vld [vmem:[#allocation2 + $0x1620] sm:$0xff]
    %v878 = vld [vmem:[#allocation2 + $0x1628] sm:$0xff]
    %v879 = vld [vmem:[#allocation2 + $0x1630] sm:$0xff]
    %v880 = vld [vmem:[#allocation2 + $0x1638] sm:$0xff]
    %v881 = vld [vmem:[#allocation2 + $0x1640] sm:$0xff]
    %v882 = vld [vmem:[#allocation2 + $0x1648] sm:$0xff]
    %v883 = vld [vmem:[#allocation2 + $0x1650] sm:$0xff]
    %v884 = vld [vmem:[#allocation2 + $0x1658] sm:$0xff]
    %v885 = vld [vmem:[#allocation2 + $0x1660] sm:$0xff]
    %v886 = vld [vmem:[#allocation2 + $0x1668] sm:$0xff]
    %v887 = vld [vmem:[#allocation2 + $0x1670] sm:$0xff]
    %v888 = vld [vmem:[#allocation2 + $0x1678] sm:$0xff]
    %v889 = vld [vmem:[#allocation2 + $0x1680] sm:$0xff]
    %v890 = vld [vmem:[#allocation2 + $0x1688] sm:$0xff]
    %v891 = vld [vmem:[#allocation2 + $0x1690] sm:$0xff]
    %v892 = vld [vmem:[#allocation2 + $0x1698] sm:$0xff]
    %v893 = vld [vmem:[#allocation2 + $0x16a0] sm:$0xff]
    %v894 = vld [vmem:[#allocation2 + $0x16a8] sm:$0xff]
    %v895 = vld [vmem:[#allocation2 + $0x16b0] sm:$0xff]
    %v896 = vld [vmem:[#allocation2 + $0x16b8] sm:$0xff]
    %v897 = vld [vmem:[#allocation2 + $0x16c0] sm:$0xff]
    %v898 = vld [vmem:[#allocation2 + $0x16c8] sm:$0xff]
    %v899 = vld [vmem:[#allocation2 + $0x16d0] sm:$0xff]
    %v900 = vld [vmem:[#allocation2 + $0x16d8] sm:$0xff]
    %v901 = vld [vmem:[#allocation2 + $0x16e0] sm:$0xff]
    %v902 = vld [vmem:[#allocation2 + $0x16e8] sm:$0xff]
    %v903 = vld [vmem:[#allocation2 + $0x16f0] sm:$0xff]
    %v904 = vld [vmem:[#allocation2 + $0x16f8] sm:$0xff]
    %v905 = vld [vmem:[#allocation2 + $0x1700] sm:$0xff]
    %v906 = vld [vmem:[#allocation2 + $0x1708] sm:$0xff]
    %v907 = vld [vmem:[#allocation2 + $0x1710] sm:$0xff]
    %v908 = vld [vmem:[#allocation2 + $0x1718] sm:$0xff]
    %v909 = vld [vmem:[#allocation2 + $0x1720] sm:$0xff]
    %v910 = vld [vmem:[#allocation2 + $0x1728] sm:$0xff]
    %v911 = vld [vmem:[#allocation2 + $0x1730] sm:$0xff]
    %v912 = vld [vmem:[#allocation2 + $0x1738] sm:$0xff]
    %v913 = vld [vmem:[#allocation2 + $0x1740] sm:$0xff]
    %v914 = vld [vmem:[#allocation2 + $0x1748] sm:$0xff]
    %v915 = vld [vmem:[#allocation2 + $0x1750] sm:$0xff]
    %v916 = vld [vmem:[#allocation2 + $0x1758] sm:$0xff]
    %v917 = vld [vmem:[#allocation2 + $0x1760] sm:$0xff]
    %v918 = vld [vmem:[#allocation2 + $0x1768] sm:$0xff]
    %v919 = vld [vmem:[#allocation2 + $0x1770] sm:$0xff]
    %v920 = vld [vmem:[#allocation2 + $0x1778] sm:$0xff]
    %v921 = vld [vmem:[#allocation2 + $0x1780] sm:$0xff]
    %v922 = vld [vmem:[#allocation2 + $0x1788] sm:$0xff]
    %v923 = vld [vmem:[#allocation2 + $0x1790] sm:$0xff]
    %v924 = vld [vmem:[#allocation2 + $0x1798] sm:$0xff]
    %v925 = vld [vmem:[#allocation2 + $0x17a0] sm:$0xff]
    %v926 = vld [vmem:[#allocation2 + $0x17a8] sm:$0xff]
    %v927 = vld [vmem:[#allocation2 + $0x17b0] sm:$0xff]
    %v928 = vld [vmem:[#allocation2 + $0x17b8] sm:$0xff]
    %v929 = vld [vmem:[#allocation2 + $0x17c0] sm:$0xff]
    %v930 = vld [vmem:[#allocation2 + $0x17c8] sm:$0xff]
    %v931 = vld [vmem:[#allocation2 + $0x17d0] sm:$0xff]
    %v932 = vld [vmem:[#allocation2 + $0x17d8] sm:$0xff]
    %v933 = vld [vmem:[#allocation2 + $0x17e0] sm:$0xff]
    %v934 = vld [vmem:[#allocation2 + $0x17e8] sm:$0xff]
    %v935 = vld [vmem:[#allocation2 + $0x17f0] sm:$0xff]
    %v936 = vld [vmem:[#allocation2 + $0x17f8] sm:$0xff]
    %v937 = vld [vmem:[#allocation2 + $0x1800] sm:$0xff]
    %v938 = vld [vmem:[#allocation2 + $0x1808] sm:$0xff]
    %v939 = vld [vmem:[#allocation2 + $0x1810] sm:$0xff]
    %v940 = vld [vmem:[#allocation2 + $0x1818] sm:$0xff]
    %v941 = vld [vmem:[#allocation2 + $0x1820] sm:$0xff]
    %v942 = vld [vmem:[#allocation2 + $0x1828] sm:$0xff]
    %v943 = vld [vmem:[#allocation2 + $0x1830] sm:$0xff]
    %v944 = vld [vmem:[#allocation2 + $0x1838] sm:$0xff]
    %v945 = vld [vmem:[#allocation2 + $0x1840] sm:$0xff]
    %v946 = vld [vmem:[#allocation2 + $0x1848] sm:$0xff]
    %v947 = vld [vmem:[#allocation2 + $0x1850] sm:$0xff]
    %v948 = vld [vmem:[#allocation2 + $0x1858] sm:$0xff]
    %v949 = vld [vmem:[#allocation2 + $0x1860] sm:$0xff]
    %v950 = vld [vmem:[#allocation2 + $0x1868] sm:$0xff]
    %v951 = vld [vmem:[#allocation2 + $0x1870] sm:$0xff]
    %v952 = vld [vmem:[#allocation2 + $0x1878] sm:$0xff]
    %v953 = vld [vmem:[#allocation2 + $0x1880] sm:$0xff]
    %v954 = vld [vmem:[#allocation2 + $0x1888] sm:$0xff]
    %v955 = vld [vmem:[#allocation2 + $0x1890] sm:$0xff]
    %v956 = vld [vmem:[#allocation2 + $0x1898] sm:$0xff]
    %v957 = vld [vmem:[#allocation2 + $0x18a0] sm:$0xff]
    %v958 = vld [vmem:[#allocation2 + $0x18a8] sm:$0xff]
    %v959 = vld [vmem:[#allocation2 + $0x18b0] sm:$0xff]
    %v960 = vld [vmem:[#allocation2 + $0x18b8] sm:$0xff]
    %v961 = vld [vmem:[#allocation2 + $0x18c0] sm:$0xff]
    %v962 = vld [vmem:[#allocation2 + $0x18c8] sm:$0xff]
    %v963 = vld [vmem:[#allocation2 + $0x18d0] sm:$0xff]
    %v964 = vld [vmem:[#allocation2 + $0x18d8] sm:$0xff]
    %v965 = vld [vmem:[#allocation2 + $0x18e0] sm:$0xff]
    %v966 = vld [vmem:[#allocation2 + $0x18e8] sm:$0xff]
    %v967 = vld [vmem:[#allocation2 + $0x18f0] sm:$0xff]
    %v968 = vld [vmem:[#allocation2 + $0x18f8] sm:$0xff]
    %v969 = vld [vmem:[#allocation2 + $0x1900] sm:$0xff]
    %v970 = vld [vmem:[#allocation2 + $0x1908] sm:$0xff]
    %v971 = vld [vmem:[#allocation2 + $0x1910] sm:$0xff]
    %v972 = vld [vmem:[#allocation2 + $0x1918] sm:$0xff]
    %v973 = vld [vmem:[#allocation2 + $0x1920] sm:$0xff]
    %v974 = vld [vmem:[#allocation2 + $0x1928] sm:$0xff]
    %v975 = vld [vmem:[#allocation2 + $0x1930] sm:$0xff]
    %v976 = vld [vmem:[#allocation2 + $0x1938] sm:$0xff]
    %v977 = vld [vmem:[#allocation2 + $0x1940] sm:$0xff]
    %v978 = vld [vmem:[#allocation2 + $0x1948] sm:$0xff]
    %v979 = vld [vmem:[#allocation2 + $0x1950] sm:$0xff]
    %v980 = vld [vmem:[#allocation2 + $0x1958] sm:$0xff]
    %v981 = vld [vmem:[#allocation2 + $0x1960] sm:$0xff]
    %v982 = vld [vmem:[#allocation2 + $0x1968] sm:$0xff]
    %v983 = vld [vmem:[#allocation2 + $0x1970] sm:$0xff]
    %v984 = vld [vmem:[#allocation2 + $0x1978] sm:$0xff]
    %v985 = vld [vmem:[#allocation2 + $0x1980] sm:$0xff]
    %v986 = vld [vmem:[#allocation2 + $0x1988] sm:$0xff]
    %v987 = vld [vmem:[#allocation2 + $0x1990] sm:$0xff]
    %v988 = vld [vmem:[#allocation2 + $0x1998] sm:$0xff]
    %v989 = vld [vmem:[#allocation2 + $0x19a0] sm:$0xff]
    %v990 = vld [vmem:[#allocation2 + $0x19a8] sm:$0xff]
    %v991 = vld [vmem:[#allocation2 + $0x19b0] sm:$0xff]
    %v992 = vld [vmem:[#allocation2 + $0x19b8] sm:$0xff]
    %v993 = vld [vmem:[#allocation2 + $0x19c0] sm:$0xff]
    %v994 = vld [vmem:[#allocation2 + $0x19c8] sm:$0xff]
    %v995 = vld [vmem:[#allocation2 + $0x19d0] sm:$0xff]
    %v996 = vld [vmem:[#allocation2 + $0x19d8] sm:$0xff]
    %v997 = vld [vmem:[#allocation2 + $0x19e0] sm:$0xff]
    %v998 = vld [vmem:[#allocation2 + $0x19e8] sm:$0xff]
    %v999 = vld [vmem:[#allocation2 + $0x19f0] sm:$0xff]
    %v1000 = vld [vmem:[#allocation2 + $0x19f8] sm:$0xff]
    %v1001 = vld [vmem:[#allocation2 + $0x1a00] sm:$0xff]
    %v1002 = vld [vmem:[#allocation2 + $0x1a08] sm:$0xff]
    %v1003 = vld [vmem:[#allocation2 + $0x1a10] sm:$0xff]
    %v1004 = vld [vmem:[#allocation2 + $0x1a18] sm:$0xff]
    %v1005 = vld [vmem:[#allocation2 + $0x1a20] sm:$0xff]
    %v1006 = vld [vmem:[#allocation2 + $0x1a28] sm:$0xff]
    %v1007 = vld [vmem:[#allocation2 + $0x1a30] sm:$0xff]
    %v1008 = vld [vmem:[#allocation2 + $0x1a38] sm:$0xff]
    %v1009 = vld [vmem:[#allocation2 + $0x1a40] sm:$0xff]
    %v1010 = vld [vmem:[#allocation2 + $0x1a48] sm:$0xff]
    %v1011 = vld [vmem:[#allocation2 + $0x1a50] sm:$0xff]
    %v1012 = vld [vmem:[#allocation2 + $0x1a58] sm:$0xff]
    %v1013 = vld [vmem:[#allocation2 + $0x1a60] sm:$0xff]
    %v1014 = vld [vmem:[#allocation2 + $0x1a68] sm:$0xff]
    %v1015 = vld [vmem:[#allocation2 + $0x1a70] sm:$0xff]
    %v1016 = vld [vmem:[#allocation2 + $0x1a78] sm:$0xff]
    %v1017 = vld [vmem:[#allocation2 + $0x1a80] sm:$0xff]
    %v1018 = vld [vmem:[#allocation2 + $0x1a88] sm:$0xff]
    %v1019 = vld [vmem:[#allocation2 + $0x1a90] sm:$0xff]
    %v1020 = vld [vmem:[#allocation2 + $0x1a98] sm:$0xff]
    %v1021 = vld [vmem:[#allocation2 + $0x1aa0] sm:$0xff]
    %v1022 = vld [vmem:[#allocation2 + $0x1aa8] sm:$0xff]
    %v1023 = vld [vmem:[#allocation2 + $0x1ab0] sm:$0xff]
    %v1024 = vld [vmem:[#allocation2 + $0x1ab8] sm:$0xff]
    %v1025 = vld [vmem:[#allocation2 + $0x1ac0] sm:$0xff]
    %v1026 = vld [vmem:[#allocation2 + $0x1ac8] sm:$0xff]
    %v1027 = vld [vmem:[#allocation2 + $0x1ad0] sm:$0xff]
    %v1028 = vld [vmem:[#allocation2 + $0x1ad8] sm:$0xff]
    %v1029 = vld [vmem:[#allocation2 + $0x1ae0] sm:$0xff]
    %v1030 = vld [vmem:[#allocation2 + $0x1ae8] sm:$0xff]
    %v1031 = vld [vmem:[#allocation2 + $0x1af0] sm:$0xff]
    %v1032 = vld [vmem:[#allocation2 + $0x1af8] sm:$0xff]
    %v1033 = vld [vmem:[#allocation2 + $0x1b00] sm:$0xff]
    %v1034 = vld [vmem:[#allocation2 + $0x1b08] sm:$0xff]
    %v1035 = vld [vmem:[#allocation2 + $0x1b10] sm:$0xff]
    %v1036 = vld [vmem:[#allocation2 + $0x1b18] sm:$0xff]
    %v1037 = vld [vmem:[#allocation2 + $0x1b20] sm:$0xff]
    %v1038 = vld [vmem:[#allocation2 + $0x1b28] sm:$0xff]
    %v1039 = vld [vmem:[#allocation2 + $0x1b30] sm:$0xff]
    %v1040 = vld [vmem:[#allocation2 + $0x1b38] sm:$0xff]
    %v1041 = vld [vmem:[#allocation2 + $0x1b40] sm:$0xff]
    %v1042 = vld [vmem:[#allocation2 + $0x1b48] sm:$0xff]
    %v1043 = vld [vmem:[#allocation2 + $0x1b50] sm:$0xff]
    %v1044 = vld [vmem:[#allocation2 + $0x1b58] sm:$0xff]
    %v1045 = vld [vmem:[#allocation2 + $0x1b60] sm:$0xff]
    %v1046 = vld [vmem:[#allocation2 + $0x1b68] sm:$0xff]
    %v1047 = vld [vmem:[#allocation2 + $0x1b70] sm:$0xff]
    %v1048 = vld [vmem:[#allocation2 + $0x1b78] sm:$0xff]
    %v1049 = vld [vmem:[#allocation2 + $0x1b80] sm:$0xff]
    %v1050 = vld [vmem:[#allocation2 + $0x1b88] sm:$0xff]
    %v1051 = vld [vmem:[#allocation2 + $0x1b90] sm:$0xff]
    %v1052 = vld [vmem:[#allocation2 + $0x1b98] sm:$0xff]
    %v1053 = vld [vmem:[#allocation2 + $0x1ba0] sm:$0xff]
    %v1054 = vld [vmem:[#allocation2 + $0x1ba8] sm:$0xff]
    %v1055 = vld [vmem:[#allocation2 + $0x1bb0] sm:$0xff]
    %v1056 = vld [vmem:[#allocation2 + $0x1bb8] sm:$0xff]
    %v1057 = vld [vmem:[#allocation2 + $0x1bc0] sm:$0xff]
    %v1058 = vld [vmem:[#allocation2 + $0x1bc8] sm:$0xff]
    %v1059 = vld [vmem:[#allocation2 + $0x1bd0] sm:$0xff]
    %v1060 = vld [vmem:[#allocation2 + $0x1bd8] sm:$0xff]
    %v1061 = vld [vmem:[#allocation2 + $0x1be0] sm:$0xff]
    %v1062 = vld [vmem:[#allocation2 + $0x1be8] sm:$0xff]
    %v1063 = vld [vmem:[#allocation2 + $0x1bf0] sm:$0xff]
    %v1064 = vld [vmem:[#allocation2 + $0x1bf8] sm:$0xff]
    %v1065 = vld [vmem:[#allocation2 + $0x1c00] sm:$0xff]
    %v1066 = vld [vmem:[#allocation2 + $0x1c08] sm:$0xff]
    %v1067 = vld [vmem:[#allocation2 + $0x1c10] sm:$0xff]
    %v1068 = vld [vmem:[#allocation2 + $0x1c18] sm:$0xff]
    %v1069 = vld [vmem:[#allocation2 + $0x1c20] sm:$0xff]
    %v1070 = vld [vmem:[#allocation2 + $0x1c28] sm:$0xff]
    %v1071 = vld [vmem:[#allocation2 + $0x1c30] sm:$0xff]
    %v1072 = vld [vmem:[#allocation2 + $0x1c38] sm:$0xff]
    %v1073 = vld [vmem:[#allocation2 + $0x1c40] sm:$0xff]
    %v1074 = vld [vmem:[#allocation2 + $0x1c48] sm:$0xff]
    %v1075 = vld [vmem:[#allocation2 + $0x1c50] sm:$0xff]
    %v1076 = vld [vmem:[#allocation2 + $0x1c58] sm:$0xff]
    %v1077 = vld [vmem:[#allocation2 + $0x1c60] sm:$0xff]
    %v1078 = vld [vmem:[#allocation2 + $0x1c68] sm:$0xff]
    %v1079 = vld [vmem:[#allocation2 + $0x1c70] sm:$0xff]
    %v1080 = vld [vmem:[#allocation2 + $0x1c78] sm:$0xff]
    %v1081 = vld [vmem:[#allocation2 + $0x1c80] sm:$0xff]
    %v1082 = vld [vmem:[#allocation2 + $0x1c88] sm:$0xff]
    %v1083 = vld [vmem:[#allocation2 + $0x1c90] sm:$0xff]
    %v1084 = vld [vmem:[#allocation2 + $0x1c98] sm:$0xff]
    %v1085 = vld [vmem:[#allocation2 + $0x1ca0] sm:$0xff]
    %v1086 = vld [vmem:[#allocation2 + $0x1ca8] sm:$0xff]
    %v1087 = vld [vmem:[#allocation2 + $0x1cb0] sm:$0xff]
    %v1088 = vld [vmem:[#allocation2 + $0x1cb8] sm:$0xff]
    %v1089 = vld [vmem:[#allocation2 + $0x1cc0] sm:$0xff]
    %v1090 = vld [vmem:[#allocation2 + $0x1cc8] sm:$0xff]
    %v1091 = vld [vmem:[#allocation2 + $0x1cd0] sm:$0xff]
    %v1092 = vld [vmem:[#allocation2 + $0x1cd8] sm:$0xff]
    %v1093 = vld [vmem:[#allocation2 + $0x1ce0] sm:$0xff]
    %v1094 = vld [vmem:[#allocation2 + $0x1ce8] sm:$0xff]
    %v1095 = vld [vmem:[#allocation2 + $0x1cf0] sm:$0xff]
    %v1096 = vld [vmem:[#allocation2 + $0x1cf8] sm:$0xff]
    %v1097 = vld [vmem:[#allocation2 + $0x1d00] sm:$0xff]
    %v1098 = vld [vmem:[#allocation2 + $0x1d08] sm:$0xff]
    %v1099 = vld [vmem:[#allocation2 + $0x1d10] sm:$0xff]
    %v1100 = vld [vmem:[#allocation2 + $0x1d18] sm:$0xff]
    %v1101 = vld [vmem:[#allocation2 + $0x1d20] sm:$0xff]
    %v1102 = vld [vmem:[#allocation2 + $0x1d28] sm:$0xff]
    %v1103 = vld [vmem:[#allocation2 + $0x1d30] sm:$0xff]
    %v1104 = vld [vmem:[#allocation2 + $0x1d38] sm:$0xff]
    %v1105 = vld [vmem:[#allocation2 + $0x1d40] sm:$0xff]
    %v1106 = vld [vmem:[#allocation2 + $0x1d48] sm:$0xff]
    %v1107 = vld [vmem:[#allocation2 + $0x1d50] sm:$0xff]
    %v1108 = vld [vmem:[#allocation2 + $0x1d58] sm:$0xff]
    %v1109 = vld [vmem:[#allocation2 + $0x1d60] sm:$0xff]
    %v1110 = vld [vmem:[#allocation2 + $0x1d68] sm:$0xff]
    %v1111 = vld [vmem:[#allocation2 + $0x1d70] sm:$0xff]
    %v1112 = vld [vmem:[#allocation2 + $0x1d78] sm:$0xff]
    %v1113 = vld [vmem:[#allocation2 + $0x1d80] sm:$0xff]
    %v1114 = vld [vmem:[#allocation2 + $0x1d88] sm:$0xff]
    %v1115 = vld [vmem:[#allocation2 + $0x1d90] sm:$0xff]
    %v1116 = vld [vmem:[#allocation2 + $0x1d98] sm:$0xff]
    %v1117 = vld [vmem:[#allocation2 + $0x1da0] sm:$0xff]
    %v1118 = vld [vmem:[#allocation2 + $0x1da8] sm:$0xff]
    %v1119 = vld [vmem:[#allocation2 + $0x1db0] sm:$0xff]
    %v1120 = vld [vmem:[#allocation2 + $0x1db8] sm:$0xff]
    %v1121 = vld [vmem:[#allocation2 + $0x1dc0] sm:$0xff]
    %v1122 = vld [vmem:[#allocation2 + $0x1dc8] sm:$0xff]
    %v1123 = vld [vmem:[#allocation2 + $0x1dd0] sm:$0xff]
    %v1124 = vld [vmem:[#allocation2 + $0x1dd8] sm:$0xff]
    %v1125 = vld [vmem:[#allocation2 + $0x1de0] sm:$0xff]
    %v1126 = vld [vmem:[#allocation2 + $0x1de8] sm:$0xff]
    %v1127 = vld [vmem:[#allocation2 + $0x1df0] sm:$0xff]
    %v1128 = vld [vmem:[#allocation2 + $0x1df8] sm:$0xff]
    %v1129 = vld [vmem:[#allocation2 + $0x1e00] sm:$0xff]
    %v1130 = vld [vmem:[#allocation2 + $0x1e08] sm:$0xff]
    %v1131 = vld [vmem:[#allocation2 + $0x1e10] sm:$0xff]
    %v1132 = vld [vmem:[#allocation2 + $0x1e18] sm:$0xff]
    %v1133 = vld [vmem:[#allocation2 + $0x1e20] sm:$0xff]
    %v1134 = vld [vmem:[#allocation2 + $0x1e28] sm:$0xff]
    %v1135 = vld [vmem:[#allocation2 + $0x1e30] sm:$0xff]
    %v1136 = vld [vmem:[#allocation2 + $0x1e38] sm:$0xff]
    %v1137 = vld [vmem:[#allocation2 + $0x1e40] sm:$0xff]
    %v1138 = vld [vmem:[#allocation2 + $0x1e48] sm:$0xff]
    %v1139 = vld [vmem:[#allocation2 + $0x1e50] sm:$0xff]
    %v1140 = vld [vmem:[#allocation2 + $0x1e58] sm:$0xff]
    %v1141 = vld [vmem:[#allocation2 + $0x1e60] sm:$0xff]
    %v1142 = vld [vmem:[#allocation2 + $0x1e68] sm:$0xff]
    %v1143 = vld [vmem:[#allocation2 + $0x1e70] sm:$0xff]
    %v1144 = vld [vmem:[#allocation2 + $0x1e78] sm:$0xff]
    %v1145 = vld [vmem:[#allocation2 + $0x1e80] sm:$0xff]
    %v1146 = vld [vmem:[#allocation2 + $0x1e88] sm:$0xff]
    %v1147 = vld [vmem:[#allocation2 + $0x1e90] sm:$0xff]
    %v1148 = vld [vmem:[#allocation2 + $0x1e98] sm:$0xff]
    %v1149 = vld [vmem:[#allocation2 + $0x1ea0] sm:$0xff]
    %v1150 = vld [vmem:[#allocation2 + $0x1ea8] sm:$0xff]
    %v1151 = vld [vmem:[#allocation2 + $0x1eb0] sm:$0xff]
    %v1152 = vld [vmem:[#allocation2 + $0x1eb8] sm:$0xff]
    %v1153 = vld [vmem:[#allocation2 + $0x1ec0] sm:$0xff]
    %v1154 = vld [vmem:[#allocation2 + $0x1ec8] sm:$0xff]
    %v1155 = vld [vmem:[#allocation2 + $0x1ed0] sm:$0xff]
    %v1156 = vld [vmem:[#allocation2 + $0x1ed8] sm:$0xff]
    %v1157 = vld [vmem:[#allocation2 + $0x1ee0] sm:$0xff]
    %v1158 = vld [vmem:[#allocation2 + $0x1ee8] sm:$0xff]
    %v1159 = vld [vmem:[#allocation2 + $0x1ef0] sm:$0xff]
    %v1160 = vld [vmem:[#allocation2 + $0x1ef8] sm:$0xff]
    %v1161 = vld [vmem:[#allocation2 + $0x1f00] sm:$0xff]
    %v1162 = vld [vmem:[#allocation2 + $0x1f08] sm:$0xff]
    %v1163 = vld [vmem:[#allocation2 + $0x1f10] sm:$0xff]
    %v1164 = vld [vmem:[#allocation2 + $0x1f18] sm:$0xff]
    %v1165 = vld [vmem:[#allocation2 + $0x1f20] sm:$0xff]
    %v1166 = vld [vmem:[#allocation2 + $0x1f28] sm:$0xff]
    %v1167 = vld [vmem:[#allocation2 + $0x1f30] sm:$0xff]
    %v1168 = vld [vmem:[#allocation2 + $0x1f38] sm:$0xff]
    %v1169 = vld [vmem:[#allocation2 + $0x1f40] sm:$0xff]
    %v1170 = vld [vmem:[#allocation2 + $0x1f48] sm:$0xff]
    %v1171 = vld [vmem:[#allocation2 + $0x1f50] sm:$0xff]
    %v1172 = vld [vmem:[#allocation2 + $0x1f58] sm:$0xff]
    %v1173 = vld [vmem:[#allocation2 + $0x1f60] sm:$0xff]
    %v1174 = vld [vmem:[#allocation2 + $0x1f68] sm:$0xff]
    %v1175 = vld [vmem:[#allocation2 + $0x1f70] sm:$0xff]
    %v1176 = vld [vmem:[#allocation2 + $0x1f78] sm:$0xff]
    %v1177 = vld [vmem:[#allocation2 + $0x1f80] sm:$0xff]
    %v1178 = vld [vmem:[#allocation2 + $0x1f88] sm:$0xff]
    %v1179 = vld [vmem:[#allocation2 + $0x1f90] sm:$0xff]
    %v1180 = vld [vmem:[#allocation2 + $0x1f98] sm:$0xff]
    %v1181 = vld [vmem:[#allocation2 + $0x1fa0] sm:$0xff]
    %v1182 = vld [vmem:[#allocation2 + $0x1fa8] sm:$0xff]
    %v1183 = vld [vmem:[#allocation2 + $0x1fb0] sm:$0xff]
    %v1184 = vld [vmem:[#allocation2 + $0x1fb8] sm:$0xff]
    %v1185 = vld [vmem:[#allocation2 + $0x1fc0] sm:$0xff]
    %v1186 = vld [vmem:[#allocation2 + $0x1fc8] sm:$0xff]
    %v1187 = vld [vmem:[#allocation2 + $0x1fd0] sm:$0xff]
    %v1188 = vld [vmem:[#allocation2 + $0x1fd8] sm:$0xff]
    %v1189 = vld [vmem:[#allocation2 + $0x1fe0] sm:$0xff]
    %v1190 = vld [vmem:[#allocation2 + $0x1fe8] sm:$0xff]
    %v1191 = vld [vmem:[#allocation2 + $0x1ff0] sm:$0xff]
    %v1192 = vld [vmem:[#allocation2 + $0x1ff8] sm:$0xff]
    %v1193 = vld [vmem:[#allocation2 + $0x2000] sm:$0xff]
    %v1194 = vld [vmem:[#allocation2 + $0x2008] sm:$0xff]
    %v1195 = vld [vmem:[#allocation2 + $0x2010] sm:$0xff]
    %v1196 = vld [vmem:[#allocation2 + $0x2018] sm:$0xff]
    %v1197 = vld [vmem:[#allocation2 + $0x2020] sm:$0xff]
    %v1198 = vld [vmem:[#allocation2 + $0x2028] sm:$0xff]
    %v1199 = vld [vmem:[#allocation2 + $0x2030] sm:$0xff]
    %v1200 = vld [vmem:[#allocation2 + $0x2038] sm:$0xff]
    %v1201 = vld [vmem:[#allocation2 + $0x2040] sm:$0xff]
    %v1202 = vld [vmem:[#allocation2 + $0x2048] sm:$0xff]
    %v1203 = vld [vmem:[#allocation2 + $0x2050] sm:$0xff]
    %v1204 = vld [vmem:[#allocation2 + $0x2058] sm:$0xff]
    %v1205 = vld [vmem:[#allocation2 + $0x2060] sm:$0xff]
    %v1206 = vld [vmem:[#allocation2 + $0x2068] sm:$0xff]
    %v1207 = vld [vmem:[#allocation2 + $0x2070] sm:$0xff]
    %v1208 = vld [vmem:[#allocation2 + $0x2078] sm:$0xff]
    %v1209 = vld [vmem:[#allocation2 + $0x2080] sm:$0xff]
    %v1210 = vld [vmem:[#allocation2 + $0x2088] sm:$0xff]
    %v1211 = vld [vmem:[#allocation2 + $0x2090] sm:$0xff]
    %v1212 = vld [vmem:[#allocation2 + $0x2098] sm:$0xff]
    %v1213 = vld [vmem:[#allocation2 + $0x20a0] sm:$0xff]
    %v1214 = vld [vmem:[#allocation2 + $0x20a8] sm:$0xff]
    %v1215 = vld [vmem:[#allocation2 + $0x20b0] sm:$0xff]
    %v1216 = vld [vmem:[#allocation2 + $0x20b8] sm:$0xff]
    %v1217 = vld [vmem:[#allocation2 + $0x20c0] sm:$0xff]
    %v1218 = vld [vmem:[#allocation2 + $0x20c8] sm:$0xff]
    %v1219 = vld [vmem:[#allocation2 + $0x20d0] sm:$0xff]
    %v1220 = vld [vmem:[#allocation2 + $0x20d8] sm:$0xff]
    %v1221 = vld [vmem:[#allocation2 + $0x20e0] sm:$0xff]
    %v1222 = vld [vmem:[#allocation2 + $0x20e8] sm:$0xff]
    %v1223 = vld [vmem:[#allocation2 + $0x20f0] sm:$0xff]
    %v1224 = vld [vmem:[#allocation2 + $0x20f8] sm:$0xff]
    %v1225 = vld [vmem:[#allocation2 + $0x2100] sm:$0xff]
    %v1226 = vld [vmem:[#allocation2 + $0x2108] sm:$0xff]
    %v1227 = vld [vmem:[#allocation2 + $0x2110] sm:$0xff]
    %v1228 = vld [vmem:[#allocation2 + $0x2118] sm:$0xff]
    %v1229 = vld [vmem:[#allocation2 + $0x2120] sm:$0xff]
    %v1230 = vld [vmem:[#allocation2 + $0x2128] sm:$0xff]
    %v1231 = vld [vmem:[#allocation2 + $0x2130] sm:$0xff]
    %v1232 = vld [vmem:[#allocation2 + $0x2138] sm:$0xff]
    %v1233 = vld [vmem:[#allocation2 + $0x2140] sm:$0xff]
    %v1234 = vld [vmem:[#allocation2 + $0x2148] sm:$0xff]
    %v1235 = vld [vmem:[#allocation2 + $0x2150] sm:$0xff]
    %v1236 = vld [vmem:[#allocation2 + $0x2158] sm:$0xff]
    %v1237 = vld [vmem:[#allocation2 + $0x2160] sm:$0xff]
    %v1238 = vld [vmem:[#allocation2 + $0x2168] sm:$0xff]
    %v1239 = vld [vmem:[#allocation2 + $0x2170] sm:$0xff]
    %v1240 = vld [vmem:[#allocation2 + $0x2178] sm:$0xff]
    %v1241 = vld [vmem:[#allocation2 + $0x2180] sm:$0xff]
    %v1242 = vld [vmem:[#allocation2 + $0x2188] sm:$0xff]
    %v1243 = vld [vmem:[#allocation2 + $0x2190] sm:$0xff]
    %v1244 = vld [vmem:[#allocation2 + $0x2198] sm:$0xff]
    %v1245 = vld [vmem:[#allocation2 + $0x21a0] sm:$0xff]
    %v1246 = vld [vmem:[#allocation2 + $0x21a8] sm:$0xff]
    %v1247 = vld [vmem:[#allocation2 + $0x21b0] sm:$0xff]
    %v1248 = vld [vmem:[#allocation2 + $0x21b8] sm:$0xff]
    %v1249 = vld [vmem:[#allocation2 + $0x21c0] sm:$0xff]
    %v1250 = vld [vmem:[#allocation2 + $0x21c8] sm:$0xff]
    %v1251 = vld [vmem:[#allocation2 + $0x21d0] sm:$0xff]
    %v1252 = vld [vmem:[#allocation2 + $0x21d8] sm:$0xff]
    %v1253 = vld [vmem:[#allocation2 + $0x21e0] sm:$0xff]
    %v1254 = vld [vmem:[#allocation2 + $0x21e8] sm:$0xff]
    %v1255 = vld [vmem:[#allocation2 + $0x21f0] sm:$0xff]
    %v1256 = vld [vmem:[#allocation2 + $0x21f8] sm:$0xff]
    %v1257 = vld [vmem:[#allocation2 + $0x2200] sm:$0xff]
    %v1258 = vld [vmem:[#allocation2 + $0x2208] sm:$0xff]
    %v1259 = vld [vmem:[#allocation2 + $0x2210] sm:$0xff]
    %v1260 = vld [vmem:[#allocation2 + $0x2218] sm:$0xff]
    %v1261 = vld [vmem:[#allocation2 + $0x2220] sm:$0xff]
    %v1262 = vld [vmem:[#allocation2 + $0x2228] sm:$0xff]
    %v1263 = vld [vmem:[#allocation2 + $0x2230] sm:$0xff]
    %v1264 = vld [vmem:[#allocation2 + $0x2238] sm:$0xff]
    %v1265 = vld [vmem:[#allocation2 + $0x2240] sm:$0xff]
    %v1266 = vld [vmem:[#allocation2 + $0x2248] sm:$0xff]
    %v1267 = vld [vmem:[#allocation2 + $0x2250] sm:$0xff]
    %v1268 = vld [vmem:[#allocation2 + $0x2258] sm:$0xff]
    %v1269 = vld [vmem:[#allocation2 + $0x2260] sm:$0xff]
    %v1270 = vld [vmem:[#allocation2 + $0x2268] sm:$0xff]
    %v1271 = vld [vmem:[#allocation2 + $0x2270] sm:$0xff]
    %v1272 = vld [vmem:[#allocation2 + $0x2278] sm:$0xff]
    %v1273 = vld [vmem:[#allocation2 + $0x2280] sm:$0xff]
    %v1274 = vld [vmem:[#allocation2 + $0x2288] sm:$0xff]
    %v1275 = vld [vmem:[#allocation2 + $0x2290] sm:$0xff]
    %v1276 = vld [vmem:[#allocation2 + $0x2298] sm:$0xff]
    %v1277 = vld [vmem:[#allocation2 + $0x22a0] sm:$0xff]
    %v1278 = vld [vmem:[#allocation2 + $0x22a8] sm:$0xff]
    %v1279 = vld [vmem:[#allocation2 + $0x22b0] sm:$0xff]
    %v1280 = vld [vmem:[#allocation2 + $0x22b8] sm:$0xff]
    %v1281 = vld [vmem:[#allocation2 + $0x22c0] sm:$0xff]
    %v1282 = vld [vmem:[#allocation2 + $0x22c8] sm:$0xff]
    %v1283 = vld [vmem:[#allocation2 + $0x22d0] sm:$0xff]
    %v1284 = vld [vmem:[#allocation2 + $0x22d8] sm:$0xff]
    %v1285 = vld [vmem:[#allocation2 + $0x22e0] sm:$0xff]
    %v1286 = vld [vmem:[#allocation2 + $0x22e8] sm:$0xff]
    %v1287 = vld [vmem:[#allocation2 + $0x22f0] sm:$0xff]
    %v1288 = vld [vmem:[#allocation2 + $0x22f8] sm:$0xff]
    %v1289 = vld [vmem:[#allocation2 + $0x2300] sm:$0xff]
    %v1290 = vld [vmem:[#allocation2 + $0x2308] sm:$0xff]
    %v1291 = vld [vmem:[#allocation2 + $0x2310] sm:$0xff]
    %v1292 = vld [vmem:[#allocation2 + $0x2318] sm:$0xff]
    %v1293 = vld [vmem:[#allocation2 + $0x2320] sm:$0xff]
    %v1294 = vld [vmem:[#allocation2 + $0x2328] sm:$0xff]
    %v1295 = vld [vmem:[#allocation2 + $0x2330] sm:$0xff]
    %v1296 = vld [vmem:[#allocation2 + $0x2338] sm:$0xff]
    %v1297 = vld [vmem:[#allocation2 + $0x2340] sm:$0xff]
    %v1298 = vld [vmem:[#allocation2 + $0x2348] sm:$0xff]
    %v1299 = vld [vmem:[#allocation2 + $0x2350] sm:$0xff]
    %v1300 = vld [vmem:[#allocation2 + $0x2358] sm:$0xff]
    %v1301 = vld [vmem:[#allocation2 + $0x2360] sm:$0xff]
    %v1302 = vld [vmem:[#allocation2 + $0x2368] sm:$0xff]
    %v1303 = vld [vmem:[#allocation2 + $0x2370] sm:$0xff]
    %v1304 = vld [vmem:[#allocation2 + $0x2378] sm:$0xff]
    %v1305 = vld [vmem:[#allocation2 + $0x2380] sm:$0xff]
    %v1306 = vld [vmem:[#allocation2 + $0x2388] sm:$0xff]
    %v1307 = vld [vmem:[#allocation2 + $0x2390] sm:$0xff]
    %v1308 = vld [vmem:[#allocation2 + $0x2398] sm:$0xff]
    %v1309 = vld [vmem:[#allocation2 + $0x23a0] sm:$0xff]
    %v1310 = vld [vmem:[#allocation2 + $0x23a8] sm:$0xff]
    %v1311 = vld [vmem:[#allocation2 + $0x23b0] sm:$0xff]
    %v1312 = vld [vmem:[#allocation2 + $0x23b8] sm:$0xff]
    %v1313 = vld [vmem:[#allocation2 + $0x23c0] sm:$0xff]
    %v1314 = vld [vmem:[#allocation2 + $0x23c8] sm:$0xff]
    %v1315 = vld [vmem:[#allocation2 + $0x23d0] sm:$0xff]
    %v1316 = vld [vmem:[#allocation2 + $0x23d8] sm:$0xff]
    %v1317 = vld [vmem:[#allocation2 + $0x23e0] sm:$0xff]
    %v1318 = vld [vmem:[#allocation2 + $0x23e8] sm:$0xff]
    %v1319 = vld [vmem:[#allocation2 + $0x23f0] sm:$0xff]
    %v1320 = vld [vmem:[#allocation2 + $0x23f8] sm:$0xff]
    %v1321 = vld [vmem:[#allocation2 + $0x2400] sm:$0xff]
    %v1322 = vld [vmem:[#allocation2 + $0x2408] sm:$0xff]
    %v1323 = vld [vmem:[#allocation2 + $0x2410] sm:$0xff]
    %v1324 = vld [vmem:[#allocation2 + $0x2418] sm:$0xff]
    %v1325 = vld [vmem:[#allocation2 + $0x2420] sm:$0xff]
    %v1326 = vld [vmem:[#allocation2 + $0x2428] sm:$0xff]
    %v1327 = vld [vmem:[#allocation2 + $0x2430] sm:$0xff]
    %v1328 = vld [vmem:[#allocation2 + $0x2438] sm:$0xff]
    %v1329 = vld [vmem:[#allocation2 + $0x2440] sm:$0xff]
    %v1330 = vld [vmem:[#allocation2 + $0x2448] sm:$0xff]
    %v1331 = vld [vmem:[#allocation2 + $0x2450] sm:$0xff]
    %v1332 = vld [vmem:[#allocation2 + $0x2458] sm:$0xff]
    %v1333 = vld [vmem:[#allocation2 + $0x2460] sm:$0xff]
    %v1334 = vld [vmem:[#allocation2 + $0x2468] sm:$0xff]
    %v1335 = vld [vmem:[#allocation2 + $0x2470] sm:$0xff]
    %v1336 = vld [vmem:[#allocation2 + $0x2478] sm:$0xff]
    %v1337 = vld [vmem:[#allocation2 + $0x2480] sm:$0xff]
    %v1338 = vld [vmem:[#allocation2 + $0x2488] sm:$0xff]
    %v1339 = vld [vmem:[#allocation2 + $0x2490] sm:$0xff]
    %v1340 = vld [vmem:[#allocation2 + $0x2498] sm:$0xff]
    %v1341 = vld [vmem:[#allocation2 + $0x24a0] sm:$0xff]
    %v1342 = vld [vmem:[#allocation2 + $0x24a8] sm:$0xff]
    %v1343 = vld [vmem:[#allocation2 + $0x24b0] sm:$0xff]
    %v1344 = vld [vmem:[#allocation2 + $0x24b8] sm:$0xff]
    %v1345 = vld [vmem:[#allocation2 + $0x24c0] sm:$0xff]
    %v1346 = vld [vmem:[#allocation2 + $0x24c8] sm:$0xff]
    %v1347 = vld [vmem:[#allocation2 + $0x24d0] sm:$0xff]
    %v1348 = vld [vmem:[#allocation2 + $0x24d8] sm:$0xff]
    %v1349 = vld [vmem:[#allocation2 + $0x24e0] sm:$0xff]
    %v1350 = vld [vmem:[#allocation2 + $0x24e8] sm:$0xff]
    %v1351 = vld [vmem:[#allocation2 + $0x24f0] sm:$0xff]
    %v1352 = vld [vmem:[#allocation2 + $0x24f8] sm:$0xff]
    %v1353 = vld [vmem:[#allocation2 + $0x2500] sm:$0xff]
    %v1354 = vld [vmem:[#allocation2 + $0x2508] sm:$0xff]
    %v1355 = vld [vmem:[#allocation2 + $0x2510] sm:$0xff]
    %v1356 = vld [vmem:[#allocation2 + $0x2518] sm:$0xff]
    %v1357 = vld [vmem:[#allocation2 + $0x2520] sm:$0xff]
    %v1358 = vld [vmem:[#allocation2 + $0x2528] sm:$0xff]
    %v1359 = vld [vmem:[#allocation2 + $0x2530] sm:$0xff]
    %v1360 = vld [vmem:[#allocation2 + $0x2538] sm:$0xff]
    %v1361 = vld [vmem:[#allocation2 + $0x2540] sm:$0xff]
    %v1362 = vld [vmem:[#allocation2 + $0x2548] sm:$0xff]
    %v1363 = vld [vmem:[#allocation2 + $0x2550] sm:$0xff]
    %v1364 = vld [vmem:[#allocation2 + $0x2558] sm:$0xff]
    %v1365 = vld [vmem:[#allocation2 + $0x2560] sm:$0xff]
    %v1366 = vld [vmem:[#allocation2 + $0x2568] sm:$0xff]
    %v1367 = vld [vmem:[#allocation2 + $0x2570] sm:$0xff]
    %v1368 = vld [vmem:[#allocation2 + $0x2578] sm:$0xff]
    %v1369 = vld [vmem:[#allocation2 + $0x2580] sm:$0xff]
    %v1370 = vld [vmem:[#allocation2 + $0x2588] sm:$0xff]
    %v1371 = vld [vmem:[#allocation2 + $0x2590] sm:$0xff]
    %v1372 = vld [vmem:[#allocation2 + $0x2598] sm:$0xff]
    %v1373 = vld [vmem:[#allocation2 + $0x25a0] sm:$0xff]
    %v1374 = vld [vmem:[#allocation2 + $0x25a8] sm:$0xff]
    %v1375 = vld [vmem:[#allocation2 + $0x25b0] sm:$0xff]
    %v1376 = vld [vmem:[#allocation2 + $0x25b8] sm:$0xff]
    %v1377 = vld [vmem:[#allocation2 + $0x25c0] sm:$0xff]
    %v1378 = vld [vmem:[#allocation2 + $0x25c8] sm:$0xff]
    %v1379 = vld [vmem:[#allocation2 + $0x25d0] sm:$0xff]
    %v1380 = vld [vmem:[#allocation2 + $0x25d8] sm:$0xff]
    %v1381 = vld [vmem:[#allocation2 + $0x25e0] sm:$0xff]
    %v1382 = vld [vmem:[#allocation2 + $0x25e8] sm:$0xff]
    %v1383 = vld [vmem:[#allocation2 + $0x25f0] sm:$0xff]
    %v1384 = vld [vmem:[#allocation2 + $0x25f8] sm:$0xff]
    %v1385 = vld [vmem:[#allocation2 + $0x2600] sm:$0xff]
    %v1386 = vld [vmem:[#allocation2 + $0x2608] sm:$0xff]
    %v1387 = vld [vmem:[#allocation2 + $0x2610] sm:$0xff]
    %v1388 = vld [vmem:[#allocation2 + $0x2618] sm:$0xff]
    %v1389 = vld [vmem:[#allocation2 + $0x2620] sm:$0xff]
    %v1390 = vld [vmem:[#allocation2 + $0x2628] sm:$0xff]
    %v1391 = vld [vmem:[#allocation2 + $0x2630] sm:$0xff]
    %v1392 = vld [vmem:[#allocation2 + $0x2638] sm:$0xff]
    %v1393 = vld [vmem:[#allocation2 + $0x2640] sm:$0xff]
    %v1394 = vld [vmem:[#allocation2 + $0x2648] sm:$0xff]
    %v1395 = vld [vmem:[#allocation2 + $0x2650] sm:$0xff]
    %v1396 = vld [vmem:[#allocation2 + $0x2658] sm:$0xff]
    %v1397 = vld [vmem:[#allocation2 + $0x2660] sm:$0xff]
    %v1398 = vld [vmem:[#allocation2 + $0x2668] sm:$0xff]
    %v1399 = vld [vmem:[#allocation2 + $0x2670] sm:$0xff]
    %v1400 = vld [vmem:[#allocation2 + $0x2678] sm:$0xff]
    %v1401 = vld [vmem:[#allocation2 + $0x2680] sm:$0xff]
    %v1402 = vld [vmem:[#allocation2 + $0x2688] sm:$0xff]
    %v1403 = vld [vmem:[#allocation2 + $0x2690] sm:$0xff]
    %v1404 = vld [vmem:[#allocation2 + $0x2698] sm:$0xff]
    %v1405 = vld [vmem:[#allocation2 + $0x26a0] sm:$0xff]
    %v1406 = vld [vmem:[#allocation2 + $0x26a8] sm:$0xff]
    %v1407 = vld [vmem:[#allocation2 + $0x26b0] sm:$0xff]
    %v1408 = vld [vmem:[#allocation2 + $0x26b8] sm:$0xff]
    %v1409 = vld [vmem:[#allocation2 + $0x26c0] sm:$0xff]
    %v1410 = vld [vmem:[#allocation2 + $0x26c8] sm:$0xff]
    %v1411 = vld [vmem:[#allocation2 + $0x26d0] sm:$0xff]
    %v1412 = vld [vmem:[#allocation2 + $0x26d8] sm:$0xff]
    %v1413 = vld [vmem:[#allocation2 + $0x26e0] sm:$0xff]
    %v1414 = vld [vmem:[#allocation2 + $0x26e8] sm:$0xff]
    %v1415 = vld [vmem:[#allocation2 + $0x26f0] sm:$0xff]
    %v1416 = vld [vmem:[#allocation2 + $0x26f8] sm:$0xff]
    %v1417 = vld [vmem:[#allocation2 + $0x2700] sm:$0xff]
    %v1418 = vld [vmem:[#allocation2 + $0x2708] sm:$0xff]
    %v1419 = vld [vmem:[#allocation2 + $0x2710] sm:$0xff]
    %v1420 = vld [vmem:[#allocation2 + $0x2718] sm:$0xff]
    %v1421 = vld [vmem:[#allocation2 + $0x2720] sm:$0xff]
    %v1422 = vld [vmem:[#allocation2 + $0x2728] sm:$0xff]
    %v1423 = vld [vmem:[#allocation2 + $0x2730] sm:$0xff]
    %v1424 = vld [vmem:[#allocation2 + $0x2738] sm:$0xff]
    %v1425 = vld [vmem:[#allocation2 + $0x2740] sm:$0xff]
    %v1426 = vld [vmem:[#allocation2 + $0x2748] sm:$0xff]
    %v1427 = vld [vmem:[#allocation2 + $0x2750] sm:$0xff]
    %v1428 = vld [vmem:[#allocation2 + $0x2758] sm:$0xff]
    %v1429 = vld [vmem:[#allocation2 + $0x2760] sm:$0xff]
    %v1430 = vld [vmem:[#allocation2 + $0x2768] sm:$0xff]
    %v1431 = vld [vmem:[#allocation2 + $0x2770] sm:$0xff]
    %v1432 = vld [vmem:[#allocation2 + $0x2778] sm:$0xff]
    %v1433 = vld [vmem:[#allocation2 + $0x2780] sm:$0xff]
    %v1434 = vld [vmem:[#allocation2 + $0x2788] sm:$0xff]
    %v1435 = vld [vmem:[#allocation2 + $0x2790] sm:$0xff]
    %v1436 = vld [vmem:[#allocation2 + $0x2798] sm:$0xff]
    %v1437 = vld [vmem:[#allocation2 + $0x27a0] sm:$0xff]
    %v1438 = vld [vmem:[#allocation2 + $0x27a8] sm:$0xff]
    %v1439 = vld [vmem:[#allocation2 + $0x27b0] sm:$0xff]
    %v1440 = vld [vmem:[#allocation2 + $0x27b8] sm:$0xff]
    %v1441 = vld [vmem:[#allocation2 + $0x27c0] sm:$0xff]
    %v1442 = vld [vmem:[#allocation2 + $0x27c8] sm:$0xff]
    %v1443 = vld [vmem:[#allocation2 + $0x27d0] sm:$0xff]
    %v1444 = vld [vmem:[#allocation2 + $0x27d8] sm:$0xff]
    %v1445 = vld [vmem:[#allocation2 + $0x27e0] sm:$0xff]
    %v1446 = vld [vmem:[#allocation2 + $0x27e8] sm:$0xff]
    %v1447 = vld [vmem:[#allocation2 + $0x27f0] sm:$0xff]
    %v1448 = vld [vmem:[#allocation2 + $0x27f8] sm:$0xff]
    %v1449 = vld [vmem:[#allocation2 + $0x2800] sm:$0xff]
    %v1450 = vld [vmem:[#allocation2 + $0x2808] sm:$0xff]
    %v1451 = vld [vmem:[#allocation2 + $0x2810] sm:$0xff]
    %v1452 = vld [vmem:[#allocation2 + $0x2818] sm:$0xff]
    %v1453 = vld [vmem:[#allocation2 + $0x2820] sm:$0xff]
    %v1454 = vld [vmem:[#allocation2 + $0x2828] sm:$0xff]
    %v1455 = vld [vmem:[#allocation2 + $0x2830] sm:$0xff]
    %v1456 = vld [vmem:[#allocation2 + $0x2838] sm:$0xff]
    %v1457 = vld [vmem:[#allocation2 + $0x2840] sm:$0xff]
    %v1458 = vld [vmem:[#allocation2 + $0x2848] sm:$0xff]
    %v1459 = vld [vmem:[#allocation2 + $0x2850] sm:$0xff]
    %v1460 = vld [vmem:[#allocation2 + $0x2858] sm:$0xff]
    %v1461 = vld [vmem:[#allocation2 + $0x2860] sm:$0xff]
    %v1462 = vld [vmem:[#allocation2 + $0x2868] sm:$0xff]
    %v1463 = vld [vmem:[#allocation2 + $0x2870] sm:$0xff]
    %v1464 = vld [vmem:[#allocation2 + $0x2878] sm:$0xff]
    %v1465 = vld [vmem:[#allocation2 + $0x2880] sm:$0xff]
    %v1466 = vld [vmem:[#allocation2 + $0x2888] sm:$0xff]
    %v1467 = vld [vmem:[#allocation2 + $0x2890] sm:$0xff]
    %v1468 = vld [vmem:[#allocation2 + $0x2898] sm:$0xff]
    %v1469 = vld [vmem:[#allocation2 + $0x28a0] sm:$0xff]
    %v1470 = vld [vmem:[#allocation2 + $0x28a8] sm:$0xff]
    %v1471 = vld [vmem:[#allocation2 + $0x28b0] sm:$0xff]
    %v1472 = vld [vmem:[#allocation2 + $0x28b8] sm:$0xff]
    %v1473 = vld [vmem:[#allocation2 + $0x28c0] sm:$0xff]
    %v1474 = vld [vmem:[#allocation2 + $0x28c8] sm:$0xff]
    %v1475 = vld [vmem:[#allocation2 + $0x28d0] sm:$0xff]
    %v1476 = vld [vmem:[#allocation2 + $0x28d8] sm:$0xff]
    %v1477 = vld [vmem:[#allocation2 + $0x28e0] sm:$0xff]
    %v1478 = vld [vmem:[#allocation2 + $0x28e8] sm:$0xff]
    %v1479 = vld [vmem:[#allocation2 + $0x28f0] sm:$0xff]
    %v1480 = vld [vmem:[#allocation2 + $0x28f8] sm:$0xff]
    %v1481 = vld [vmem:[#allocation2 + $0x2900] sm:$0xff]
    %v1482 = vld [vmem:[#allocation2 + $0x2908] sm:$0xff]
    %v1483 = vld [vmem:[#allocation2 + $0x2910] sm:$0xff]
    %v1484 = vld [vmem:[#allocation2 + $0x2918] sm:$0xff]
    %v1485 = vld [vmem:[#allocation2 + $0x2920] sm:$0xff]
    %v1486 = vld [vmem:[#allocation2 + $0x2928] sm:$0xff]
    %v1487 = vld [vmem:[#allocation2 + $0x2930] sm:$0xff]
    %v1488 = vld [vmem:[#allocation2 + $0x2938] sm:$0xff]
    %v1489 = vld [vmem:[#allocation2 + $0x2940] sm:$0xff]
    %v1490 = vld [vmem:[#allocation2 + $0x2948] sm:$0xff]
    %v1491 = vld [vmem:[#allocation2 + $0x2950] sm:$0xff]
    %v1492 = vld [vmem:[#allocation2 + $0x2958] sm:$0xff]
    %v1493 = vld [vmem:[#allocation2 + $0x2960] sm:$0xff]
    %v1494 = vld [vmem:[#allocation2 + $0x2968] sm:$0xff]
    %v1495 = vld [vmem:[#allocation2 + $0x2970] sm:$0xff]
    %v1496 = vld [vmem:[#allocation2 + $0x2978] sm:$0xff]
    %v1497 = vld [vmem:[#allocation2 + $0x2980] sm:$0xff]
    %v1498 = vld [vmem:[#allocation2 + $0x2988] sm:$0xff]
    %v1499 = vld [vmem:[#allocation2 + $0x2990] sm:$0xff]
    %v1500 = vld [vmem:[#allocation2 + $0x2998] sm:$0xff]
    %v1501 = vld [vmem:[#allocation2 + $0x29a0] sm:$0xff]
    %v1502 = vld [vmem:[#allocation2 + $0x29a8] sm:$0xff]
    %v1503 = vld [vmem:[#allocation2 + $0x29b0] sm:$0xff]
    %v1504 = vld [vmem:[#allocation2 + $0x29b8] sm:$0xff]
    %v1505 = vld [vmem:[#allocation2 + $0x29c0] sm:$0xff]
    %v1506 = vld [vmem:[#allocation2 + $0x29c8] sm:$0xff]
    %v1507 = vld [vmem:[#allocation2 + $0x29d0] sm:$0xff]
    %v1508 = vld [vmem:[#allocation2 + $0x29d8] sm:$0xff]
    %v1509 = vld [vmem:[#allocation2 + $0x29e0] sm:$0xff]
    %v1510 = vld [vmem:[#allocation2 + $0x29e8] sm:$0xff]
    %v1511 = vld [vmem:[#allocation2 + $0x29f0] sm:$0xff]
    %v1512 = vld [vmem:[#allocation2 + $0x29f8] sm:$0xff]
    %v1513 = vld [vmem:[#allocation2 + $0x2a00] sm:$0xff]
    %v1514 = vld [vmem:[#allocation2 + $0x2a08] sm:$0xff]
    %v1515 = vld [vmem:[#allocation2 + $0x2a10] sm:$0xff]
    %v1516 = vld [vmem:[#allocation2 + $0x2a18] sm:$0xff]
    %v1517 = vld [vmem:[#allocation2 + $0x2a20] sm:$0xff]
    %v1518 = vld [vmem:[#allocation2 + $0x2a28] sm:$0xff]
    %v1519 = vld [vmem:[#allocation2 + $0x2a30] sm:$0xff]
    %v1520 = vld [vmem:[#allocation2 + $0x2a38] sm:$0xff]
    %v1521 = vld [vmem:[#allocation2 + $0x2a40] sm:$0xff]
    %v1522 = vld [vmem:[#allocation2 + $0x2a48] sm:$0xff]
    %v1523 = vld [vmem:[#allocation2 + $0x2a50] sm:$0xff]
    %v1524 = vld [vmem:[#allocation2 + $0x2a58] sm:$0xff]
    %v1525 = vld [vmem:[#allocation2 + $0x2a60] sm:$0xff]
    %v1526 = vld [vmem:[#allocation2 + $0x2a68] sm:$0xff]
    %v1527 = vld [vmem:[#allocation2 + $0x2a70] sm:$0xff]
    %v1528 = vld [vmem:[#allocation2 + $0x2a78] sm:$0xff]
    %v1529 = vld [vmem:[#allocation2 + $0x2a80] sm:$0xff]
    %v1530 = vld [vmem:[#allocation2 + $0x2a88] sm:$0xff]
    %v1531 = vld [vmem:[#allocation2 + $0x2a90] sm:$0xff]
    %v1532 = vld [vmem:[#allocation2 + $0x2a98] sm:$0xff]
    %v1533 = vld [vmem:[#allocation2 + $0x2aa0] sm:$0xff]
    %v1534 = vld [vmem:[#allocation2 + $0x2aa8] sm:$0xff]
    %v1535 = vld [vmem:[#allocation2 + $0x2ab0] sm:$0xff]
    %v1536 = vld [vmem:[#allocation2 + $0x2ab8] sm:$0xff]
    %v1537 = vld [vmem:[#allocation2 + $0x2ac0] sm:$0xff]
    %v1538 = vld [vmem:[#allocation2 + $0x2ac8] sm:$0xff]
    %v1539 = vld [vmem:[#allocation2 + $0x2ad0] sm:$0xff]
    %v1540 = vld [vmem:[#allocation2 + $0x2ad8] sm:$0xff]
    %v1541 = vld [vmem:[#allocation4] sm:$0xff]
    %v1542 = vld [vmem:[#allocation4 + $0x8] sm:$0xff]
    %v1543 = vld [vmem:[#allocation4 + $0x10] sm:$0xff]
    %v1544 = vld [vmem:[#allocation4 + $0x18] sm:$0xf]
    %v1549 = vlaneseq
    %v1550 = vshrl.u32 %v1549, 7
    %v1551 = vsub.s32 0, %v1550
    %v1552 = vrot.slane %v1541, %v1551
    %v1553 = vlaneseq
    %v1554 = vshrl.u32 %v1553, 7
    %v1555 = vsub.s32 1, %v1554
    %v1556 = vrot.slane %v1541, %v1555
    %v1557 = vlaneseq
    %v1558 = vshrl.u32 %v1557, 7
    %v1559 = vsub.s32 2, %v1558
    %v1560 = vrot.slane %v1541, %v1559
    %v1561 = vlaneseq
    %v1562 = vshrl.u32 %v1561, 7
    %v1563 = vsub.s32 3, %v1562
    %v1564 = vrot.slane %v1541, %v1563
    %v1565 = vlaneseq
    %v1566 = vshrl.u32 %v1565, 7
    %v1567 = vsub.s32 4, %v1566
    %v1568 = vrot.slane %v1541, %v1567
    %v1569 = vlaneseq
    %v1570 = vshrl.u32 %v1569, 7
    %v1571 = vsub.s32 5, %v1570
    %v1572 = vrot.slane %v1541, %v1571
    %v1573 = vlaneseq
    %v1574 = vshrl.u32 %v1573, 7
    %v1575 = vsub.s32 6, %v1574
    %v1576 = vrot.slane %v1541, %v1575
    %v1577 = vlaneseq
    %v1578 = vshrl.u32 %v1577, 7
    %v1579 = vsub.s32 7, %v1578
    %v1580 = vrot.slane %v1541, %v1579
    %v1581 = vlaneseq
    %v1582 = vshrl.u32 %v1581, 7
    %v1583 = vsub.s32 0, %v1582
    %v1584 = vrot.slane %v1542, %v1583
    %v1585 = vlaneseq
    %v1586 = vshrl.u32 %v1585, 7
    %v1587 = vsub.s32 1, %v1586
    %v1588 = vrot.slane %v1542, %v1587
    %v1589 = vlaneseq
    %v1590 = vshrl.u32 %v1589, 7
    %v1591 = vsub.s32 2, %v1590
    %v1592 = vrot.slane %v1542, %v1591
    %v1593 = vlaneseq
    %v1594 = vshrl.u32 %v1593, 7
    %v1595 = vsub.s32 3, %v1594
    %v1596 = vrot.slane %v1542, %v1595
    %v1597 = vlaneseq
    %v1598 = vshrl.u32 %v1597, 7
    %v1599 = vsub.s32 4, %v1598
    %v1600 = vrot.slane %v1542, %v1599
    %v1601 = vlaneseq
    %v1602 = vshrl.u32 %v1601, 7
    %v1603 = vsub.s32 5, %v1602
    %v1604 = vrot.slane %v1542, %v1603
    %v1605 = vlaneseq
    %v1606 = vshrl.u32 %v1605, 7
    %v1607 = vsub.s32 6, %v1606
    %v1608 = vrot.slane %v1542, %v1607
    %v1609 = vlaneseq
    %v1610 = vshrl.u32 %v1609, 7
    %v1611 = vsub.s32 7, %v1610
    %v1612 = vrot.slane %v1542, %v1611
    %v1613 = vlaneseq
    %v1614 = vshrl.u32 %v1613, 7
    %v1615 = vsub.s32 0, %v1614
    %v1616 = vrot.slane %v1543, %v1615
    %v1617 = vlaneseq
    %v1618 = vshrl.u32 %v1617, 7
    %v1619 = vsub.s32 1, %v1618
    %v1620 = vrot.slane %v1543, %v1619
    %v1621 = vlaneseq
    %v1622 = vshrl.u32 %v1621, 7
    %v1623 = vsub.s32 2, %v1622
    %v1624 = vrot.slane %v1543, %v1623
    %v1625 = vlaneseq
    %v1626 = vshrl.u32 %v1625, 7
    %v1627 = vsub.s32 3, %v1626
    %v1628 = vrot.slane %v1543, %v1627
    %v1629 = vlaneseq
    %v1630 = vshrl.u32 %v1629, 7
    %v1631 = vsub.s32 4, %v1630
    %v1632 = vrot.slane %v1543, %v1631
    %v1633 = vlaneseq
    %v1634 = vshrl.u32 %v1633, 7
    %v1635 = vsub.s32 5, %v1634
    %v1636 = vrot.slane %v1543, %v1635
    %v1637 = vlaneseq
    %v1638 = vshrl.u32 %v1637, 7
    %v1639 = vsub.s32 6, %v1638
    %v1640 = vrot.slane %v1543, %v1639
    %v1641 = vlaneseq
    %v1642 = vshrl.u32 %v1641, 7
    %v1643 = vsub.s32 7, %v1642
    %v1644 = vrot.slane %v1543, %v1643
    %v1645 = vlaneseq
    %v1646 = vshrl.u32 %v1645, 7
    %v1647 = vsub.s32 0, %v1646
    %v1648 = vrot.slane %v1544, %v1647
    %v1649 = vlaneseq
    %v1650 = vshrl.u32 %v1649, 7
    %v1651 = vsub.s32 1, %v1650
    %v1652 = vrot.slane %v1544, %v1651
    %v1653 = vlaneseq
    %v1654 = vshrl.u32 %v1653, 7
    %v1655 = vsub.s32 2, %v1654
    %v1656 = vrot.slane %v1544, %v1655
    %v1657 = vlaneseq
    %v1658 = vshrl.u32 %v1657, 7
    %v1659 = vsub.s32 3, %v1658
    %v1660 = vrot.slane %v1544, %v1659
    %v1693 = vunpack.c.l.b16 %v165
    %v1694 = vunpack.c.h.b16 %v165
    %v1695 = vunpack.c.l.b16 %v166
    %v1696 = vunpack.c.h.b16 %v166
    %v1697 = vunpack.c.l.b16 %v167
    %v1698 = vunpack.c.h.b16 %v167
    %v1699 = vunpack.c.l.b16 %v168
    %v1700 = vpack.c.b16 %v1693, %v1693
    %v1701 = vpack.c.b16 %v1694, %v1694
    %v1702 = vpack.c.b16 %v1695, %v1695
    %v1703 = vpack.c.b16 %v1696, %v1696
    %v1704 = vpack.c.b16 %v1697, %v1697
    %v1705 = vpack.c.b16 %v1698, %v1698
    %v1706 = vpack.c.b16 %v1699, %v1699
    %v3085 = vunpack.c.l.b16 %v169
    %v3086 = vunpack.c.h.b16 %v169
    %v3087 = vunpack.c.l.b16 %v170
    %v3088 = vunpack.c.h.b16 %v170
    %v3089 = vunpack.c.l.b16 %v171
    %v3090 = vunpack.c.h.b16 %v171
    %v3091 = vunpack.c.l.b16 %v172
    %v3092 = vunpack.c.h.b16 %v172
    %v3093 = vunpack.c.l.b16 %v173
    %v3094 = vunpack.c.h.b16 %v173
    %v3095 = vunpack.c.l.b16 %v174
    %v3096 = vunpack.c.h.b16 %v174
    %v3097 = vunpack.c.l.b16 %v175
    %v3098 = vunpack.c.h.b16 %v175
    %v3099 = vunpack.c.l.b16 %v176
    %v3100 = vunpack.c.h.b16 %v176
    %v3101 = vunpack.c.l.b16 %v177
    %v3102 = vunpack.c.h.b16 %v177
    %v3103 = vunpack.c.l.b16 %v178
    %v3104 = vunpack.c.h.b16 %v178
    %v3105 = vunpack.c.l.b16 %v179
    %v3106 = vunpack.c.h.b16 %v179
    %v3107 = vunpack.c.l.b16 %v180
    %v3108 = vunpack.c.h.b16 %v180
    %v3109 = vunpack.c.l.b16 %v181
    %v3110 = vunpack.c.h.b16 %v181
    %v3111 = vunpack.c.l.b16 %v182
    %v3112 = vunpack.c.h.b16 %v182
    %v3113 = vunpack.c.l.b16 %v183
    %v3114 = vunpack.c.h.b16 %v183
    %v3115 = vunpack.c.l.b16 %v184
    %v3116 = vunpack.c.h.b16 %v184
    %v3117 = vunpack.c.l.b16 %v185
    %v3118 = vunpack.c.h.b16 %v185
    %v3119 = vunpack.c.l.b16 %v186
    %v3120 = vunpack.c.h.b16 %v186
    %v3121 = vunpack.c.l.b16 %v187
    %v3122 = vunpack.c.h.b16 %v187
    %v3123 = vunpack.c.l.b16 %v188
    %v3124 = vunpack.c.h.b16 %v188
    %v3125 = vunpack.c.l.b16 %v189
    %v3126 = vunpack.c.h.b16 %v189
    %v3127 = vunpack.c.l.b16 %v190
    %v3128 = vunpack.c.h.b16 %v190
    %v3129 = vunpack.c.l.b16 %v191
    %v3130 = vunpack.c.h.b16 %v191
    %v3131 = vunpack.c.l.b16 %v192
    %v3132 = vunpack.c.h.b16 %v192
    %v3133 = vunpack.c.l.b16 %v193
    %v3134 = vunpack.c.h.b16 %v193
    %v3135 = vunpack.c.l.b16 %v194
    %v3136 = vunpack.c.h.b16 %v194
    %v3137 = vunpack.c.l.b16 %v195
    %v3138 = vunpack.c.h.b16 %v195
    %v3139 = vunpack.c.l.b16 %v196
    %v3140 = vunpack.c.h.b16 %v196
    %v3141 = vunpack.c.l.b16 %v197
    %v3142 = vunpack.c.h.b16 %v197
    %v3143 = vunpack.c.l.b16 %v198
    %v3144 = vunpack.c.h.b16 %v198
    %v3145 = vunpack.c.l.b16 %v199
    %v3146 = vunpack.c.h.b16 %v199
    %v3147 = vunpack.c.l.b16 %v200
    %v3148 = vunpack.c.h.b16 %v200
    %v3149 = vunpack.c.l.b16 %v201
    %v3150 = vunpack.c.h.b16 %v201
    %v3151 = vunpack.c.l.b16 %v202
    %v3152 = vunpack.c.h.b16 %v202
    %v3153 = vunpack.c.l.b16 %v203
    %v3154 = vunpack.c.h.b16 %v203
    %v3155 = vunpack.c.l.b16 %v204
    %v3156 = vunpack.c.h.b16 %v204
    %v3157 = vunpack.c.l.b16 %v205
    %v3158 = vunpack.c.h.b16 %v205
    %v3159 = vunpack.c.l.b16 %v206
    %v3160 = vunpack.c.h.b16 %v206
    %v3161 = vunpack.c.l.b16 %v207
    %v3162 = vunpack.c.h.b16 %v207
    %v3163 = vunpack.c.l.b16 %v208
    %v3164 = vunpack.c.h.b16 %v208
    %v3165 = vunpack.c.l.b16 %v209
    %v3166 = vunpack.c.h.b16 %v209
    %v3167 = vunpack.c.l.b16 %v210
    %v3168 = vunpack.c.h.b16 %v210
    %v3169 = vunpack.c.l.b16 %v211
    %v3170 = vunpack.c.h.b16 %v211
    %v3171 = vunpack.c.l.b16 %v212
    %v3172 = vunpack.c.h.b16 %v212
    %v3173 = vunpack.c.l.b16 %v213
    %v3174 = vunpack.c.h.b16 %v213
    %v3175 = vunpack.c.l.b16 %v214
    %v3176 = vunpack.c.h.b16 %v214
    %v3177 = vunpack.c.l.b16 %v215
    %v3178 = vunpack.c.h.b16 %v215
    %v3179 = vunpack.c.l.b16 %v216
    %v3180 = vunpack.c.h.b16 %v216
    %v3181 = vunpack.c.l.b16 %v217
    %v3182 = vunpack.c.h.b16 %v217
    %v3183 = vunpack.c.l.b16 %v218
    %v3184 = vunpack.c.h.b16 %v218
    %v3185 = vunpack.c.l.b16 %v219
    %v3186 = vunpack.c.h.b16 %v219
    %v3187 = vunpack.c.l.b16 %v220
    %v3188 = vunpack.c.h.b16 %v220
    %v3189 = vunpack.c.l.b16 %v221
    %v3190 = vunpack.c.h.b16 %v221
    %v3191 = vunpack.c.l.b16 %v222
    %v3192 = vunpack.c.h.b16 %v222
    %v3193 = vunpack.c.l.b16 %v223
    %v3194 = vunpack.c.h.b16 %v223
    %v3195 = vunpack.c.l.b16 %v224
    %v3196 = vunpack.c.h.b16 %v224
    %v3197 = vunpack.c.l.b16 %v225
    %v3198 = vunpack.c.h.b16 %v225
    %v3199 = vunpack.c.l.b16 %v226
    %v3200 = vunpack.c.h.b16 %v226
    %v3201 = vunpack.c.l.b16 %v227
    %v3202 = vunpack.c.h.b16 %v227
    %v3203 = vunpack.c.l.b16 %v228
    %v3204 = vunpack.c.h.b16 %v228
    %v3205 = vunpack.c.l.b16 %v229
    %v3206 = vunpack.c.h.b16 %v229
    %v3207 = vunpack.c.l.b16 %v230
    %v3208 = vunpack.c.h.b16 %v230
    %v3209 = vunpack.c.l.b16 %v231
    %v3210 = vunpack.c.h.b16 %v231
    %v3211 = vunpack.c.l.b16 %v232
    %v3212 = vunpack.c.h.b16 %v232
    %v3213 = vunpack.c.l.b16 %v233
    %v3214 = vunpack.c.h.b16 %v233
    %v3215 = vunpack.c.l.b16 %v234
    %v3216 = vunpack.c.h.b16 %v234
    %v3217 = vunpack.c.l.b16 %v235
    %v3218 = vunpack.c.h.b16 %v235
    %v3219 = vunpack.c.l.b16 %v236
    %v3220 = vunpack.c.h.b16 %v236
    %v3221 = vunpack.c.l.b16 %v237
    %v3222 = vunpack.c.h.b16 %v237
    %v3223 = vunpack.c.l.b16 %v238
    %v3224 = vunpack.c.h.b16 %v238
    %v3225 = vunpack.c.l.b16 %v239
    %v3226 = vunpack.c.h.b16 %v239
    %v3227 = vunpack.c.l.b16 %v240
    %v3228 = vunpack.c.h.b16 %v240
    %v3229 = vunpack.c.l.b16 %v241
    %v3230 = vunpack.c.h.b16 %v241
    %v3231 = vunpack.c.l.b16 %v242
    %v3232 = vunpack.c.h.b16 %v242
    %v3233 = vunpack.c.l.b16 %v243
    %v3234 = vunpack.c.h.b16 %v243
    %v3235 = vunpack.c.l.b16 %v244
    %v3236 = vunpack.c.h.b16 %v244
    %v3237 = vunpack.c.l.b16 %v245
    %v3238 = vunpack.c.h.b16 %v245
    %v3239 = vunpack.c.l.b16 %v246
    %v3240 = vunpack.c.h.b16 %v246
    %v3241 = vunpack.c.l.b16 %v247
    %v3242 = vunpack.c.h.b16 %v247
    %v3243 = vunpack.c.l.b16 %v248
    %v3244 = vunpack.c.h.b16 %v248
    %v3245 = vunpack.c.l.b16 %v249
    %v3246 = vunpack.c.h.b16 %v249
    %v3247 = vunpack.c.l.b16 %v250
    %v3248 = vunpack.c.h.b16 %v250
    %v3249 = vunpack.c.l.b16 %v251
    %v3250 = vunpack.c.h.b16 %v251
    %v3251 = vunpack.c.l.b16 %v252
    %v3252 = vunpack.c.h.b16 %v252
    %v3253 = vunpack.c.l.b16 %v253
    %v3254 = vunpack.c.h.b16 %v253
    %v3255 = vunpack.c.l.b16 %v254
    %v3256 = vunpack.c.h.b16 %v254
    %v3257 = vunpack.c.l.b16 %v255
    %v3258 = vunpack.c.h.b16 %v255
    %v3259 = vunpack.c.l.b16 %v256
    %v3260 = vunpack.c.h.b16 %v256
    %v3261 = vunpack.c.l.b16 %v257
    %v3262 = vunpack.c.h.b16 %v257
    %v3263 = vunpack.c.l.b16 %v258
    %v3264 = vunpack.c.h.b16 %v258
    %v3265 = vunpack.c.l.b16 %v259
    %v3266 = vunpack.c.h.b16 %v259
    %v3267 = vunpack.c.l.b16 %v260
    %v3268 = vunpack.c.h.b16 %v260
    %v3269 = vunpack.c.l.b16 %v261
    %v3270 = vunpack.c.h.b16 %v261
    %v3271 = vunpack.c.l.b16 %v262
    %v3272 = vunpack.c.h.b16 %v262
    %v3273 = vunpack.c.l.b16 %v263
    %v3274 = vunpack.c.h.b16 %v263
    %v3275 = vunpack.c.l.b16 %v264
    %v3276 = vunpack.c.h.b16 %v264
    %v3277 = vunpack.c.l.b16 %v265
    %v3278 = vunpack.c.h.b16 %v265
    %v3279 = vunpack.c.l.b16 %v266
    %v3280 = vunpack.c.h.b16 %v266
    %v3281 = vunpack.c.l.b16 %v267
    %v3282 = vunpack.c.h.b16 %v267
    %v3283 = vunpack.c.l.b16 %v268
    %v3284 = vunpack.c.h.b16 %v268
    %v3285 = vunpack.c.l.b16 %v269
    %v3286 = vunpack.c.h.b16 %v269
    %v3287 = vunpack.c.l.b16 %v270
    %v3288 = vunpack.c.h.b16 %v270
    %v3289 = vunpack.c.l.b16 %v271
    %v3290 = vunpack.c.h.b16 %v271
    %v3291 = vunpack.c.l.b16 %v272
    %v3292 = vunpack.c.h.b16 %v272
    %v3293 = vunpack.c.l.b16 %v273
    %v3294 = vunpack.c.h.b16 %v273
    %v3295 = vunpack.c.l.b16 %v274
    %v3296 = vunpack.c.h.b16 %v274
    %v3297 = vunpack.c.l.b16 %v275
    %v3298 = vunpack.c.h.b16 %v275
    %v3299 = vunpack.c.l.b16 %v276
    %v3300 = vunpack.c.h.b16 %v276
    %v3301 = vunpack.c.l.b16 %v277
    %v3302 = vunpack.c.h.b16 %v277
    %v3303 = vunpack.c.l.b16 %v278
    %v3304 = vunpack.c.h.b16 %v278
    %v3305 = vunpack.c.l.b16 %v279
    %v3306 = vunpack.c.h.b16 %v279
    %v3307 = vunpack.c.l.b16 %v280
    %v3308 = vunpack.c.h.b16 %v280
    %v3309 = vunpack.c.l.b16 %v281
    %v3310 = vunpack.c.h.b16 %v281
    %v3311 = vunpack.c.l.b16 %v282
    %v3312 = vunpack.c.h.b16 %v282
    %v3313 = vunpack.c.l.b16 %v283
    %v3314 = vunpack.c.h.b16 %v283
    %v3315 = vunpack.c.l.b16 %v284
    %v3316 = vunpack.c.h.b16 %v284
    %v3317 = vunpack.c.l.b16 %v285
    %v3318 = vunpack.c.h.b16 %v285
    %v3319 = vunpack.c.l.b16 %v286
    %v3320 = vunpack.c.h.b16 %v286
    %v3321 = vunpack.c.l.b16 %v287
    %v3322 = vunpack.c.h.b16 %v287
    %v3323 = vunpack.c.l.b16 %v288
    %v3324 = vunpack.c.h.b16 %v288
    %v3325 = vunpack.c.l.b16 %v289
    %v3326 = vunpack.c.h.b16 %v289
    %v3327 = vunpack.c.l.b16 %v290
    %v3328 = vunpack.c.h.b16 %v290
    %v3329 = vunpack.c.l.b16 %v291
    %v3330 = vunpack.c.h.b16 %v291
    %v3331 = vunpack.c.l.b16 %v292
    %v3332 = vunpack.c.h.b16 %v292
    %v3333 = vunpack.c.l.b16 %v293
    %v3334 = vunpack.c.h.b16 %v293
    %v3335 = vunpack.c.l.b16 %v294
    %v3336 = vunpack.c.h.b16 %v294
    %v3337 = vunpack.c.l.b16 %v295
    %v3338 = vunpack.c.h.b16 %v295
    %v3339 = vunpack.c.l.b16 %v296
    %v3340 = vunpack.c.h.b16 %v296
    %v3341 = vunpack.c.l.b16 %v297
    %v3342 = vunpack.c.h.b16 %v297
    %v3343 = vunpack.c.l.b16 %v298
    %v3344 = vunpack.c.h.b16 %v298
    %v3345 = vunpack.c.l.b16 %v299
    %v3346 = vunpack.c.h.b16 %v299
    %v3347 = vunpack.c.l.b16 %v300
    %v3348 = vunpack.c.h.b16 %v300
    %v3349 = vunpack.c.l.b16 %v301
    %v3350 = vunpack.c.h.b16 %v301
    %v3351 = vunpack.c.l.b16 %v302
    %v3352 = vunpack.c.h.b16 %v302
    %v3353 = vunpack.c.l.b16 %v303
    %v3354 = vunpack.c.h.b16 %v303
    %v3355 = vunpack.c.l.b16 %v304
    %v3356 = vunpack.c.h.b16 %v304
    %v3357 = vunpack.c.l.b16 %v305
    %v3358 = vunpack.c.h.b16 %v305
    %v3359 = vunpack.c.l.b16 %v306
    %v3360 = vunpack.c.h.b16 %v306
    %v3361 = vunpack.c.l.b16 %v307
    %v3362 = vunpack.c.h.b16 %v307
    %v3363 = vunpack.c.l.b16 %v308
    %v3364 = vunpack.c.h.b16 %v308
    %v3365 = vunpack.c.l.b16 %v309
    %v3366 = vunpack.c.h.b16 %v309
    %v3367 = vunpack.c.l.b16 %v310
    %v3368 = vunpack.c.h.b16 %v310
    %v3369 = vunpack.c.l.b16 %v311
    %v3370 = vunpack.c.h.b16 %v311
    %v3371 = vunpack.c.l.b16 %v312
    %v3372 = vunpack.c.h.b16 %v312
    %v3373 = vunpack.c.l.b16 %v313
    %v3374 = vunpack.c.h.b16 %v313
    %v3375 = vunpack.c.l.b16 %v314
    %v3376 = vunpack.c.h.b16 %v314
    %v3377 = vunpack.c.l.b16 %v315
    %v3378 = vunpack.c.h.b16 %v315
    %v3379 = vunpack.c.l.b16 %v316
    %v3380 = vunpack.c.h.b16 %v316
    %v3381 = vunpack.c.l.b16 %v317
    %v3382 = vunpack.c.h.b16 %v317
    %v3383 = vunpack.c.l.b16 %v318
    %v3384 = vunpack.c.h.b16 %v318
    %v3385 = vunpack.c.l.b16 %v319
    %v3386 = vunpack.c.h.b16 %v319
    %v3387 = vunpack.c.l.b16 %v320
    %v3388 = vunpack.c.h.b16 %v320
    %v3389 = vunpack.c.l.b16 %v321
    %v3390 = vunpack.c.h.b16 %v321
    %v3391 = vunpack.c.l.b16 %v322
    %v3392 = vunpack.c.h.b16 %v322
    %v3393 = vunpack.c.l.b16 %v323
    %v3394 = vunpack.c.h.b16 %v323
    %v3395 = vunpack.c.l.b16 %v324
    %v3396 = vunpack.c.h.b16 %v324
    %v3397 = vunpack.c.l.b16 %v325
    %v3398 = vunpack.c.h.b16 %v325
    %v3399 = vunpack.c.l.b16 %v326
    %v3400 = vunpack.c.h.b16 %v326
    %v3401 = vunpack.c.l.b16 %v327
    %v3402 = vunpack.c.h.b16 %v327
    %v3403 = vunpack.c.l.b16 %v328
    %v3404 = vunpack.c.h.b16 %v328
    %v3405 = vunpack.c.l.b16 %v329
    %v3406 = vunpack.c.h.b16 %v329
    %v3407 = vunpack.c.l.b16 %v330
    %v3408 = vunpack.c.h.b16 %v330
    %v3409 = vunpack.c.l.b16 %v331
    %v3410 = vunpack.c.h.b16 %v331
    %v3411 = vunpack.c.l.b16 %v332
    %v3412 = vunpack.c.h.b16 %v332
    %v3413 = vunpack.c.l.b16 %v333
    %v3414 = vunpack.c.h.b16 %v333
    %v3415 = vunpack.c.l.b16 %v334
    %v3416 = vunpack.c.h.b16 %v334
    %v3417 = vunpack.c.l.b16 %v335
    %v3418 = vunpack.c.h.b16 %v335
    %v3419 = vunpack.c.l.b16 %v336
    %v3420 = vunpack.c.h.b16 %v336
    %v3421 = vunpack.c.l.b16 %v337
    %v3422 = vunpack.c.h.b16 %v337
    %v3423 = vunpack.c.l.b16 %v338
    %v3424 = vunpack.c.h.b16 %v338
    %v3425 = vunpack.c.l.b16 %v339
    %v3426 = vunpack.c.h.b16 %v339
    %v3427 = vunpack.c.l.b16 %v340
    %v3428 = vunpack.c.h.b16 %v340
    %v3429 = vunpack.c.l.b16 %v341
    %v3430 = vunpack.c.h.b16 %v341
    %v3431 = vunpack.c.l.b16 %v342
    %v3432 = vunpack.c.h.b16 %v342
    %v3433 = vunpack.c.l.b16 %v343
    %v3434 = vunpack.c.h.b16 %v343
    %v3435 = vunpack.c.l.b16 %v344
    %v3436 = vunpack.c.h.b16 %v344
    %v3437 = vunpack.c.l.b16 %v345
    %v3438 = vunpack.c.h.b16 %v345
    %v3439 = vunpack.c.l.b16 %v346
    %v3440 = vunpack.c.h.b16 %v346
    %v3441 = vunpack.c.l.b16 %v347
    %v3442 = vunpack.c.h.b16 %v347
    %v3443 = vunpack.c.l.b16 %v348
    %v3444 = vunpack.c.h.b16 %v348
    %v3445 = vunpack.c.l.b16 %v349
    %v3446 = vunpack.c.h.b16 %v349
    %v3447 = vunpack.c.l.b16 %v350
    %v3448 = vunpack.c.h.b16 %v350
    %v3449 = vunpack.c.l.b16 %v351
    %v3450 = vunpack.c.h.b16 %v351
    %v3451 = vunpack.c.l.b16 %v352
    %v3452 = vunpack.c.h.b16 %v352
    %v3453 = vunpack.c.l.b16 %v353
    %v3454 = vunpack.c.h.b16 %v353
    %v3455 = vunpack.c.l.b16 %v354
    %v3456 = vunpack.c.h.b16 %v354
    %v3457 = vunpack.c.l.b16 %v355
    %v3458 = vunpack.c.h.b16 %v355
    %v3459 = vunpack.c.l.b16 %v356
    %v3460 = vunpack.c.h.b16 %v356
    %v3461 = vunpack.c.l.b16 %v357
    %v3462 = vunpack.c.h.b16 %v357
    %v3463 = vunpack.c.l.b16 %v358
    %v3464 = vunpack.c.h.b16 %v358
    %v3465 = vunpack.c.l.b16 %v359
    %v3466 = vunpack.c.h.b16 %v359
    %v3467 = vunpack.c.l.b16 %v360
    %v3468 = vunpack.c.h.b16 %v360
    %v3469 = vunpack.c.l.b16 %v361
    %v3470 = vunpack.c.h.b16 %v361
    %v3471 = vunpack.c.l.b16 %v362
    %v3472 = vunpack.c.h.b16 %v362
    %v3473 = vunpack.c.l.b16 %v363
    %v3474 = vunpack.c.h.b16 %v363
    %v3475 = vunpack.c.l.b16 %v364
    %v3476 = vunpack.c.h.b16 %v364
    %v3477 = vunpack.c.l.b16 %v365
    %v3478 = vunpack.c.h.b16 %v365
    %v3479 = vunpack.c.l.b16 %v366
    %v3480 = vunpack.c.h.b16 %v366
    %v3481 = vunpack.c.l.b16 %v367
    %v3482 = vunpack.c.h.b16 %v367
    %v3483 = vunpack.c.l.b16 %v368
    %v3484 = vunpack.c.h.b16 %v368
    %v3485 = vunpack.c.l.b16 %v369
    %v3486 = vunpack.c.h.b16 %v369
    %v3487 = vunpack.c.l.b16 %v370
    %v3488 = vunpack.c.h.b16 %v370
    %v3489 = vunpack.c.l.b16 %v371
    %v3490 = vunpack.c.h.b16 %v371
    %v3491 = vunpack.c.l.b16 %v372
    %v3492 = vunpack.c.h.b16 %v372
    %v3493 = vunpack.c.l.b16 %v373
    %v3494 = vunpack.c.h.b16 %v373
    %v3495 = vunpack.c.l.b16 %v374
    %v3496 = vunpack.c.h.b16 %v374
    %v3497 = vunpack.c.l.b16 %v375
    %v3498 = vunpack.c.h.b16 %v375
    %v3499 = vunpack.c.l.b16 %v376
    %v3500 = vunpack.c.h.b16 %v376
    %v3501 = vunpack.c.l.b16 %v377
    %v3502 = vunpack.c.h.b16 %v377
    %v3503 = vunpack.c.l.b16 %v378
    %v3504 = vunpack.c.h.b16 %v378
    %v3505 = vunpack.c.l.b16 %v379
    %v3506 = vunpack.c.h.b16 %v379
    %v3507 = vunpack.c.l.b16 %v380
    %v3508 = vunpack.c.h.b16 %v380
    %v3509 = vunpack.c.l.b16 %v381
    %v3510 = vunpack.c.h.b16 %v381
    %v3511 = vunpack.c.l.b16 %v382
    %v3512 = vunpack.c.h.b16 %v382
    %v3513 = vunpack.c.l.b16 %v383
    %v3514 = vunpack.c.h.b16 %v383
    %v3515 = vunpack.c.l.b16 %v384
    %v3516 = vunpack.c.h.b16 %v384
    %v3517 = vunpack.c.l.b16 %v385
    %v3518 = vunpack.c.h.b16 %v385
    %v3519 = vunpack.c.l.b16 %v386
    %v3520 = vunpack.c.h.b16 %v386
    %v3521 = vunpack.c.l.b16 %v387
    %v3522 = vunpack.c.h.b16 %v387
    %v3523 = vunpack.c.l.b16 %v388
    %v3524 = vunpack.c.h.b16 %v388
    %v3525 = vunpack.c.l.b16 %v389
    %v3526 = vunpack.c.h.b16 %v389
    %v3527 = vunpack.c.l.b16 %v390
    %v3528 = vunpack.c.h.b16 %v390
    %v3529 = vunpack.c.l.b16 %v391
    %v3530 = vunpack.c.h.b16 %v391
    %v3531 = vunpack.c.l.b16 %v392
    %v3532 = vunpack.c.h.b16 %v392
    %v3533 = vunpack.c.l.b16 %v393
    %v3534 = vunpack.c.h.b16 %v393
    %v3535 = vunpack.c.l.b16 %v394
    %v3536 = vunpack.c.h.b16 %v394
    %v3537 = vunpack.c.l.b16 %v395
    %v3538 = vunpack.c.h.b16 %v395
    %v3539 = vunpack.c.l.b16 %v396
    %v3540 = vunpack.c.h.b16 %v396
    %v3541 = vunpack.c.l.b16 %v397
    %v3542 = vunpack.c.h.b16 %v397
    %v3543 = vunpack.c.l.b16 %v398
    %v3544 = vunpack.c.h.b16 %v398
    %v3545 = vunpack.c.l.b16 %v399
    %v3546 = vunpack.c.h.b16 %v399
    %v3547 = vunpack.c.l.b16 %v400
    %v3548 = vunpack.c.h.b16 %v400
    %v3549 = vunpack.c.l.b16 %v401
    %v3550 = vunpack.c.h.b16 %v401
    %v3551 = vunpack.c.l.b16 %v402
    %v3552 = vunpack.c.h.b16 %v402
    %v3553 = vunpack.c.l.b16 %v403
    %v3554 = vunpack.c.h.b16 %v403
    %v3555 = vunpack.c.l.b16 %v404
    %v3556 = vunpack.c.h.b16 %v404
    %v3557 = vunpack.c.l.b16 %v405
    %v3558 = vunpack.c.h.b16 %v405
    %v3559 = vunpack.c.l.b16 %v406
    %v3560 = vunpack.c.h.b16 %v406
    %v3561 = vunpack.c.l.b16 %v407
    %v3562 = vunpack.c.h.b16 %v407
    %v3563 = vunpack.c.l.b16 %v408
    %v3564 = vunpack.c.h.b16 %v408
    %v3565 = vunpack.c.l.b16 %v409
    %v3566 = vunpack.c.h.b16 %v409
    %v3567 = vunpack.c.l.b16 %v410
    %v3568 = vunpack.c.h.b16 %v410
    %v3569 = vunpack.c.l.b16 %v411
    %v3570 = vunpack.c.h.b16 %v411
    %v3571 = vunpack.c.l.b16 %v412
    %v3572 = vunpack.c.h.b16 %v412
    %v3573 = vunpack.c.l.b16 %v413
    %v3574 = vunpack.c.h.b16 %v413
    %v3575 = vunpack.c.l.b16 %v414
    %v3576 = vunpack.c.h.b16 %v414
    %v3577 = vunpack.c.l.b16 %v415
    %v3578 = vunpack.c.h.b16 %v415
    %v3579 = vunpack.c.l.b16 %v416
    %v3580 = vunpack.c.h.b16 %v416
    %v3581 = vunpack.c.l.b16 %v417
    %v3582 = vunpack.c.h.b16 %v417
    %v3583 = vunpack.c.l.b16 %v418
    %v3584 = vunpack.c.h.b16 %v418
    %v3585 = vunpack.c.l.b16 %v419
    %v3586 = vunpack.c.h.b16 %v419
    %v3587 = vunpack.c.l.b16 %v420
    %v3588 = vunpack.c.h.b16 %v420
    %v3589 = vunpack.c.l.b16 %v421
    %v3590 = vunpack.c.h.b16 %v421
    %v3591 = vunpack.c.l.b16 %v422
    %v3592 = vunpack.c.h.b16 %v422
    %v3593 = vunpack.c.l.b16 %v423
    %v3594 = vunpack.c.h.b16 %v423
    %v3595 = vunpack.c.l.b16 %v424
    %v3596 = vunpack.c.h.b16 %v424
    %v3597 = vunpack.c.l.b16 %v425
    %v3598 = vunpack.c.h.b16 %v425
    %v3599 = vunpack.c.l.b16 %v426
    %v3600 = vunpack.c.h.b16 %v426
    %v3601 = vunpack.c.l.b16 %v427
    %v3602 = vunpack.c.h.b16 %v427
    %v3603 = vunpack.c.l.b16 %v428
    %v3604 = vunpack.c.h.b16 %v428
    %v3605 = vunpack.c.l.b16 %v429
    %v3606 = vunpack.c.h.b16 %v429
    %v3607 = vunpack.c.l.b16 %v430
    %v3608 = vunpack.c.h.b16 %v430
    %v3609 = vunpack.c.l.b16 %v431
    %v3610 = vunpack.c.h.b16 %v431
    %v3611 = vunpack.c.l.b16 %v432
    %v3612 = vunpack.c.h.b16 %v432
    %v3613 = vunpack.c.l.b16 %v433
    %v3614 = vunpack.c.h.b16 %v433
    %v3615 = vunpack.c.l.b16 %v434
    %v3616 = vunpack.c.h.b16 %v434
    %v3617 = vunpack.c.l.b16 %v435
    %v3618 = vunpack.c.h.b16 %v435
    %v3619 = vunpack.c.l.b16 %v436
    %v3620 = vunpack.c.h.b16 %v436
    %v3621 = vunpack.c.l.b16 %v437
    %v3622 = vunpack.c.h.b16 %v437
    %v3623 = vunpack.c.l.b16 %v438
    %v3624 = vunpack.c.h.b16 %v438
    %v3625 = vunpack.c.l.b16 %v439
    %v3626 = vunpack.c.h.b16 %v439
    %v3627 = vunpack.c.l.b16 %v440
    %v3628 = vunpack.c.h.b16 %v440
    %v3629 = vunpack.c.l.b16 %v441
    %v3630 = vunpack.c.h.b16 %v441
    %v3631 = vunpack.c.l.b16 %v442
    %v3632 = vunpack.c.h.b16 %v442
    %v3633 = vunpack.c.l.b16 %v443
    %v3634 = vunpack.c.h.b16 %v443
    %v3635 = vunpack.c.l.b16 %v444
    %v3636 = vunpack.c.h.b16 %v444
    %v3637 = vunpack.c.l.b16 %v445
    %v3638 = vunpack.c.h.b16 %v445
    %v3639 = vunpack.c.l.b16 %v446
    %v3640 = vunpack.c.h.b16 %v446
    %v3641 = vunpack.c.l.b16 %v447
    %v3642 = vunpack.c.h.b16 %v447
    %v3643 = vunpack.c.l.b16 %v448
    %v3644 = vunpack.c.h.b16 %v448
    %v3645 = vunpack.c.l.b16 %v449
    %v3646 = vunpack.c.h.b16 %v449
    %v3647 = vunpack.c.l.b16 %v450
    %v3648 = vunpack.c.h.b16 %v450
    %v3649 = vunpack.c.l.b16 %v451
    %v3650 = vunpack.c.h.b16 %v451
    %v3651 = vunpack.c.l.b16 %v452
    %v3652 = vunpack.c.h.b16 %v452
    %v3653 = vunpack.c.l.b16 %v453
    %v3654 = vunpack.c.h.b16 %v453
    %v3655 = vunpack.c.l.b16 %v454
    %v3656 = vunpack.c.h.b16 %v454
    %v3657 = vunpack.c.l.b16 %v455
    %v3658 = vunpack.c.h.b16 %v455
    %v3659 = vunpack.c.l.b16 %v456
    %v3660 = vunpack.c.h.b16 %v456
    %v3661 = vunpack.c.l.b16 %v457
    %v3662 = vunpack.c.h.b16 %v457
    %v3663 = vunpack.c.l.b16 %v458
    %v3664 = vunpack.c.h.b16 %v458
    %v3665 = vunpack.c.l.b16 %v459
    %v3666 = vunpack.c.h.b16 %v459
    %v3667 = vunpack.c.l.b16 %v460
    %v3668 = vunpack.c.h.b16 %v460
    %v3669 = vunpack.c.l.b16 %v461
    %v3670 = vunpack.c.h.b16 %v461
    %v3671 = vunpack.c.l.b16 %v462
    %v3672 = vunpack.c.h.b16 %v462
    %v3673 = vunpack.c.l.b16 %v463
    %v3674 = vunpack.c.h.b16 %v463
    %v3675 = vunpack.c.l.b16 %v464
    %v3676 = vunpack.c.h.b16 %v464
    %v3677 = vunpack.c.l.b16 %v465
    %v3678 = vunpack.c.h.b16 %v465
    %v3679 = vunpack.c.l.b16 %v466
    %v3680 = vunpack.c.h.b16 %v466
    %v3681 = vunpack.c.l.b16 %v467
    %v3682 = vunpack.c.h.b16 %v467
    %v3683 = vunpack.c.l.b16 %v468
    %v3684 = vunpack.c.h.b16 %v468
    %v3685 = vunpack.c.l.b16 %v469
    %v3686 = vunpack.c.h.b16 %v469
    %v3687 = vunpack.c.l.b16 %v470
    %v3688 = vunpack.c.h.b16 %v470
    %v3689 = vunpack.c.l.b16 %v471
    %v3690 = vunpack.c.h.b16 %v471
    %v3691 = vunpack.c.l.b16 %v472
    %v3692 = vunpack.c.h.b16 %v472
    %v3693 = vunpack.c.l.b16 %v473
    %v3694 = vunpack.c.h.b16 %v473
    %v3695 = vunpack.c.l.b16 %v474
    %v3696 = vunpack.c.h.b16 %v474
    %v3697 = vunpack.c.l.b16 %v475
    %v3698 = vunpack.c.h.b16 %v475
    %v3699 = vunpack.c.l.b16 %v476
    %v3700 = vunpack.c.h.b16 %v476
    %v3701 = vunpack.c.l.b16 %v477
    %v3702 = vunpack.c.h.b16 %v477
    %v3703 = vunpack.c.l.b16 %v478
    %v3704 = vunpack.c.h.b16 %v478
    %v3705 = vunpack.c.l.b16 %v479
    %v3706 = vunpack.c.h.b16 %v479
    %v3707 = vunpack.c.l.b16 %v480
    %v3708 = vunpack.c.h.b16 %v480
    %v3709 = vunpack.c.l.b16 %v481
    %v3710 = vunpack.c.h.b16 %v481
    %v3711 = vunpack.c.l.b16 %v482
    %v3712 = vunpack.c.h.b16 %v482
    %v3713 = vunpack.c.l.b16 %v483
    %v3714 = vunpack.c.h.b16 %v483
    %v3715 = vunpack.c.l.b16 %v484
    %v3716 = vunpack.c.h.b16 %v484
    %v3717 = vunpack.c.l.b16 %v485
    %v3718 = vunpack.c.h.b16 %v485
    %v3719 = vunpack.c.l.b16 %v486
    %v3720 = vunpack.c.h.b16 %v486
    %v3721 = vunpack.c.l.b16 %v487
    %v3722 = vunpack.c.h.b16 %v487
    %v3723 = vunpack.c.l.b16 %v488
    %v3724 = vunpack.c.h.b16 %v488
    %v3725 = vunpack.c.l.b16 %v489
    %v3726 = vunpack.c.h.b16 %v489
    %v3727 = vunpack.c.l.b16 %v490
    %v3728 = vunpack.c.h.b16 %v490
    %v3729 = vunpack.c.l.b16 %v491
    %v3730 = vunpack.c.h.b16 %v491
    %v3731 = vunpack.c.l.b16 %v492
    %v3732 = vunpack.c.h.b16 %v492
    %v3733 = vunpack.c.l.b16 %v493
    %v3734 = vunpack.c.h.b16 %v493
    %v3735 = vunpack.c.l.b16 %v494
    %v3736 = vunpack.c.h.b16 %v494
    %v3737 = vunpack.c.l.b16 %v495
    %v3738 = vunpack.c.h.b16 %v495
    %v3739 = vunpack.c.l.b16 %v496
    %v3740 = vunpack.c.h.b16 %v496
    %v3741 = vunpack.c.l.b16 %v497
    %v3742 = vunpack.c.h.b16 %v497
    %v3743 = vunpack.c.l.b16 %v498
    %v3744 = vunpack.c.h.b16 %v498
    %v3745 = vunpack.c.l.b16 %v499
    %v3746 = vunpack.c.h.b16 %v499
    %v3747 = vunpack.c.l.b16 %v500
    %v3748 = vunpack.c.h.b16 %v500
    %v3749 = vunpack.c.l.b16 %v501
    %v3750 = vunpack.c.h.b16 %v501
    %v3751 = vunpack.c.l.b16 %v502
    %v3752 = vunpack.c.h.b16 %v502
    %v3753 = vunpack.c.l.b16 %v503
    %v3754 = vunpack.c.h.b16 %v503
    %v3755 = vunpack.c.l.b16 %v504
    %v3756 = vunpack.c.h.b16 %v504
    %v3757 = vunpack.c.l.b16 %v505
    %v3758 = vunpack.c.h.b16 %v505
    %v3759 = vunpack.c.l.b16 %v506
    %v3760 = vunpack.c.h.b16 %v506
    %v3761 = vunpack.c.l.b16 %v507
    %v3762 = vunpack.c.h.b16 %v507
    %v3763 = vunpack.c.l.b16 %v508
    %v3764 = vunpack.c.h.b16 %v508
    %v3765 = vunpack.c.l.b16 %v509
    %v3766 = vunpack.c.h.b16 %v509
    %v3767 = vunpack.c.l.b16 %v510
    %v3768 = vunpack.c.h.b16 %v510
    %v3769 = vunpack.c.l.b16 %v511
    %v3770 = vunpack.c.h.b16 %v511
    %v3771 = vunpack.c.l.b16 %v512
    %v3772 = vunpack.c.h.b16 %v512
    %v3773 = vunpack.c.l.b16 %v513
    %v3774 = vunpack.c.h.b16 %v513
    %v3775 = vunpack.c.l.b16 %v514
    %v3776 = vunpack.c.h.b16 %v514
    %v3777 = vunpack.c.l.b16 %v515
    %v3778 = vunpack.c.h.b16 %v515
    %v3779 = vunpack.c.l.b16 %v516
    %v3780 = vunpack.c.h.b16 %v516
    %v3781 = vunpack.c.l.b16 %v517
    %v3782 = vunpack.c.h.b16 %v517
    %v3783 = vunpack.c.l.b16 %v518
    %v3784 = vunpack.c.h.b16 %v518
    %v3785 = vunpack.c.l.b16 %v519
    %v3786 = vunpack.c.h.b16 %v519
    %v3787 = vunpack.c.l.b16 %v520
    %v3788 = vunpack.c.h.b16 %v520
    %v3789 = vunpack.c.l.b16 %v521
    %v3790 = vunpack.c.h.b16 %v521
    %v3791 = vunpack.c.l.b16 %v522
    %v3792 = vunpack.c.h.b16 %v522
    %v3793 = vunpack.c.l.b16 %v523
    %v3794 = vunpack.c.h.b16 %v523
    %v3795 = vunpack.c.l.b16 %v524
    %v3796 = vunpack.c.h.b16 %v524
    %v3797 = vunpack.c.l.b16 %v525
    %v3798 = vunpack.c.h.b16 %v525
    %v3799 = vunpack.c.l.b16 %v526
    %v3800 = vunpack.c.h.b16 %v526
    %v3801 = vunpack.c.l.b16 %v527
    %v3802 = vunpack.c.h.b16 %v527
    %v3803 = vunpack.c.l.b16 %v528
    %v3804 = vunpack.c.h.b16 %v528
    %v3805 = vunpack.c.l.b16 %v529
    %v3806 = vunpack.c.h.b16 %v529
    %v3807 = vunpack.c.l.b16 %v530
    %v3808 = vunpack.c.h.b16 %v530
    %v3809 = vunpack.c.l.b16 %v531
    %v3810 = vunpack.c.h.b16 %v531
    %v3811 = vunpack.c.l.b16 %v532
    %v3812 = vunpack.c.h.b16 %v532
    %v3813 = vunpack.c.l.b16 %v533
    %v3814 = vunpack.c.h.b16 %v533
    %v3815 = vunpack.c.l.b16 %v534
    %v3816 = vunpack.c.h.b16 %v534
    %v3817 = vunpack.c.l.b16 %v535
    %v3818 = vunpack.c.h.b16 %v535
    %v3819 = vunpack.c.l.b16 %v536
    %v3820 = vunpack.c.h.b16 %v536
    %v3821 = vunpack.c.l.b16 %v537
    %v3822 = vunpack.c.h.b16 %v537
    %v3823 = vunpack.c.l.b16 %v538
    %v3824 = vunpack.c.h.b16 %v538
    %v3825 = vunpack.c.l.b16 %v539
    %v3826 = vunpack.c.h.b16 %v539
    %v3827 = vunpack.c.l.b16 %v540
    %v3828 = vunpack.c.h.b16 %v540
    %v3829 = vunpack.c.l.b16 %v541
    %v3830 = vunpack.c.h.b16 %v541
    %v3831 = vunpack.c.l.b16 %v542
    %v3832 = vunpack.c.h.b16 %v542
    %v3833 = vunpack.c.l.b16 %v543
    %v3834 = vunpack.c.h.b16 %v543
    %v3835 = vunpack.c.l.b16 %v544
    %v3836 = vunpack.c.h.b16 %v544
    %v3837 = vunpack.c.l.b16 %v545
    %v3838 = vunpack.c.h.b16 %v545
    %v3839 = vunpack.c.l.b16 %v546
    %v3840 = vunpack.c.h.b16 %v546
    %v3841 = vunpack.c.l.b16 %v547
    %v3842 = vunpack.c.h.b16 %v547
    %v3843 = vunpack.c.l.b16 %v548
    %v3844 = vunpack.c.h.b16 %v548
    %v3845 = vunpack.c.l.b16 %v549
    %v3846 = vunpack.c.h.b16 %v549
    %v3847 = vunpack.c.l.b16 %v550
    %v3848 = vunpack.c.h.b16 %v550
    %v3849 = vunpack.c.l.b16 %v551
    %v3850 = vunpack.c.h.b16 %v551
    %v3851 = vunpack.c.l.b16 %v552
    %v3852 = vunpack.c.h.b16 %v552
    %v3853 = vunpack.c.l.b16 %v553
    %v3854 = vunpack.c.h.b16 %v553
    %v3855 = vunpack.c.l.b16 %v554
    %v3856 = vunpack.c.h.b16 %v554
    %v3857 = vunpack.c.l.b16 %v555
    %v3858 = vunpack.c.h.b16 %v555
    %v3859 = vunpack.c.l.b16 %v556
    %v3860 = vunpack.c.h.b16 %v556
    %v3861 = vunpack.c.l.b16 %v557
    %v3862 = vunpack.c.h.b16 %v557
    %v3863 = vunpack.c.l.b16 %v558
    %v3864 = vunpack.c.h.b16 %v558
    %v3865 = vunpack.c.l.b16 %v559
    %v3866 = vunpack.c.h.b16 %v559
    %v3867 = vunpack.c.l.b16 %v560
    %v3868 = vunpack.c.h.b16 %v560
    %v3869 = vunpack.c.l.b16 %v561
    %v3870 = vunpack.c.h.b16 %v561
    %v3871 = vunpack.c.l.b16 %v562
    %v3872 = vunpack.c.h.b16 %v562
    %v3873 = vunpack.c.l.b16 %v563
    %v3874 = vunpack.c.h.b16 %v563
    %v3875 = vunpack.c.l.b16 %v564
    %v3876 = vunpack.c.h.b16 %v564
    %v3877 = vunpack.c.l.b16 %v565
    %v3878 = vunpack.c.h.b16 %v565
    %v3879 = vunpack.c.l.b16 %v566
    %v3880 = vunpack.c.h.b16 %v566
    %v3881 = vunpack.c.l.b16 %v567
    %v3882 = vunpack.c.h.b16 %v567
    %v3883 = vunpack.c.l.b16 %v568
    %v3884 = vunpack.c.h.b16 %v568
    %v3885 = vunpack.c.l.b16 %v569
    %v3886 = vunpack.c.h.b16 %v569
    %v3887 = vunpack.c.l.b16 %v570
    %v3888 = vunpack.c.h.b16 %v570
    %v3889 = vunpack.c.l.b16 %v571
    %v3890 = vunpack.c.h.b16 %v571
    %v3891 = vunpack.c.l.b16 %v572
    %v3892 = vunpack.c.h.b16 %v572
    %v3893 = vunpack.c.l.b16 %v573
    %v3894 = vunpack.c.h.b16 %v573
    %v3895 = vunpack.c.l.b16 %v574
    %v3896 = vunpack.c.h.b16 %v574
    %v3897 = vunpack.c.l.b16 %v575
    %v3898 = vunpack.c.h.b16 %v575
    %v3899 = vunpack.c.l.b16 %v576
    %v3900 = vunpack.c.h.b16 %v576
    %v3901 = vunpack.c.l.b16 %v577
    %v3902 = vunpack.c.h.b16 %v577
    %v3903 = vunpack.c.l.b16 %v578
    %v3904 = vunpack.c.h.b16 %v578
    %v3905 = vunpack.c.l.b16 %v579
    %v3906 = vunpack.c.h.b16 %v579
    %v3907 = vunpack.c.l.b16 %v580
    %v3908 = vunpack.c.h.b16 %v580
    %v3909 = vunpack.c.l.b16 %v581
    %v3910 = vunpack.c.h.b16 %v581
    %v3911 = vunpack.c.l.b16 %v582
    %v3912 = vunpack.c.h.b16 %v582
    %v3913 = vunpack.c.l.b16 %v583
    %v3914 = vunpack.c.h.b16 %v583
    %v3915 = vunpack.c.l.b16 %v584
    %v3916 = vunpack.c.h.b16 %v584
    %v3917 = vunpack.c.l.b16 %v585
    %v3918 = vunpack.c.h.b16 %v585
    %v3919 = vunpack.c.l.b16 %v586
    %v3920 = vunpack.c.h.b16 %v586
    %v3921 = vunpack.c.l.b16 %v587
    %v3922 = vunpack.c.h.b16 %v587
    %v3923 = vunpack.c.l.b16 %v588
    %v3924 = vunpack.c.h.b16 %v588
    %v3925 = vunpack.c.l.b16 %v589
    %v3926 = vunpack.c.h.b16 %v589
    %v3927 = vunpack.c.l.b16 %v590
    %v3928 = vunpack.c.h.b16 %v590
    %v3929 = vunpack.c.l.b16 %v591
    %v3930 = vunpack.c.h.b16 %v591
    %v3931 = vunpack.c.l.b16 %v592
    %v3932 = vunpack.c.h.b16 %v592
    %v3933 = vunpack.c.l.b16 %v593
    %v3934 = vunpack.c.h.b16 %v593
    %v3935 = vunpack.c.l.b16 %v594
    %v3936 = vunpack.c.h.b16 %v594
    %v3937 = vunpack.c.l.b16 %v595
    %v3938 = vunpack.c.h.b16 %v595
    %v3939 = vunpack.c.l.b16 %v596
    %v3940 = vunpack.c.h.b16 %v596
    %v3941 = vunpack.c.l.b16 %v597
    %v3942 = vunpack.c.h.b16 %v597
    %v3943 = vunpack.c.l.b16 %v598
    %v3944 = vunpack.c.h.b16 %v598
    %v3945 = vunpack.c.l.b16 %v599
    %v3946 = vunpack.c.h.b16 %v599
    %v3947 = vunpack.c.l.b16 %v600
    %v3948 = vunpack.c.h.b16 %v600
    %v3949 = vunpack.c.l.b16 %v601
    %v3950 = vunpack.c.h.b16 %v601
    %v3951 = vunpack.c.l.b16 %v602
    %v3952 = vunpack.c.h.b16 %v602
    %v3953 = vunpack.c.l.b16 %v603
    %v3954 = vunpack.c.h.b16 %v603
    %v3955 = vunpack.c.l.b16 %v604
    %v3956 = vunpack.c.h.b16 %v604
    %v3957 = vunpack.c.l.b16 %v605
    %v3958 = vunpack.c.h.b16 %v605
    %v3959 = vunpack.c.l.b16 %v606
    %v3960 = vunpack.c.h.b16 %v606
    %v3961 = vunpack.c.l.b16 %v607
    %v3962 = vunpack.c.h.b16 %v607
    %v3963 = vunpack.c.l.b16 %v608
    %v3964 = vunpack.c.h.b16 %v608
    %v3965 = vunpack.c.l.b16 %v609
    %v3966 = vunpack.c.h.b16 %v609
    %v3967 = vunpack.c.l.b16 %v610
    %v3968 = vunpack.c.h.b16 %v610
    %v3969 = vunpack.c.l.b16 %v611
    %v3970 = vunpack.c.h.b16 %v611
    %v3971 = vunpack.c.l.b16 %v612
    %v3972 = vunpack.c.h.b16 %v612
    %v3973 = vunpack.c.l.b16 %v613
    %v3974 = vunpack.c.h.b16 %v613
    %v3975 = vunpack.c.l.b16 %v614
    %v3976 = vunpack.c.h.b16 %v614
    %v3977 = vunpack.c.l.b16 %v615
    %v3978 = vunpack.c.h.b16 %v615
    %v3979 = vunpack.c.l.b16 %v616
    %v3980 = vunpack.c.h.b16 %v616
    %v3981 = vunpack.c.l.b16 %v617
    %v3982 = vunpack.c.h.b16 %v617
    %v3983 = vunpack.c.l.b16 %v618
    %v3984 = vunpack.c.h.b16 %v618
    %v3985 = vunpack.c.l.b16 %v619
    %v3986 = vunpack.c.h.b16 %v619
    %v3987 = vunpack.c.l.b16 %v620
    %v3988 = vunpack.c.h.b16 %v620
    %v3989 = vunpack.c.l.b16 %v621
    %v3990 = vunpack.c.h.b16 %v621
    %v3991 = vunpack.c.l.b16 %v622
    %v3992 = vunpack.c.h.b16 %v622
    %v3993 = vunpack.c.l.b16 %v623
    %v3994 = vunpack.c.h.b16 %v623
    %v3995 = vunpack.c.l.b16 %v624
    %v3996 = vunpack.c.h.b16 %v624
    %v3997 = vunpack.c.l.b16 %v625
    %v3998 = vunpack.c.h.b16 %v625
    %v3999 = vunpack.c.l.b16 %v626
    %v4000 = vunpack.c.h.b16 %v626
    %v4001 = vunpack.c.l.b16 %v627
    %v4002 = vunpack.c.h.b16 %v627
    %v4003 = vunpack.c.l.b16 %v628
    %v4004 = vunpack.c.h.b16 %v628
    %v4005 = vunpack.c.l.b16 %v629
    %v4006 = vunpack.c.h.b16 %v629
    %v4007 = vunpack.c.l.b16 %v630
    %v4008 = vunpack.c.h.b16 %v630
    %v4009 = vunpack.c.l.b16 %v631
    %v4010 = vunpack.c.h.b16 %v631
    %v4011 = vunpack.c.l.b16 %v632
    %v4012 = vunpack.c.h.b16 %v632
    %v4013 = vunpack.c.l.b16 %v633
    %v4014 = vunpack.c.h.b16 %v633
    %v4015 = vunpack.c.l.b16 %v634
    %v4016 = vunpack.c.h.b16 %v634
    %v4017 = vunpack.c.l.b16 %v635
    %v4018 = vunpack.c.h.b16 %v635
    %v4019 = vunpack.c.l.b16 %v636
    %v4020 = vunpack.c.h.b16 %v636
    %v4021 = vunpack.c.l.b16 %v637
    %v4022 = vunpack.c.h.b16 %v637
    %v4023 = vunpack.c.l.b16 %v638
    %v4024 = vunpack.c.h.b16 %v638
    %v4025 = vunpack.c.l.b16 %v639
    %v4026 = vunpack.c.h.b16 %v639
    %v4027 = vunpack.c.l.b16 %v640
    %v4028 = vunpack.c.h.b16 %v640
    %v4029 = vunpack.c.l.b16 %v641
    %v4030 = vunpack.c.h.b16 %v641
    %v4031 = vunpack.c.l.b16 %v642
    %v4032 = vunpack.c.h.b16 %v642
    %v4033 = vunpack.c.l.b16 %v643
    %v4034 = vunpack.c.h.b16 %v643
    %v4035 = vunpack.c.l.b16 %v644
    %v4036 = vunpack.c.h.b16 %v644
    %v4037 = vunpack.c.l.b16 %v645
    %v4038 = vunpack.c.h.b16 %v645
    %v4039 = vunpack.c.l.b16 %v646
    %v4040 = vunpack.c.h.b16 %v646
    %v4041 = vunpack.c.l.b16 %v647
    %v4042 = vunpack.c.h.b16 %v647
    %v4043 = vunpack.c.l.b16 %v648
    %v4044 = vunpack.c.h.b16 %v648
    %v4045 = vunpack.c.l.b16 %v649
    %v4046 = vunpack.c.h.b16 %v649
    %v4047 = vunpack.c.l.b16 %v650
    %v4048 = vunpack.c.h.b16 %v650
    %v4049 = vunpack.c.l.b16 %v651
    %v4050 = vunpack.c.h.b16 %v651
    %v4051 = vunpack.c.l.b16 %v652
    %v4052 = vunpack.c.h.b16 %v652
    %v4053 = vunpack.c.l.b16 %v653
    %v4054 = vunpack.c.h.b16 %v653
    %v4055 = vunpack.c.l.b16 %v654
    %v4056 = vunpack.c.h.b16 %v654
    %v4057 = vunpack.c.l.b16 %v655
    %v4058 = vunpack.c.h.b16 %v655
    %v4059 = vunpack.c.l.b16 %v656
    %v4060 = vunpack.c.h.b16 %v656
    %v4061 = vunpack.c.l.b16 %v657
    %v4062 = vunpack.c.h.b16 %v657
    %v4063 = vunpack.c.l.b16 %v658
    %v4064 = vunpack.c.h.b16 %v658
    %v4065 = vunpack.c.l.b16 %v659
    %v4066 = vunpack.c.h.b16 %v659
    %v4067 = vunpack.c.l.b16 %v660
    %v4068 = vunpack.c.h.b16 %v660
    %v4069 = vunpack.c.l.b16 %v661
    %v4070 = vunpack.c.h.b16 %v661
    %v4071 = vunpack.c.l.b16 %v662
    %v4072 = vunpack.c.h.b16 %v662
    %v4073 = vunpack.c.l.b16 %v663
    %v4074 = vunpack.c.h.b16 %v663
    %v4075 = vunpack.c.l.b16 %v664
    %v4076 = vunpack.c.h.b16 %v664
    %v4077 = vunpack.c.l.b16 %v665
    %v4078 = vunpack.c.h.b16 %v665
    %v4079 = vunpack.c.l.b16 %v666
    %v4080 = vunpack.c.h.b16 %v666
    %v4081 = vunpack.c.l.b16 %v667
    %v4082 = vunpack.c.h.b16 %v667
    %v4083 = vunpack.c.l.b16 %v668
    %v4084 = vunpack.c.h.b16 %v668
    %v4085 = vunpack.c.l.b16 %v669
    %v4086 = vunpack.c.h.b16 %v669
    %v4087 = vunpack.c.l.b16 %v670
    %v4088 = vunpack.c.h.b16 %v670
    %v4089 = vunpack.c.l.b16 %v671
    %v4090 = vunpack.c.h.b16 %v671
    %v4091 = vunpack.c.l.b16 %v672
    %v4092 = vunpack.c.h.b16 %v672
    %v4093 = vunpack.c.l.b16 %v673
    %v4094 = vunpack.c.h.b16 %v673
    %v4095 = vunpack.c.l.b16 %v674
    %v4096 = vunpack.c.h.b16 %v674
    %v4097 = vunpack.c.l.b16 %v675
    %v4098 = vunpack.c.h.b16 %v675
    %v4099 = vunpack.c.l.b16 %v676
    %v4100 = vunpack.c.h.b16 %v676
    %v4101 = vunpack.c.l.b16 %v677
    %v4102 = vunpack.c.h.b16 %v677
    %v4103 = vunpack.c.l.b16 %v678
    %v4104 = vunpack.c.h.b16 %v678
    %v4105 = vunpack.c.l.b16 %v679
    %v4106 = vunpack.c.h.b16 %v679
    %v4107 = vunpack.c.l.b16 %v680
    %v4108 = vunpack.c.h.b16 %v680
    %v4109 = vunpack.c.l.b16 %v681
    %v4110 = vunpack.c.h.b16 %v681
    %v4111 = vunpack.c.l.b16 %v682
    %v4112 = vunpack.c.h.b16 %v682
    %v4113 = vunpack.c.l.b16 %v683
    %v4114 = vunpack.c.h.b16 %v683
    %v4115 = vunpack.c.l.b16 %v684
    %v4116 = vunpack.c.h.b16 %v684
    %v4117 = vunpack.c.l.b16 %v685
    %v4118 = vunpack.c.h.b16 %v685
    %v4119 = vunpack.c.l.b16 %v686
    %v4120 = vunpack.c.h.b16 %v686
    %v4121 = vunpack.c.l.b16 %v687
    %v4122 = vunpack.c.h.b16 %v687
    %v4123 = vunpack.c.l.b16 %v688
    %v4124 = vunpack.c.h.b16 %v688
    %v4125 = vunpack.c.l.b16 %v689
    %v4126 = vunpack.c.h.b16 %v689
    %v4127 = vunpack.c.l.b16 %v690
    %v4128 = vunpack.c.h.b16 %v690
    %v4129 = vunpack.c.l.b16 %v691
    %v4130 = vunpack.c.h.b16 %v691
    %v4131 = vunpack.c.l.b16 %v692
    %v4132 = vunpack.c.h.b16 %v692
    %v4133 = vunpack.c.l.b16 %v693
    %v4134 = vunpack.c.h.b16 %v693
    %v4135 = vunpack.c.l.b16 %v694
    %v4136 = vunpack.c.h.b16 %v694
    %v4137 = vunpack.c.l.b16 %v695
    %v4138 = vunpack.c.h.b16 %v695
    %v4139 = vunpack.c.l.b16 %v696
    %v4140 = vunpack.c.h.b16 %v696
    %v4141 = vunpack.c.l.b16 %v697
    %v4142 = vunpack.c.h.b16 %v697
    %v4143 = vunpack.c.l.b16 %v698
    %v4144 = vunpack.c.h.b16 %v698
    %v4145 = vunpack.c.l.b16 %v699
    %v4146 = vunpack.c.h.b16 %v699
    %v4147 = vunpack.c.l.b16 %v700
    %v4148 = vunpack.c.h.b16 %v700
    %v4149 = vunpack.c.l.b16 %v701
    %v4150 = vunpack.c.h.b16 %v701
    %v4151 = vunpack.c.l.b16 %v702
    %v4152 = vunpack.c.h.b16 %v702
    %v4153 = vunpack.c.l.b16 %v703
    %v4154 = vunpack.c.h.b16 %v703
    %v4155 = vunpack.c.l.b16 %v704
    %v4156 = vunpack.c.h.b16 %v704
    %v4157 = vunpack.c.l.b16 %v705
    %v4158 = vunpack.c.h.b16 %v705
    %v4159 = vunpack.c.l.b16 %v706
    %v4160 = vunpack.c.h.b16 %v706
    %v4161 = vunpack.c.l.b16 %v707
    %v4162 = vunpack.c.h.b16 %v707
    %v4163 = vunpack.c.l.b16 %v708
    %v4164 = vunpack.c.h.b16 %v708
    %v4165 = vunpack.c.l.b16 %v709
    %v4166 = vunpack.c.h.b16 %v709
    %v4167 = vunpack.c.l.b16 %v710
    %v4168 = vunpack.c.h.b16 %v710
    %v4169 = vunpack.c.l.b16 %v711
    %v4170 = vunpack.c.h.b16 %v711
    %v4171 = vunpack.c.l.b16 %v712
    %v4172 = vunpack.c.h.b16 %v712
    %v4173 = vunpack.c.l.b16 %v713
    %v4174 = vunpack.c.h.b16 %v713
    %v4175 = vunpack.c.l.b16 %v714
    %v4176 = vunpack.c.h.b16 %v714
    %v4177 = vunpack.c.l.b16 %v715
    %v4178 = vunpack.c.h.b16 %v715
    %v4179 = vunpack.c.l.b16 %v716
    %v4180 = vunpack.c.h.b16 %v716
    %v4181 = vunpack.c.l.b16 %v717
    %v4182 = vunpack.c.h.b16 %v717
    %v4183 = vunpack.c.l.b16 %v718
    %v4184 = vunpack.c.h.b16 %v718
    %v4185 = vunpack.c.l.b16 %v719
    %v4186 = vunpack.c.h.b16 %v719
    %v4187 = vunpack.c.l.b16 %v720
    %v4188 = vunpack.c.h.b16 %v720
    %v4189 = vunpack.c.l.b16 %v721
    %v4190 = vunpack.c.h.b16 %v721
    %v4191 = vunpack.c.l.b16 %v722
    %v4192 = vunpack.c.h.b16 %v722
    %v4193 = vunpack.c.l.b16 %v723
    %v4194 = vunpack.c.h.b16 %v723
    %v4195 = vunpack.c.l.b16 %v724
    %v4196 = vunpack.c.h.b16 %v724
    %v4197 = vunpack.c.l.b16 %v725
    %v4198 = vunpack.c.h.b16 %v725
    %v4199 = vunpack.c.l.b16 %v726
    %v4200 = vunpack.c.h.b16 %v726
    %v4201 = vunpack.c.l.b16 %v727
    %v4202 = vunpack.c.h.b16 %v727
    %v4203 = vunpack.c.l.b16 %v728
    %v4204 = vunpack.c.h.b16 %v728
    %v4205 = vunpack.c.l.b16 %v729
    %v4206 = vunpack.c.h.b16 %v729
    %v4207 = vunpack.c.l.b16 %v730
    %v4208 = vunpack.c.h.b16 %v730
    %v4209 = vunpack.c.l.b16 %v731
    %v4210 = vunpack.c.h.b16 %v731
    %v4211 = vunpack.c.l.b16 %v732
    %v4212 = vunpack.c.h.b16 %v732
    %v4213 = vunpack.c.l.b16 %v733
    %v4214 = vunpack.c.h.b16 %v733
    %v4215 = vunpack.c.l.b16 %v734
    %v4216 = vunpack.c.h.b16 %v734
    %v4217 = vunpack.c.l.b16 %v735
    %v4218 = vunpack.c.h.b16 %v735
    %v4219 = vunpack.c.l.b16 %v736
    %v4220 = vunpack.c.h.b16 %v736
    %v4221 = vunpack.c.l.b16 %v737
    %v4222 = vunpack.c.h.b16 %v737
    %v4223 = vunpack.c.l.b16 %v738
    %v4224 = vunpack.c.h.b16 %v738
    %v4225 = vunpack.c.l.b16 %v739
    %v4226 = vunpack.c.h.b16 %v739
    %v4227 = vunpack.c.l.b16 %v740
    %v4228 = vunpack.c.h.b16 %v740
    %v4229 = vunpack.c.l.b16 %v741
    %v4230 = vunpack.c.h.b16 %v741
    %v4231 = vunpack.c.l.b16 %v742
    %v4232 = vunpack.c.h.b16 %v742
    %v4233 = vunpack.c.l.b16 %v743
    %v4234 = vunpack.c.h.b16 %v743
    %v4235 = vunpack.c.l.b16 %v744
    %v4236 = vunpack.c.h.b16 %v744
    %v4237 = vunpack.c.l.b16 %v745
    %v4238 = vunpack.c.h.b16 %v745
    %v4239 = vunpack.c.l.b16 %v746
    %v4240 = vunpack.c.h.b16 %v746
    %v4241 = vunpack.c.l.b16 %v747
    %v4242 = vunpack.c.h.b16 %v747
    %v4243 = vunpack.c.l.b16 %v748
    %v4244 = vunpack.c.h.b16 %v748
    %v4245 = vunpack.c.l.b16 %v749
    %v4246 = vunpack.c.h.b16 %v749
    %v4247 = vunpack.c.l.b16 %v750
    %v4248 = vunpack.c.h.b16 %v750
    %v4249 = vunpack.c.l.b16 %v751
    %v4250 = vunpack.c.h.b16 %v751
    %v4251 = vunpack.c.l.b16 %v752
    %v4252 = vunpack.c.h.b16 %v752
    %v4253 = vunpack.c.l.b16 %v753
    %v4254 = vunpack.c.h.b16 %v753
    %v4255 = vunpack.c.l.b16 %v754
    %v4256 = vunpack.c.h.b16 %v754
    %v4257 = vunpack.c.l.b16 %v755
    %v4258 = vunpack.c.h.b16 %v755
    %v4259 = vunpack.c.l.b16 %v756
    %v4260 = vunpack.c.h.b16 %v756
    %v4261 = vunpack.c.l.b16 %v757
    %v4262 = vunpack.c.h.b16 %v757
    %v4263 = vunpack.c.l.b16 %v758
    %v4264 = vunpack.c.h.b16 %v758
    %v4265 = vunpack.c.l.b16 %v759
    %v4266 = vunpack.c.h.b16 %v759
    %v4267 = vunpack.c.l.b16 %v760
    %v4268 = vunpack.c.h.b16 %v760
    %v4269 = vunpack.c.l.b16 %v761
    %v4270 = vunpack.c.h.b16 %v761
    %v4271 = vunpack.c.l.b16 %v762
    %v4272 = vunpack.c.h.b16 %v762
    %v4273 = vunpack.c.l.b16 %v763
    %v4274 = vunpack.c.h.b16 %v763
    %v4275 = vunpack.c.l.b16 %v764
    %v4276 = vunpack.c.h.b16 %v764
    %v4277 = vunpack.c.l.b16 %v765
    %v4278 = vunpack.c.h.b16 %v765
    %v4279 = vunpack.c.l.b16 %v766
    %v4280 = vunpack.c.h.b16 %v766
    %v4281 = vunpack.c.l.b16 %v767
    %v4282 = vunpack.c.h.b16 %v767
    %v4283 = vunpack.c.l.b16 %v768
    %v4284 = vunpack.c.h.b16 %v768
    %v4285 = vunpack.c.l.b16 %v769
    %v4286 = vunpack.c.h.b16 %v769
    %v4287 = vunpack.c.l.b16 %v770
    %v4288 = vunpack.c.h.b16 %v770
    %v4289 = vunpack.c.l.b16 %v771
    %v4290 = vunpack.c.h.b16 %v771
    %v4291 = vunpack.c.l.b16 %v772
    %v4292 = vunpack.c.h.b16 %v772
    %v4293 = vunpack.c.l.b16 %v773
    %v4294 = vunpack.c.h.b16 %v773
    %v4295 = vunpack.c.l.b16 %v774
    %v4296 = vunpack.c.h.b16 %v774
    %v4297 = vunpack.c.l.b16 %v775
    %v4298 = vunpack.c.h.b16 %v775
    %v4299 = vunpack.c.l.b16 %v776
    %v4300 = vunpack.c.h.b16 %v776
    %v4301 = vunpack.c.l.b16 %v777
    %v4302 = vunpack.c.h.b16 %v777
    %v4303 = vunpack.c.l.b16 %v778
    %v4304 = vunpack.c.h.b16 %v778
    %v4305 = vunpack.c.l.b16 %v779
    %v4306 = vunpack.c.h.b16 %v779
    %v4307 = vunpack.c.l.b16 %v780
    %v4308 = vunpack.c.h.b16 %v780
    %v4309 = vunpack.c.l.b16 %v781
    %v4310 = vunpack.c.h.b16 %v781
    %v4311 = vunpack.c.l.b16 %v782
    %v4312 = vunpack.c.h.b16 %v782
    %v4313 = vunpack.c.l.b16 %v783
    %v4314 = vunpack.c.h.b16 %v783
    %v4315 = vunpack.c.l.b16 %v784
    %v4316 = vunpack.c.h.b16 %v784
    %v4317 = vunpack.c.l.b16 %v785
    %v4318 = vunpack.c.h.b16 %v785
    %v4319 = vunpack.c.l.b16 %v786
    %v4320 = vunpack.c.h.b16 %v786
    %v4321 = vunpack.c.l.b16 %v787
    %v4322 = vunpack.c.h.b16 %v787
    %v4323 = vunpack.c.l.b16 %v788
    %v4324 = vunpack.c.h.b16 %v788
    %v4325 = vunpack.c.l.b16 %v789
    %v4326 = vunpack.c.h.b16 %v789
    %v4327 = vunpack.c.l.b16 %v790
    %v4328 = vunpack.c.h.b16 %v790
    %v4329 = vunpack.c.l.b16 %v791
    %v4330 = vunpack.c.h.b16 %v791
    %v4331 = vunpack.c.l.b16 %v792
    %v4332 = vunpack.c.h.b16 %v792
    %v4333 = vunpack.c.l.b16 %v793
    %v4334 = vunpack.c.h.b16 %v793
    %v4335 = vunpack.c.l.b16 %v794
    %v4336 = vunpack.c.h.b16 %v794
    %v4337 = vunpack.c.l.b16 %v795
    %v4338 = vunpack.c.h.b16 %v795
    %v4339 = vunpack.c.l.b16 %v796
    %v4340 = vunpack.c.h.b16 %v796
    %v4341 = vunpack.c.l.b16 %v797
    %v4342 = vunpack.c.h.b16 %v797
    %v4343 = vunpack.c.l.b16 %v798
    %v4344 = vunpack.c.h.b16 %v798
    %v4345 = vunpack.c.l.b16 %v799
    %v4346 = vunpack.c.h.b16 %v799
    %v4347 = vunpack.c.l.b16 %v800
    %v4348 = vunpack.c.h.b16 %v800
    %v4349 = vunpack.c.l.b16 %v801
    %v4350 = vunpack.c.h.b16 %v801
    %v4351 = vunpack.c.l.b16 %v802
    %v4352 = vunpack.c.h.b16 %v802
    %v4353 = vunpack.c.l.b16 %v803
    %v4354 = vunpack.c.h.b16 %v803
    %v4355 = vunpack.c.l.b16 %v804
    %v4356 = vunpack.c.h.b16 %v804
    %v4357 = vunpack.c.l.b16 %v805
    %v4358 = vunpack.c.h.b16 %v805
    %v4359 = vunpack.c.l.b16 %v806
    %v4360 = vunpack.c.h.b16 %v806
    %v4361 = vunpack.c.l.b16 %v807
    %v4362 = vunpack.c.h.b16 %v807
    %v4363 = vunpack.c.l.b16 %v808
    %v4364 = vunpack.c.h.b16 %v808
    %v4365 = vunpack.c.l.b16 %v809
    %v4366 = vunpack.c.h.b16 %v809
    %v4367 = vunpack.c.l.b16 %v810
    %v4368 = vunpack.c.h.b16 %v810
    %v4369 = vunpack.c.l.b16 %v811
    %v4370 = vunpack.c.h.b16 %v811
    %v4371 = vunpack.c.l.b16 %v812
    %v4372 = vunpack.c.h.b16 %v812
    %v4373 = vunpack.c.l.b16 %v813
    %v4374 = vunpack.c.h.b16 %v813
    %v4375 = vunpack.c.l.b16 %v814
    %v4376 = vunpack.c.h.b16 %v814
    %v4377 = vunpack.c.l.b16 %v815
    %v4378 = vunpack.c.h.b16 %v815
    %v4379 = vunpack.c.l.b16 %v816
    %v4380 = vunpack.c.h.b16 %v816
    %v4381 = vunpack.c.l.b16 %v817
    %v4382 = vunpack.c.h.b16 %v817
    %v4383 = vunpack.c.l.b16 %v818
    %v4384 = vunpack.c.h.b16 %v818
    %v4385 = vunpack.c.l.b16 %v819
    %v4386 = vunpack.c.h.b16 %v819
    %v4387 = vunpack.c.l.b16 %v820
    %v4388 = vunpack.c.h.b16 %v820
    %v4389 = vunpack.c.l.b16 %v821
    %v4390 = vunpack.c.h.b16 %v821
    %v4391 = vunpack.c.l.b16 %v822
    %v4392 = vunpack.c.h.b16 %v822
    %v4393 = vunpack.c.l.b16 %v823
    %v4394 = vunpack.c.h.b16 %v823
    %v4395 = vunpack.c.l.b16 %v824
    %v4396 = vunpack.c.h.b16 %v824
    %v4397 = vunpack.c.l.b16 %v825
    %v4398 = vunpack.c.h.b16 %v825
    %v4399 = vunpack.c.l.b16 %v826
    %v4400 = vunpack.c.h.b16 %v826
    %v4401 = vunpack.c.l.b16 %v827
    %v4402 = vunpack.c.h.b16 %v827
    %v4403 = vunpack.c.l.b16 %v828
    %v4404 = vunpack.c.h.b16 %v828
    %v4405 = vunpack.c.l.b16 %v829
    %v4406 = vunpack.c.h.b16 %v829
    %v4407 = vunpack.c.l.b16 %v830
    %v4408 = vunpack.c.h.b16 %v830
    %v4409 = vunpack.c.l.b16 %v831
    %v4410 = vunpack.c.h.b16 %v831
    %v4411 = vunpack.c.l.b16 %v832
    %v4412 = vunpack.c.h.b16 %v832
    %v4413 = vunpack.c.l.b16 %v833
    %v4414 = vunpack.c.h.b16 %v833
    %v4415 = vunpack.c.l.b16 %v834
    %v4416 = vunpack.c.h.b16 %v834
    %v4417 = vunpack.c.l.b16 %v835
    %v4418 = vunpack.c.h.b16 %v835
    %v4419 = vunpack.c.l.b16 %v836
    %v4420 = vunpack.c.h.b16 %v836
    %v4421 = vunpack.c.l.b16 %v837
    %v4422 = vunpack.c.h.b16 %v837
    %v4423 = vunpack.c.l.b16 %v838
    %v4424 = vunpack.c.h.b16 %v838
    %v4425 = vunpack.c.l.b16 %v839
    %v4426 = vunpack.c.h.b16 %v839
    %v4427 = vunpack.c.l.b16 %v840
    %v4428 = vunpack.c.h.b16 %v840
    %v4429 = vunpack.c.l.b16 %v841
    %v4430 = vunpack.c.h.b16 %v841
    %v4431 = vunpack.c.l.b16 %v842
    %v4432 = vunpack.c.h.b16 %v842
    %v4433 = vunpack.c.l.b16 %v843
    %v4434 = vunpack.c.h.b16 %v843
    %v4435 = vunpack.c.l.b16 %v844
    %v4436 = vunpack.c.h.b16 %v844
    %v4437 = vunpack.c.l.b16 %v845
    %v4438 = vunpack.c.h.b16 %v845
    %v4439 = vunpack.c.l.b16 %v846
    %v4440 = vunpack.c.h.b16 %v846
    %v4441 = vunpack.c.l.b16 %v847
    %v4442 = vunpack.c.h.b16 %v847
    %v4443 = vunpack.c.l.b16 %v848
    %v4444 = vunpack.c.h.b16 %v848
    %v4445 = vunpack.c.l.b16 %v849
    %v4446 = vunpack.c.h.b16 %v849
    %v4447 = vunpack.c.l.b16 %v850
    %v4448 = vunpack.c.h.b16 %v850
    %v4449 = vunpack.c.l.b16 %v851
    %v4450 = vunpack.c.h.b16 %v851
    %v4451 = vunpack.c.l.b16 %v852
    %v4452 = vunpack.c.h.b16 %v852
    %v4453 = vunpack.c.l.b16 %v853
    %v4454 = vunpack.c.h.b16 %v853
    %v4455 = vunpack.c.l.b16 %v854
    %v4456 = vunpack.c.h.b16 %v854
    %v4457 = vunpack.c.l.b16 %v855
    %v4458 = vunpack.c.h.b16 %v855
    %v4459 = vunpack.c.l.b16 %v856
    %v4460 = vunpack.c.h.b16 %v856
    %v4461 = vunpack.c.l.b16 %v857
    %v4462 = vunpack.c.h.b16 %v857
    %v4463 = vunpack.c.l.b16 %v858
    %v4464 = vunpack.c.h.b16 %v858
    %v4465 = vunpack.c.l.b16 %v859
    %v4466 = vunpack.c.h.b16 %v859
    %v4467 = vunpack.c.l.b16 %v860
    %v4468 = vunpack.c.h.b16 %v860
    %v4469 = vunpack.c.l.b16 %v861
    %v4470 = vunpack.c.h.b16 %v861
    %v4471 = vunpack.c.l.b16 %v862
    %v4472 = vunpack.c.h.b16 %v862
    %v4473 = vunpack.c.l.b16 %v863
    %v4474 = vunpack.c.h.b16 %v863
    %v4475 = vunpack.c.l.b16 %v864
    %v4476 = vunpack.c.h.b16 %v864
    %v4477 = vunpack.c.l.b16 %v865
    %v4478 = vunpack.c.h.b16 %v865
    %v4479 = vunpack.c.l.b16 %v866
    %v4480 = vunpack.c.h.b16 %v866
    %v4481 = vunpack.c.l.b16 %v867
    %v4482 = vunpack.c.h.b16 %v867
    %v4483 = vunpack.c.l.b16 %v868
    %v4484 = vunpack.c.h.b16 %v868
    %v4485 = vunpack.c.l.b16 %v869
    %v4486 = vunpack.c.h.b16 %v869
    %v4487 = vunpack.c.l.b16 %v870
    %v4488 = vunpack.c.h.b16 %v870
    %v4489 = vunpack.c.l.b16 %v871
    %v4490 = vunpack.c.h.b16 %v871
    %v4491 = vunpack.c.l.b16 %v872
    %v4492 = vunpack.c.h.b16 %v872
    %v4493 = vunpack.c.l.b16 %v873
    %v4494 = vunpack.c.h.b16 %v873
    %v4495 = vunpack.c.l.b16 %v874
    %v4496 = vunpack.c.h.b16 %v874
    %v4497 = vunpack.c.l.b16 %v875
    %v4498 = vunpack.c.h.b16 %v875
    %v4499 = vunpack.c.l.b16 %v876
    %v4500 = vunpack.c.h.b16 %v876
    %v4501 = vunpack.c.l.b16 %v877
    %v4502 = vunpack.c.h.b16 %v877
    %v4503 = vunpack.c.l.b16 %v878
    %v4504 = vunpack.c.h.b16 %v878
    %v4505 = vunpack.c.l.b16 %v879
    %v4506 = vunpack.c.h.b16 %v879
    %v4507 = vunpack.c.l.b16 %v880
    %v4508 = vunpack.c.h.b16 %v880
    %v4509 = vunpack.c.l.b16 %v881
    %v4510 = vunpack.c.h.b16 %v881
    %v4511 = vunpack.c.l.b16 %v882
    %v4512 = vunpack.c.h.b16 %v882
    %v4513 = vunpack.c.l.b16 %v883
    %v4514 = vunpack.c.h.b16 %v883
    %v4515 = vunpack.c.l.b16 %v884
    %v4516 = vunpack.c.h.b16 %v884
    %v4517 = vunpack.c.l.b16 %v885
    %v4518 = vunpack.c.h.b16 %v885
    %v4519 = vunpack.c.l.b16 %v886
    %v4520 = vunpack.c.h.b16 %v886
    %v4521 = vunpack.c.l.b16 %v887
    %v4522 = vunpack.c.h.b16 %v887
    %v4523 = vunpack.c.l.b16 %v888
    %v4524 = vunpack.c.h.b16 %v888
    %v4525 = vunpack.c.l.b16 %v889
    %v4526 = vunpack.c.h.b16 %v889
    %v4527 = vunpack.c.l.b16 %v890
    %v4528 = vunpack.c.h.b16 %v890
    %v4529 = vunpack.c.l.b16 %v891
    %v4530 = vunpack.c.h.b16 %v891
    %v4531 = vunpack.c.l.b16 %v892
    %v4532 = vunpack.c.h.b16 %v892
    %v4533 = vunpack.c.l.b16 %v893
    %v4534 = vunpack.c.h.b16 %v893
    %v4535 = vunpack.c.l.b16 %v894
    %v4536 = vunpack.c.h.b16 %v894
    %v4537 = vunpack.c.l.b16 %v895
    %v4538 = vunpack.c.h.b16 %v895
    %v4539 = vunpack.c.l.b16 %v896
    %v4540 = vunpack.c.h.b16 %v896
    %v4541 = vunpack.c.l.b16 %v897
    %v4542 = vunpack.c.h.b16 %v897
    %v4543 = vunpack.c.l.b16 %v898
    %v4544 = vunpack.c.h.b16 %v898
    %v4545 = vunpack.c.l.b16 %v899
    %v4546 = vunpack.c.h.b16 %v899
    %v4547 = vunpack.c.l.b16 %v900
    %v4548 = vunpack.c.h.b16 %v900
    %v4549 = vunpack.c.l.b16 %v901
    %v4550 = vunpack.c.h.b16 %v901
    %v4551 = vunpack.c.l.b16 %v902
    %v4552 = vunpack.c.h.b16 %v902
    %v4553 = vunpack.c.l.b16 %v903
    %v4554 = vunpack.c.h.b16 %v903
    %v4555 = vunpack.c.l.b16 %v904
    %v4556 = vunpack.c.h.b16 %v904
    %v4557 = vunpack.c.l.b16 %v905
    %v4558 = vunpack.c.h.b16 %v905
    %v4559 = vunpack.c.l.b16 %v906
    %v4560 = vunpack.c.h.b16 %v906
    %v4561 = vunpack.c.l.b16 %v907
    %v4562 = vunpack.c.h.b16 %v907
    %v4563 = vunpack.c.l.b16 %v908
    %v4564 = vunpack.c.h.b16 %v908
    %v4565 = vunpack.c.l.b16 %v909
    %v4566 = vunpack.c.h.b16 %v909
    %v4567 = vunpack.c.l.b16 %v910
    %v4568 = vunpack.c.h.b16 %v910
    %v4569 = vunpack.c.l.b16 %v911
    %v4570 = vunpack.c.h.b16 %v911
    %v4571 = vunpack.c.l.b16 %v912
    %v4572 = vunpack.c.h.b16 %v912
    %v4573 = vunpack.c.l.b16 %v913
    %v4574 = vunpack.c.h.b16 %v913
    %v4575 = vunpack.c.l.b16 %v914
    %v4576 = vunpack.c.h.b16 %v914
    %v4577 = vunpack.c.l.b16 %v915
    %v4578 = vunpack.c.h.b16 %v915
    %v4579 = vunpack.c.l.b16 %v916
    %v4580 = vunpack.c.h.b16 %v916
    %v4581 = vunpack.c.l.b16 %v917
    %v4582 = vunpack.c.h.b16 %v917
    %v4583 = vunpack.c.l.b16 %v918
    %v4584 = vunpack.c.h.b16 %v918
    %v4585 = vunpack.c.l.b16 %v919
    %v4586 = vunpack.c.h.b16 %v919
    %v4587 = vunpack.c.l.b16 %v920
    %v4588 = vunpack.c.h.b16 %v920
    %v4589 = vunpack.c.l.b16 %v921
    %v4590 = vunpack.c.h.b16 %v921
    %v4591 = vunpack.c.l.b16 %v922
    %v4592 = vunpack.c.h.b16 %v922
    %v4593 = vunpack.c.l.b16 %v923
    %v4594 = vunpack.c.h.b16 %v923
    %v4595 = vunpack.c.l.b16 %v924
    %v4596 = vunpack.c.h.b16 %v924
    %v4597 = vunpack.c.l.b16 %v925
    %v4598 = vunpack.c.h.b16 %v925
    %v4599 = vunpack.c.l.b16 %v926
    %v4600 = vunpack.c.h.b16 %v926
    %v4601 = vunpack.c.l.b16 %v927
    %v4602 = vunpack.c.h.b16 %v927
    %v4603 = vunpack.c.l.b16 %v928
    %v4604 = vunpack.c.h.b16 %v928
    %v4605 = vunpack.c.l.b16 %v929
    %v4606 = vunpack.c.h.b16 %v929
    %v4607 = vunpack.c.l.b16 %v930
    %v4608 = vunpack.c.h.b16 %v930
    %v4609 = vunpack.c.l.b16 %v931
    %v4610 = vunpack.c.h.b16 %v931
    %v4611 = vunpack.c.l.b16 %v932
    %v4612 = vunpack.c.h.b16 %v932
    %v4613 = vunpack.c.l.b16 %v933
    %v4614 = vunpack.c.h.b16 %v933
    %v4615 = vunpack.c.l.b16 %v934
    %v4616 = vunpack.c.h.b16 %v934
    %v4617 = vunpack.c.l.b16 %v935
    %v4618 = vunpack.c.h.b16 %v935
    %v4619 = vunpack.c.l.b16 %v936
    %v4620 = vunpack.c.h.b16 %v936
    %v4621 = vunpack.c.l.b16 %v937
    %v4622 = vunpack.c.h.b16 %v937
    %v4623 = vunpack.c.l.b16 %v938
    %v4624 = vunpack.c.h.b16 %v938
    %v4625 = vunpack.c.l.b16 %v939
    %v4626 = vunpack.c.h.b16 %v939
    %v4627 = vunpack.c.l.b16 %v940
    %v4628 = vunpack.c.h.b16 %v940
    %v4629 = vunpack.c.l.b16 %v941
    %v4630 = vunpack.c.h.b16 %v941
    %v4631 = vunpack.c.l.b16 %v942
    %v4632 = vunpack.c.h.b16 %v942
    %v4633 = vunpack.c.l.b16 %v943
    %v4634 = vunpack.c.h.b16 %v943
    %v4635 = vunpack.c.l.b16 %v944
    %v4636 = vunpack.c.h.b16 %v944
    %v4637 = vunpack.c.l.b16 %v945
    %v4638 = vunpack.c.h.b16 %v945
    %v4639 = vunpack.c.l.b16 %v946
    %v4640 = vunpack.c.h.b16 %v946
    %v4641 = vunpack.c.l.b16 %v947
    %v4642 = vunpack.c.h.b16 %v947
    %v4643 = vunpack.c.l.b16 %v948
    %v4644 = vunpack.c.h.b16 %v948
    %v4645 = vunpack.c.l.b16 %v949
    %v4646 = vunpack.c.h.b16 %v949
    %v4647 = vunpack.c.l.b16 %v950
    %v4648 = vunpack.c.h.b16 %v950
    %v4649 = vunpack.c.l.b16 %v951
    %v4650 = vunpack.c.h.b16 %v951
    %v4651 = vunpack.c.l.b16 %v952
    %v4652 = vunpack.c.h.b16 %v952
    %v4653 = vunpack.c.l.b16 %v953
    %v4654 = vunpack.c.h.b16 %v953
    %v4655 = vunpack.c.l.b16 %v954
    %v4656 = vunpack.c.h.b16 %v954
    %v4657 = vunpack.c.l.b16 %v955
    %v4658 = vunpack.c.h.b16 %v955
    %v4659 = vunpack.c.l.b16 %v956
    %v4660 = vunpack.c.h.b16 %v956
    %v4661 = vunpack.c.l.b16 %v957
    %v4662 = vunpack.c.h.b16 %v957
    %v4663 = vunpack.c.l.b16 %v958
    %v4664 = vunpack.c.h.b16 %v958
    %v4665 = vunpack.c.l.b16 %v959
    %v4666 = vunpack.c.h.b16 %v959
    %v4667 = vunpack.c.l.b16 %v960
    %v4668 = vunpack.c.h.b16 %v960
    %v4669 = vunpack.c.l.b16 %v961
    %v4670 = vunpack.c.h.b16 %v961
    %v4671 = vunpack.c.l.b16 %v962
    %v4672 = vunpack.c.h.b16 %v962
    %v4673 = vunpack.c.l.b16 %v963
    %v4674 = vunpack.c.h.b16 %v963
    %v4675 = vunpack.c.l.b16 %v964
    %v4676 = vunpack.c.h.b16 %v964
    %v4677 = vunpack.c.l.b16 %v965
    %v4678 = vunpack.c.h.b16 %v965
    %v4679 = vunpack.c.l.b16 %v966
    %v4680 = vunpack.c.h.b16 %v966
    %v4681 = vunpack.c.l.b16 %v967
    %v4682 = vunpack.c.h.b16 %v967
    %v4683 = vunpack.c.l.b16 %v968
    %v4684 = vunpack.c.h.b16 %v968
    %v4685 = vunpack.c.l.b16 %v969
    %v4686 = vunpack.c.h.b16 %v969
    %v4687 = vunpack.c.l.b16 %v970
    %v4688 = vunpack.c.h.b16 %v970
    %v4689 = vunpack.c.l.b16 %v971
    %v4690 = vunpack.c.h.b16 %v971
    %v4691 = vunpack.c.l.b16 %v972
    %v4692 = vunpack.c.h.b16 %v972
    %v4693 = vunpack.c.l.b16 %v973
    %v4694 = vunpack.c.h.b16 %v973
    %v4695 = vunpack.c.l.b16 %v974
    %v4696 = vunpack.c.h.b16 %v974
    %v4697 = vunpack.c.l.b16 %v975
    %v4698 = vunpack.c.h.b16 %v975
    %v4699 = vunpack.c.l.b16 %v976
    %v4700 = vunpack.c.h.b16 %v976
    %v4701 = vunpack.c.l.b16 %v977
    %v4702 = vunpack.c.h.b16 %v977
    %v4703 = vunpack.c.l.b16 %v978
    %v4704 = vunpack.c.h.b16 %v978
    %v4705 = vunpack.c.l.b16 %v979
    %v4706 = vunpack.c.h.b16 %v979
    %v4707 = vunpack.c.l.b16 %v980
    %v4708 = vunpack.c.h.b16 %v980
    %v4709 = vunpack.c.l.b16 %v981
    %v4710 = vunpack.c.h.b16 %v981
    %v4711 = vunpack.c.l.b16 %v982
    %v4712 = vunpack.c.h.b16 %v982
    %v4713 = vunpack.c.l.b16 %v983
    %v4714 = vunpack.c.h.b16 %v983
    %v4715 = vunpack.c.l.b16 %v984
    %v4716 = vunpack.c.h.b16 %v984
    %v4717 = vunpack.c.l.b16 %v985
    %v4718 = vunpack.c.h.b16 %v985
    %v4719 = vunpack.c.l.b16 %v986
    %v4720 = vunpack.c.h.b16 %v986
    %v4721 = vunpack.c.l.b16 %v987
    %v4722 = vunpack.c.h.b16 %v987
    %v4723 = vunpack.c.l.b16 %v988
    %v4724 = vunpack.c.h.b16 %v988
    %v4725 = vunpack.c.l.b16 %v989
    %v4726 = vunpack.c.h.b16 %v989
    %v4727 = vunpack.c.l.b16 %v990
    %v4728 = vunpack.c.h.b16 %v990
    %v4729 = vunpack.c.l.b16 %v991
    %v4730 = vunpack.c.h.b16 %v991
    %v4731 = vunpack.c.l.b16 %v992
    %v4732 = vunpack.c.h.b16 %v992
    %v4733 = vunpack.c.l.b16 %v993
    %v4734 = vunpack.c.h.b16 %v993
    %v4735 = vunpack.c.l.b16 %v994
    %v4736 = vunpack.c.h.b16 %v994
    %v4737 = vunpack.c.l.b16 %v995
    %v4738 = vunpack.c.h.b16 %v995
    %v4739 = vunpack.c.l.b16 %v996
    %v4740 = vunpack.c.h.b16 %v996
    %v4741 = vunpack.c.l.b16 %v997
    %v4742 = vunpack.c.h.b16 %v997
    %v4743 = vunpack.c.l.b16 %v998
    %v4744 = vunpack.c.h.b16 %v998
    %v4745 = vunpack.c.l.b16 %v999
    %v4746 = vunpack.c.h.b16 %v999
    %v4747 = vunpack.c.l.b16 %v1000
    %v4748 = vunpack.c.h.b16 %v1000
    %v4749 = vunpack.c.l.b16 %v1001
    %v4750 = vunpack.c.h.b16 %v1001
    %v4751 = vunpack.c.l.b16 %v1002
    %v4752 = vunpack.c.h.b16 %v1002
    %v4753 = vunpack.c.l.b16 %v1003
    %v4754 = vunpack.c.h.b16 %v1003
    %v4755 = vunpack.c.l.b16 %v1004
    %v4756 = vunpack.c.h.b16 %v1004
    %v4757 = vunpack.c.l.b16 %v1005
    %v4758 = vunpack.c.h.b16 %v1005
    %v4759 = vunpack.c.l.b16 %v1006
    %v4760 = vunpack.c.h.b16 %v1006
    %v4761 = vunpack.c.l.b16 %v1007
    %v4762 = vunpack.c.h.b16 %v1007
    %v4763 = vunpack.c.l.b16 %v1008
    %v4764 = vunpack.c.h.b16 %v1008
    %v4765 = vunpack.c.l.b16 %v1009
    %v4766 = vunpack.c.h.b16 %v1009
    %v4767 = vunpack.c.l.b16 %v1010
    %v4768 = vunpack.c.h.b16 %v1010
    %v4769 = vunpack.c.l.b16 %v1011
    %v4770 = vunpack.c.h.b16 %v1011
    %v4771 = vunpack.c.l.b16 %v1012
    %v4772 = vunpack.c.h.b16 %v1012
    %v4773 = vunpack.c.l.b16 %v1013
    %v4774 = vunpack.c.h.b16 %v1013
    %v4775 = vunpack.c.l.b16 %v1014
    %v4776 = vunpack.c.h.b16 %v1014
    %v4777 = vunpack.c.l.b16 %v1015
    %v4778 = vunpack.c.h.b16 %v1015
    %v4779 = vunpack.c.l.b16 %v1016
    %v4780 = vunpack.c.h.b16 %v1016
    %v4781 = vunpack.c.l.b16 %v1017
    %v4782 = vunpack.c.h.b16 %v1017
    %v4783 = vunpack.c.l.b16 %v1018
    %v4784 = vunpack.c.h.b16 %v1018
    %v4785 = vunpack.c.l.b16 %v1019
    %v4786 = vunpack.c.h.b16 %v1019
    %v4787 = vunpack.c.l.b16 %v1020
    %v4788 = vunpack.c.h.b16 %v1020
    %v4789 = vunpack.c.l.b16 %v1021
    %v4790 = vunpack.c.h.b16 %v1021
    %v4791 = vunpack.c.l.b16 %v1022
    %v4792 = vunpack.c.h.b16 %v1022
    %v4793 = vunpack.c.l.b16 %v1023
    %v4794 = vunpack.c.h.b16 %v1023
    %v4795 = vunpack.c.l.b16 %v1024
    %v4796 = vunpack.c.h.b16 %v1024
    %v4797 = vunpack.c.l.b16 %v1025
    %v4798 = vunpack.c.h.b16 %v1025
    %v4799 = vunpack.c.l.b16 %v1026
    %v4800 = vunpack.c.h.b16 %v1026
    %v4801 = vunpack.c.l.b16 %v1027
    %v4802 = vunpack.c.h.b16 %v1027
    %v4803 = vunpack.c.l.b16 %v1028
    %v4804 = vunpack.c.h.b16 %v1028
    %v4805 = vunpack.c.l.b16 %v1029
    %v4806 = vunpack.c.h.b16 %v1029
    %v4807 = vunpack.c.l.b16 %v1030
    %v4808 = vunpack.c.h.b16 %v1030
    %v4809 = vunpack.c.l.b16 %v1031
    %v4810 = vunpack.c.h.b16 %v1031
    %v4811 = vunpack.c.l.b16 %v1032
    %v4812 = vunpack.c.h.b16 %v1032
    %v4813 = vunpack.c.l.b16 %v1033
    %v4814 = vunpack.c.h.b16 %v1033
    %v4815 = vunpack.c.l.b16 %v1034
    %v4816 = vunpack.c.h.b16 %v1034
    %v4817 = vunpack.c.l.b16 %v1035
    %v4818 = vunpack.c.h.b16 %v1035
    %v4819 = vunpack.c.l.b16 %v1036
    %v4820 = vunpack.c.h.b16 %v1036
    %v4821 = vunpack.c.l.b16 %v1037
    %v4822 = vunpack.c.h.b16 %v1037
    %v4823 = vunpack.c.l.b16 %v1038
    %v4824 = vunpack.c.h.b16 %v1038
    %v4825 = vunpack.c.l.b16 %v1039
    %v4826 = vunpack.c.h.b16 %v1039
    %v4827 = vunpack.c.l.b16 %v1040
    %v4828 = vunpack.c.h.b16 %v1040
    %v4829 = vunpack.c.l.b16 %v1041
    %v4830 = vunpack.c.h.b16 %v1041
    %v4831 = vunpack.c.l.b16 %v1042
    %v4832 = vunpack.c.h.b16 %v1042
    %v4833 = vunpack.c.l.b16 %v1043
    %v4834 = vunpack.c.h.b16 %v1043
    %v4835 = vunpack.c.l.b16 %v1044
    %v4836 = vunpack.c.h.b16 %v1044
    %v4837 = vunpack.c.l.b16 %v1045
    %v4838 = vunpack.c.h.b16 %v1045
    %v4839 = vunpack.c.l.b16 %v1046
    %v4840 = vunpack.c.h.b16 %v1046
    %v4841 = vunpack.c.l.b16 %v1047
    %v4842 = vunpack.c.h.b16 %v1047
    %v4843 = vunpack.c.l.b16 %v1048
    %v4844 = vunpack.c.h.b16 %v1048
    %v4845 = vunpack.c.l.b16 %v1049
    %v4846 = vunpack.c.h.b16 %v1049
    %v4847 = vunpack.c.l.b16 %v1050
    %v4848 = vunpack.c.h.b16 %v1050
    %v4849 = vunpack.c.l.b16 %v1051
    %v4850 = vunpack.c.h.b16 %v1051
    %v4851 = vunpack.c.l.b16 %v1052
    %v4852 = vunpack.c.h.b16 %v1052
    %v4853 = vunpack.c.l.b16 %v1053
    %v4854 = vunpack.c.h.b16 %v1053
    %v4855 = vunpack.c.l.b16 %v1054
    %v4856 = vunpack.c.h.b16 %v1054
    %v4857 = vunpack.c.l.b16 %v1055
    %v4858 = vunpack.c.h.b16 %v1055
    %v4859 = vunpack.c.l.b16 %v1056
    %v4860 = vunpack.c.h.b16 %v1056
    %v4861 = vunpack.c.l.b16 %v1057
    %v4862 = vunpack.c.h.b16 %v1057
    %v4863 = vunpack.c.l.b16 %v1058
    %v4864 = vunpack.c.h.b16 %v1058
    %v4865 = vunpack.c.l.b16 %v1059
    %v4866 = vunpack.c.h.b16 %v1059
    %v4867 = vunpack.c.l.b16 %v1060
    %v4868 = vunpack.c.h.b16 %v1060
    %v4869 = vunpack.c.l.b16 %v1061
    %v4870 = vunpack.c.h.b16 %v1061
    %v4871 = vunpack.c.l.b16 %v1062
    %v4872 = vunpack.c.h.b16 %v1062
    %v4873 = vunpack.c.l.b16 %v1063
    %v4874 = vunpack.c.h.b16 %v1063
    %v4875 = vunpack.c.l.b16 %v1064
    %v4876 = vunpack.c.h.b16 %v1064
    %v4877 = vunpack.c.l.b16 %v1065
    %v4878 = vunpack.c.h.b16 %v1065
    %v4879 = vunpack.c.l.b16 %v1066
    %v4880 = vunpack.c.h.b16 %v1066
    %v4881 = vunpack.c.l.b16 %v1067
    %v4882 = vunpack.c.h.b16 %v1067
    %v4883 = vunpack.c.l.b16 %v1068
    %v4884 = vunpack.c.h.b16 %v1068
    %v4885 = vunpack.c.l.b16 %v1069
    %v4886 = vunpack.c.h.b16 %v1069
    %v4887 = vunpack.c.l.b16 %v1070
    %v4888 = vunpack.c.h.b16 %v1070
    %v4889 = vunpack.c.l.b16 %v1071
    %v4890 = vunpack.c.h.b16 %v1071
    %v4891 = vunpack.c.l.b16 %v1072
    %v4892 = vunpack.c.h.b16 %v1072
    %v4893 = vunpack.c.l.b16 %v1073
    %v4894 = vunpack.c.h.b16 %v1073
    %v4895 = vunpack.c.l.b16 %v1074
    %v4896 = vunpack.c.h.b16 %v1074
    %v4897 = vunpack.c.l.b16 %v1075
    %v4898 = vunpack.c.h.b16 %v1075
    %v4899 = vunpack.c.l.b16 %v1076
    %v4900 = vunpack.c.h.b16 %v1076
    %v4901 = vunpack.c.l.b16 %v1077
    %v4902 = vunpack.c.h.b16 %v1077
    %v4903 = vunpack.c.l.b16 %v1078
    %v4904 = vunpack.c.h.b16 %v1078
    %v4905 = vunpack.c.l.b16 %v1079
    %v4906 = vunpack.c.h.b16 %v1079
    %v4907 = vunpack.c.l.b16 %v1080
    %v4908 = vunpack.c.h.b16 %v1080
    %v4909 = vunpack.c.l.b16 %v1081
    %v4910 = vunpack.c.h.b16 %v1081
    %v4911 = vunpack.c.l.b16 %v1082
    %v4912 = vunpack.c.h.b16 %v1082
    %v4913 = vunpack.c.l.b16 %v1083
    %v4914 = vunpack.c.h.b16 %v1083
    %v4915 = vunpack.c.l.b16 %v1084
    %v4916 = vunpack.c.h.b16 %v1084
    %v4917 = vunpack.c.l.b16 %v1085
    %v4918 = vunpack.c.h.b16 %v1085
    %v4919 = vunpack.c.l.b16 %v1086
    %v4920 = vunpack.c.h.b16 %v1086
    %v4921 = vunpack.c.l.b16 %v1087
    %v4922 = vunpack.c.h.b16 %v1087
    %v4923 = vunpack.c.l.b16 %v1088
    %v4924 = vunpack.c.h.b16 %v1088
    %v4925 = vunpack.c.l.b16 %v1089
    %v4926 = vunpack.c.h.b16 %v1089
    %v4927 = vunpack.c.l.b16 %v1090
    %v4928 = vunpack.c.h.b16 %v1090
    %v4929 = vunpack.c.l.b16 %v1091
    %v4930 = vunpack.c.h.b16 %v1091
    %v4931 = vunpack.c.l.b16 %v1092
    %v4932 = vunpack.c.h.b16 %v1092
    %v4933 = vunpack.c.l.b16 %v1093
    %v4934 = vunpack.c.h.b16 %v1093
    %v4935 = vunpack.c.l.b16 %v1094
    %v4936 = vunpack.c.h.b16 %v1094
    %v4937 = vunpack.c.l.b16 %v1095
    %v4938 = vunpack.c.h.b16 %v1095
    %v4939 = vunpack.c.l.b16 %v1096
    %v4940 = vunpack.c.h.b16 %v1096
    %v4941 = vunpack.c.l.b16 %v1097
    %v4942 = vunpack.c.h.b16 %v1097
    %v4943 = vunpack.c.l.b16 %v1098
    %v4944 = vunpack.c.h.b16 %v1098
    %v4945 = vunpack.c.l.b16 %v1099
    %v4946 = vunpack.c.h.b16 %v1099
    %v4947 = vunpack.c.l.b16 %v1100
    %v4948 = vunpack.c.h.b16 %v1100
    %v4949 = vunpack.c.l.b16 %v1101
    %v4950 = vunpack.c.h.b16 %v1101
    %v4951 = vunpack.c.l.b16 %v1102
    %v4952 = vunpack.c.h.b16 %v1102
    %v4953 = vunpack.c.l.b16 %v1103
    %v4954 = vunpack.c.h.b16 %v1103
    %v4955 = vunpack.c.l.b16 %v1104
    %v4956 = vunpack.c.h.b16 %v1104
    %v4957 = vunpack.c.l.b16 %v1105
    %v4958 = vunpack.c.h.b16 %v1105
    %v4959 = vunpack.c.l.b16 %v1106
    %v4960 = vunpack.c.h.b16 %v1106
    %v4961 = vunpack.c.l.b16 %v1107
    %v4962 = vunpack.c.h.b16 %v1107
    %v4963 = vunpack.c.l.b16 %v1108
    %v4964 = vunpack.c.h.b16 %v1108
    %v4965 = vunpack.c.l.b16 %v1109
    %v4966 = vunpack.c.h.b16 %v1109
    %v4967 = vunpack.c.l.b16 %v1110
    %v4968 = vunpack.c.h.b16 %v1110
    %v4969 = vunpack.c.l.b16 %v1111
    %v4970 = vunpack.c.h.b16 %v1111
    %v4971 = vunpack.c.l.b16 %v1112
    %v4972 = vunpack.c.h.b16 %v1112
    %v4973 = vunpack.c.l.b16 %v1113
    %v4974 = vunpack.c.h.b16 %v1113
    %v4975 = vunpack.c.l.b16 %v1114
    %v4976 = vunpack.c.h.b16 %v1114
    %v4977 = vunpack.c.l.b16 %v1115
    %v4978 = vunpack.c.h.b16 %v1115
    %v4979 = vunpack.c.l.b16 %v1116
    %v4980 = vunpack.c.h.b16 %v1116
    %v4981 = vunpack.c.l.b16 %v1117
    %v4982 = vunpack.c.h.b16 %v1117
    %v4983 = vunpack.c.l.b16 %v1118
    %v4984 = vunpack.c.h.b16 %v1118
    %v4985 = vunpack.c.l.b16 %v1119
    %v4986 = vunpack.c.h.b16 %v1119
    %v4987 = vunpack.c.l.b16 %v1120
    %v4988 = vunpack.c.h.b16 %v1120
    %v4989 = vunpack.c.l.b16 %v1121
    %v4990 = vunpack.c.h.b16 %v1121
    %v4991 = vunpack.c.l.b16 %v1122
    %v4992 = vunpack.c.h.b16 %v1122
    %v4993 = vunpack.c.l.b16 %v1123
    %v4994 = vunpack.c.h.b16 %v1123
    %v4995 = vunpack.c.l.b16 %v1124
    %v4996 = vunpack.c.h.b16 %v1124
    %v4997 = vunpack.c.l.b16 %v1125
    %v4998 = vunpack.c.h.b16 %v1125
    %v4999 = vunpack.c.l.b16 %v1126
    %v5000 = vunpack.c.h.b16 %v1126
    %v5001 = vunpack.c.l.b16 %v1127
    %v5002 = vunpack.c.h.b16 %v1127
    %v5003 = vunpack.c.l.b16 %v1128
    %v5004 = vunpack.c.h.b16 %v1128
    %v5005 = vunpack.c.l.b16 %v1129
    %v5006 = vunpack.c.h.b16 %v1129
    %v5007 = vunpack.c.l.b16 %v1130
    %v5008 = vunpack.c.h.b16 %v1130
    %v5009 = vunpack.c.l.b16 %v1131
    %v5010 = vunpack.c.h.b16 %v1131
    %v5011 = vunpack.c.l.b16 %v1132
    %v5012 = vunpack.c.h.b16 %v1132
    %v5013 = vunpack.c.l.b16 %v1133
    %v5014 = vunpack.c.h.b16 %v1133
    %v5015 = vunpack.c.l.b16 %v1134
    %v5016 = vunpack.c.h.b16 %v1134
    %v5017 = vunpack.c.l.b16 %v1135
    %v5018 = vunpack.c.h.b16 %v1135
    %v5019 = vunpack.c.l.b16 %v1136
    %v5020 = vunpack.c.h.b16 %v1136
    %v5021 = vunpack.c.l.b16 %v1137
    %v5022 = vunpack.c.h.b16 %v1137
    %v5023 = vunpack.c.l.b16 %v1138
    %v5024 = vunpack.c.h.b16 %v1138
    %v5025 = vunpack.c.l.b16 %v1139
    %v5026 = vunpack.c.h.b16 %v1139
    %v5027 = vunpack.c.l.b16 %v1140
    %v5028 = vunpack.c.h.b16 %v1140
    %v5029 = vunpack.c.l.b16 %v1141
    %v5030 = vunpack.c.h.b16 %v1141
    %v5031 = vunpack.c.l.b16 %v1142
    %v5032 = vunpack.c.h.b16 %v1142
    %v5033 = vunpack.c.l.b16 %v1143
    %v5034 = vunpack.c.h.b16 %v1143
    %v5035 = vunpack.c.l.b16 %v1144
    %v5036 = vunpack.c.h.b16 %v1144
    %v5037 = vunpack.c.l.b16 %v1145
    %v5038 = vunpack.c.h.b16 %v1145
    %v5039 = vunpack.c.l.b16 %v1146
    %v5040 = vunpack.c.h.b16 %v1146
    %v5041 = vunpack.c.l.b16 %v1147
    %v5042 = vunpack.c.h.b16 %v1147
    %v5043 = vunpack.c.l.b16 %v1148
    %v5044 = vunpack.c.h.b16 %v1148
    %v5045 = vunpack.c.l.b16 %v1149
    %v5046 = vunpack.c.h.b16 %v1149
    %v5047 = vunpack.c.l.b16 %v1150
    %v5048 = vunpack.c.h.b16 %v1150
    %v5049 = vunpack.c.l.b16 %v1151
    %v5050 = vunpack.c.h.b16 %v1151
    %v5051 = vunpack.c.l.b16 %v1152
    %v5052 = vunpack.c.h.b16 %v1152
    %v5053 = vunpack.c.l.b16 %v1153
    %v5054 = vunpack.c.h.b16 %v1153
    %v5055 = vunpack.c.l.b16 %v1154
    %v5056 = vunpack.c.h.b16 %v1154
    %v5057 = vunpack.c.l.b16 %v1155
    %v5058 = vunpack.c.h.b16 %v1155
    %v5059 = vunpack.c.l.b16 %v1156
    %v5060 = vunpack.c.h.b16 %v1156
    %v5061 = vunpack.c.l.b16 %v1157
    %v5062 = vunpack.c.h.b16 %v1157
    %v5063 = vunpack.c.l.b16 %v1158
    %v5064 = vunpack.c.h.b16 %v1158
    %v5065 = vunpack.c.l.b16 %v1159
    %v5066 = vunpack.c.h.b16 %v1159
    %v5067 = vunpack.c.l.b16 %v1160
    %v5068 = vunpack.c.h.b16 %v1160
    %v5069 = vunpack.c.l.b16 %v1161
    %v5070 = vunpack.c.h.b16 %v1161
    %v5071 = vunpack.c.l.b16 %v1162
    %v5072 = vunpack.c.h.b16 %v1162
    %v5073 = vunpack.c.l.b16 %v1163
    %v5074 = vunpack.c.h.b16 %v1163
    %v5075 = vunpack.c.l.b16 %v1164
    %v5076 = vunpack.c.h.b16 %v1164
    %v5077 = vunpack.c.l.b16 %v1165
    %v5078 = vunpack.c.h.b16 %v1165
    %v5079 = vunpack.c.l.b16 %v1166
    %v5080 = vunpack.c.h.b16 %v1166
    %v5081 = vunpack.c.l.b16 %v1167
    %v5082 = vunpack.c.h.b16 %v1167
    %v5083 = vunpack.c.l.b16 %v1168
    %v5084 = vunpack.c.h.b16 %v1168
    %v5085 = vunpack.c.l.b16 %v1169
    %v5086 = vunpack.c.h.b16 %v1169
    %v5087 = vunpack.c.l.b16 %v1170
    %v5088 = vunpack.c.h.b16 %v1170
    %v5089 = vunpack.c.l.b16 %v1171
    %v5090 = vunpack.c.h.b16 %v1171
    %v5091 = vunpack.c.l.b16 %v1172
    %v5092 = vunpack.c.h.b16 %v1172
    %v5093 = vunpack.c.l.b16 %v1173
    %v5094 = vunpack.c.h.b16 %v1173
    %v5095 = vunpack.c.l.b16 %v1174
    %v5096 = vunpack.c.h.b16 %v1174
    %v5097 = vunpack.c.l.b16 %v1175
    %v5098 = vunpack.c.h.b16 %v1175
    %v5099 = vunpack.c.l.b16 %v1176
    %v5100 = vunpack.c.h.b16 %v1176
    %v5101 = vunpack.c.l.b16 %v1177
    %v5102 = vunpack.c.h.b16 %v1177
    %v5103 = vunpack.c.l.b16 %v1178
    %v5104 = vunpack.c.h.b16 %v1178
    %v5105 = vunpack.c.l.b16 %v1179
    %v5106 = vunpack.c.h.b16 %v1179
    %v5107 = vunpack.c.l.b16 %v1180
    %v5108 = vunpack.c.h.b16 %v1180
    %v5109 = vunpack.c.l.b16 %v1181
    %v5110 = vunpack.c.h.b16 %v1181
    %v5111 = vunpack.c.l.b16 %v1182
    %v5112 = vunpack.c.h.b16 %v1182
    %v5113 = vunpack.c.l.b16 %v1183
    %v5114 = vunpack.c.h.b16 %v1183
    %v5115 = vunpack.c.l.b16 %v1184
    %v5116 = vunpack.c.h.b16 %v1184
    %v5117 = vunpack.c.l.b16 %v1185
    %v5118 = vunpack.c.h.b16 %v1185
    %v5119 = vunpack.c.l.b16 %v1186
    %v5120 = vunpack.c.h.b16 %v1186
    %v5121 = vunpack.c.l.b16 %v1187
    %v5122 = vunpack.c.h.b16 %v1187
    %v5123 = vunpack.c.l.b16 %v1188
    %v5124 = vunpack.c.h.b16 %v1188
    %v5125 = vunpack.c.l.b16 %v1189
    %v5126 = vunpack.c.h.b16 %v1189
    %v5127 = vunpack.c.l.b16 %v1190
    %v5128 = vunpack.c.h.b16 %v1190
    %v5129 = vunpack.c.l.b16 %v1191
    %v5130 = vunpack.c.h.b16 %v1191
    %v5131 = vunpack.c.l.b16 %v1192
    %v5132 = vunpack.c.h.b16 %v1192
    %v5133 = vunpack.c.l.b16 %v1193
    %v5134 = vunpack.c.h.b16 %v1193
    %v5135 = vunpack.c.l.b16 %v1194
    %v5136 = vunpack.c.h.b16 %v1194
    %v5137 = vunpack.c.l.b16 %v1195
    %v5138 = vunpack.c.h.b16 %v1195
    %v5139 = vunpack.c.l.b16 %v1196
    %v5140 = vunpack.c.h.b16 %v1196
    %v5141 = vunpack.c.l.b16 %v1197
    %v5142 = vunpack.c.h.b16 %v1197
    %v5143 = vunpack.c.l.b16 %v1198
    %v5144 = vunpack.c.h.b16 %v1198
    %v5145 = vunpack.c.l.b16 %v1199
    %v5146 = vunpack.c.h.b16 %v1199
    %v5147 = vunpack.c.l.b16 %v1200
    %v5148 = vunpack.c.h.b16 %v1200
    %v5149 = vunpack.c.l.b16 %v1201
    %v5150 = vunpack.c.h.b16 %v1201
    %v5151 = vunpack.c.l.b16 %v1202
    %v5152 = vunpack.c.h.b16 %v1202
    %v5153 = vunpack.c.l.b16 %v1203
    %v5154 = vunpack.c.h.b16 %v1203
    %v5155 = vunpack.c.l.b16 %v1204
    %v5156 = vunpack.c.h.b16 %v1204
    %v5157 = vunpack.c.l.b16 %v1205
    %v5158 = vunpack.c.h.b16 %v1205
    %v5159 = vunpack.c.l.b16 %v1206
    %v5160 = vunpack.c.h.b16 %v1206
    %v5161 = vunpack.c.l.b16 %v1207
    %v5162 = vunpack.c.h.b16 %v1207
    %v5163 = vunpack.c.l.b16 %v1208
    %v5164 = vunpack.c.h.b16 %v1208
    %v5165 = vunpack.c.l.b16 %v1209
    %v5166 = vunpack.c.h.b16 %v1209
    %v5167 = vunpack.c.l.b16 %v1210
    %v5168 = vunpack.c.h.b16 %v1210
    %v5169 = vunpack.c.l.b16 %v1211
    %v5170 = vunpack.c.h.b16 %v1211
    %v5171 = vunpack.c.l.b16 %v1212
    %v5172 = vunpack.c.h.b16 %v1212
    %v5173 = vunpack.c.l.b16 %v1213
    %v5174 = vunpack.c.h.b16 %v1213
    %v5175 = vunpack.c.l.b16 %v1214
    %v5176 = vunpack.c.h.b16 %v1214
    %v5177 = vunpack.c.l.b16 %v1215
    %v5178 = vunpack.c.h.b16 %v1215
    %v5179 = vunpack.c.l.b16 %v1216
    %v5180 = vunpack.c.h.b16 %v1216
    %v5181 = vunpack.c.l.b16 %v1217
    %v5182 = vunpack.c.h.b16 %v1217
    %v5183 = vunpack.c.l.b16 %v1218
    %v5184 = vunpack.c.h.b16 %v1218
    %v5185 = vunpack.c.l.b16 %v1219
    %v5186 = vunpack.c.h.b16 %v1219
    %v5187 = vunpack.c.l.b16 %v1220
    %v5188 = vunpack.c.h.b16 %v1220
    %v5189 = vunpack.c.l.b16 %v1221
    %v5190 = vunpack.c.h.b16 %v1221
    %v5191 = vunpack.c.l.b16 %v1222
    %v5192 = vunpack.c.h.b16 %v1222
    %v5193 = vunpack.c.l.b16 %v1223
    %v5194 = vunpack.c.h.b16 %v1223
    %v5195 = vunpack.c.l.b16 %v1224
    %v5196 = vunpack.c.h.b16 %v1224
    %v5197 = vunpack.c.l.b16 %v1225
    %v5198 = vunpack.c.h.b16 %v1225
    %v5199 = vunpack.c.l.b16 %v1226
    %v5200 = vunpack.c.h.b16 %v1226
    %v5201 = vunpack.c.l.b16 %v1227
    %v5202 = vunpack.c.h.b16 %v1227
    %v5203 = vunpack.c.l.b16 %v1228
    %v5204 = vunpack.c.h.b16 %v1228
    %v5205 = vunpack.c.l.b16 %v1229
    %v5206 = vunpack.c.h.b16 %v1229
    %v5207 = vunpack.c.l.b16 %v1230
    %v5208 = vunpack.c.h.b16 %v1230
    %v5209 = vunpack.c.l.b16 %v1231
    %v5210 = vunpack.c.h.b16 %v1231
    %v5211 = vunpack.c.l.b16 %v1232
    %v5212 = vunpack.c.h.b16 %v1232
    %v5213 = vunpack.c.l.b16 %v1233
    %v5214 = vunpack.c.h.b16 %v1233
    %v5215 = vunpack.c.l.b16 %v1234
    %v5216 = vunpack.c.h.b16 %v1234
    %v5217 = vunpack.c.l.b16 %v1235
    %v5218 = vunpack.c.h.b16 %v1235
    %v5219 = vunpack.c.l.b16 %v1236
    %v5220 = vunpack.c.h.b16 %v1236
    %v5221 = vunpack.c.l.b16 %v1237
    %v5222 = vunpack.c.h.b16 %v1237
    %v5223 = vunpack.c.l.b16 %v1238
    %v5224 = vunpack.c.h.b16 %v1238
    %v5225 = vunpack.c.l.b16 %v1239
    %v5226 = vunpack.c.h.b16 %v1239
    %v5227 = vunpack.c.l.b16 %v1240
    %v5228 = vunpack.c.h.b16 %v1240
    %v5229 = vunpack.c.l.b16 %v1241
    %v5230 = vunpack.c.h.b16 %v1241
    %v5231 = vunpack.c.l.b16 %v1242
    %v5232 = vunpack.c.h.b16 %v1242
    %v5233 = vunpack.c.l.b16 %v1243
    %v5234 = vunpack.c.h.b16 %v1243
    %v5235 = vunpack.c.l.b16 %v1244
    %v5236 = vunpack.c.h.b16 %v1244
    %v5237 = vunpack.c.l.b16 %v1245
    %v5238 = vunpack.c.h.b16 %v1245
    %v5239 = vunpack.c.l.b16 %v1246
    %v5240 = vunpack.c.h.b16 %v1246
    %v5241 = vunpack.c.l.b16 %v1247
    %v5242 = vunpack.c.h.b16 %v1247
    %v5243 = vunpack.c.l.b16 %v1248
    %v5244 = vunpack.c.h.b16 %v1248
    %v5245 = vunpack.c.l.b16 %v1249
    %v5246 = vunpack.c.h.b16 %v1249
    %v5247 = vunpack.c.l.b16 %v1250
    %v5248 = vunpack.c.h.b16 %v1250
    %v5249 = vunpack.c.l.b16 %v1251
    %v5250 = vunpack.c.h.b16 %v1251
    %v5251 = vunpack.c.l.b16 %v1252
    %v5252 = vunpack.c.h.b16 %v1252
    %v5253 = vunpack.c.l.b16 %v1253
    %v5254 = vunpack.c.h.b16 %v1253
    %v5255 = vunpack.c.l.b16 %v1254
    %v5256 = vunpack.c.h.b16 %v1254
    %v5257 = vunpack.c.l.b16 %v1255
    %v5258 = vunpack.c.h.b16 %v1255
    %v5259 = vunpack.c.l.b16 %v1256
    %v5260 = vunpack.c.h.b16 %v1256
    %v5261 = vunpack.c.l.b16 %v1257
    %v5262 = vunpack.c.h.b16 %v1257
    %v5263 = vunpack.c.l.b16 %v1258
    %v5264 = vunpack.c.h.b16 %v1258
    %v5265 = vunpack.c.l.b16 %v1259
    %v5266 = vunpack.c.h.b16 %v1259
    %v5267 = vunpack.c.l.b16 %v1260
    %v5268 = vunpack.c.h.b16 %v1260
    %v5269 = vunpack.c.l.b16 %v1261
    %v5270 = vunpack.c.h.b16 %v1261
    %v5271 = vunpack.c.l.b16 %v1262
    %v5272 = vunpack.c.h.b16 %v1262
    %v5273 = vunpack.c.l.b16 %v1263
    %v5274 = vunpack.c.h.b16 %v1263
    %v5275 = vunpack.c.l.b16 %v1264
    %v5276 = vunpack.c.h.b16 %v1264
    %v5277 = vunpack.c.l.b16 %v1265
    %v5278 = vunpack.c.h.b16 %v1265
    %v5279 = vunpack.c.l.b16 %v1266
    %v5280 = vunpack.c.h.b16 %v1266
    %v5281 = vunpack.c.l.b16 %v1267
    %v5282 = vunpack.c.h.b16 %v1267
    %v5283 = vunpack.c.l.b16 %v1268
    %v5284 = vunpack.c.h.b16 %v1268
    %v5285 = vunpack.c.l.b16 %v1269
    %v5286 = vunpack.c.h.b16 %v1269
    %v5287 = vunpack.c.l.b16 %v1270
    %v5288 = vunpack.c.h.b16 %v1270
    %v5289 = vunpack.c.l.b16 %v1271
    %v5290 = vunpack.c.h.b16 %v1271
    %v5291 = vunpack.c.l.b16 %v1272
    %v5292 = vunpack.c.h.b16 %v1272
    %v5293 = vunpack.c.l.b16 %v1273
    %v5294 = vunpack.c.h.b16 %v1273
    %v5295 = vunpack.c.l.b16 %v1274
    %v5296 = vunpack.c.h.b16 %v1274
    %v5297 = vunpack.c.l.b16 %v1275
    %v5298 = vunpack.c.h.b16 %v1275
    %v5299 = vunpack.c.l.b16 %v1276
    %v5300 = vunpack.c.h.b16 %v1276
    %v5301 = vunpack.c.l.b16 %v1277
    %v5302 = vunpack.c.h.b16 %v1277
    %v5303 = vunpack.c.l.b16 %v1278
    %v5304 = vunpack.c.h.b16 %v1278
    %v5305 = vunpack.c.l.b16 %v1279
    %v5306 = vunpack.c.h.b16 %v1279
    %v5307 = vunpack.c.l.b16 %v1280
    %v5308 = vunpack.c.h.b16 %v1280
    %v5309 = vunpack.c.l.b16 %v1281
    %v5310 = vunpack.c.h.b16 %v1281
    %v5311 = vunpack.c.l.b16 %v1282
    %v5312 = vunpack.c.h.b16 %v1282
    %v5313 = vunpack.c.l.b16 %v1283
    %v5314 = vunpack.c.h.b16 %v1283
    %v5315 = vunpack.c.l.b16 %v1284
    %v5316 = vunpack.c.h.b16 %v1284
    %v5317 = vunpack.c.l.b16 %v1285
    %v5318 = vunpack.c.h.b16 %v1285
    %v5319 = vunpack.c.l.b16 %v1286
    %v5320 = vunpack.c.h.b16 %v1286
    %v5321 = vunpack.c.l.b16 %v1287
    %v5322 = vunpack.c.h.b16 %v1287
    %v5323 = vunpack.c.l.b16 %v1288
    %v5324 = vunpack.c.h.b16 %v1288
    %v5325 = vunpack.c.l.b16 %v1289
    %v5326 = vunpack.c.h.b16 %v1289
    %v5327 = vunpack.c.l.b16 %v1290
    %v5328 = vunpack.c.h.b16 %v1290
    %v5329 = vunpack.c.l.b16 %v1291
    %v5330 = vunpack.c.h.b16 %v1291
    %v5331 = vunpack.c.l.b16 %v1292
    %v5332 = vunpack.c.h.b16 %v1292
    %v5333 = vunpack.c.l.b16 %v1293
    %v5334 = vunpack.c.h.b16 %v1293
    %v5335 = vunpack.c.l.b16 %v1294
    %v5336 = vunpack.c.h.b16 %v1294
    %v5337 = vunpack.c.l.b16 %v1295
    %v5338 = vunpack.c.h.b16 %v1295
    %v5339 = vunpack.c.l.b16 %v1296
    %v5340 = vunpack.c.h.b16 %v1296
    %v5341 = vunpack.c.l.b16 %v1297
    %v5342 = vunpack.c.h.b16 %v1297
    %v5343 = vunpack.c.l.b16 %v1298
    %v5344 = vunpack.c.h.b16 %v1298
    %v5345 = vunpack.c.l.b16 %v1299
    %v5346 = vunpack.c.h.b16 %v1299
    %v5347 = vunpack.c.l.b16 %v1300
    %v5348 = vunpack.c.h.b16 %v1300
    %v5349 = vunpack.c.l.b16 %v1301
    %v5350 = vunpack.c.h.b16 %v1301
    %v5351 = vunpack.c.l.b16 %v1302
    %v5352 = vunpack.c.h.b16 %v1302
    %v5353 = vunpack.c.l.b16 %v1303
    %v5354 = vunpack.c.h.b16 %v1303
    %v5355 = vunpack.c.l.b16 %v1304
    %v5356 = vunpack.c.h.b16 %v1304
    %v5357 = vunpack.c.l.b16 %v1305
    %v5358 = vunpack.c.h.b16 %v1305
    %v5359 = vunpack.c.l.b16 %v1306
    %v5360 = vunpack.c.h.b16 %v1306
    %v5361 = vunpack.c.l.b16 %v1307
    %v5362 = vunpack.c.h.b16 %v1307
    %v5363 = vunpack.c.l.b16 %v1308
    %v5364 = vunpack.c.h.b16 %v1308
    %v5365 = vunpack.c.l.b16 %v1309
    %v5366 = vunpack.c.h.b16 %v1309
    %v5367 = vunpack.c.l.b16 %v1310
    %v5368 = vunpack.c.h.b16 %v1310
    %v5369 = vunpack.c.l.b16 %v1311
    %v5370 = vunpack.c.h.b16 %v1311
    %v5371 = vunpack.c.l.b16 %v1312
    %v5372 = vunpack.c.h.b16 %v1312
    %v5373 = vunpack.c.l.b16 %v1313
    %v5374 = vunpack.c.h.b16 %v1313
    %v5375 = vunpack.c.l.b16 %v1314
    %v5376 = vunpack.c.h.b16 %v1314
    %v5377 = vunpack.c.l.b16 %v1315
    %v5378 = vunpack.c.h.b16 %v1315
    %v5379 = vunpack.c.l.b16 %v1316
    %v5380 = vunpack.c.h.b16 %v1316
    %v5381 = vunpack.c.l.b16 %v1317
    %v5382 = vunpack.c.h.b16 %v1317
    %v5383 = vunpack.c.l.b16 %v1318
    %v5384 = vunpack.c.h.b16 %v1318
    %v5385 = vunpack.c.l.b16 %v1319
    %v5386 = vunpack.c.h.b16 %v1319
    %v5387 = vunpack.c.l.b16 %v1320
    %v5388 = vunpack.c.h.b16 %v1320
    %v5389 = vunpack.c.l.b16 %v1321
    %v5390 = vunpack.c.h.b16 %v1321
    %v5391 = vunpack.c.l.b16 %v1322
    %v5392 = vunpack.c.h.b16 %v1322
    %v5393 = vunpack.c.l.b16 %v1323
    %v5394 = vunpack.c.h.b16 %v1323
    %v5395 = vunpack.c.l.b16 %v1324
    %v5396 = vunpack.c.h.b16 %v1324
    %v5397 = vunpack.c.l.b16 %v1325
    %v5398 = vunpack.c.h.b16 %v1325
    %v5399 = vunpack.c.l.b16 %v1326
    %v5400 = vunpack.c.h.b16 %v1326
    %v5401 = vunpack.c.l.b16 %v1327
    %v5402 = vunpack.c.h.b16 %v1327
    %v5403 = vunpack.c.l.b16 %v1328
    %v5404 = vunpack.c.h.b16 %v1328
    %v5405 = vunpack.c.l.b16 %v1329
    %v5406 = vunpack.c.h.b16 %v1329
    %v5407 = vunpack.c.l.b16 %v1330
    %v5408 = vunpack.c.h.b16 %v1330
    %v5409 = vunpack.c.l.b16 %v1331
    %v5410 = vunpack.c.h.b16 %v1331
    %v5411 = vunpack.c.l.b16 %v1332
    %v5412 = vunpack.c.h.b16 %v1332
    %v5413 = vunpack.c.l.b16 %v1333
    %v5414 = vunpack.c.h.b16 %v1333
    %v5415 = vunpack.c.l.b16 %v1334
    %v5416 = vunpack.c.h.b16 %v1334
    %v5417 = vunpack.c.l.b16 %v1335
    %v5418 = vunpack.c.h.b16 %v1335
    %v5419 = vunpack.c.l.b16 %v1336
    %v5420 = vunpack.c.h.b16 %v1336
    %v5421 = vunpack.c.l.b16 %v1337
    %v5422 = vunpack.c.h.b16 %v1337
    %v5423 = vunpack.c.l.b16 %v1338
    %v5424 = vunpack.c.h.b16 %v1338
    %v5425 = vunpack.c.l.b16 %v1339
    %v5426 = vunpack.c.h.b16 %v1339
    %v5427 = vunpack.c.l.b16 %v1340
    %v5428 = vunpack.c.h.b16 %v1340
    %v5429 = vunpack.c.l.b16 %v1341
    %v5430 = vunpack.c.h.b16 %v1341
    %v5431 = vunpack.c.l.b16 %v1342
    %v5432 = vunpack.c.h.b16 %v1342
    %v5433 = vunpack.c.l.b16 %v1343
    %v5434 = vunpack.c.h.b16 %v1343
    %v5435 = vunpack.c.l.b16 %v1344
    %v5436 = vunpack.c.h.b16 %v1344
    %v5437 = vunpack.c.l.b16 %v1345
    %v5438 = vunpack.c.h.b16 %v1345
    %v5439 = vunpack.c.l.b16 %v1346
    %v5440 = vunpack.c.h.b16 %v1346
    %v5441 = vunpack.c.l.b16 %v1347
    %v5442 = vunpack.c.h.b16 %v1347
    %v5443 = vunpack.c.l.b16 %v1348
    %v5444 = vunpack.c.h.b16 %v1348
    %v5445 = vunpack.c.l.b16 %v1349
    %v5446 = vunpack.c.h.b16 %v1349
    %v5447 = vunpack.c.l.b16 %v1350
    %v5448 = vunpack.c.h.b16 %v1350
    %v5449 = vunpack.c.l.b16 %v1351
    %v5450 = vunpack.c.h.b16 %v1351
    %v5451 = vunpack.c.l.b16 %v1352
    %v5452 = vunpack.c.h.b16 %v1352
    %v5453 = vunpack.c.l.b16 %v1353
    %v5454 = vunpack.c.h.b16 %v1353
    %v5455 = vunpack.c.l.b16 %v1354
    %v5456 = vunpack.c.h.b16 %v1354
    %v5457 = vunpack.c.l.b16 %v1355
    %v5458 = vunpack.c.h.b16 %v1355
    %v5459 = vunpack.c.l.b16 %v1356
    %v5460 = vunpack.c.h.b16 %v1356
    %v5461 = vunpack.c.l.b16 %v1357
    %v5462 = vunpack.c.h.b16 %v1357
    %v5463 = vunpack.c.l.b16 %v1358
    %v5464 = vunpack.c.h.b16 %v1358
    %v5465 = vunpack.c.l.b16 %v1359
    %v5466 = vunpack.c.h.b16 %v1359
    %v5467 = vunpack.c.l.b16 %v1360
    %v5468 = vunpack.c.h.b16 %v1360
    %v5469 = vunpack.c.l.b16 %v1361
    %v5470 = vunpack.c.h.b16 %v1361
    %v5471 = vunpack.c.l.b16 %v1362
    %v5472 = vunpack.c.h.b16 %v1362
    %v5473 = vunpack.c.l.b16 %v1363
    %v5474 = vunpack.c.h.b16 %v1363
    %v5475 = vunpack.c.l.b16 %v1364
    %v5476 = vunpack.c.h.b16 %v1364
    %v5477 = vunpack.c.l.b16 %v1365
    %v5478 = vunpack.c.h.b16 %v1365
    %v5479 = vunpack.c.l.b16 %v1366
    %v5480 = vunpack.c.h.b16 %v1366
    %v5481 = vunpack.c.l.b16 %v1367
    %v5482 = vunpack.c.h.b16 %v1367
    %v5483 = vunpack.c.l.b16 %v1368
    %v5484 = vunpack.c.h.b16 %v1368
    %v5485 = vunpack.c.l.b16 %v1369
    %v5486 = vunpack.c.h.b16 %v1369
    %v5487 = vunpack.c.l.b16 %v1370
    %v5488 = vunpack.c.h.b16 %v1370
    %v5489 = vunpack.c.l.b16 %v1371
    %v5490 = vunpack.c.h.b16 %v1371
    %v5491 = vunpack.c.l.b16 %v1372
    %v5492 = vunpack.c.h.b16 %v1372
    %v5493 = vunpack.c.l.b16 %v1373
    %v5494 = vunpack.c.h.b16 %v1373
    %v5495 = vunpack.c.l.b16 %v1374
    %v5496 = vunpack.c.h.b16 %v1374
    %v5497 = vunpack.c.l.b16 %v1375
    %v5498 = vunpack.c.h.b16 %v1375
    %v5499 = vunpack.c.l.b16 %v1376
    %v5500 = vunpack.c.h.b16 %v1376
    %v5501 = vunpack.c.l.b16 %v1377
    %v5502 = vunpack.c.h.b16 %v1377
    %v5503 = vunpack.c.l.b16 %v1378
    %v5504 = vunpack.c.h.b16 %v1378
    %v5505 = vunpack.c.l.b16 %v1379
    %v5506 = vunpack.c.h.b16 %v1379
    %v5507 = vunpack.c.l.b16 %v1380
    %v5508 = vunpack.c.h.b16 %v1380
    %v5509 = vunpack.c.l.b16 %v1381
    %v5510 = vunpack.c.h.b16 %v1381
    %v5511 = vunpack.c.l.b16 %v1382
    %v5512 = vunpack.c.h.b16 %v1382
    %v5513 = vunpack.c.l.b16 %v1383
    %v5514 = vunpack.c.h.b16 %v1383
    %v5515 = vunpack.c.l.b16 %v1384
    %v5516 = vunpack.c.h.b16 %v1384
    %v5517 = vunpack.c.l.b16 %v1385
    %v5518 = vunpack.c.h.b16 %v1385
    %v5519 = vunpack.c.l.b16 %v1386
    %v5520 = vunpack.c.h.b16 %v1386
    %v5521 = vunpack.c.l.b16 %v1387
    %v5522 = vunpack.c.h.b16 %v1387
    %v5523 = vunpack.c.l.b16 %v1388
    %v5524 = vunpack.c.h.b16 %v1388
    %v5525 = vunpack.c.l.b16 %v1389
    %v5526 = vunpack.c.h.b16 %v1389
    %v5527 = vunpack.c.l.b16 %v1390
    %v5528 = vunpack.c.h.b16 %v1390
    %v5529 = vunpack.c.l.b16 %v1391
    %v5530 = vunpack.c.h.b16 %v1391
    %v5531 = vunpack.c.l.b16 %v1392
    %v5532 = vunpack.c.h.b16 %v1392
    %v5533 = vunpack.c.l.b16 %v1393
    %v5534 = vunpack.c.h.b16 %v1393
    %v5535 = vunpack.c.l.b16 %v1394
    %v5536 = vunpack.c.h.b16 %v1394
    %v5537 = vunpack.c.l.b16 %v1395
    %v5538 = vunpack.c.h.b16 %v1395
    %v5539 = vunpack.c.l.b16 %v1396
    %v5540 = vunpack.c.h.b16 %v1396
    %v5541 = vunpack.c.l.b16 %v1397
    %v5542 = vunpack.c.h.b16 %v1397
    %v5543 = vunpack.c.l.b16 %v1398
    %v5544 = vunpack.c.h.b16 %v1398
    %v5545 = vunpack.c.l.b16 %v1399
    %v5546 = vunpack.c.h.b16 %v1399
    %v5547 = vunpack.c.l.b16 %v1400
    %v5548 = vunpack.c.h.b16 %v1400
    %v5549 = vunpack.c.l.b16 %v1401
    %v5550 = vunpack.c.h.b16 %v1401
    %v5551 = vunpack.c.l.b16 %v1402
    %v5552 = vunpack.c.h.b16 %v1402
    %v5553 = vunpack.c.l.b16 %v1403
    %v5554 = vunpack.c.h.b16 %v1403
    %v5555 = vunpack.c.l.b16 %v1404
    %v5556 = vunpack.c.h.b16 %v1404
    %v5557 = vunpack.c.l.b16 %v1405
    %v5558 = vunpack.c.h.b16 %v1405
    %v5559 = vunpack.c.l.b16 %v1406
    %v5560 = vunpack.c.h.b16 %v1406
    %v5561 = vunpack.c.l.b16 %v1407
    %v5562 = vunpack.c.h.b16 %v1407
    %v5563 = vunpack.c.l.b16 %v1408
    %v5564 = vunpack.c.h.b16 %v1408
    %v5565 = vunpack.c.l.b16 %v1409
    %v5566 = vunpack.c.h.b16 %v1409
    %v5567 = vunpack.c.l.b16 %v1410
    %v5568 = vunpack.c.h.b16 %v1410
    %v5569 = vunpack.c.l.b16 %v1411
    %v5570 = vunpack.c.h.b16 %v1411
    %v5571 = vunpack.c.l.b16 %v1412
    %v5572 = vunpack.c.h.b16 %v1412
    %v5573 = vunpack.c.l.b16 %v1413
    %v5574 = vunpack.c.h.b16 %v1413
    %v5575 = vunpack.c.l.b16 %v1414
    %v5576 = vunpack.c.h.b16 %v1414
    %v5577 = vunpack.c.l.b16 %v1415
    %v5578 = vunpack.c.h.b16 %v1415
    %v5579 = vunpack.c.l.b16 %v1416
    %v5580 = vunpack.c.h.b16 %v1416
    %v5581 = vunpack.c.l.b16 %v1417
    %v5582 = vunpack.c.h.b16 %v1417
    %v5583 = vunpack.c.l.b16 %v1418
    %v5584 = vunpack.c.h.b16 %v1418
    %v5585 = vunpack.c.l.b16 %v1419
    %v5586 = vunpack.c.h.b16 %v1419
    %v5587 = vunpack.c.l.b16 %v1420
    %v5588 = vunpack.c.h.b16 %v1420
    %v5589 = vunpack.c.l.b16 %v1421
    %v5590 = vunpack.c.h.b16 %v1421
    %v5591 = vunpack.c.l.b16 %v1422
    %v5592 = vunpack.c.h.b16 %v1422
    %v5593 = vunpack.c.l.b16 %v1423
    %v5594 = vunpack.c.h.b16 %v1423
    %v5595 = vunpack.c.l.b16 %v1424
    %v5596 = vunpack.c.h.b16 %v1424
    %v5597 = vunpack.c.l.b16 %v1425
    %v5598 = vunpack.c.h.b16 %v1425
    %v5599 = vunpack.c.l.b16 %v1426
    %v5600 = vunpack.c.h.b16 %v1426
    %v5601 = vunpack.c.l.b16 %v1427
    %v5602 = vunpack.c.h.b16 %v1427
    %v5603 = vunpack.c.l.b16 %v1428
    %v5604 = vunpack.c.h.b16 %v1428
    %v5605 = vunpack.c.l.b16 %v1429
    %v5606 = vunpack.c.h.b16 %v1429
    %v5607 = vunpack.c.l.b16 %v1430
    %v5608 = vunpack.c.h.b16 %v1430
    %v5609 = vunpack.c.l.b16 %v1431
    %v5610 = vunpack.c.h.b16 %v1431
    %v5611 = vunpack.c.l.b16 %v1432
    %v5612 = vunpack.c.h.b16 %v1432
    %v5613 = vunpack.c.l.b16 %v1433
    %v5614 = vunpack.c.h.b16 %v1433
    %v5615 = vunpack.c.l.b16 %v1434
    %v5616 = vunpack.c.h.b16 %v1434
    %v5617 = vunpack.c.l.b16 %v1435
    %v5618 = vunpack.c.h.b16 %v1435
    %v5619 = vunpack.c.l.b16 %v1436
    %v5620 = vunpack.c.h.b16 %v1436
    %v5621 = vunpack.c.l.b16 %v1437
    %v5622 = vunpack.c.h.b16 %v1437
    %v5623 = vunpack.c.l.b16 %v1438
    %v5624 = vunpack.c.h.b16 %v1438
    %v5625 = vunpack.c.l.b16 %v1439
    %v5626 = vunpack.c.h.b16 %v1439
    %v5627 = vunpack.c.l.b16 %v1440
    %v5628 = vunpack.c.h.b16 %v1440
    %v5629 = vunpack.c.l.b16 %v1441
    %v5630 = vunpack.c.h.b16 %v1441
    %v5631 = vunpack.c.l.b16 %v1442
    %v5632 = vunpack.c.h.b16 %v1442
    %v5633 = vunpack.c.l.b16 %v1443
    %v5634 = vunpack.c.h.b16 %v1443
    %v5635 = vunpack.c.l.b16 %v1444
    %v5636 = vunpack.c.h.b16 %v1444
    %v5637 = vunpack.c.l.b16 %v1445
    %v5638 = vunpack.c.h.b16 %v1445
    %v5639 = vunpack.c.l.b16 %v1446
    %v5640 = vunpack.c.h.b16 %v1446
    %v5641 = vunpack.c.l.b16 %v1447
    %v5642 = vunpack.c.h.b16 %v1447
    %v5643 = vunpack.c.l.b16 %v1448
    %v5644 = vunpack.c.h.b16 %v1448
    %v5645 = vunpack.c.l.b16 %v1449
    %v5646 = vunpack.c.h.b16 %v1449
    %v5647 = vunpack.c.l.b16 %v1450
    %v5648 = vunpack.c.h.b16 %v1450
    %v5649 = vunpack.c.l.b16 %v1451
    %v5650 = vunpack.c.h.b16 %v1451
    %v5651 = vunpack.c.l.b16 %v1452
    %v5652 = vunpack.c.h.b16 %v1452
    %v5653 = vunpack.c.l.b16 %v1453
    %v5654 = vunpack.c.h.b16 %v1453
    %v5655 = vunpack.c.l.b16 %v1454
    %v5656 = vunpack.c.h.b16 %v1454
    %v5657 = vunpack.c.l.b16 %v1455
    %v5658 = vunpack.c.h.b16 %v1455
    %v5659 = vunpack.c.l.b16 %v1456
    %v5660 = vunpack.c.h.b16 %v1456
    %v5661 = vunpack.c.l.b16 %v1457
    %v5662 = vunpack.c.h.b16 %v1457
    %v5663 = vunpack.c.l.b16 %v1458
    %v5664 = vunpack.c.h.b16 %v1458
    %v5665 = vunpack.c.l.b16 %v1459
    %v5666 = vunpack.c.h.b16 %v1459
    %v5667 = vunpack.c.l.b16 %v1460
    %v5668 = vunpack.c.h.b16 %v1460
    %v5669 = vunpack.c.l.b16 %v1461
    %v5670 = vunpack.c.h.b16 %v1461
    %v5671 = vunpack.c.l.b16 %v1462
    %v5672 = vunpack.c.h.b16 %v1462
    %v5673 = vunpack.c.l.b16 %v1463
    %v5674 = vunpack.c.h.b16 %v1463
    %v5675 = vunpack.c.l.b16 %v1464
    %v5676 = vunpack.c.h.b16 %v1464
    %v5677 = vunpack.c.l.b16 %v1465
    %v5678 = vunpack.c.h.b16 %v1465
    %v5679 = vunpack.c.l.b16 %v1466
    %v5680 = vunpack.c.h.b16 %v1466
    %v5681 = vunpack.c.l.b16 %v1467
    %v5682 = vunpack.c.h.b16 %v1467
    %v5683 = vunpack.c.l.b16 %v1468
    %v5684 = vunpack.c.h.b16 %v1468
    %v5685 = vunpack.c.l.b16 %v1469
    %v5686 = vunpack.c.h.b16 %v1469
    %v5687 = vunpack.c.l.b16 %v1470
    %v5688 = vunpack.c.h.b16 %v1470
    %v5689 = vunpack.c.l.b16 %v1471
    %v5690 = vunpack.c.h.b16 %v1471
    %v5691 = vunpack.c.l.b16 %v1472
    %v5692 = vunpack.c.h.b16 %v1472
    %v5693 = vunpack.c.l.b16 %v1473
    %v5694 = vunpack.c.h.b16 %v1473
    %v5695 = vunpack.c.l.b16 %v1474
    %v5696 = vunpack.c.h.b16 %v1474
    %v5697 = vunpack.c.l.b16 %v1475
    %v5698 = vunpack.c.h.b16 %v1475
    %v5699 = vunpack.c.l.b16 %v1476
    %v5700 = vunpack.c.h.b16 %v1476
    %v5701 = vunpack.c.l.b16 %v1477
    %v5702 = vunpack.c.h.b16 %v1477
    %v5703 = vunpack.c.l.b16 %v1478
    %v5704 = vunpack.c.h.b16 %v1478
    %v5705 = vunpack.c.l.b16 %v1479
    %v5706 = vunpack.c.h.b16 %v1479
    %v5707 = vunpack.c.l.b16 %v1480
    %v5708 = vunpack.c.h.b16 %v1480
    %v5709 = vunpack.c.l.b16 %v1481
    %v5710 = vunpack.c.h.b16 %v1481
    %v5711 = vunpack.c.l.b16 %v1482
    %v5712 = vunpack.c.h.b16 %v1482
    %v5713 = vunpack.c.l.b16 %v1483
    %v5714 = vunpack.c.h.b16 %v1483
    %v5715 = vunpack.c.l.b16 %v1484
    %v5716 = vunpack.c.h.b16 %v1484
    %v5717 = vunpack.c.l.b16 %v1485
    %v5718 = vunpack.c.h.b16 %v1485
    %v5719 = vunpack.c.l.b16 %v1486
    %v5720 = vunpack.c.h.b16 %v1486
    %v5721 = vunpack.c.l.b16 %v1487
    %v5722 = vunpack.c.h.b16 %v1487
    %v5723 = vunpack.c.l.b16 %v1488
    %v5724 = vunpack.c.h.b16 %v1488
    %v5725 = vunpack.c.l.b16 %v1489
    %v5726 = vunpack.c.h.b16 %v1489
    %v5727 = vunpack.c.l.b16 %v1490
    %v5728 = vunpack.c.h.b16 %v1490
    %v5729 = vunpack.c.l.b16 %v1491
    %v5730 = vunpack.c.h.b16 %v1491
    %v5731 = vunpack.c.l.b16 %v1492
    %v5732 = vunpack.c.h.b16 %v1492
    %v5733 = vunpack.c.l.b16 %v1493
    %v5734 = vunpack.c.h.b16 %v1493
    %v5735 = vunpack.c.l.b16 %v1494
    %v5736 = vunpack.c.h.b16 %v1494
    %v5737 = vunpack.c.l.b16 %v1495
    %v5738 = vunpack.c.h.b16 %v1495
    %v5739 = vunpack.c.l.b16 %v1496
    %v5740 = vunpack.c.h.b16 %v1496
    %v5741 = vunpack.c.l.b16 %v1497
    %v5742 = vunpack.c.h.b16 %v1497
    %v5743 = vunpack.c.l.b16 %v1498
    %v5744 = vunpack.c.h.b16 %v1498
    %v5745 = vunpack.c.l.b16 %v1499
    %v5746 = vunpack.c.h.b16 %v1499
    %v5747 = vunpack.c.l.b16 %v1500
    %v5748 = vunpack.c.h.b16 %v1500
    %v5749 = vunpack.c.l.b16 %v1501
    %v5750 = vunpack.c.h.b16 %v1501
    %v5751 = vunpack.c.l.b16 %v1502
    %v5752 = vunpack.c.h.b16 %v1502
    %v5753 = vunpack.c.l.b16 %v1503
    %v5754 = vunpack.c.h.b16 %v1503
    %v5755 = vunpack.c.l.b16 %v1504
    %v5756 = vunpack.c.h.b16 %v1504
    %v5757 = vunpack.c.l.b16 %v1505
    %v5758 = vunpack.c.h.b16 %v1505
    %v5759 = vunpack.c.l.b16 %v1506
    %v5760 = vunpack.c.h.b16 %v1506
    %v5761 = vunpack.c.l.b16 %v1507
    %v5762 = vunpack.c.h.b16 %v1507
    %v5763 = vunpack.c.l.b16 %v1508
    %v5764 = vunpack.c.h.b16 %v1508
    %v5765 = vunpack.c.l.b16 %v1509
    %v5766 = vunpack.c.h.b16 %v1509
    %v5767 = vunpack.c.l.b16 %v1510
    %v5768 = vunpack.c.h.b16 %v1510
    %v5769 = vunpack.c.l.b16 %v1511
    %v5770 = vunpack.c.h.b16 %v1511
    %v5771 = vunpack.c.l.b16 %v1512
    %v5772 = vunpack.c.h.b16 %v1512
    %v5773 = vunpack.c.l.b16 %v1513
    %v5774 = vunpack.c.h.b16 %v1513
    %v5775 = vunpack.c.l.b16 %v1514
    %v5776 = vunpack.c.h.b16 %v1514
    %v5777 = vunpack.c.l.b16 %v1515
    %v5778 = vunpack.c.h.b16 %v1515
    %v5779 = vunpack.c.l.b16 %v1516
    %v5780 = vunpack.c.h.b16 %v1516
    %v5781 = vunpack.c.l.b16 %v1517
    %v5782 = vunpack.c.h.b16 %v1517
    %v5783 = vunpack.c.l.b16 %v1518
    %v5784 = vunpack.c.h.b16 %v1518
    %v5785 = vunpack.c.l.b16 %v1519
    %v5786 = vunpack.c.h.b16 %v1519
    %v5787 = vunpack.c.l.b16 %v1520
    %v5788 = vunpack.c.h.b16 %v1520
    %v5789 = vunpack.c.l.b16 %v1521
    %v5790 = vunpack.c.h.b16 %v1521
    %v5791 = vunpack.c.l.b16 %v1522
    %v5792 = vunpack.c.h.b16 %v1522
    %v5793 = vunpack.c.l.b16 %v1523
    %v5794 = vunpack.c.h.b16 %v1523
    %v5795 = vunpack.c.l.b16 %v1524
    %v5796 = vunpack.c.h.b16 %v1524
    %v5797 = vunpack.c.l.b16 %v1525
    %v5798 = vunpack.c.h.b16 %v1525
    %v5799 = vunpack.c.l.b16 %v1526
    %v5800 = vunpack.c.h.b16 %v1526
    %v5801 = vunpack.c.l.b16 %v1527
    %v5802 = vunpack.c.h.b16 %v1527
    %v5803 = vunpack.c.l.b16 %v1528
    %v5804 = vunpack.c.h.b16 %v1528
    %v5805 = vunpack.c.l.b16 %v1529
    %v5806 = vunpack.c.h.b16 %v1529
    %v5807 = vunpack.c.l.b16 %v1530
    %v5808 = vunpack.c.h.b16 %v1530
    %v5809 = vunpack.c.l.b16 %v1531
    %v5810 = vunpack.c.h.b16 %v1531
    %v5811 = vunpack.c.l.b16 %v1532
    %v5812 = vunpack.c.h.b16 %v1532
    %v5813 = vunpack.c.l.b16 %v1533
    %v5814 = vunpack.c.h.b16 %v1533
    %v5815 = vunpack.c.l.b16 %v1534
    %v5816 = vunpack.c.h.b16 %v1534
    %v5817 = vunpack.c.l.b16 %v1535
    %v5818 = vunpack.c.h.b16 %v1535
    %v5819 = vunpack.c.l.b16 %v1536
    %v5820 = vunpack.c.h.b16 %v1536
    %v5821 = vunpack.c.l.b16 %v1537
    %v5822 = vunpack.c.h.b16 %v1537
    %v5823 = vunpack.c.l.b16 %v1538
    %v5824 = vunpack.c.h.b16 %v1538
    %v5825 = vunpack.c.l.b16 %v1539
    %v5826 = vunpack.c.h.b16 %v1539
    %v5827 = vunpack.c.l.b16 %v1540
    %v5828 = vunpack.c.h.b16 %v1540
    %v5829 = vpack.c.b16 %v3113, %v3085
    %v5830 = vpack.c.b16 %v3114, %v3086
    %v5831 = vpack.c.b16 %v3115, %v3087
    %v5832 = vpack.c.b16 %v3116, %v3088
    %v5833 = vpack.c.b16 %v3117, %v3089
    %v5834 = vpack.c.b16 %v3118, %v3090
    %v5835 = vpack.c.b16 %v3119, %v3091
    %v5836 = vpack.c.b16 %v3120, %v3092
    %v5837 = vpack.c.b16 %v3121, %v3093
    %v5838 = vpack.c.b16 %v3122, %v3094
    %v5839 = vpack.c.b16 %v3123, %v3095
    %v5840 = vpack.c.b16 %v3124, %v3096
    %v5841 = vpack.c.b16 %v3125, %v3097
    %v5842 = vpack.c.b16 %v3126, %v3098
    %v5843 = vpack.c.b16 %v3127, %v3099
    %v5844 = vpack.c.b16 %v3128, %v3100
    %v5845 = vpack.c.b16 %v3129, %v3101
    %v5846 = vpack.c.b16 %v3130, %v3102
    %v5847 = vpack.c.b16 %v3131, %v3103
    %v5848 = vpack.c.b16 %v3132, %v3104
    %v5849 = vpack.c.b16 %v3133, %v3105
    %v5850 = vpack.c.b16 %v3134, %v3106
    %v5851 = vpack.c.b16 %v3135, %v3107
    %v5852 = vpack.c.b16 %v3136, %v3108
    %v5853 = vpack.c.b16 %v3137, %v3109
    %v5854 = vpack.c.b16 %v3138, %v3110
    %v5855 = vpack.c.b16 %v3139, %v3111
    %v5856 = vpack.c.b16 %v3140, %v3112
    %v5857 = vpack.c.b16 %v3169, %v3141
    %v5858 = vpack.c.b16 %v3170, %v3142
    %v5859 = vpack.c.b16 %v3171, %v3143
    %v5860 = vpack.c.b16 %v3172, %v3144
    %v5861 = vpack.c.b16 %v3173, %v3145
    %v5862 = vpack.c.b16 %v3174, %v3146
    %v5863 = vpack.c.b16 %v3175, %v3147
    %v5864 = vpack.c.b16 %v3176, %v3148
    %v5865 = vpack.c.b16 %v3177, %v3149
    %v5866 = vpack.c.b16 %v3178, %v3150
    %v5867 = vpack.c.b16 %v3179, %v3151
    %v5868 = vpack.c.b16 %v3180, %v3152
    %v5869 = vpack.c.b16 %v3181, %v3153
    %v5870 = vpack.c.b16 %v3182, %v3154
    %v5871 = vpack.c.b16 %v3183, %v3155
    %v5872 = vpack.c.b16 %v3184, %v3156
    %v5873 = vpack.c.b16 %v3185, %v3157
    %v5874 = vpack.c.b16 %v3186, %v3158
    %v5875 = vpack.c.b16 %v3187, %v3159
    %v5876 = vpack.c.b16 %v3188, %v3160
    %v5877 = vpack.c.b16 %v3189, %v3161
    %v5878 = vpack.c.b16 %v3190, %v3162
    %v5879 = vpack.c.b16 %v3191, %v3163
    %v5880 = vpack.c.b16 %v3192, %v3164
    %v5881 = vpack.c.b16 %v3193, %v3165
    %v5882 = vpack.c.b16 %v3194, %v3166
    %v5883 = vpack.c.b16 %v3195, %v3167
    %v5884 = vpack.c.b16 %v3196, %v3168
    %v5885 = vpack.c.b16 %v3225, %v3197
    %v5886 = vpack.c.b16 %v3226, %v3198
    %v5887 = vpack.c.b16 %v3227, %v3199
    %v5888 = vpack.c.b16 %v3228, %v3200
    %v5889 = vpack.c.b16 %v3229, %v3201
    %v5890 = vpack.c.b16 %v3230, %v3202
    %v5891 = vpack.c.b16 %v3231, %v3203
    %v5892 = vpack.c.b16 %v3232, %v3204
    %v5893 = vpack.c.b16 %v3233, %v3205
    %v5894 = vpack.c.b16 %v3234, %v3206
    %v5895 = vpack.c.b16 %v3235, %v3207
    %v5896 = vpack.c.b16 %v3236, %v3208
    %v5897 = vpack.c.b16 %v3237, %v3209
    %v5898 = vpack.c.b16 %v3238, %v3210
    %v5899 = vpack.c.b16 %v3239, %v3211
    %v5900 = vpack.c.b16 %v3240, %v3212
    %v5901 = vpack.c.b16 %v3241, %v3213
    %v5902 = vpack.c.b16 %v3242, %v3214
    %v5903 = vpack.c.b16 %v3243, %v3215
    %v5904 = vpack.c.b16 %v3244, %v3216
    %v5905 = vpack.c.b16 %v3245, %v3217
    %v5906 = vpack.c.b16 %v3246, %v3218
    %v5907 = vpack.c.b16 %v3247, %v3219
    %v5908 = vpack.c.b16 %v3248, %v3220
    %v5909 = vpack.c.b16 %v3249, %v3221
    %v5910 = vpack.c.b16 %v3250, %v3222
    %v5911 = vpack.c.b16 %v3251, %v3223
    %v5912 = vpack.c.b16 %v3252, %v3224
    %v5913 = vpack.c.b16 %v3281, %v3253
    %v5914 = vpack.c.b16 %v3282, %v3254
    %v5915 = vpack.c.b16 %v3283, %v3255
    %v5916 = vpack.c.b16 %v3284, %v3256
    %v5917 = vpack.c.b16 %v3285, %v3257
    %v5918 = vpack.c.b16 %v3286, %v3258
    %v5919 = vpack.c.b16 %v3287, %v3259
    %v5920 = vpack.c.b16 %v3288, %v3260
    %v5921 = vpack.c.b16 %v3289, %v3261
    %v5922 = vpack.c.b16 %v3290, %v3262
    %v5923 = vpack.c.b16 %v3291, %v3263
    %v5924 = vpack.c.b16 %v3292, %v3264
    %v5925 = vpack.c.b16 %v3293, %v3265
    %v5926 = vpack.c.b16 %v3294, %v3266
    %v5927 = vpack.c.b16 %v3295, %v3267
    %v5928 = vpack.c.b16 %v3296, %v3268
    %v5929 = vpack.c.b16 %v3297, %v3269
    %v5930 = vpack.c.b16 %v3298, %v3270
    %v5931 = vpack.c.b16 %v3299, %v3271
    %v5932 = vpack.c.b16 %v3300, %v3272
    %v5933 = vpack.c.b16 %v3301, %v3273
    %v5934 = vpack.c.b16 %v3302, %v3274
    %v5935 = vpack.c.b16 %v3303, %v3275
    %v5936 = vpack.c.b16 %v3304, %v3276
    %v5937 = vpack.c.b16 %v3305, %v3277
    %v5938 = vpack.c.b16 %v3306, %v3278
    %v5939 = vpack.c.b16 %v3307, %v3279
    %v5940 = vpack.c.b16 %v3308, %v3280
    %v5941 = vpack.c.b16 %v3337, %v3309
    %v5942 = vpack.c.b16 %v3338, %v3310
    %v5943 = vpack.c.b16 %v3339, %v3311
    %v5944 = vpack.c.b16 %v3340, %v3312
    %v5945 = vpack.c.b16 %v3341, %v3313
    %v5946 = vpack.c.b16 %v3342, %v3314
    %v5947 = vpack.c.b16 %v3343, %v3315
    %v5948 = vpack.c.b16 %v3344, %v3316
    %v5949 = vpack.c.b16 %v3345, %v3317
    %v5950 = vpack.c.b16 %v3346, %v3318
    %v5951 = vpack.c.b16 %v3347, %v3319
    %v5952 = vpack.c.b16 %v3348, %v3320
    %v5953 = vpack.c.b16 %v3349, %v3321
    %v5954 = vpack.c.b16 %v3350, %v3322
    %v5955 = vpack.c.b16 %v3351, %v3323
    %v5956 = vpack.c.b16 %v3352, %v3324
    %v5957 = vpack.c.b16 %v3353, %v3325
    %v5958 = vpack.c.b16 %v3354, %v3326
    %v5959 = vpack.c.b16 %v3355, %v3327
    %v5960 = vpack.c.b16 %v3356, %v3328
    %v5961 = vpack.c.b16 %v3357, %v3329
    %v5962 = vpack.c.b16 %v3358, %v3330
    %v5963 = vpack.c.b16 %v3359, %v3331
    %v5964 = vpack.c.b16 %v3360, %v3332
    %v5965 = vpack.c.b16 %v3361, %v3333
    %v5966 = vpack.c.b16 %v3362, %v3334
    %v5967 = vpack.c.b16 %v3363, %v3335
    %v5968 = vpack.c.b16 %v3364, %v3336
    %v5969 = vpack.c.b16 %v3393, %v3365
    %v5970 = vpack.c.b16 %v3394, %v3366
    %v5971 = vpack.c.b16 %v3395, %v3367
    %v5972 = vpack.c.b16 %v3396, %v3368
    %v5973 = vpack.c.b16 %v3397, %v3369
    %v5974 = vpack.c.b16 %v3398, %v3370
    %v5975 = vpack.c.b16 %v3399, %v3371
    %v5976 = vpack.c.b16 %v3400, %v3372
    %v5977 = vpack.c.b16 %v3401, %v3373
    %v5978 = vpack.c.b16 %v3402, %v3374
    %v5979 = vpack.c.b16 %v3403, %v3375
    %v5980 = vpack.c.b16 %v3404, %v3376
    %v5981 = vpack.c.b16 %v3405, %v3377
    %v5982 = vpack.c.b16 %v3406, %v3378
    %v5983 = vpack.c.b16 %v3407, %v3379
    %v5984 = vpack.c.b16 %v3408, %v3380
    %v5985 = vpack.c.b16 %v3409, %v3381
    %v5986 = vpack.c.b16 %v3410, %v3382
    %v5987 = vpack.c.b16 %v3411, %v3383
    %v5988 = vpack.c.b16 %v3412, %v3384
    %v5989 = vpack.c.b16 %v3413, %v3385
    %v5990 = vpack.c.b16 %v3414, %v3386
    %v5991 = vpack.c.b16 %v3415, %v3387
    %v5992 = vpack.c.b16 %v3416, %v3388
    %v5993 = vpack.c.b16 %v3417, %v3389
    %v5994 = vpack.c.b16 %v3418, %v3390
    %v5995 = vpack.c.b16 %v3419, %v3391
    %v5996 = vpack.c.b16 %v3420, %v3392
    %v5997 = vpack.c.b16 %v3449, %v3421
    %v5998 = vpack.c.b16 %v3450, %v3422
    %v5999 = vpack.c.b16 %v3451, %v3423
    %v6000 = vpack.c.b16 %v3452, %v3424
    %v6001 = vpack.c.b16 %v3453, %v3425
    %v6002 = vpack.c.b16 %v3454, %v3426
    %v6003 = vpack.c.b16 %v3455, %v3427
    %v6004 = vpack.c.b16 %v3456, %v3428
    %v6005 = vpack.c.b16 %v3457, %v3429
    %v6006 = vpack.c.b16 %v3458, %v3430
    %v6007 = vpack.c.b16 %v3459, %v3431
    %v6008 = vpack.c.b16 %v3460, %v3432
    %v6009 = vpack.c.b16 %v3461, %v3433
    %v6010 = vpack.c.b16 %v3462, %v3434
    %v6011 = vpack.c.b16 %v3463, %v3435
    %v6012 = vpack.c.b16 %v3464, %v3436
    %v6013 = vpack.c.b16 %v3465, %v3437
    %v6014 = vpack.c.b16 %v3466, %v3438
    %v6015 = vpack.c.b16 %v3467, %v3439
    %v6016 = vpack.c.b16 %v3468, %v3440
    %v6017 = vpack.c.b16 %v3469, %v3441
    %v6018 = vpack.c.b16 %v3470, %v3442
    %v6019 = vpack.c.b16 %v3471, %v3443
    %v6020 = vpack.c.b16 %v3472, %v3444
    %v6021 = vpack.c.b16 %v3473, %v3445
    %v6022 = vpack.c.b16 %v3474, %v3446
    %v6023 = vpack.c.b16 %v3475, %v3447
    %v6024 = vpack.c.b16 %v3476, %v3448
    %v6025 = vpack.c.b16 %v3505, %v3477
    %v6026 = vpack.c.b16 %v3506, %v3478
    %v6027 = vpack.c.b16 %v3507, %v3479
    %v6028 = vpack.c.b16 %v3508, %v3480
    %v6029 = vpack.c.b16 %v3509, %v3481
    %v6030 = vpack.c.b16 %v3510, %v3482
    %v6031 = vpack.c.b16 %v3511, %v3483
    %v6032 = vpack.c.b16 %v3512, %v3484
    %v6033 = vpack.c.b16 %v3513, %v3485
    %v6034 = vpack.c.b16 %v3514, %v3486
    %v6035 = vpack.c.b16 %v3515, %v3487
    %v6036 = vpack.c.b16 %v3516, %v3488
    %v6037 = vpack.c.b16 %v3517, %v3489
    %v6038 = vpack.c.b16 %v3518, %v3490
    %v6039 = vpack.c.b16 %v3519, %v3491
    %v6040 = vpack.c.b16 %v3520, %v3492
    %v6041 = vpack.c.b16 %v3521, %v3493
    %v6042 = vpack.c.b16 %v3522, %v3494
    %v6043 = vpack.c.b16 %v3523, %v3495
    %v6044 = vpack.c.b16 %v3524, %v3496
    %v6045 = vpack.c.b16 %v3525, %v3497
    %v6046 = vpack.c.b16 %v3526, %v3498
    %v6047 = vpack.c.b16 %v3527, %v3499
    %v6048 = vpack.c.b16 %v3528, %v3500
    %v6049 = vpack.c.b16 %v3529, %v3501
    %v6050 = vpack.c.b16 %v3530, %v3502
    %v6051 = vpack.c.b16 %v3531, %v3503
    %v6052 = vpack.c.b16 %v3532, %v3504
    %v6053 = vpack.c.b16 %v3561, %v3533
    %v6054 = vpack.c.b16 %v3562, %v3534
    %v6055 = vpack.c.b16 %v3563, %v3535
    %v6056 = vpack.c.b16 %v3564, %v3536
    %v6057 = vpack.c.b16 %v3565, %v3537
    %v6058 = vpack.c.b16 %v3566, %v3538
    %v6059 = vpack.c.b16 %v3567, %v3539
    %v6060 = vpack.c.b16 %v3568, %v3540
    %v6061 = vpack.c.b16 %v3569, %v3541
    %v6062 = vpack.c.b16 %v3570, %v3542
    %v6063 = vpack.c.b16 %v3571, %v3543
    %v6064 = vpack.c.b16 %v3572, %v3544
    %v6065 = vpack.c.b16 %v3573, %v3545
    %v6066 = vpack.c.b16 %v3574, %v3546
    %v6067 = vpack.c.b16 %v3575, %v3547
    %v6068 = vpack.c.b16 %v3576, %v3548
    %v6069 = vpack.c.b16 %v3577, %v3549
    %v6070 = vpack.c.b16 %v3578, %v3550
    %v6071 = vpack.c.b16 %v3579, %v3551
    %v6072 = vpack.c.b16 %v3580, %v3552
    %v6073 = vpack.c.b16 %v3581, %v3553
    %v6074 = vpack.c.b16 %v3582, %v3554
    %v6075 = vpack.c.b16 %v3583, %v3555
    %v6076 = vpack.c.b16 %v3584, %v3556
    %v6077 = vpack.c.b16 %v3585, %v3557
    %v6078 = vpack.c.b16 %v3586, %v3558
    %v6079 = vpack.c.b16 %v3587, %v3559
    %v6080 = vpack.c.b16 %v3588, %v3560
    %v6081 = vpack.c.b16 %v3617, %v3589
    %v6082 = vpack.c.b16 %v3618, %v3590
    %v6083 = vpack.c.b16 %v3619, %v3591
    %v6084 = vpack.c.b16 %v3620, %v3592
    %v6085 = vpack.c.b16 %v3621, %v3593
    %v6086 = vpack.c.b16 %v3622, %v3594
    %v6087 = vpack.c.b16 %v3623, %v3595
    %v6088 = vpack.c.b16 %v3624, %v3596
    %v6089 = vpack.c.b16 %v3625, %v3597
    %v6090 = vpack.c.b16 %v3626, %v3598
    %v6091 = vpack.c.b16 %v3627, %v3599
    %v6092 = vpack.c.b16 %v3628, %v3600
    %v6093 = vpack.c.b16 %v3629, %v3601
    %v6094 = vpack.c.b16 %v3630, %v3602
    %v6095 = vpack.c.b16 %v3631, %v3603
    %v6096 = vpack.c.b16 %v3632, %v3604
    %v6097 = vpack.c.b16 %v3633, %v3605
    %v6098 = vpack.c.b16 %v3634, %v3606
    %v6099 = vpack.c.b16 %v3635, %v3607
    %v6100 = vpack.c.b16 %v3636, %v3608
    %v6101 = vpack.c.b16 %v3637, %v3609
    %v6102 = vpack.c.b16 %v3638, %v3610
    %v6103 = vpack.c.b16 %v3639, %v3611
    %v6104 = vpack.c.b16 %v3640, %v3612
    %v6105 = vpack.c.b16 %v3641, %v3613
    %v6106 = vpack.c.b16 %v3642, %v3614
    %v6107 = vpack.c.b16 %v3643, %v3615
    %v6108 = vpack.c.b16 %v3644, %v3616
    %v6109 = vpack.c.b16 %v3673, %v3645
    %v6110 = vpack.c.b16 %v3674, %v3646
    %v6111 = vpack.c.b16 %v3675, %v3647
    %v6112 = vpack.c.b16 %v3676, %v3648
    %v6113 = vpack.c.b16 %v3677, %v3649
    %v6114 = vpack.c.b16 %v3678, %v3650
    %v6115 = vpack.c.b16 %v3679, %v3651
    %v6116 = vpack.c.b16 %v3680, %v3652
    %v6117 = vpack.c.b16 %v3681, %v3653
    %v6118 = vpack.c.b16 %v3682, %v3654
    %v6119 = vpack.c.b16 %v3683, %v3655
    %v6120 = vpack.c.b16 %v3684, %v3656
    %v6121 = vpack.c.b16 %v3685, %v3657
    %v6122 = vpack.c.b16 %v3686, %v3658
    %v6123 = vpack.c.b16 %v3687, %v3659
    %v6124 = vpack.c.b16 %v3688, %v3660
    %v6125 = vpack.c.b16 %v3689, %v3661
    %v6126 = vpack.c.b16 %v3690, %v3662
    %v6127 = vpack.c.b16 %v3691, %v3663
    %v6128 = vpack.c.b16 %v3692, %v3664
    %v6129 = vpack.c.b16 %v3693, %v3665
    %v6130 = vpack.c.b16 %v3694, %v3666
    %v6131 = vpack.c.b16 %v3695, %v3667
    %v6132 = vpack.c.b16 %v3696, %v3668
    %v6133 = vpack.c.b16 %v3697, %v3669
    %v6134 = vpack.c.b16 %v3698, %v3670
    %v6135 = vpack.c.b16 %v3699, %v3671
    %v6136 = vpack.c.b16 %v3700, %v3672
    %v6137 = vpack.c.b16 %v3729, %v3701
    %v6138 = vpack.c.b16 %v3730, %v3702
    %v6139 = vpack.c.b16 %v3731, %v3703
    %v6140 = vpack.c.b16 %v3732, %v3704
    %v6141 = vpack.c.b16 %v3733, %v3705
    %v6142 = vpack.c.b16 %v3734, %v3706
    %v6143 = vpack.c.b16 %v3735, %v3707
    %v6144 = vpack.c.b16 %v3736, %v3708
    %v6145 = vpack.c.b16 %v3737, %v3709
    %v6146 = vpack.c.b16 %v3738, %v3710
    %v6147 = vpack.c.b16 %v3739, %v3711
    %v6148 = vpack.c.b16 %v3740, %v3712
    %v6149 = vpack.c.b16 %v3741, %v3713
    %v6150 = vpack.c.b16 %v3742, %v3714
    %v6151 = vpack.c.b16 %v3743, %v3715
    %v6152 = vpack.c.b16 %v3744, %v3716
    %v6153 = vpack.c.b16 %v3745, %v3717
    %v6154 = vpack.c.b16 %v3746, %v3718
    %v6155 = vpack.c.b16 %v3747, %v3719
    %v6156 = vpack.c.b16 %v3748, %v3720
    %v6157 = vpack.c.b16 %v3749, %v3721
    %v6158 = vpack.c.b16 %v3750, %v3722
    %v6159 = vpack.c.b16 %v3751, %v3723
    %v6160 = vpack.c.b16 %v3752, %v3724
    %v6161 = vpack.c.b16 %v3753, %v3725
    %v6162 = vpack.c.b16 %v3754, %v3726
    %v6163 = vpack.c.b16 %v3755, %v3727
    %v6164 = vpack.c.b16 %v3756, %v3728
    %v6165 = vpack.c.b16 %v3785, %v3757
    %v6166 = vpack.c.b16 %v3786, %v3758
    %v6167 = vpack.c.b16 %v3787, %v3759
    %v6168 = vpack.c.b16 %v3788, %v3760
    %v6169 = vpack.c.b16 %v3789, %v3761
    %v6170 = vpack.c.b16 %v3790, %v3762
    %v6171 = vpack.c.b16 %v3791, %v3763
    %v6172 = vpack.c.b16 %v3792, %v3764
    %v6173 = vpack.c.b16 %v3793, %v3765
    %v6174 = vpack.c.b16 %v3794, %v3766
    %v6175 = vpack.c.b16 %v3795, %v3767
    %v6176 = vpack.c.b16 %v3796, %v3768
    %v6177 = vpack.c.b16 %v3797, %v3769
    %v6178 = vpack.c.b16 %v3798, %v3770
    %v6179 = vpack.c.b16 %v3799, %v3771
    %v6180 = vpack.c.b16 %v3800, %v3772
    %v6181 = vpack.c.b16 %v3801, %v3773
    %v6182 = vpack.c.b16 %v3802, %v3774
    %v6183 = vpack.c.b16 %v3803, %v3775
    %v6184 = vpack.c.b16 %v3804, %v3776
    %v6185 = vpack.c.b16 %v3805, %v3777
    %v6186 = vpack.c.b16 %v3806, %v3778
    %v6187 = vpack.c.b16 %v3807, %v3779
    %v6188 = vpack.c.b16 %v3808, %v3780
    %v6189 = vpack.c.b16 %v3809, %v3781
    %v6190 = vpack.c.b16 %v3810, %v3782
    %v6191 = vpack.c.b16 %v3811, %v3783
    %v6192 = vpack.c.b16 %v3812, %v3784
    %v6193 = vpack.c.b16 %v3841, %v3813
    %v6194 = vpack.c.b16 %v3842, %v3814
    %v6195 = vpack.c.b16 %v3843, %v3815
    %v6196 = vpack.c.b16 %v3844, %v3816
    %v6197 = vpack.c.b16 %v3845, %v3817
    %v6198 = vpack.c.b16 %v3846, %v3818
    %v6199 = vpack.c.b16 %v3847, %v3819
    %v6200 = vpack.c.b16 %v3848, %v3820
    %v6201 = vpack.c.b16 %v3849, %v3821
    %v6202 = vpack.c.b16 %v3850, %v3822
    %v6203 = vpack.c.b16 %v3851, %v3823
    %v6204 = vpack.c.b16 %v3852, %v3824
    %v6205 = vpack.c.b16 %v3853, %v3825
    %v6206 = vpack.c.b16 %v3854, %v3826
    %v6207 = vpack.c.b16 %v3855, %v3827
    %v6208 = vpack.c.b16 %v3856, %v3828
    %v6209 = vpack.c.b16 %v3857, %v3829
    %v6210 = vpack.c.b16 %v3858, %v3830
    %v6211 = vpack.c.b16 %v3859, %v3831
    %v6212 = vpack.c.b16 %v3860, %v3832
    %v6213 = vpack.c.b16 %v3861, %v3833
    %v6214 = vpack.c.b16 %v3862, %v3834
    %v6215 = vpack.c.b16 %v3863, %v3835
    %v6216 = vpack.c.b16 %v3864, %v3836
    %v6217 = vpack.c.b16 %v3865, %v3837
    %v6218 = vpack.c.b16 %v3866, %v3838
    %v6219 = vpack.c.b16 %v3867, %v3839
    %v6220 = vpack.c.b16 %v3868, %v3840
    %v6221 = vpack.c.b16 %v3897, %v3869
    %v6222 = vpack.c.b16 %v3898, %v3870
    %v6223 = vpack.c.b16 %v3899, %v3871
    %v6224 = vpack.c.b16 %v3900, %v3872
    %v6225 = vpack.c.b16 %v3901, %v3873
    %v6226 = vpack.c.b16 %v3902, %v3874
    %v6227 = vpack.c.b16 %v3903, %v3875
    %v6228 = vpack.c.b16 %v3904, %v3876
    %v6229 = vpack.c.b16 %v3905, %v3877
    %v6230 = vpack.c.b16 %v3906, %v3878
    %v6231 = vpack.c.b16 %v3907, %v3879
    %v6232 = vpack.c.b16 %v3908, %v3880
    %v6233 = vpack.c.b16 %v3909, %v3881
    %v6234 = vpack.c.b16 %v3910, %v3882
    %v6235 = vpack.c.b16 %v3911, %v3883
    %v6236 = vpack.c.b16 %v3912, %v3884
    %v6237 = vpack.c.b16 %v3913, %v3885
    %v6238 = vpack.c.b16 %v3914, %v3886
    %v6239 = vpack.c.b16 %v3915, %v3887
    %v6240 = vpack.c.b16 %v3916, %v3888
    %v6241 = vpack.c.b16 %v3917, %v3889
    %v6242 = vpack.c.b16 %v3918, %v3890
    %v6243 = vpack.c.b16 %v3919, %v3891
    %v6244 = vpack.c.b16 %v3920, %v3892
    %v6245 = vpack.c.b16 %v3921, %v3893
    %v6246 = vpack.c.b16 %v3922, %v3894
    %v6247 = vpack.c.b16 %v3923, %v3895
    %v6248 = vpack.c.b16 %v3924, %v3896
    %v6249 = vpack.c.b16 %v3953, %v3925
    %v6250 = vpack.c.b16 %v3954, %v3926
    %v6251 = vpack.c.b16 %v3955, %v3927
    %v6252 = vpack.c.b16 %v3956, %v3928
    %v6253 = vpack.c.b16 %v3957, %v3929
    %v6254 = vpack.c.b16 %v3958, %v3930
    %v6255 = vpack.c.b16 %v3959, %v3931
    %v6256 = vpack.c.b16 %v3960, %v3932
    %v6257 = vpack.c.b16 %v3961, %v3933
    %v6258 = vpack.c.b16 %v3962, %v3934
    %v6259 = vpack.c.b16 %v3963, %v3935
    %v6260 = vpack.c.b16 %v3964, %v3936
    %v6261 = vpack.c.b16 %v3965, %v3937
    %v6262 = vpack.c.b16 %v3966, %v3938
    %v6263 = vpack.c.b16 %v3967, %v3939
    %v6264 = vpack.c.b16 %v3968, %v3940
    %v6265 = vpack.c.b16 %v3969, %v3941
    %v6266 = vpack.c.b16 %v3970, %v3942
    %v6267 = vpack.c.b16 %v3971, %v3943
    %v6268 = vpack.c.b16 %v3972, %v3944
    %v6269 = vpack.c.b16 %v3973, %v3945
    %v6270 = vpack.c.b16 %v3974, %v3946
    %v6271 = vpack.c.b16 %v3975, %v3947
    %v6272 = vpack.c.b16 %v3976, %v3948
    %v6273 = vpack.c.b16 %v3977, %v3949
    %v6274 = vpack.c.b16 %v3978, %v3950
    %v6275 = vpack.c.b16 %v3979, %v3951
    %v6276 = vpack.c.b16 %v3980, %v3952
    %v6277 = vpack.c.b16 %v4009, %v3981
    %v6278 = vpack.c.b16 %v4010, %v3982
    %v6279 = vpack.c.b16 %v4011, %v3983
    %v6280 = vpack.c.b16 %v4012, %v3984
    %v6281 = vpack.c.b16 %v4013, %v3985
    %v6282 = vpack.c.b16 %v4014, %v3986
    %v6283 = vpack.c.b16 %v4015, %v3987
    %v6284 = vpack.c.b16 %v4016, %v3988
    %v6285 = vpack.c.b16 %v4017, %v3989
    %v6286 = vpack.c.b16 %v4018, %v3990
    %v6287 = vpack.c.b16 %v4019, %v3991
    %v6288 = vpack.c.b16 %v4020, %v3992
    %v6289 = vpack.c.b16 %v4021, %v3993
    %v6290 = vpack.c.b16 %v4022, %v3994
    %v6291 = vpack.c.b16 %v4023, %v3995
    %v6292 = vpack.c.b16 %v4024, %v3996
    %v6293 = vpack.c.b16 %v4025, %v3997
    %v6294 = vpack.c.b16 %v4026, %v3998
    %v6295 = vpack.c.b16 %v4027, %v3999
    %v6296 = vpack.c.b16 %v4028, %v4000
    %v6297 = vpack.c.b16 %v4029, %v4001
    %v6298 = vpack.c.b16 %v4030, %v4002
    %v6299 = vpack.c.b16 %v4031, %v4003
    %v6300 = vpack.c.b16 %v4032, %v4004
    %v6301 = vpack.c.b16 %v4033, %v4005
    %v6302 = vpack.c.b16 %v4034, %v4006
    %v6303 = vpack.c.b16 %v4035, %v4007
    %v6304 = vpack.c.b16 %v4036, %v4008
    %v6305 = vpack.c.b16 %v4065, %v4037
    %v6306 = vpack.c.b16 %v4066, %v4038
    %v6307 = vpack.c.b16 %v4067, %v4039
    %v6308 = vpack.c.b16 %v4068, %v4040
    %v6309 = vpack.c.b16 %v4069, %v4041
    %v6310 = vpack.c.b16 %v4070, %v4042
    %v6311 = vpack.c.b16 %v4071, %v4043
    %v6312 = vpack.c.b16 %v4072, %v4044
    %v6313 = vpack.c.b16 %v4073, %v4045
    %v6314 = vpack.c.b16 %v4074, %v4046
    %v6315 = vpack.c.b16 %v4075, %v4047
    %v6316 = vpack.c.b16 %v4076, %v4048
    %v6317 = vpack.c.b16 %v4077, %v4049
    %v6318 = vpack.c.b16 %v4078, %v4050
    %v6319 = vpack.c.b16 %v4079, %v4051
    %v6320 = vpack.c.b16 %v4080, %v4052
    %v6321 = vpack.c.b16 %v4081, %v4053
    %v6322 = vpack.c.b16 %v4082, %v4054
    %v6323 = vpack.c.b16 %v4083, %v4055
    %v6324 = vpack.c.b16 %v4084, %v4056
    %v6325 = vpack.c.b16 %v4085, %v4057
    %v6326 = vpack.c.b16 %v4086, %v4058
    %v6327 = vpack.c.b16 %v4087, %v4059
    %v6328 = vpack.c.b16 %v4088, %v4060
    %v6329 = vpack.c.b16 %v4089, %v4061
    %v6330 = vpack.c.b16 %v4090, %v4062
    %v6331 = vpack.c.b16 %v4091, %v4063
    %v6332 = vpack.c.b16 %v4092, %v4064
    %v6333 = vpack.c.b16 %v4121, %v4093
    %v6334 = vpack.c.b16 %v4122, %v4094
    %v6335 = vpack.c.b16 %v4123, %v4095
    %v6336 = vpack.c.b16 %v4124, %v4096
    %v6337 = vpack.c.b16 %v4125, %v4097
    %v6338 = vpack.c.b16 %v4126, %v4098
    %v6339 = vpack.c.b16 %v4127, %v4099
    %v6340 = vpack.c.b16 %v4128, %v4100
    %v6341 = vpack.c.b16 %v4129, %v4101
    %v6342 = vpack.c.b16 %v4130, %v4102
    %v6343 = vpack.c.b16 %v4131, %v4103
    %v6344 = vpack.c.b16 %v4132, %v4104
    %v6345 = vpack.c.b16 %v4133, %v4105
    %v6346 = vpack.c.b16 %v4134, %v4106
    %v6347 = vpack.c.b16 %v4135, %v4107
    %v6348 = vpack.c.b16 %v4136, %v4108
    %v6349 = vpack.c.b16 %v4137, %v4109
    %v6350 = vpack.c.b16 %v4138, %v4110
    %v6351 = vpack.c.b16 %v4139, %v4111
    %v6352 = vpack.c.b16 %v4140, %v4112
    %v6353 = vpack.c.b16 %v4141, %v4113
    %v6354 = vpack.c.b16 %v4142, %v4114
    %v6355 = vpack.c.b16 %v4143, %v4115
    %v6356 = vpack.c.b16 %v4144, %v4116
    %v6357 = vpack.c.b16 %v4145, %v4117
    %v6358 = vpack.c.b16 %v4146, %v4118
    %v6359 = vpack.c.b16 %v4147, %v4119
    %v6360 = vpack.c.b16 %v4148, %v4120
    %v6361 = vpack.c.b16 %v4177, %v4149
    %v6362 = vpack.c.b16 %v4178, %v4150
    %v6363 = vpack.c.b16 %v4179, %v4151
    %v6364 = vpack.c.b16 %v4180, %v4152
    %v6365 = vpack.c.b16 %v4181, %v4153
    %v6366 = vpack.c.b16 %v4182, %v4154
    %v6367 = vpack.c.b16 %v4183, %v4155
    %v6368 = vpack.c.b16 %v4184, %v4156
    %v6369 = vpack.c.b16 %v4185, %v4157
    %v6370 = vpack.c.b16 %v4186, %v4158
    %v6371 = vpack.c.b16 %v4187, %v4159
    %v6372 = vpack.c.b16 %v4188, %v4160
    %v6373 = vpack.c.b16 %v4189, %v4161
    %v6374 = vpack.c.b16 %v4190, %v4162
    %v6375 = vpack.c.b16 %v4191, %v4163
    %v6376 = vpack.c.b16 %v4192, %v4164
    %v6377 = vpack.c.b16 %v4193, %v4165
    %v6378 = vpack.c.b16 %v4194, %v4166
    %v6379 = vpack.c.b16 %v4195, %v4167
    %v6380 = vpack.c.b16 %v4196, %v4168
    %v6381 = vpack.c.b16 %v4197, %v4169
    %v6382 = vpack.c.b16 %v4198, %v4170
    %v6383 = vpack.c.b16 %v4199, %v4171
    %v6384 = vpack.c.b16 %v4200, %v4172
    %v6385 = vpack.c.b16 %v4201, %v4173
    %v6386 = vpack.c.b16 %v4202, %v4174
    %v6387 = vpack.c.b16 %v4203, %v4175
    %v6388 = vpack.c.b16 %v4204, %v4176
    %v6389 = vpack.c.b16 %v4233, %v4205
    %v6390 = vpack.c.b16 %v4234, %v4206
    %v6391 = vpack.c.b16 %v4235, %v4207
    %v6392 = vpack.c.b16 %v4236, %v4208
    %v6393 = vpack.c.b16 %v4237, %v4209
    %v6394 = vpack.c.b16 %v4238, %v4210
    %v6395 = vpack.c.b16 %v4239, %v4211
    %v6396 = vpack.c.b16 %v4240, %v4212
    %v6397 = vpack.c.b16 %v4241, %v4213
    %v6398 = vpack.c.b16 %v4242, %v4214
    %v6399 = vpack.c.b16 %v4243, %v4215
    %v6400 = vpack.c.b16 %v4244, %v4216
    %v6401 = vpack.c.b16 %v4245, %v4217
    %v6402 = vpack.c.b16 %v4246, %v4218
    %v6403 = vpack.c.b16 %v4247, %v4219
    %v6404 = vpack.c.b16 %v4248, %v4220
    %v6405 = vpack.c.b16 %v4249, %v4221
    %v6406 = vpack.c.b16 %v4250, %v4222
    %v6407 = vpack.c.b16 %v4251, %v4223
    %v6408 = vpack.c.b16 %v4252, %v4224
    %v6409 = vpack.c.b16 %v4253, %v4225
    %v6410 = vpack.c.b16 %v4254, %v4226
    %v6411 = vpack.c.b16 %v4255, %v4227
    %v6412 = vpack.c.b16 %v4256, %v4228
    %v6413 = vpack.c.b16 %v4257, %v4229
    %v6414 = vpack.c.b16 %v4258, %v4230
    %v6415 = vpack.c.b16 %v4259, %v4231
    %v6416 = vpack.c.b16 %v4260, %v4232
    %v6417 = vpack.c.b16 %v4289, %v4261
    %v6418 = vpack.c.b16 %v4290, %v4262
    %v6419 = vpack.c.b16 %v4291, %v4263
    %v6420 = vpack.c.b16 %v4292, %v4264
    %v6421 = vpack.c.b16 %v4293, %v4265
    %v6422 = vpack.c.b16 %v4294, %v4266
    %v6423 = vpack.c.b16 %v4295, %v4267
    %v6424 = vpack.c.b16 %v4296, %v4268
    %v6425 = vpack.c.b16 %v4297, %v4269
    %v6426 = vpack.c.b16 %v4298, %v4270
    %v6427 = vpack.c.b16 %v4299, %v4271
    %v6428 = vpack.c.b16 %v4300, %v4272
    %v6429 = vpack.c.b16 %v4301, %v4273
    %v6430 = vpack.c.b16 %v4302, %v4274
    %v6431 = vpack.c.b16 %v4303, %v4275
    %v6432 = vpack.c.b16 %v4304, %v4276
    %v6433 = vpack.c.b16 %v4305, %v4277
    %v6434 = vpack.c.b16 %v4306, %v4278
    %v6435 = vpack.c.b16 %v4307, %v4279
    %v6436 = vpack.c.b16 %v4308, %v4280
    %v6437 = vpack.c.b16 %v4309, %v4281
    %v6438 = vpack.c.b16 %v4310, %v4282
    %v6439 = vpack.c.b16 %v4311, %v4283
    %v6440 = vpack.c.b16 %v4312, %v4284
    %v6441 = vpack.c.b16 %v4313, %v4285
    %v6442 = vpack.c.b16 %v4314, %v4286
    %v6443 = vpack.c.b16 %v4315, %v4287
    %v6444 = vpack.c.b16 %v4316, %v4288
    %v6445 = vpack.c.b16 %v4345, %v4317
    %v6446 = vpack.c.b16 %v4346, %v4318
    %v6447 = vpack.c.b16 %v4347, %v4319
    %v6448 = vpack.c.b16 %v4348, %v4320
    %v6449 = vpack.c.b16 %v4349, %v4321
    %v6450 = vpack.c.b16 %v4350, %v4322
    %v6451 = vpack.c.b16 %v4351, %v4323
    %v6452 = vpack.c.b16 %v4352, %v4324
    %v6453 = vpack.c.b16 %v4353, %v4325
    %v6454 = vpack.c.b16 %v4354, %v4326
    %v6455 = vpack.c.b16 %v4355, %v4327
    %v6456 = vpack.c.b16 %v4356, %v4328
    %v6457 = vpack.c.b16 %v4357, %v4329
    %v6458 = vpack.c.b16 %v4358, %v4330
    %v6459 = vpack.c.b16 %v4359, %v4331
    %v6460 = vpack.c.b16 %v4360, %v4332
    %v6461 = vpack.c.b16 %v4361, %v4333
    %v6462 = vpack.c.b16 %v4362, %v4334
    %v6463 = vpack.c.b16 %v4363, %v4335
    %v6464 = vpack.c.b16 %v4364, %v4336
    %v6465 = vpack.c.b16 %v4365, %v4337
    %v6466 = vpack.c.b16 %v4366, %v4338
    %v6467 = vpack.c.b16 %v4367, %v4339
    %v6468 = vpack.c.b16 %v4368, %v4340
    %v6469 = vpack.c.b16 %v4369, %v4341
    %v6470 = vpack.c.b16 %v4370, %v4342
    %v6471 = vpack.c.b16 %v4371, %v4343
    %v6472 = vpack.c.b16 %v4372, %v4344
    %v6473 = vpack.c.b16 %v4401, %v4373
    %v6474 = vpack.c.b16 %v4402, %v4374
    %v6475 = vpack.c.b16 %v4403, %v4375
    %v6476 = vpack.c.b16 %v4404, %v4376
    %v6477 = vpack.c.b16 %v4405, %v4377
    %v6478 = vpack.c.b16 %v4406, %v4378
    %v6479 = vpack.c.b16 %v4407, %v4379
    %v6480 = vpack.c.b16 %v4408, %v4380
    %v6481 = vpack.c.b16 %v4409, %v4381
    %v6482 = vpack.c.b16 %v4410, %v4382
    %v6483 = vpack.c.b16 %v4411, %v4383
    %v6484 = vpack.c.b16 %v4412, %v4384
    %v6485 = vpack.c.b16 %v4413, %v4385
    %v6486 = vpack.c.b16 %v4414, %v4386
    %v6487 = vpack.c.b16 %v4415, %v4387
    %v6488 = vpack.c.b16 %v4416, %v4388
    %v6489 = vpack.c.b16 %v4417, %v4389
    %v6490 = vpack.c.b16 %v4418, %v4390
    %v6491 = vpack.c.b16 %v4419, %v4391
    %v6492 = vpack.c.b16 %v4420, %v4392
    %v6493 = vpack.c.b16 %v4421, %v4393
    %v6494 = vpack.c.b16 %v4422, %v4394
    %v6495 = vpack.c.b16 %v4423, %v4395
    %v6496 = vpack.c.b16 %v4424, %v4396
    %v6497 = vpack.c.b16 %v4425, %v4397
    %v6498 = vpack.c.b16 %v4426, %v4398
    %v6499 = vpack.c.b16 %v4427, %v4399
    %v6500 = vpack.c.b16 %v4428, %v4400
    %v6501 = vpack.c.b16 %v4457, %v4429
    %v6502 = vpack.c.b16 %v4458, %v4430
    %v6503 = vpack.c.b16 %v4459, %v4431
    %v6504 = vpack.c.b16 %v4460, %v4432
    %v6505 = vpack.c.b16 %v4461, %v4433
    %v6506 = vpack.c.b16 %v4462, %v4434
    %v6507 = vpack.c.b16 %v4463, %v4435
    %v6508 = vpack.c.b16 %v4464, %v4436
    %v6509 = vpack.c.b16 %v4465, %v4437
    %v6510 = vpack.c.b16 %v4466, %v4438
    %v6511 = vpack.c.b16 %v4467, %v4439
    %v6512 = vpack.c.b16 %v4468, %v4440
    %v6513 = vpack.c.b16 %v4469, %v4441
    %v6514 = vpack.c.b16 %v4470, %v4442
    %v6515 = vpack.c.b16 %v4471, %v4443
    %v6516 = vpack.c.b16 %v4472, %v4444
    %v6517 = vpack.c.b16 %v4473, %v4445
    %v6518 = vpack.c.b16 %v4474, %v4446
    %v6519 = vpack.c.b16 %v4475, %v4447
    %v6520 = vpack.c.b16 %v4476, %v4448
    %v6521 = vpack.c.b16 %v4477, %v4449
    %v6522 = vpack.c.b16 %v4478, %v4450
    %v6523 = vpack.c.b16 %v4479, %v4451
    %v6524 = vpack.c.b16 %v4480, %v4452
    %v6525 = vpack.c.b16 %v4481, %v4453
    %v6526 = vpack.c.b16 %v4482, %v4454
    %v6527 = vpack.c.b16 %v4483, %v4455
    %v6528 = vpack.c.b16 %v4484, %v4456
    %v6529 = vpack.c.b16 %v4513, %v4485
    %v6530 = vpack.c.b16 %v4514, %v4486
    %v6531 = vpack.c.b16 %v4515, %v4487
    %v6532 = vpack.c.b16 %v4516, %v4488
    %v6533 = vpack.c.b16 %v4517, %v4489
    %v6534 = vpack.c.b16 %v4518, %v4490
    %v6535 = vpack.c.b16 %v4519, %v4491
    %v6536 = vpack.c.b16 %v4520, %v4492
    %v6537 = vpack.c.b16 %v4521, %v4493
    %v6538 = vpack.c.b16 %v4522, %v4494
    %v6539 = vpack.c.b16 %v4523, %v4495
    %v6540 = vpack.c.b16 %v4524, %v4496
    %v6541 = vpack.c.b16 %v4525, %v4497
    %v6542 = vpack.c.b16 %v4526, %v4498
    %v6543 = vpack.c.b16 %v4527, %v4499
    %v6544 = vpack.c.b16 %v4528, %v4500
    %v6545 = vpack.c.b16 %v4529, %v4501
    %v6546 = vpack.c.b16 %v4530, %v4502
    %v6547 = vpack.c.b16 %v4531, %v4503
    %v6548 = vpack.c.b16 %v4532, %v4504
    %v6549 = vpack.c.b16 %v4533, %v4505
    %v6550 = vpack.c.b16 %v4534, %v4506
    %v6551 = vpack.c.b16 %v4535, %v4507
    %v6552 = vpack.c.b16 %v4536, %v4508
    %v6553 = vpack.c.b16 %v4537, %v4509
    %v6554 = vpack.c.b16 %v4538, %v4510
    %v6555 = vpack.c.b16 %v4539, %v4511
    %v6556 = vpack.c.b16 %v4540, %v4512
    %v6557 = vpack.c.b16 %v4569, %v4541
    %v6558 = vpack.c.b16 %v4570, %v4542
    %v6559 = vpack.c.b16 %v4571, %v4543
    %v6560 = vpack.c.b16 %v4572, %v4544
    %v6561 = vpack.c.b16 %v4573, %v4545
    %v6562 = vpack.c.b16 %v4574, %v4546
    %v6563 = vpack.c.b16 %v4575, %v4547
    %v6564 = vpack.c.b16 %v4576, %v4548
    %v6565 = vpack.c.b16 %v4577, %v4549
    %v6566 = vpack.c.b16 %v4578, %v4550
    %v6567 = vpack.c.b16 %v4579, %v4551
    %v6568 = vpack.c.b16 %v4580, %v4552
    %v6569 = vpack.c.b16 %v4581, %v4553
    %v6570 = vpack.c.b16 %v4582, %v4554
    %v6571 = vpack.c.b16 %v4583, %v4555
    %v6572 = vpack.c.b16 %v4584, %v4556
    %v6573 = vpack.c.b16 %v4585, %v4557
    %v6574 = vpack.c.b16 %v4586, %v4558
    %v6575 = vpack.c.b16 %v4587, %v4559
    %v6576 = vpack.c.b16 %v4588, %v4560
    %v6577 = vpack.c.b16 %v4589, %v4561
    %v6578 = vpack.c.b16 %v4590, %v4562
    %v6579 = vpack.c.b16 %v4591, %v4563
    %v6580 = vpack.c.b16 %v4592, %v4564
    %v6581 = vpack.c.b16 %v4593, %v4565
    %v6582 = vpack.c.b16 %v4594, %v4566
    %v6583 = vpack.c.b16 %v4595, %v4567
    %v6584 = vpack.c.b16 %v4596, %v4568
    %v6585 = vpack.c.b16 %v4625, %v4597
    %v6586 = vpack.c.b16 %v4626, %v4598
    %v6587 = vpack.c.b16 %v4627, %v4599
    %v6588 = vpack.c.b16 %v4628, %v4600
    %v6589 = vpack.c.b16 %v4629, %v4601
    %v6590 = vpack.c.b16 %v4630, %v4602
    %v6591 = vpack.c.b16 %v4631, %v4603
    %v6592 = vpack.c.b16 %v4632, %v4604
    %v6593 = vpack.c.b16 %v4633, %v4605
    %v6594 = vpack.c.b16 %v4634, %v4606
    %v6595 = vpack.c.b16 %v4635, %v4607
    %v6596 = vpack.c.b16 %v4636, %v4608
    %v6597 = vpack.c.b16 %v4637, %v4609
    %v6598 = vpack.c.b16 %v4638, %v4610
    %v6599 = vpack.c.b16 %v4639, %v4611
    %v6600 = vpack.c.b16 %v4640, %v4612
    %v6601 = vpack.c.b16 %v4641, %v4613
    %v6602 = vpack.c.b16 %v4642, %v4614
    %v6603 = vpack.c.b16 %v4643, %v4615
    %v6604 = vpack.c.b16 %v4644, %v4616
    %v6605 = vpack.c.b16 %v4645, %v4617
    %v6606 = vpack.c.b16 %v4646, %v4618
    %v6607 = vpack.c.b16 %v4647, %v4619
    %v6608 = vpack.c.b16 %v4648, %v4620
    %v6609 = vpack.c.b16 %v4649, %v4621
    %v6610 = vpack.c.b16 %v4650, %v4622
    %v6611 = vpack.c.b16 %v4651, %v4623
    %v6612 = vpack.c.b16 %v4652, %v4624
    %v6613 = vpack.c.b16 %v4681, %v4653
    %v6614 = vpack.c.b16 %v4682, %v4654
    %v6615 = vpack.c.b16 %v4683, %v4655
    %v6616 = vpack.c.b16 %v4684, %v4656
    %v6617 = vpack.c.b16 %v4685, %v4657
    %v6618 = vpack.c.b16 %v4686, %v4658
    %v6619 = vpack.c.b16 %v4687, %v4659
    %v6620 = vpack.c.b16 %v4688, %v4660
    %v6621 = vpack.c.b16 %v4689, %v4661
    %v6622 = vpack.c.b16 %v4690, %v4662
    %v6623 = vpack.c.b16 %v4691, %v4663
    %v6624 = vpack.c.b16 %v4692, %v4664
    %v6625 = vpack.c.b16 %v4693, %v4665
    %v6626 = vpack.c.b16 %v4694, %v4666
    %v6627 = vpack.c.b16 %v4695, %v4667
    %v6628 = vpack.c.b16 %v4696, %v4668
    %v6629 = vpack.c.b16 %v4697, %v4669
    %v6630 = vpack.c.b16 %v4698, %v4670
    %v6631 = vpack.c.b16 %v4699, %v4671
    %v6632 = vpack.c.b16 %v4700, %v4672
    %v6633 = vpack.c.b16 %v4701, %v4673
    %v6634 = vpack.c.b16 %v4702, %v4674
    %v6635 = vpack.c.b16 %v4703, %v4675
    %v6636 = vpack.c.b16 %v4704, %v4676
    %v6637 = vpack.c.b16 %v4705, %v4677
    %v6638 = vpack.c.b16 %v4706, %v4678
    %v6639 = vpack.c.b16 %v4707, %v4679
    %v6640 = vpack.c.b16 %v4708, %v4680
    %v6641 = vpack.c.b16 %v4737, %v4709
    %v6642 = vpack.c.b16 %v4738, %v4710
    %v6643 = vpack.c.b16 %v4739, %v4711
    %v6644 = vpack.c.b16 %v4740, %v4712
    %v6645 = vpack.c.b16 %v4741, %v4713
    %v6646 = vpack.c.b16 %v4742, %v4714
    %v6647 = vpack.c.b16 %v4743, %v4715
    %v6648 = vpack.c.b16 %v4744, %v4716
    %v6649 = vpack.c.b16 %v4745, %v4717
    %v6650 = vpack.c.b16 %v4746, %v4718
    %v6651 = vpack.c.b16 %v4747, %v4719
    %v6652 = vpack.c.b16 %v4748, %v4720
    %v6653 = vpack.c.b16 %v4749, %v4721
    %v6654 = vpack.c.b16 %v4750, %v4722
    %v6655 = vpack.c.b16 %v4751, %v4723
    %v6656 = vpack.c.b16 %v4752, %v4724
    %v6657 = vpack.c.b16 %v4753, %v4725
    %v6658 = vpack.c.b16 %v4754, %v4726
    %v6659 = vpack.c.b16 %v4755, %v4727
    %v6660 = vpack.c.b16 %v4756, %v4728
    %v6661 = vpack.c.b16 %v4757, %v4729
    %v6662 = vpack.c.b16 %v4758, %v4730
    %v6663 = vpack.c.b16 %v4759, %v4731
    %v6664 = vpack.c.b16 %v4760, %v4732
    %v6665 = vpack.c.b16 %v4761, %v4733
    %v6666 = vpack.c.b16 %v4762, %v4734
    %v6667 = vpack.c.b16 %v4763, %v4735
    %v6668 = vpack.c.b16 %v4764, %v4736
    %v6669 = vpack.c.b16 %v4793, %v4765
    %v6670 = vpack.c.b16 %v4794, %v4766
    %v6671 = vpack.c.b16 %v4795, %v4767
    %v6672 = vpack.c.b16 %v4796, %v4768
    %v6673 = vpack.c.b16 %v4797, %v4769
    %v6674 = vpack.c.b16 %v4798, %v4770
    %v6675 = vpack.c.b16 %v4799, %v4771
    %v6676 = vpack.c.b16 %v4800, %v4772
    %v6677 = vpack.c.b16 %v4801, %v4773
    %v6678 = vpack.c.b16 %v4802, %v4774
    %v6679 = vpack.c.b16 %v4803, %v4775
    %v6680 = vpack.c.b16 %v4804, %v4776
    %v6681 = vpack.c.b16 %v4805, %v4777
    %v6682 = vpack.c.b16 %v4806, %v4778
    %v6683 = vpack.c.b16 %v4807, %v4779
    %v6684 = vpack.c.b16 %v4808, %v4780
    %v6685 = vpack.c.b16 %v4809, %v4781
    %v6686 = vpack.c.b16 %v4810, %v4782
    %v6687 = vpack.c.b16 %v4811, %v4783
    %v6688 = vpack.c.b16 %v4812, %v4784
    %v6689 = vpack.c.b16 %v4813, %v4785
    %v6690 = vpack.c.b16 %v4814, %v4786
    %v6691 = vpack.c.b16 %v4815, %v4787
    %v6692 = vpack.c.b16 %v4816, %v4788
    %v6693 = vpack.c.b16 %v4817, %v4789
    %v6694 = vpack.c.b16 %v4818, %v4790
    %v6695 = vpack.c.b16 %v4819, %v4791
    %v6696 = vpack.c.b16 %v4820, %v4792
    %v6697 = vpack.c.b16 %v4849, %v4821
    %v6698 = vpack.c.b16 %v4850, %v4822
    %v6699 = vpack.c.b16 %v4851, %v4823
    %v6700 = vpack.c.b16 %v4852, %v4824
    %v6701 = vpack.c.b16 %v4853, %v4825
    %v6702 = vpack.c.b16 %v4854, %v4826
    %v6703 = vpack.c.b16 %v4855, %v4827
    %v6704 = vpack.c.b16 %v4856, %v4828
    %v6705 = vpack.c.b16 %v4857, %v4829
    %v6706 = vpack.c.b16 %v4858, %v4830
    %v6707 = vpack.c.b16 %v4859, %v4831
    %v6708 = vpack.c.b16 %v4860, %v4832
    %v6709 = vpack.c.b16 %v4861, %v4833
    %v6710 = vpack.c.b16 %v4862, %v4834
    %v6711 = vpack.c.b16 %v4863, %v4835
    %v6712 = vpack.c.b16 %v4864, %v4836
    %v6713 = vpack.c.b16 %v4865, %v4837
    %v6714 = vpack.c.b16 %v4866, %v4838
    %v6715 = vpack.c.b16 %v4867, %v4839
    %v6716 = vpack.c.b16 %v4868, %v4840
    %v6717 = vpack.c.b16 %v4869, %v4841
    %v6718 = vpack.c.b16 %v4870, %v4842
    %v6719 = vpack.c.b16 %v4871, %v4843
    %v6720 = vpack.c.b16 %v4872, %v4844
    %v6721 = vpack.c.b16 %v4873, %v4845
    %v6722 = vpack.c.b16 %v4874, %v4846
    %v6723 = vpack.c.b16 %v4875, %v4847
    %v6724 = vpack.c.b16 %v4876, %v4848
    %v6725 = vpack.c.b16 %v4905, %v4877
    %v6726 = vpack.c.b16 %v4906, %v4878
    %v6727 = vpack.c.b16 %v4907, %v4879
    %v6728 = vpack.c.b16 %v4908, %v4880
    %v6729 = vpack.c.b16 %v4909, %v4881
    %v6730 = vpack.c.b16 %v4910, %v4882
    %v6731 = vpack.c.b16 %v4911, %v4883
    %v6732 = vpack.c.b16 %v4912, %v4884
    %v6733 = vpack.c.b16 %v4913, %v4885
    %v6734 = vpack.c.b16 %v4914, %v4886
    %v6735 = vpack.c.b16 %v4915, %v4887
    %v6736 = vpack.c.b16 %v4916, %v4888
    %v6737 = vpack.c.b16 %v4917, %v4889
    %v6738 = vpack.c.b16 %v4918, %v4890
    %v6739 = vpack.c.b16 %v4919, %v4891
    %v6740 = vpack.c.b16 %v4920, %v4892
    %v6741 = vpack.c.b16 %v4921, %v4893
    %v6742 = vpack.c.b16 %v4922, %v4894
    %v6743 = vpack.c.b16 %v4923, %v4895
    %v6744 = vpack.c.b16 %v4924, %v4896
    %v6745 = vpack.c.b16 %v4925, %v4897
    %v6746 = vpack.c.b16 %v4926, %v4898
    %v6747 = vpack.c.b16 %v4927, %v4899
    %v6748 = vpack.c.b16 %v4928, %v4900
    %v6749 = vpack.c.b16 %v4929, %v4901
    %v6750 = vpack.c.b16 %v4930, %v4902
    %v6751 = vpack.c.b16 %v4931, %v4903
    %v6752 = vpack.c.b16 %v4932, %v4904
    %v6753 = vpack.c.b16 %v4961, %v4933
    %v6754 = vpack.c.b16 %v4962, %v4934
    %v6755 = vpack.c.b16 %v4963, %v4935
    %v6756 = vpack.c.b16 %v4964, %v4936
    %v6757 = vpack.c.b16 %v4965, %v4937
    %v6758 = vpack.c.b16 %v4966, %v4938
    %v6759 = vpack.c.b16 %v4967, %v4939
    %v6760 = vpack.c.b16 %v4968, %v4940
    %v6761 = vpack.c.b16 %v4969, %v4941
    %v6762 = vpack.c.b16 %v4970, %v4942
    %v6763 = vpack.c.b16 %v4971, %v4943
    %v6764 = vpack.c.b16 %v4972, %v4944
    %v6765 = vpack.c.b16 %v4973, %v4945
    %v6766 = vpack.c.b16 %v4974, %v4946
    %v6767 = vpack.c.b16 %v4975, %v4947
    %v6768 = vpack.c.b16 %v4976, %v4948
    %v6769 = vpack.c.b16 %v4977, %v4949
    %v6770 = vpack.c.b16 %v4978, %v4950
    %v6771 = vpack.c.b16 %v4979, %v4951
    %v6772 = vpack.c.b16 %v4980, %v4952
    %v6773 = vpack.c.b16 %v4981, %v4953
    %v6774 = vpack.c.b16 %v4982, %v4954
    %v6775 = vpack.c.b16 %v4983, %v4955
    %v6776 = vpack.c.b16 %v4984, %v4956
    %v6777 = vpack.c.b16 %v4985, %v4957
    %v6778 = vpack.c.b16 %v4986, %v4958
    %v6779 = vpack.c.b16 %v4987, %v4959
    %v6780 = vpack.c.b16 %v4988, %v4960
    %v6781 = vpack.c.b16 %v5017, %v4989
    %v6782 = vpack.c.b16 %v5018, %v4990
    %v6783 = vpack.c.b16 %v5019, %v4991
    %v6784 = vpack.c.b16 %v5020, %v4992
    %v6785 = vpack.c.b16 %v5021, %v4993
    %v6786 = vpack.c.b16 %v5022, %v4994
    %v6787 = vpack.c.b16 %v5023, %v4995
    %v6788 = vpack.c.b16 %v5024, %v4996
    %v6789 = vpack.c.b16 %v5025, %v4997
    %v6790 = vpack.c.b16 %v5026, %v4998
    %v6791 = vpack.c.b16 %v5027, %v4999
    %v6792 = vpack.c.b16 %v5028, %v5000
    %v6793 = vpack.c.b16 %v5029, %v5001
    %v6794 = vpack.c.b16 %v5030, %v5002
    %v6795 = vpack.c.b16 %v5031, %v5003
    %v6796 = vpack.c.b16 %v5032, %v5004
    %v6797 = vpack.c.b16 %v5033, %v5005
    %v6798 = vpack.c.b16 %v5034, %v5006
    %v6799 = vpack.c.b16 %v5035, %v5007
    %v6800 = vpack.c.b16 %v5036, %v5008
    %v6801 = vpack.c.b16 %v5037, %v5009
    %v6802 = vpack.c.b16 %v5038, %v5010
    %v6803 = vpack.c.b16 %v5039, %v5011
    %v6804 = vpack.c.b16 %v5040, %v5012
    %v6805 = vpack.c.b16 %v5041, %v5013
    %v6806 = vpack.c.b16 %v5042, %v5014
    %v6807 = vpack.c.b16 %v5043, %v5015
    %v6808 = vpack.c.b16 %v5044, %v5016
    %v6809 = vpack.c.b16 %v5073, %v5045
    %v6810 = vpack.c.b16 %v5074, %v5046
    %v6811 = vpack.c.b16 %v5075, %v5047
    %v6812 = vpack.c.b16 %v5076, %v5048
    %v6813 = vpack.c.b16 %v5077, %v5049
    %v6814 = vpack.c.b16 %v5078, %v5050
    %v6815 = vpack.c.b16 %v5079, %v5051
    %v6816 = vpack.c.b16 %v5080, %v5052
    %v6817 = vpack.c.b16 %v5081, %v5053
    %v6818 = vpack.c.b16 %v5082, %v5054
    %v6819 = vpack.c.b16 %v5083, %v5055
    %v6820 = vpack.c.b16 %v5084, %v5056
    %v6821 = vpack.c.b16 %v5085, %v5057
    %v6822 = vpack.c.b16 %v5086, %v5058
    %v6823 = vpack.c.b16 %v5087, %v5059
    %v6824 = vpack.c.b16 %v5088, %v5060
    %v6825 = vpack.c.b16 %v5089, %v5061
    %v6826 = vpack.c.b16 %v5090, %v5062
    %v6827 = vpack.c.b16 %v5091, %v5063
    %v6828 = vpack.c.b16 %v5092, %v5064
    %v6829 = vpack.c.b16 %v5093, %v5065
    %v6830 = vpack.c.b16 %v5094, %v5066
    %v6831 = vpack.c.b16 %v5095, %v5067
    %v6832 = vpack.c.b16 %v5096, %v5068
    %v6833 = vpack.c.b16 %v5097, %v5069
    %v6834 = vpack.c.b16 %v5098, %v5070
    %v6835 = vpack.c.b16 %v5099, %v5071
    %v6836 = vpack.c.b16 %v5100, %v5072
    %v6837 = vpack.c.b16 %v5129, %v5101
    %v6838 = vpack.c.b16 %v5130, %v5102
    %v6839 = vpack.c.b16 %v5131, %v5103
    %v6840 = vpack.c.b16 %v5132, %v5104
    %v6841 = vpack.c.b16 %v5133, %v5105
    %v6842 = vpack.c.b16 %v5134, %v5106
    %v6843 = vpack.c.b16 %v5135, %v5107
    %v6844 = vpack.c.b16 %v5136, %v5108
    %v6845 = vpack.c.b16 %v5137, %v5109
    %v6846 = vpack.c.b16 %v5138, %v5110
    %v6847 = vpack.c.b16 %v5139, %v5111
    %v6848 = vpack.c.b16 %v5140, %v5112
    %v6849 = vpack.c.b16 %v5141, %v5113
    %v6850 = vpack.c.b16 %v5142, %v5114
    %v6851 = vpack.c.b16 %v5143, %v5115
    %v6852 = vpack.c.b16 %v5144, %v5116
    %v6853 = vpack.c.b16 %v5145, %v5117
    %v6854 = vpack.c.b16 %v5146, %v5118
    %v6855 = vpack.c.b16 %v5147, %v5119
    %v6856 = vpack.c.b16 %v5148, %v5120
    %v6857 = vpack.c.b16 %v5149, %v5121
    %v6858 = vpack.c.b16 %v5150, %v5122
    %v6859 = vpack.c.b16 %v5151, %v5123
    %v6860 = vpack.c.b16 %v5152, %v5124
    %v6861 = vpack.c.b16 %v5153, %v5125
    %v6862 = vpack.c.b16 %v5154, %v5126
    %v6863 = vpack.c.b16 %v5155, %v5127
    %v6864 = vpack.c.b16 %v5156, %v5128
    %v6865 = vpack.c.b16 %v5185, %v5157
    %v6866 = vpack.c.b16 %v5186, %v5158
    %v6867 = vpack.c.b16 %v5187, %v5159
    %v6868 = vpack.c.b16 %v5188, %v5160
    %v6869 = vpack.c.b16 %v5189, %v5161
    %v6870 = vpack.c.b16 %v5190, %v5162
    %v6871 = vpack.c.b16 %v5191, %v5163
    %v6872 = vpack.c.b16 %v5192, %v5164
    %v6873 = vpack.c.b16 %v5193, %v5165
    %v6874 = vpack.c.b16 %v5194, %v5166
    %v6875 = vpack.c.b16 %v5195, %v5167
    %v6876 = vpack.c.b16 %v5196, %v5168
    %v6877 = vpack.c.b16 %v5197, %v5169
    %v6878 = vpack.c.b16 %v5198, %v5170
    %v6879 = vpack.c.b16 %v5199, %v5171
    %v6880 = vpack.c.b16 %v5200, %v5172
    %v6881 = vpack.c.b16 %v5201, %v5173
    %v6882 = vpack.c.b16 %v5202, %v5174
    %v6883 = vpack.c.b16 %v5203, %v5175
    %v6884 = vpack.c.b16 %v5204, %v5176
    %v6885 = vpack.c.b16 %v5205, %v5177
    %v6886 = vpack.c.b16 %v5206, %v5178
    %v6887 = vpack.c.b16 %v5207, %v5179
    %v6888 = vpack.c.b16 %v5208, %v5180
    %v6889 = vpack.c.b16 %v5209, %v5181
    %v6890 = vpack.c.b16 %v5210, %v5182
    %v6891 = vpack.c.b16 %v5211, %v5183
    %v6892 = vpack.c.b16 %v5212, %v5184
    %v6893 = vpack.c.b16 %v5241, %v5213
    %v6894 = vpack.c.b16 %v5242, %v5214
    %v6895 = vpack.c.b16 %v5243, %v5215
    %v6896 = vpack.c.b16 %v5244, %v5216
    %v6897 = vpack.c.b16 %v5245, %v5217
    %v6898 = vpack.c.b16 %v5246, %v5218
    %v6899 = vpack.c.b16 %v5247, %v5219
    %v6900 = vpack.c.b16 %v5248, %v5220
    %v6901 = vpack.c.b16 %v5249, %v5221
    %v6902 = vpack.c.b16 %v5250, %v5222
    %v6903 = vpack.c.b16 %v5251, %v5223
    %v6904 = vpack.c.b16 %v5252, %v5224
    %v6905 = vpack.c.b16 %v5253, %v5225
    %v6906 = vpack.c.b16 %v5254, %v5226
    %v6907 = vpack.c.b16 %v5255, %v5227
    %v6908 = vpack.c.b16 %v5256, %v5228
    %v6909 = vpack.c.b16 %v5257, %v5229
    %v6910 = vpack.c.b16 %v5258, %v5230
    %v6911 = vpack.c.b16 %v5259, %v5231
    %v6912 = vpack.c.b16 %v5260, %v5232
    %v6913 = vpack.c.b16 %v5261, %v5233
    %v6914 = vpack.c.b16 %v5262, %v5234
    %v6915 = vpack.c.b16 %v5263, %v5235
    %v6916 = vpack.c.b16 %v5264, %v5236
    %v6917 = vpack.c.b16 %v5265, %v5237
    %v6918 = vpack.c.b16 %v5266, %v5238
    %v6919 = vpack.c.b16 %v5267, %v5239
    %v6920 = vpack.c.b16 %v5268, %v5240
    %v6921 = vpack.c.b16 %v5297, %v5269
    %v6922 = vpack.c.b16 %v5298, %v5270
    %v6923 = vpack.c.b16 %v5299, %v5271
    %v6924 = vpack.c.b16 %v5300, %v5272
    %v6925 = vpack.c.b16 %v5301, %v5273
    %v6926 = vpack.c.b16 %v5302, %v5274
    %v6927 = vpack.c.b16 %v5303, %v5275
    %v6928 = vpack.c.b16 %v5304, %v5276
    %v6929 = vpack.c.b16 %v5305, %v5277
    %v6930 = vpack.c.b16 %v5306, %v5278
    %v6931 = vpack.c.b16 %v5307, %v5279
    %v6932 = vpack.c.b16 %v5308, %v5280
    %v6933 = vpack.c.b16 %v5309, %v5281
    %v6934 = vpack.c.b16 %v5310, %v5282
    %v6935 = vpack.c.b16 %v5311, %v5283
    %v6936 = vpack.c.b16 %v5312, %v5284
    %v6937 = vpack.c.b16 %v5313, %v5285
    %v6938 = vpack.c.b16 %v5314, %v5286
    %v6939 = vpack.c.b16 %v5315, %v5287
    %v6940 = vpack.c.b16 %v5316, %v5288
    %v6941 = vpack.c.b16 %v5317, %v5289
    %v6942 = vpack.c.b16 %v5318, %v5290
    %v6943 = vpack.c.b16 %v5319, %v5291
    %v6944 = vpack.c.b16 %v5320, %v5292
    %v6945 = vpack.c.b16 %v5321, %v5293
    %v6946 = vpack.c.b16 %v5322, %v5294
    %v6947 = vpack.c.b16 %v5323, %v5295
    %v6948 = vpack.c.b16 %v5324, %v5296
    %v6949 = vpack.c.b16 %v5353, %v5325
    %v6950 = vpack.c.b16 %v5354, %v5326
    %v6951 = vpack.c.b16 %v5355, %v5327
    %v6952 = vpack.c.b16 %v5356, %v5328
    %v6953 = vpack.c.b16 %v5357, %v5329
    %v6954 = vpack.c.b16 %v5358, %v5330
    %v6955 = vpack.c.b16 %v5359, %v5331
    %v6956 = vpack.c.b16 %v5360, %v5332
    %v6957 = vpack.c.b16 %v5361, %v5333
    %v6958 = vpack.c.b16 %v5362, %v5334
    %v6959 = vpack.c.b16 %v5363, %v5335
    %v6960 = vpack.c.b16 %v5364, %v5336
    %v6961 = vpack.c.b16 %v5365, %v5337
    %v6962 = vpack.c.b16 %v5366, %v5338
    %v6963 = vpack.c.b16 %v5367, %v5339
    %v6964 = vpack.c.b16 %v5368, %v5340
    %v6965 = vpack.c.b16 %v5369, %v5341
    %v6966 = vpack.c.b16 %v5370, %v5342
    %v6967 = vpack.c.b16 %v5371, %v5343
    %v6968 = vpack.c.b16 %v5372, %v5344
    %v6969 = vpack.c.b16 %v5373, %v5345
    %v6970 = vpack.c.b16 %v5374, %v5346
    %v6971 = vpack.c.b16 %v5375, %v5347
    %v6972 = vpack.c.b16 %v5376, %v5348
    %v6973 = vpack.c.b16 %v5377, %v5349
    %v6974 = vpack.c.b16 %v5378, %v5350
    %v6975 = vpack.c.b16 %v5379, %v5351
    %v6976 = vpack.c.b16 %v5380, %v5352
    %v6977 = vpack.c.b16 %v5409, %v5381
    %v6978 = vpack.c.b16 %v5410, %v5382
    %v6979 = vpack.c.b16 %v5411, %v5383
    %v6980 = vpack.c.b16 %v5412, %v5384
    %v6981 = vpack.c.b16 %v5413, %v5385
    %v6982 = vpack.c.b16 %v5414, %v5386
    %v6983 = vpack.c.b16 %v5415, %v5387
    %v6984 = vpack.c.b16 %v5416, %v5388
    %v6985 = vpack.c.b16 %v5417, %v5389
    %v6986 = vpack.c.b16 %v5418, %v5390
    %v6987 = vpack.c.b16 %v5419, %v5391
    %v6988 = vpack.c.b16 %v5420, %v5392
    %v6989 = vpack.c.b16 %v5421, %v5393
    %v6990 = vpack.c.b16 %v5422, %v5394
    %v6991 = vpack.c.b16 %v5423, %v5395
    %v6992 = vpack.c.b16 %v5424, %v5396
    %v6993 = vpack.c.b16 %v5425, %v5397
    %v6994 = vpack.c.b16 %v5426, %v5398
    %v6995 = vpack.c.b16 %v5427, %v5399
    %v6996 = vpack.c.b16 %v5428, %v5400
    %v6997 = vpack.c.b16 %v5429, %v5401
    %v6998 = vpack.c.b16 %v5430, %v5402
    %v6999 = vpack.c.b16 %v5431, %v5403
    %v7000 = vpack.c.b16 %v5432, %v5404
    %v7001 = vpack.c.b16 %v5433, %v5405
    %v7002 = vpack.c.b16 %v5434, %v5406
    %v7003 = vpack.c.b16 %v5435, %v5407
    %v7004 = vpack.c.b16 %v5436, %v5408
    %v7005 = vpack.c.b16 %v5465, %v5437
    %v7006 = vpack.c.b16 %v5466, %v5438
    %v7007 = vpack.c.b16 %v5467, %v5439
    %v7008 = vpack.c.b16 %v5468, %v5440
    %v7009 = vpack.c.b16 %v5469, %v5441
    %v7010 = vpack.c.b16 %v5470, %v5442
    %v7011 = vpack.c.b16 %v5471, %v5443
    %v7012 = vpack.c.b16 %v5472, %v5444
    %v7013 = vpack.c.b16 %v5473, %v5445
    %v7014 = vpack.c.b16 %v5474, %v5446
    %v7015 = vpack.c.b16 %v5475, %v5447
    %v7016 = vpack.c.b16 %v5476, %v5448
    %v7017 = vpack.c.b16 %v5477, %v5449
    %v7018 = vpack.c.b16 %v5478, %v5450
    %v7019 = vpack.c.b16 %v5479, %v5451
    %v7020 = vpack.c.b16 %v5480, %v5452
    %v7021 = vpack.c.b16 %v5481, %v5453
    %v7022 = vpack.c.b16 %v5482, %v5454
    %v7023 = vpack.c.b16 %v5483, %v5455
    %v7024 = vpack.c.b16 %v5484, %v5456
    %v7025 = vpack.c.b16 %v5485, %v5457
    %v7026 = vpack.c.b16 %v5486, %v5458
    %v7027 = vpack.c.b16 %v5487, %v5459
    %v7028 = vpack.c.b16 %v5488, %v5460
    %v7029 = vpack.c.b16 %v5489, %v5461
    %v7030 = vpack.c.b16 %v5490, %v5462
    %v7031 = vpack.c.b16 %v5491, %v5463
    %v7032 = vpack.c.b16 %v5492, %v5464
    %v7033 = vpack.c.b16 %v5521, %v5493
    %v7034 = vpack.c.b16 %v5522, %v5494
    %v7035 = vpack.c.b16 %v5523, %v5495
    %v7036 = vpack.c.b16 %v5524, %v5496
    %v7037 = vpack.c.b16 %v5525, %v5497
    %v7038 = vpack.c.b16 %v5526, %v5498
    %v7039 = vpack.c.b16 %v5527, %v5499
    %v7040 = vpack.c.b16 %v5528, %v5500
    %v7041 = vpack.c.b16 %v5529, %v5501
    %v7042 = vpack.c.b16 %v5530, %v5502
    %v7043 = vpack.c.b16 %v5531, %v5503
    %v7044 = vpack.c.b16 %v5532, %v5504
    %v7045 = vpack.c.b16 %v5533, %v5505
    %v7046 = vpack.c.b16 %v5534, %v5506
    %v7047 = vpack.c.b16 %v5535, %v5507
    %v7048 = vpack.c.b16 %v5536, %v5508
    %v7049 = vpack.c.b16 %v5537, %v5509
    %v7050 = vpack.c.b16 %v5538, %v5510
    %v7051 = vpack.c.b16 %v5539, %v5511
    %v7052 = vpack.c.b16 %v5540, %v5512
    %v7053 = vpack.c.b16 %v5541, %v5513
    %v7054 = vpack.c.b16 %v5542, %v5514
    %v7055 = vpack.c.b16 %v5543, %v5515
    %v7056 = vpack.c.b16 %v5544, %v5516
    %v7057 = vpack.c.b16 %v5545, %v5517
    %v7058 = vpack.c.b16 %v5546, %v5518
    %v7059 = vpack.c.b16 %v5547, %v5519
    %v7060 = vpack.c.b16 %v5548, %v5520
    %v7061 = vpack.c.b16 %v5577, %v5549
    %v7062 = vpack.c.b16 %v5578, %v5550
    %v7063 = vpack.c.b16 %v5579, %v5551
    %v7064 = vpack.c.b16 %v5580, %v5552
    %v7065 = vpack.c.b16 %v5581, %v5553
    %v7066 = vpack.c.b16 %v5582, %v5554
    %v7067 = vpack.c.b16 %v5583, %v5555
    %v7068 = vpack.c.b16 %v5584, %v5556
    %v7069 = vpack.c.b16 %v5585, %v5557
    %v7070 = vpack.c.b16 %v5586, %v5558
    %v7071 = vpack.c.b16 %v5587, %v5559
    %v7072 = vpack.c.b16 %v5588, %v5560
    %v7073 = vpack.c.b16 %v5589, %v5561
    %v7074 = vpack.c.b16 %v5590, %v5562
    %v7075 = vpack.c.b16 %v5591, %v5563
    %v7076 = vpack.c.b16 %v5592, %v5564
    %v7077 = vpack.c.b16 %v5593, %v5565
    %v7078 = vpack.c.b16 %v5594, %v5566
    %v7079 = vpack.c.b16 %v5595, %v5567
    %v7080 = vpack.c.b16 %v5596, %v5568
    %v7081 = vpack.c.b16 %v5597, %v5569
    %v7082 = vpack.c.b16 %v5598, %v5570
    %v7083 = vpack.c.b16 %v5599, %v5571
    %v7084 = vpack.c.b16 %v5600, %v5572
    %v7085 = vpack.c.b16 %v5601, %v5573
    %v7086 = vpack.c.b16 %v5602, %v5574
    %v7087 = vpack.c.b16 %v5603, %v5575
    %v7088 = vpack.c.b16 %v5604, %v5576
    %v7089 = vpack.c.b16 %v5633, %v5605
    %v7090 = vpack.c.b16 %v5634, %v5606
    %v7091 = vpack.c.b16 %v5635, %v5607
    %v7092 = vpack.c.b16 %v5636, %v5608
    %v7093 = vpack.c.b16 %v5637, %v5609
    %v7094 = vpack.c.b16 %v5638, %v5610
    %v7095 = vpack.c.b16 %v5639, %v5611
    %v7096 = vpack.c.b16 %v5640, %v5612
    %v7097 = vpack.c.b16 %v5641, %v5613
    %v7098 = vpack.c.b16 %v5642, %v5614
    %v7099 = vpack.c.b16 %v5643, %v5615
    %v7100 = vpack.c.b16 %v5644, %v5616
    %v7101 = vpack.c.b16 %v5645, %v5617
    %v7102 = vpack.c.b16 %v5646, %v5618
    %v7103 = vpack.c.b16 %v5647, %v5619
    %v7104 = vpack.c.b16 %v5648, %v5620
    %v7105 = vpack.c.b16 %v5649, %v5621
    %v7106 = vpack.c.b16 %v5650, %v5622
    %v7107 = vpack.c.b16 %v5651, %v5623
    %v7108 = vpack.c.b16 %v5652, %v5624
    %v7109 = vpack.c.b16 %v5653, %v5625
    %v7110 = vpack.c.b16 %v5654, %v5626
    %v7111 = vpack.c.b16 %v5655, %v5627
    %v7112 = vpack.c.b16 %v5656, %v5628
    %v7113 = vpack.c.b16 %v5657, %v5629
    %v7114 = vpack.c.b16 %v5658, %v5630
    %v7115 = vpack.c.b16 %v5659, %v5631
    %v7116 = vpack.c.b16 %v5660, %v5632
    %v7117 = vpack.c.b16 %v5689, %v5661
    %v7118 = vpack.c.b16 %v5690, %v5662
    %v7119 = vpack.c.b16 %v5691, %v5663
    %v7120 = vpack.c.b16 %v5692, %v5664
    %v7121 = vpack.c.b16 %v5693, %v5665
    %v7122 = vpack.c.b16 %v5694, %v5666
    %v7123 = vpack.c.b16 %v5695, %v5667
    %v7124 = vpack.c.b16 %v5696, %v5668
    %v7125 = vpack.c.b16 %v5697, %v5669
    %v7126 = vpack.c.b16 %v5698, %v5670
    %v7127 = vpack.c.b16 %v5699, %v5671
    %v7128 = vpack.c.b16 %v5700, %v5672
    %v7129 = vpack.c.b16 %v5701, %v5673
    %v7130 = vpack.c.b16 %v5702, %v5674
    %v7131 = vpack.c.b16 %v5703, %v5675
    %v7132 = vpack.c.b16 %v5704, %v5676
    %v7133 = vpack.c.b16 %v5705, %v5677
    %v7134 = vpack.c.b16 %v5706, %v5678
    %v7135 = vpack.c.b16 %v5707, %v5679
    %v7136 = vpack.c.b16 %v5708, %v5680
    %v7137 = vpack.c.b16 %v5709, %v5681
    %v7138 = vpack.c.b16 %v5710, %v5682
    %v7139 = vpack.c.b16 %v5711, %v5683
    %v7140 = vpack.c.b16 %v5712, %v5684
    %v7141 = vpack.c.b16 %v5713, %v5685
    %v7142 = vpack.c.b16 %v5714, %v5686
    %v7143 = vpack.c.b16 %v5715, %v5687
    %v7144 = vpack.c.b16 %v5716, %v5688
    %v7145 = vpack.c.b16 %v5745, %v5717
    %v7146 = vpack.c.b16 %v5746, %v5718
    %v7147 = vpack.c.b16 %v5747, %v5719
    %v7148 = vpack.c.b16 %v5748, %v5720
    %v7149 = vpack.c.b16 %v5749, %v5721
    %v7150 = vpack.c.b16 %v5750, %v5722
    %v7151 = vpack.c.b16 %v5751, %v5723
    %v7152 = vpack.c.b16 %v5752, %v5724
    %v7153 = vpack.c.b16 %v5753, %v5725
    %v7154 = vpack.c.b16 %v5754, %v5726
    %v7155 = vpack.c.b16 %v5755, %v5727
    %v7156 = vpack.c.b16 %v5756, %v5728
    %v7157 = vpack.c.b16 %v5757, %v5729
    %v7158 = vpack.c.b16 %v5758, %v5730
    %v7159 = vpack.c.b16 %v5759, %v5731
    %v7160 = vpack.c.b16 %v5760, %v5732
    %v7161 = vpack.c.b16 %v5761, %v5733
    %v7162 = vpack.c.b16 %v5762, %v5734
    %v7163 = vpack.c.b16 %v5763, %v5735
    %v7164 = vpack.c.b16 %v5764, %v5736
    %v7165 = vpack.c.b16 %v5765, %v5737
    %v7166 = vpack.c.b16 %v5766, %v5738
    %v7167 = vpack.c.b16 %v5767, %v5739
    %v7168 = vpack.c.b16 %v5768, %v5740
    %v7169 = vpack.c.b16 %v5769, %v5741
    %v7170 = vpack.c.b16 %v5770, %v5742
    %v7171 = vpack.c.b16 %v5771, %v5743
    %v7172 = vpack.c.b16 %v5772, %v5744
    %v7173 = vpack.c.b16 %v5801, %v5773
    %v7174 = vpack.c.b16 %v5802, %v5774
    %v7175 = vpack.c.b16 %v5803, %v5775
    %v7176 = vpack.c.b16 %v5804, %v5776
    %v7177 = vpack.c.b16 %v5805, %v5777
    %v7178 = vpack.c.b16 %v5806, %v5778
    %v7179 = vpack.c.b16 %v5807, %v5779
    %v7180 = vpack.c.b16 %v5808, %v5780
    %v7181 = vpack.c.b16 %v5809, %v5781
    %v7182 = vpack.c.b16 %v5810, %v5782
    %v7183 = vpack.c.b16 %v5811, %v5783
    %v7184 = vpack.c.b16 %v5812, %v5784
    %v7185 = vpack.c.b16 %v5813, %v5785
    %v7186 = vpack.c.b16 %v5814, %v5786
    %v7187 = vpack.c.b16 %v5815, %v5787
    %v7188 = vpack.c.b16 %v5816, %v5788
    %v7189 = vpack.c.b16 %v5817, %v5789
    %v7190 = vpack.c.b16 %v5818, %v5790
    %v7191 = vpack.c.b16 %v5819, %v5791
    %v7192 = vpack.c.b16 %v5820, %v5792
    %v7193 = vpack.c.b16 %v5821, %v5793
    %v7194 = vpack.c.b16 %v5822, %v5794
    %v7195 = vpack.c.b16 %v5823, %v5795
    %v7196 = vpack.c.b16 %v5824, %v5796
    %v7197 = vpack.c.b16 %v5825, %v5797
    %v7198 = vpack.c.b16 %v5826, %v5798
    %v7199 = vpack.c.b16 %v5827, %v5799
    %v7200 = vpack.c.b16 %v5828, %v5800
    %vm8573 = vcmask 130048
    %v8575 = vsel %vm8573, %v1706, 0
    %8577 = vmatprep.subr.bf16.mxu0 %v5830
    %8578 = vmatpush1.bf16.msra.mxu0 %v5829
    %8579 = vmatprep.subr.bf16.mxu0 %v5858
    %8580 = vmatpush1.bf16.msra.mxu0 %v5857
    %8581 = vmatprep.subr.bf16.mxu0 %v5886
    %8582 = vmatpush1.bf16.msra.mxu0 %v5885
    %8583 = vmatprep.subr.bf16.mxu0 %v5914
    %8584 = vmatpush1.bf16.msra.mxu0 %v5913
    %8585 = vmatprep.subr.bf16.mxu0 %v5942
    %8586 = vmatpush1.bf16.msra.mxu0 %v5941
    %8587 = vmatprep.subr.bf16.mxu0 %v5970
    %8588 = vmatpush1.bf16.msra.mxu0 %v5969
    %8589 = vmatprep.subr.bf16.mxu0 %v5998
    %8590 = vmatpush1.bf16.msra.mxu0 %v5997
    %8591 = vmatprep.subr.bf16.mxu0 %v6026
    %8592 = vmatpush1.bf16.msra.mxu0 %v6025
    %8593 = vmatprep.subr.bf16.mxu0 %v6054
    %8594 = vmatpush1.bf16.msra.mxu0 %v6053
    %8595 = vmatprep.subr.bf16.mxu0 %v6082
    %8596 = vmatpush1.bf16.msra.mxu0 %v6081
    %8597 = vmatprep.subr.bf16.mxu0 %v6110
    %8598 = vmatpush1.bf16.msra.mxu0 %v6109
    %8599 = vmatprep.subr.bf16.mxu0 %v6138
    %8600 = vmatpush1.bf16.msra.mxu0 %v6137
    %8601 = vmatprep.subr.bf16.mxu0 %v6166
    %8602 = vmatpush1.bf16.msra.mxu0 %v6165
    %8603 = vmatprep.subr.bf16.mxu0 %v6194
    %8604 = vmatpush1.bf16.msra.mxu0 %v6193
    %8605 = vmatprep.subr.bf16.mxu0 %v6222
    %8606 = vmatpush1.bf16.msra.mxu0 %v6221
    %8607 = vmatprep.subr.bf16.mxu0 %v6250
    %8608 = vmatpush1.bf16.msra.mxu0 %v6249
    %8609 = vmatprep.mubr.bf16.mxu0 %v1701
    %8610 = vmatmul.mubr.bf16.gmra.mrb[0].mxu0 %v1700
    %v8611 = vpop.f32.mrb[0].mxu0
    %v8612 = vadd.f32 %v1552, %v8611
    %v8613 = vpop.f32.mrb[0].mxu0
    %v8614 = vadd.f32 %v1556, %v8613
    %v8615 = vpop.f32.mrb[0].mxu0
    %v8616 = vpop.f32.mrb[0].mxu0
    %8617 = vdwg.mxu0
    %8618 = vmatprep.subr.bf16.mxu0 %v6278
    %8619 = vmatpush1.bf16.msra.mxu0 %v6277
    %8620 = vmatprep.subr.bf16.mxu0 %v6306
    %8621 = vmatpush1.bf16.msra.mxu0 %v6305
    %8622 = vmatprep.subr.bf16.mxu0 %v6334
    %8623 = vmatpush1.bf16.msra.mxu0 %v6333
    %8624 = vmatprep.subr.bf16.mxu0 %v6362
    %8625 = vmatpush1.bf16.msra.mxu0 %v6361
    %8626 = vmatprep.subr.bf16.mxu0 %v6390
    %8627 = vmatpush1.bf16.msra.mxu0 %v6389
    %8628 = vmatprep.subr.bf16.mxu0 %v6418
    %8629 = vmatpush1.bf16.msra.mxu0 %v6417
    %8630 = vmatprep.subr.bf16.mxu0 %v6446
    %8631 = vmatpush1.bf16.msra.mxu0 %v6445
    %8632 = vmatprep.subr.bf16.mxu0 %v6474
    %8633 = vmatpush1.bf16.msra.mxu0 %v6473
    %8634 = vmatprep.subr.bf16.mxu0 %v6502
    %8635 = vmatpush1.bf16.msra.mxu0 %v6501
    %8636 = vmatprep.subr.bf16.mxu0 %v6530
    %8637 = vmatpush1.bf16.msra.mxu0 %v6529
    %8638 = vmatprep.subr.bf16.mxu0 %v6558
    %8639 = vmatpush1.bf16.msra.mxu0 %v6557
    %8640 = vmatprep.subr.bf16.mxu0 %v6586
    %8641 = vmatpush1.bf16.msra.mxu0 %v6585
    %8642 = vmatprep.subr.bf16.mxu0 %v6614
    %8643 = vmatpush1.bf16.msra.mxu0 %v6613
    %8644 = vmatprep.subr.bf16.mxu0 %v6642
    %8645 = vmatpush1.bf16.msra.mxu0 %v6641
    %8646 = vmatprep.subr.bf16.mxu0 %v6670
    %8647 = vmatpush1.bf16.msra.mxu0 %v6669
    %8648 = vmatprep.subr.bf16.mxu0 %v6698
    %8649 = vmatpush1.bf16.msra.mxu0 %v6697
    %8650 = vmatprep.mubr.bf16.mxu0 %v1703
    %8651 = vmatmul.mubr.bf16.gmra.mrb[0].mxu0 %v1702
    %v8652 = vpop.f32.mrb[0].mxu0
    %v8653 = vadd.f32 %v8612, %v8652
    %v8654 = vpop.f32.mrb[0].mxu0
    %v8655 = vadd.f32 %v8614, %v8654
    %v8656 = vpop.f32.mrb[0].mxu0
    %v8657 = vpop.f32.mrb[0].mxu0
    %8658 = vdwg.mxu0
    %8659 = vmatprep.subr.bf16.mxu0 %v6726
    %8660 = vmatpush1.bf16.msra.mxu0 %v6725
    %8661 = vmatprep.subr.bf16.mxu0 %v6754
    %8662 = vmatpush1.bf16.msra.mxu0 %v6753
    %8663 = vmatprep.subr.bf16.mxu0 %v6782
    %8664 = vmatpush1.bf16.msra.mxu0 %v6781
    %8665 = vmatprep.subr.bf16.mxu0 %v6810
    %8666 = vmatpush1.bf16.msra.mxu0 %v6809
    %8667 = vmatprep.subr.bf16.mxu0 %v6838
    %8668 = vmatpush1.bf16.msra.mxu0 %v6837
    %8669 = vmatprep.subr.bf16.mxu0 %v6866
    %8670 = vmatpush1.bf16.msra.mxu0 %v6865
    %8671 = vmatprep.subr.bf16.mxu0 %v6894
    %8672 = vmatpush1.bf16.msra.mxu0 %v6893
    %8673 = vmatprep.subr.bf16.mxu0 %v6922
    %8674 = vmatpush1.bf16.msra.mxu0 %v6921
    %8675 = vmatprep.subr.bf16.mxu0 %v6950
    %8676 = vmatpush1.bf16.msra.mxu0 %v6949
    %8677 = vmatprep.subr.bf16.mxu0 %v6978
    %8678 = vmatpush1.bf16.msra.mxu0 %v6977
    %8679 = vmatprep.subr.bf16.mxu0 %v7006
    %8680 = vmatpush1.bf16.msra.mxu0 %v7005
    %8681 = vmatprep.subr.bf16.mxu0 %v7034
    %8682 = vmatpush1.bf16.msra.mxu0 %v7033
    %8683 = vmatprep.subr.bf16.mxu0 %v7062
    %8684 = vmatpush1.bf16.msra.mxu0 %v7061
    %8685 = vmatprep.subr.bf16.mxu0 %v7090
    %8686 = vmatpush1.bf16.msra.mxu0 %v7089
    %8687 = vmatprep.subr.bf16.mxu0 %v7118
    %8688 = vmatpush1.bf16.msra.mxu0 %v7117
    %8689 = vmatprep.subr.bf16.mxu0 %v7146
    %8690 = vmatpush1.bf16.msra.mxu0 %v7145
    %8691 = vmatprep.mubr.bf16.mxu0 %v1705
    %8692 = vmatmul.mubr.bf16.gmra.mrb[0].mxu0 %v1704
    %v8693 = vpop.f32.mrb[0].mxu0
    %v8694 = vadd.f32 %v8653, %v8693
    %v8695 = vpop.f32.mrb[0].mxu0
    %v8696 = vadd.f32 %v8655, %v8695
    %v8697 = vpop.f32.mrb[0].mxu0
    %v8698 = vpop.f32.mrb[0].mxu0
    %8699 = vdwg.mxu0
    %8700 = vmatprep.subr.bf16.mxu0 %v7174
    %8701 = vmatpush1.bf16.msra.mxu0 %v7173
    %8702 = vmatprep.subr.bf16.mxu0 0
    %8703 = vmatpush1.bf16.msra.mxu0 0
    %8704 = vmatprep.subr.bf16.mxu0 0
    %8705 = vmatpush1.bf16.msra.mxu0 0
    %8706 = vmatprep.subr.bf16.mxu0 0
    %8707 = vmatpush1.bf16.msra.mxu0 0
    %8708 = vmatprep.subr.bf16.mxu0 0
    %8709 = vmatpush1.bf16.msra.mxu0 0
    %8710 = vmatprep.subr.bf16.mxu0 0
    %8711 = vmatpush1.bf16.msra.mxu0 0
    %8712 = vmatprep.subr.bf16.mxu0 0
    %8713 = vmatpush1.bf16.msra.mxu0 0
    %8714 = vmatprep.subr.bf16.mxu0 0
    %8715 = vmatpush1.bf16.msra.mxu0 0
    %8716 = vmatprep.subr.bf16.mxu0 0
    %8717 = vmatpush1.bf16.msra.mxu0 0
    %8718 = vmatprep.subr.bf16.mxu0 0
    %8719 = vmatpush1.bf16.msra.mxu0 0
    %8720 = vmatprep.subr.bf16.mxu0 0
    %8721 = vmatpush1.bf16.msra.mxu0 0
    %8722 = vmatprep.subr.bf16.mxu0 0
    %8723 = vmatpush1.bf16.msra.mxu0 0
    %8724 = vmatprep.subr.bf16.mxu0 0
    %8725 = vmatpush1.bf16.msra.mxu0 0
    %8726 = vmatprep.subr.bf16.mxu0 0
    %8727 = vmatpush1.bf16.msra.mxu0 0
    %8728 = vmatprep.subr.bf16.mxu0 0
    %8729 = vmatpush1.bf16.msra.mxu0 0
    %8730 = vmatprep.subr.bf16.mxu0 0
    %8731 = vmatpush1.bf16.msra.mxu0 0
    %8732 = vmatprep.mubr.bf16.mxu0 0
    %8733 = vmatmul.mubr.bf16.gmra.mrb[0].mxu0 %v8575
    %v8734 = vpop.f32.mrb[0].mxu0
    %v8735 = vadd.f32 %v8694, %v8734
    %v8736 = vpop.f32.mrb[0].mxu0
    %v8737 = vadd.f32 %v8696, %v8736
    %v8738 = vpop.f32.mrb[0].mxu0
    %v8739 = vpop.f32.mrb[0].mxu0
    %8740 = vdwg.mxu0
    %8741 = vmatprep.subr.bf16.mxu0 %v5832
    %8742 = vmatpush1.bf16.msra.mxu0 %v5831
    %8743 = vmatprep.subr.bf16.mxu0 %v5860
    %8744 = vmatpush1.bf16.msra.mxu0 %v5859
    %8745 = vmatprep.subr.bf16.mxu0 %v5888
    %8746 = vmatpush1.bf16.msra.mxu0 %v5887
    %8747 = vmatprep.subr.bf16.mxu0 %v5916
    %8748 = vmatpush1.bf16.msra.mxu0 %v5915
    %8749 = vmatprep.subr.bf16.mxu0 %v5944
    %8750 = vmatpush1.bf16.msra.mxu0 %v5943
    %8751 = vmatprep.subr.bf16.mxu0 %v5972
    %8752 = vmatpush1.bf16.msra.mxu0 %v5971
    %8753 = vmatprep.subr.bf16.mxu0 %v6000
    %8754 = vmatpush1.bf16.msra.mxu0 %v5999
    %8755 = vmatprep.subr.bf16.mxu0 %v6028
    %8756 = vmatpush1.bf16.msra.mxu0 %v6027
    %8757 = vmatprep.subr.bf16.mxu0 %v6056
    %8758 = vmatpush1.bf16.msra.mxu0 %v6055
    %8759 = vmatprep.subr.bf16.mxu0 %v6084
    %8760 = vmatpush1.bf16.msra.mxu0 %v6083
    %8761 = vmatprep.subr.bf16.mxu0 %v6112
    %8762 = vmatpush1.bf16.msra.mxu0 %v6111
    %8763 = vmatprep.subr.bf16.mxu0 %v6140
    %8764 = vmatpush1.bf16.msra.mxu0 %v6139
    %8765 = vmatprep.subr.bf16.mxu0 %v6168
    %8766 = vmatpush1.bf16.msra.mxu0 %v6167
    %8767 = vmatprep.subr.bf16.mxu0 %v6196
    %8768 = vmatpush1.bf16.msra.mxu0 %v6195
    %8769 = vmatprep.subr.bf16.mxu0 %v6224
    %8770 = vmatpush1.bf16.msra.mxu0 %v6223
    %8771 = vmatprep.subr.bf16.mxu0 %v6252
    %8772 = vmatpush1.bf16.msra.mxu0 %v6251
    %8773 = vmatprep.mubr.bf16.mxu0 %v1701
    %8774 = vmatmul.mubr.bf16.gmra.mrb[0].mxu0 %v1700
    %v8775 = vpop.f32.mrb[0].mxu0
    %v8776 = vadd.f32 %v1560, %v8775
    %v8777 = vpop.f32.mrb[0].mxu0
    %v8778 = vadd.f32 %v1564, %v8777
    %v8779 = vpop.f32.mrb[0].mxu0
    %v8780 = vpop.f32.mrb[0].mxu0
    %8781 = vdwg.mxu0
    %8782 = vmatprep.subr.bf16.mxu0 %v6280
    %8783 = vmatpush1.bf16.msra.mxu0 %v6279
    %8784 = vmatprep.subr.bf16.mxu0 %v6308
    %8785 = vmatpush1.bf16.msra.mxu0 %v6307
    %8786 = vmatprep.subr.bf16.mxu0 %v6336
    %8787 = vmatpush1.bf16.msra.mxu0 %v6335
    %8788 = vmatprep.subr.bf16.mxu0 %v6364
    %8789 = vmatpush1.bf16.msra.mxu0 %v6363
    %8790 = vmatprep.subr.bf16.mxu0 %v6392
    %8791 = vmatpush1.bf16.msra.mxu0 %v6391
    %8792 = vmatprep.subr.bf16.mxu0 %v6420
    %8793 = vmatpush1.bf16.msra.mxu0 %v6419
    %8794 = vmatprep.subr.bf16.mxu0 %v6448
    %8795 = vmatpush1.bf16.msra.mxu0 %v6447
    %8796 = vmatprep.subr.bf16.mxu0 %v6476
    %8797 = vmatpush1.bf16.msra.mxu0 %v6475
    %8798 = vmatprep.subr.bf16.mxu0 %v6504
    %8799 = vmatpush1.bf16.msra.mxu0 %v6503
    %8800 = vmatprep.subr.bf16.mxu0 %v6532
    %8801 = vmatpush1.bf16.msra.mxu0 %v6531
    %8802 = vmatprep.subr.bf16.mxu0 %v6560
    %8803 = vmatpush1.bf16.msra.mxu0 %v6559
    %8804 = vmatprep.subr.bf16.mxu0 %v6588
    %8805 = vmatpush1.bf16.msra.mxu0 %v6587
    %8806 = vmatprep.subr.bf16.mxu0 %v6616
    %8807 = vmatpush1.bf16.msra.mxu0 %v6615
    %8808 = vmatprep.subr.bf16.mxu0 %v6644
    %8809 = vmatpush1.bf16.msra.mxu0 %v6643
    %8810 = vmatprep.subr.bf16.mxu0 %v6672
    %8811 = vmatpush1.bf16.msra.mxu0 %v6671
    %8812 = vmatprep.subr.bf16.mxu0 %v6700
    %8813 = vmatpush1.bf16.msra.mxu0 %v6699
    %8814 = vmatprep.mubr.bf16.mxu0 %v1703
    %8815 = vmatmul.mubr.bf16.gmra.mrb[0].mxu0 %v1702
    %v8816 = vpop.f32.mrb[0].mxu0
    %v8817 = vadd.f32 %v8776, %v8816
    %v8818 = vpop.f32.mrb[0].mxu0
    %v8819 = vadd.f32 %v8778, %v8818
    %v8820 = vpop.f32.mrb[0].mxu0
    %v8821 = vpop.f32.mrb[0].mxu0
    %8822 = vdwg.mxu0
    %8823 = vmatprep.subr.bf16.mxu0 %v6728
    %8824 = vmatpush1.bf16.msra.mxu0 %v6727
    %8825 = vmatprep.subr.bf16.mxu0 %v6756
    %8826 = vmatpush1.bf16.msra.mxu0 %v6755
    %8827 = vmatprep.subr.bf16.mxu0 %v6784
    %8828 = vmatpush1.bf16.msra.mxu0 %v6783
    %8829 = vmatprep.subr.bf16.mxu0 %v6812
    %8830 = vmatpush1.bf16.msra.mxu0 %v6811
    %8831 = vmatprep.subr.bf16.mxu0 %v6840
    %8832 = vmatpush1.bf16.msra.mxu0 %v6839
    %8833 = vmatprep.subr.bf16.mxu0 %v6868
    %8834 = vmatpush1.bf16.msra.mxu0 %v6867
    %8835 = vmatprep.subr.bf16.mxu0 %v6896
    %8836 = vmatpush1.bf16.msra.mxu0 %v6895
    %8837 = vmatprep.subr.bf16.mxu0 %v6924
    %8838 = vmatpush1.bf16.msra.mxu0 %v6923
    %8839 = vmatprep.subr.bf16.mxu0 %v6952
    %8840 = vmatpush1.bf16.msra.mxu0 %v6951
    %8841 = vmatprep.subr.bf16.mxu0 %v6980
    %8842 = vmatpush1.bf16.msra.mxu0 %v6979
    %8843 = vmatprep.subr.bf16.mxu0 %v7008
    %8844 = vmatpush1.bf16.msra.mxu0 %v7007
    %8845 = vmatprep.subr.bf16.mxu0 %v7036
    %8846 = vmatpush1.bf16.msra.mxu0 %v7035
    %8847 = vmatprep.subr.bf16.mxu0 %v7064
    %8848 = vmatpush1.bf16.msra.mxu0 %v7063
    %8849 = vmatprep.subr.bf16.mxu0 %v7092
    %8850 = vmatpush1.bf16.msra.mxu0 %v7091
    %8851 = vmatprep.subr.bf16.mxu0 %v7120
    %8852 = vmatpush1.bf16.msra.mxu0 %v7119
    %8853 = vmatprep.subr.bf16.mxu0 %v7148
    %8854 = vmatpush1.bf16.msra.mxu0 %v7147
    %8855 = vmatprep.mubr.bf16.mxu0 %v1705
    %8856 = vmatmul.mubr.bf16.gmra.mrb[0].mxu0 %v1704
    %v8857 = vpop.f32.mrb[0].mxu0
    %v8858 = vadd.f32 %v8817, %v8857
    %v8859 = vpop.f32.mrb[0].mxu0
    %v8860 = vadd.f32 %v8819, %v8859
    %v8861 = vpop.f32.mrb[0].mxu0
    %v8862 = vpop.f32.mrb[0].mxu0
    %8863 = vdwg.mxu0
    %8864 = vmatprep.subr.bf16.mxu0 %v7176
    %8865 = vmatpush1.bf16.msra.mxu0 %v7175
    %8866 = vmatprep.subr.bf16.mxu0 0
    %8867 = vmatpush1.bf16.msra.mxu0 0
    %8868 = vmatprep.subr.bf16.mxu0 0
    %8869 = vmatpush1.bf16.msra.mxu0 0
    %8870 = vmatprep.subr.bf16.mxu0 0
    %8871 = vmatpush1.bf16.msra.mxu0 0
    %8872 = vmatprep.subr.bf16.mxu0 0
    %8873 = vmatpush1.bf16.msra.mxu0 0
    %8874 = vmatprep.subr.bf16.mxu0 0
    %8875 = vmatpush1.bf16.msra.mxu0 0
    %8876 = vmatprep.subr.bf16.mxu0 0
    %8877 = vmatpush1.bf16.msra.mxu0 0
    %8878 = vmatprep.subr.bf16.mxu0 0
    %8879 = vmatpush1.bf16.msra.mxu0 0
    %8880 = vmatprep.subr.bf16.mxu0 0
    %8881 = vmatpush1.bf16.msra.mxu0 0
    %8882 = vmatprep.subr.bf16.mxu0 0
    %8883 = vmatpush1.bf16.msra.mxu0 0
    %8884 = vmatprep.subr.bf16.mxu0 0
    %8885 = vmatpush1.bf16.msra.mxu0 0
    %8886 = vmatprep.subr.bf16.mxu0 0
    %8887 = vmatpush1.bf16.msra.mxu0 0
    %8888 = vmatprep.subr.bf16.mxu0 0
    %8889 = vmatpush1.bf16.msra.mxu0 0
    %8890 = vmatprep.subr.bf16.mxu0 0
    %8891 = vmatpush1.bf16.msra.mxu0 0
    %8892 = vmatprep.subr.bf16.mxu0 0
    %8893 = vmatpush1.bf16.msra.mxu0 0
    %8894 = vmatprep.subr.bf16.mxu0 0
    %8895 = vmatpush1.bf16.msra.mxu0 0
    %8896 = vmatprep.mubr.bf16.mxu0 0
    %8897 = vmatmul.mubr.bf16.gmra.mrb[0].mxu0 %v8575
    %v8898 = vpop.f32.mrb[0].mxu0
    %v8899 = vadd.f32 %v8858, %v8898
    %v8900 = vpop.f32.mrb[0].mxu0
    %v8901 = vadd.f32 %v8860, %v8900
    %v8902 = vpop.f32.mrb[0].mxu0
    %v8903 = vpop.f32.mrb[0].mxu0
    %8904 = vdwg.mxu0
    %8905 = vmatprep.subr.bf16.mxu0 %v5834
    %8906 = vmatpush1.bf16.msra.mxu0 %v5833
    %8907 = vmatprep.subr.bf16.mxu0 %v5862
    %8908 = vmatpush1.bf16.msra.mxu0 %v5861
    %8909 = vmatprep.subr.bf16.mxu0 %v5890
    %8910 = vmatpush1.bf16.msra.mxu0 %v5889
    %8911 = vmatprep.subr.bf16.mxu0 %v5918
    %8912 = vmatpush1.bf16.msra.mxu0 %v5917
    %8913 = vmatprep.subr.bf16.mxu0 %v5946
    %8914 = vmatpush1.bf16.msra.mxu0 %v5945
    %8915 = vmatprep.subr.bf16.mxu0 %v5974
    %8916 = vmatpush1.bf16.msra.mxu0 %v5973
    %8917 = vmatprep.subr.bf16.mxu0 %v6002
    %8918 = vmatpush1.bf16.msra.mxu0 %v6001
    %8919 = vmatprep.subr.bf16.mxu0 %v6030
    %8920 = vmatpush1.bf16.msra.mxu0 %v6029
    %8921 = vmatprep.subr.bf16.mxu0 %v6058
    %8922 = vmatpush1.bf16.msra.mxu0 %v6057
    %8923 = vmatprep.subr.bf16.mxu0 %v6086
    %8924 = vmatpush1.bf16.msra.mxu0 %v6085
    %8925 = vmatprep.subr.bf16.mxu0 %v6114
    %8926 = vmatpush1.bf16.msra.mxu0 %v6113
    %8927 = vmatprep.subr.bf16.mxu0 %v6142
    %8928 = vmatpush1.bf16.msra.mxu0 %v6141
    %8929 = vmatprep.subr.bf16.mxu0 %v6170
    %8930 = vmatpush1.bf16.msra.mxu0 %v6169
    %8931 = vmatprep.subr.bf16.mxu0 %v6198
    %8932 = vmatpush1.bf16.msra.mxu0 %v6197
    %8933 = vmatprep.subr.bf16.mxu0 %v6226
    %8934 = vmatpush1.bf16.msra.mxu0 %v6225
    %8935 = vmatprep.subr.bf16.mxu0 %v6254
    %8936 = vmatpush1.bf16.msra.mxu0 %v6253
    %8937 = vmatprep.mubr.bf16.mxu0 %v1701
    %8938 = vmatmul.mubr.bf16.gmra.mrb[0].mxu0 %v1700
    %v8939 = vpop.f32.mrb[0].mxu0
    %v8940 = vadd.f32 %v1568, %v8939
    %v8941 = vpop.f32.mrb[0].mxu0
    %v8942 = vadd.f32 %v1572, %v8941
    %v8943 = vpop.f32.mrb[0].mxu0
    %v8944 = vpop.f32.mrb[0].mxu0
    %8945 = vdwg.mxu0
    %8946 = vmatprep.subr.bf16.mxu0 %v6282
    %8947 = vmatpush1.bf16.msra.mxu0 %v6281
    %8948 = vmatprep.subr.bf16.mxu0 %v6310
    %8949 = vmatpush1.bf16.msra.mxu0 %v6309
    %8950 = vmatprep.subr.bf16.mxu0 %v6338
    %8951 = vmatpush1.bf16.msra.mxu0 %v6337
    %8952 = vmatprep.subr.bf16.mxu0 %v6366
    %8953 = vmatpush1.bf16.msra.mxu0 %v6365
    %8954 = vmatprep.subr.bf16.mxu0 %v6394
    %8955 = vmatpush1.bf16.msra.mxu0 %v6393
    %8956 = vmatprep.subr.bf16.mxu0 %v6422
    %8957 = vmatpush1.bf16.msra.mxu0 %v6421
    %8958 = vmatprep.subr.bf16.mxu0 %v6450
    %8959 = vmatpush1.bf16.msra.mxu0 %v6449
    %8960 = vmatprep.subr.bf16.mxu0 %v6478
    %8961 = vmatpush1.bf16.msra.mxu0 %v6477
    %8962 = vmatprep.subr.bf16.mxu0 %v6506
    %8963 = vmatpush1.bf16.msra.mxu0 %v6505
    %8964 = vmatprep.subr.bf16.mxu0 %v6534
    %8965 = vmatpush1.bf16.msra.mxu0 %v6533
    %8966 = vmatprep.subr.bf16.mxu0 %v6562
    %8967 = vmatpush1.bf16.msra.mxu0 %v6561
    %8968 = vmatprep.subr.bf16.mxu0 %v6590
    %8969 = vmatpush1.bf16.msra.mxu0 %v6589
    %8970 = vmatprep.subr.bf16.mxu0 %v6618
    %8971 = vmatpush1.bf16.msra.mxu0 %v6617
    %8972 = vmatprep.subr.bf16.mxu0 %v6646
    %8973 = vmatpush1.bf16.msra.mxu0 %v6645
    %8974 = vmatprep.subr.bf16.mxu0 %v6674
    %8975 = vmatpush1.bf16.msra.mxu0 %v6673
    %8976 = vmatprep.subr.bf16.mxu0 %v6702
    %8977 = vmatpush1.bf16.msra.mxu0 %v6701
    %8978 = vmatprep.mubr.bf16.mxu0 %v1703
    %8979 = vmatmul.mubr.bf16.gmra.mrb[0].mxu0 %v1702
    %v8980 = vpop.f32.mrb[0].mxu0
    %v8981 = vadd.f32 %v8940, %v8980
    %v8982 = vpop.f32.mrb[0].mxu0
    %v8983 = vadd.f32 %v8942, %v8982
    %v8984 = vpop.f32.mrb[0].mxu0
    %v8985 = vpop.f32.mrb[0].mxu0
    %8986 = vdwg.mxu0
    %8987 = vmatprep.subr.bf16.mxu0 %v6730
    %8988 = vmatpush1.bf16.msra.mxu0 %v6729
    %8989 = vmatprep.subr.bf16.mxu0 %v6758
    %8990 = vmatpush1.bf16.msra.mxu0 %v6757
    %8991 = vmatprep.subr.bf16.mxu0 %v6786
    %8992 = vmatpush1.bf16.msra.mxu0 %v6785
    %8993 = vmatprep.subr.bf16.mxu0 %v6814
    %8994 = vmatpush1.bf16.msra.mxu0 %v6813
    %8995 = vmatprep.subr.bf16.mxu0 %v6842
    %8996 = vmatpush1.bf16.msra.mxu0 %v6841
    %8997 = vmatprep.subr.bf16.mxu0 %v6870
    %8998 = vmatpush1.bf16.msra.mxu0 %v6869
    %8999 = vmatprep.subr.bf16.mxu0 %v6898
    %9000 = vmatpush1.bf16.msra.mxu0 %v6897
    %9001 = vmatprep.subr.bf16.mxu0 %v6926
    %9002 = vmatpush1.bf16.msra.mxu0 %v6925
    %9003 = vmatprep.subr.bf16.mxu0 %v6954
    %9004 = vmatpush1.bf16.msra.mxu0 %v6953
    %9005 = vmatprep.subr.bf16.mxu0 %v6982
    %9006 = vmatpush1.bf16.msra.mxu0 %v6981
    %9007 = vmatprep.subr.bf16.mxu0 %v7010
    %9008 = vmatpush1.bf16.msra.mxu0 %v7009
    %9009 = vmatprep.subr.bf16.mxu0 %v7038
    %9010 = vmatpush1.bf16.msra.mxu0 %v7037
    %9011 = vmatprep.subr.bf16.mxu0 %v7066
    %9012 = vmatpush1.bf16.msra.mxu0 %v7065
    %9013 = vmatprep.subr.bf16.mxu0 %v7094
    %9014 = vmatpush1.bf16.msra.mxu0 %v7093
    %9015 = vmatprep.subr.bf16.mxu0 %v7122
    %9016 = vmatpush1.bf16.msra.mxu0 %v7121
    %9017 = vmatprep.subr.bf16.mxu0 %v7150
    %9018 = vmatpush1.bf16.msra.mxu0 %v7149
    %9019 = vmatprep.mubr.bf16.mxu0 %v1705
    %9020 = vmatmul.mubr.bf16.gmra.mrb[0].mxu0 %v1704
    %v9021 = vpop.f32.mrb[0].mxu0
    %v9022 = vadd.f32 %v8981, %v9021
    %v9023 = vpop.f32.mrb[0].mxu0
    %v9024 = vadd.f32 %v8983, %v9023
    %v9025 = vpop.f32.mrb[0].mxu0
    %v9026 = vpop.f32.mrb[0].mxu0
    %9027 = vdwg.mxu0
    %9028 = vmatprep.subr.bf16.mxu0 %v7178
    %9029 = vmatpush1.bf16.msra.mxu0 %v7177
    %9030 = vmatprep.subr.bf16.mxu0 0
    %9031 = vmatpush1.bf16.msra.mxu0 0
    %9032 = vmatprep.subr.bf16.mxu0 0
    %9033 = vmatpush1.bf16.msra.mxu0 0
    %9034 = vmatprep.subr.bf16.mxu0 0
    %9035 = vmatpush1.bf16.msra.mxu0 0
    %9036 = vmatprep.subr.bf16.mxu0 0
    %9037 = vmatpush1.bf16.msra.mxu0 0
    %9038 = vmatprep.subr.bf16.mxu0 0
    %9039 = vmatpush1.bf16.msra.mxu0 0
    %9040 = vmatprep.subr.bf16.mxu0 0
    %9041 = vmatpush1.bf16.msra.mxu0 0
    %9042 = vmatprep.subr.bf16.mxu0 0
    %9043 = vmatpush1.bf16.msra.mxu0 0
    %9044 = vmatprep.subr.bf16.mxu0 0
    %9045 = vmatpush1.bf16.msra.mxu0 0
    %9046 = vmatprep.subr.bf16.mxu0 0
    %9047 = vmatpush1.bf16.msra.mxu0 0
    %9048 = vmatprep.subr.bf16.mxu0 0
    %9049 = vmatpush1.bf16.msra.mxu0 0
    %9050 = vmatprep.subr.bf16.mxu0 0
    %9051 = vmatpush1.bf16.msra.mxu0 0
    %9052 = vmatprep.subr.bf16.mxu0 0
    %9053 = vmatpush1.bf16.msra.mxu0 0
    %9054 = vmatprep.subr.bf16.mxu0 0
    %9055 = vmatpush1.bf16.msra.mxu0 0
    %9056 = vmatprep.subr.bf16.mxu0 0
    %9057 = vmatpush1.bf16.msra.mxu0 0
    %9058 = vmatprep.subr.bf16.mxu0 0
    %9059 = vmatpush1.bf16.msra.mxu0 0
    %9060 = vmatprep.mubr.bf16.mxu0 0
    %9061 = vmatmul.mubr.bf16.gmra.mrb[0].mxu0 %v8575
    %v9062 = vpop.f32.mrb[0].mxu0
    %v9063 = vadd.f32 %v9022, %v9062
    %v9064 = vpop.f32.mrb[0].mxu0
    %v9065 = vadd.f32 %v9024, %v9064
    %v9066 = vpop.f32.mrb[0].mxu0
    %v9067 = vpop.f32.mrb[0].mxu0
    %9068 = vdwg.mxu0
    %9069 = vmatprep.subr.bf16.mxu0 %v5836
    %9070 = vmatpush1.bf16.msra.mxu0 %v5835
    %9071 = vmatprep.subr.bf16.mxu0 %v5864
    %9072 = vmatpush1.bf16.msra.mxu0 %v5863
    %9073 = vmatprep.subr.bf16.mxu0 %v5892
    %9074 = vmatpush1.bf16.msra.mxu0 %v5891
    %9075 = vmatprep.subr.bf16.mxu0 %v5920
    %9076 = vmatpush1.bf16.msra.mxu0 %v5919
    %9077 = vmatprep.subr.bf16.mxu0 %v5948
    %9078 = vmatpush1.bf16.msra.mxu0 %v5947
    %9079 = vmatprep.subr.bf16.mxu0 %v5976
    %9080 = vmatpush1.bf16.msra.mxu0 %v5975
    %9081 = vmatprep.subr.bf16.mxu0 %v6004
    %9082 = vmatpush1.bf16.msra.mxu0 %v6003
    %9083 = vmatprep.subr.bf16.mxu0 %v6032
    %9084 = vmatpush1.bf16.msra.mxu0 %v6031
    %9085 = vmatprep.subr.bf16.mxu0 %v6060
    %9086 = vmatpush1.bf16.msra.mxu0 %v6059
    %9087 = vmatprep.subr.bf16.mxu0 %v6088
    %9088 = vmatpush1.bf16.msra.mxu0 %v6087
    %9089 = vmatprep.subr.bf16.mxu0 %v6116
    %9090 = vmatpush1.bf16.msra.mxu0 %v6115
    %9091 = vmatprep.subr.bf16.mxu0 %v6144
    %9092 = vmatpush1.bf16.msra.mxu0 %v6143
    %9093 = vmatprep.subr.bf16.mxu0 %v6172
    %9094 = vmatpush1.bf16.msra.mxu0 %v6171
    %9095 = vmatprep.subr.bf16.mxu0 %v6200
    %9096 = vmatpush1.bf16.msra.mxu0 %v6199
    %9097 = vmatprep.subr.bf16.mxu0 %v6228
    %9098 = vmatpush1.bf16.msra.mxu0 %v6227
    %9099 = vmatprep.subr.bf16.mxu0 %v6256
    %9100 = vmatpush1.bf16.msra.mxu0 %v6255
    %9101 = vmatprep.mubr.bf16.mxu0 %v1701
    %9102 = vmatmul.mubr.bf16.gmra.mrb[0].mxu0 %v1700
    %v9103 = vpop.f32.mrb[0].mxu0
    %v9104 = vadd.f32 %v1576, %v9103
    %v9105 = vpop.f32.mrb[0].mxu0
    %v9106 = vadd.f32 %v1580, %v9105
    %v9107 = vpop.f32.mrb[0].mxu0
    %v9108 = vpop.f32.mrb[0].mxu0
    %9109 = vdwg.mxu0
    %9110 = vmatprep.subr.bf16.mxu0 %v6284
    %9111 = vmatpush1.bf16.msra.mxu0 %v6283
    %9112 = vmatprep.subr.bf16.mxu0 %v6312
    %9113 = vmatpush1.bf16.msra.mxu0 %v6311
    %9114 = vmatprep.subr.bf16.mxu0 %v6340
    %9115 = vmatpush1.bf16.msra.mxu0 %v6339
    %9116 = vmatprep.subr.bf16.mxu0 %v6368
    %9117 = vmatpush1.bf16.msra.mxu0 %v6367
    %9118 = vmatprep.subr.bf16.mxu0 %v6396
    %9119 = vmatpush1.bf16.msra.mxu0 %v6395
    %9120 = vmatprep.subr.bf16.mxu0 %v6424
    %9121 = vmatpush1.bf16.msra.mxu0 %v6423
    %9122 = vmatprep.subr.bf16.mxu0 %v6452
    %9123 = vmatpush1.bf16.msra.mxu0 %v6451
    %9124 = vmatprep.subr.bf16.mxu0 %v6480
    %9125 = vmatpush1.bf16.msra.mxu0 %v6479
    %9126 = vmatprep.subr.bf16.mxu0 %v6508
    %9127 = vmatpush1.bf16.msra.mxu0 %v6507
    %9128 = vmatprep.subr.bf16.mxu0 %v6536
    %9129 = vmatpush1.bf16.msra.mxu0 %v6535
    %9130 = vmatprep.subr.bf16.mxu0 %v6564
    %9131 = vmatpush1.bf16.msra.mxu0 %v6563
    %9132 = vmatprep.subr.bf16.mxu0 %v6592
    %9133 = vmatpush1.bf16.msra.mxu0 %v6591
    %9134 = vmatprep.subr.bf16.mxu0 %v6620
    %9135 = vmatpush1.bf16.msra.mxu0 %v6619
    %9136 = vmatprep.subr.bf16.mxu0 %v6648
    %9137 = vmatpush1.bf16.msra.mxu0 %v6647
    %9138 = vmatprep.subr.bf16.mxu0 %v6676
    %9139 = vmatpush1.bf16.msra.mxu0 %v6675
    %9140 = vmatprep.subr.bf16.mxu0 %v6704
    %9141 = vmatpush1.bf16.msra.mxu0 %v6703
    %9142 = vmatprep.mubr.bf16.mxu0 %v1703
    %9143 = vmatmul.mubr.bf16.gmra.mrb[0].mxu0 %v1702
    %v9144 = vpop.f32.mrb[0].mxu0
    %v9145 = vadd.f32 %v9104, %v9144
    %v9146 = vpop.f32.mrb[0].mxu0
    %v9147 = vadd.f32 %v9106, %v9146
    %v9148 = vpop.f32.mrb[0].mxu0
    %v9149 = vpop.f32.mrb[0].mxu0
    %9150 = vdwg.mxu0
    %9151 = vmatprep.subr.bf16.mxu0 %v6732
    %9152 = vmatpush1.bf16.msra.mxu0 %v6731
    %9153 = vmatprep.subr.bf16.mxu0 %v6760
    %9154 = vmatpush1.bf16.msra.mxu0 %v6759
    %9155 = vmatprep.subr.bf16.mxu0 %v6788
    %9156 = vmatpush1.bf16.msra.mxu0 %v6787
    %9157 = vmatprep.subr.bf16.mxu0 %v6816
    %9158 = vmatpush1.bf16.msra.mxu0 %v6815
    %9159 = vmatprep.subr.bf16.mxu0 %v6844
    %9160 = vmatpush1.bf16.msra.mxu0 %v6843
    %9161 = vmatprep.subr.bf16.mxu0 %v6872
    %9162 = vmatpush1.bf16.msra.mxu0 %v6871
    %9163 = vmatprep.subr.bf16.mxu0 %v6900
    %9164 = vmatpush1.bf16.msra.mxu0 %v6899
    %9165 = vmatprep.subr.bf16.mxu0 %v6928
    %9166 = vmatpush1.bf16.msra.mxu0 %v6927
    %9167 = vmatprep.subr.bf16.mxu0 %v6956
    %9168 = vmatpush1.bf16.msra.mxu0 %v6955
    %9169 = vmatprep.subr.bf16.mxu0 %v6984
    %9170 = vmatpush1.bf16.msra.mxu0 %v6983
    %9171 = vmatprep.subr.bf16.mxu0 %v7012
    %9172 = vmatpush1.bf16.msra.mxu0 %v7011
    %9173 = vmatprep.subr.bf16.mxu0 %v7040
    %9174 = vmatpush1.bf16.msra.mxu0 %v7039
    %9175 = vmatprep.subr.bf16.mxu0 %v7068
    %9176 = vmatpush1.bf16.msra.mxu0 %v7067
    %9177 = vmatprep.subr.bf16.mxu0 %v7096
    %9178 = vmatpush1.bf16.msra.mxu0 %v7095
    %9179 = vmatprep.subr.bf16.mxu0 %v7124
    %9180 = vmatpush1.bf16.msra.mxu0 %v7123
    %9181 = vmatprep.subr.bf16.mxu0 %v7152
    %9182 = vmatpush1.bf16.msra.mxu0 %v7151
    %9183 = vmatprep.mubr.bf16.mxu0 %v1705
    %9184 = vmatmul.mubr.bf16.gmra.mrb[0].mxu0 %v1704
    %v9185 = vpop.f32.mrb[0].mxu0
    %v9186 = vadd.f32 %v9145, %v9185
    %v9187 = vpop.f32.mrb[0].mxu0
    %v9188 = vadd.f32 %v9147, %v9187
    %v9189 = vpop.f32.mrb[0].mxu0
    %v9190 = vpop.f32.mrb[0].mxu0
    %9191 = vdwg.mxu0
    %9192 = vmatprep.subr.bf16.mxu0 %v7180
    %9193 = vmatpush1.bf16.msra.mxu0 %v7179
    %9194 = vmatprep.subr.bf16.mxu0 0
    %9195 = vmatpush1.bf16.msra.mxu0 0
    %9196 = vmatprep.subr.bf16.mxu0 0
    %9197 = vmatpush1.bf16.msra.mxu0 0
    %9198 = vmatprep.subr.bf16.mxu0 0
    %9199 = vmatpush1.bf16.msra.mxu0 0
    %9200 = vmatprep.subr.bf16.mxu0 0
    %9201 = vmatpush1.bf16.msra.mxu0 0
    %9202 = vmatprep.subr.bf16.mxu0 0
    %9203 = vmatpush1.bf16.msra.mxu0 0
    %9204 = vmatprep.subr.bf16.mxu0 0
    %9205 = vmatpush1.bf16.msra.mxu0 0
    %9206 = vmatprep.subr.bf16.mxu0 0
    %9207 = vmatpush1.bf16.msra.mxu0 0
    %9208 = vmatprep.subr.bf16.mxu0 0
    %9209 = vmatpush1.bf16.msra.mxu0 0
    %9210 = vmatprep.subr.bf16.mxu0 0
    %9211 = vmatpush1.bf16.msra.mxu0 0
    %9212 = vmatprep.subr.bf16.mxu0 0
    %9213 = vmatpush1.bf16.msra.mxu0 0
    %9214 = vmatprep.subr.bf16.mxu0 0
    %9215 = vmatpush1.bf16.msra.mxu0 0
    %9216 = vmatprep.subr.bf16.mxu0 0
    %9217 = vmatpush1.bf16.msra.mxu0 0
    %9218 = vmatprep.subr.bf16.mxu0 0
    %9219 = vmatpush1.bf16.msra.mxu0 0
    %9220 = vmatprep.subr.bf16.mxu0 0
    %9221 = vmatpush1.bf16.msra.mxu0 0
    %9222 = vmatprep.subr.bf16.mxu0 0
    %9223 = vmatpush1.bf16.msra.mxu0 0
    %9224 = vmatprep.mubr.bf16.mxu0 0
    %9225 = vmatmul.mubr.bf16.gmra.mrb[0].mxu0 %v8575
    %v9226 = vpop.f32.mrb[0].mxu0
    %v9227 = vadd.f32 %v9186, %v9226
    %v9228 = vpop.f32.mrb[0].mxu0
    %v9229 = vadd.f32 %v9188, %v9228
    %v9230 = vpop.f32.mrb[0].mxu0
    %v9231 = vpop.f32.mrb[0].mxu0
    %9232 = vdwg.mxu0
    %9233 = vmatprep.subr.bf16.mxu0 %v5838
    %9234 = vmatpush1.bf16.msra.mxu0 %v5837
    %9235 = vmatprep.subr.bf16.mxu0 %v5866
    %9236 = vmatpush1.bf16.msra.mxu0 %v5865
    %9237 = vmatprep.subr.bf16.mxu0 %v5894
    %9238 = vmatpush1.bf16.msra.mxu0 %v5893
    %9239 = vmatprep.subr.bf16.mxu0 %v5922
    %9240 = vmatpush1.bf16.msra.mxu0 %v5921
    %9241 = vmatprep.subr.bf16.mxu0 %v5950
    %9242 = vmatpush1.bf16.msra.mxu0 %v5949
    %9243 = vmatprep.subr.bf16.mxu0 %v5978
    %9244 = vmatpush1.bf16.msra.mxu0 %v5977
    %9245 = vmatprep.subr.bf16.mxu0 %v6006
    %9246 = vmatpush1.bf16.msra.mxu0 %v6005
    %9247 = vmatprep.subr.bf16.mxu0 %v6034
    %9248 = vmatpush1.bf16.msra.mxu0 %v6033
    %9249 = vmatprep.subr.bf16.mxu0 %v6062
    %9250 = vmatpush1.bf16.msra.mxu0 %v6061
    %9251 = vmatprep.subr.bf16.mxu0 %v6090
    %9252 = vmatpush1.bf16.msra.mxu0 %v6089
    %9253 = vmatprep.subr.bf16.mxu0 %v6118
    %9254 = vmatpush1.bf16.msra.mxu0 %v6117
    %9255 = vmatprep.subr.bf16.mxu0 %v6146
    %9256 = vmatpush1.bf16.msra.mxu0 %v6145
    %9257 = vmatprep.subr.bf16.mxu0 %v6174
    %9258 = vmatpush1.bf16.msra.mxu0 %v6173
    %9259 = vmatprep.subr.bf16.mxu0 %v6202
    %9260 = vmatpush1.bf16.msra.mxu0 %v6201
    %9261 = vmatprep.subr.bf16.mxu0 %v6230
    %9262 = vmatpush1.bf16.msra.mxu0 %v6229
    %9263 = vmatprep.subr.bf16.mxu0 %v6258
    %9264 = vmatpush1.bf16.msra.mxu0 %v6257
    %9265 = vmatprep.mubr.bf16.mxu0 %v1701
    %9266 = vmatmul.mubr.bf16.gmra.mrb[0].mxu0 %v1700
    %v9267 = vpop.f32.mrb[0].mxu0
    %v9268 = vadd.f32 %v1584, %v9267
    %v9269 = vpop.f32.mrb[0].mxu0
    %v9270 = vadd.f32 %v1588, %v9269
    %v9271 = vpop.f32.mrb[0].mxu0
    %v9272 = vpop.f32.mrb[0].mxu0
    %9273 = vdwg.mxu0
    %9274 = vmatprep.subr.bf16.mxu0 %v6286
    %9275 = vmatpush1.bf16.msra.mxu0 %v6285
    %9276 = vmatprep.subr.bf16.mxu0 %v6314
    %9277 = vmatpush1.bf16.msra.mxu0 %v6313
    %9278 = vmatprep.subr.bf16.mxu0 %v6342
    %9279 = vmatpush1.bf16.msra.mxu0 %v6341
    %9280 = vmatprep.subr.bf16.mxu0 %v6370
    %9281 = vmatpush1.bf16.msra.mxu0 %v6369
    %9282 = vmatprep.subr.bf16.mxu0 %v6398
    %9283 = vmatpush1.bf16.msra.mxu0 %v6397
    %9284 = vmatprep.subr.bf16.mxu0 %v6426
    %9285 = vmatpush1.bf16.msra.mxu0 %v6425
    %9286 = vmatprep.subr.bf16.mxu0 %v6454
    %9287 = vmatpush1.bf16.msra.mxu0 %v6453
    %9288 = vmatprep.subr.bf16.mxu0 %v6482
    %9289 = vmatpush1.bf16.msra.mxu0 %v6481
    %9290 = vmatprep.subr.bf16.mxu0 %v6510
    %9291 = vmatpush1.bf16.msra.mxu0 %v6509
    %9292 = vmatprep.subr.bf16.mxu0 %v6538
    %9293 = vmatpush1.bf16.msra.mxu0 %v6537
    %9294 = vmatprep.subr.bf16.mxu0 %v6566
    %9295 = vmatpush1.bf16.msra.mxu0 %v6565
    %9296 = vmatprep.subr.bf16.mxu0 %v6594
    %9297 = vmatpush1.bf16.msra.mxu0 %v6593
    %9298 = vmatprep.subr.bf16.mxu0 %v6622
    %9299 = vmatpush1.bf16.msra.mxu0 %v6621
    %9300 = vmatprep.subr.bf16.mxu0 %v6650
    %9301 = vmatpush1.bf16.msra.mxu0 %v6649
    %9302 = vmatprep.subr.bf16.mxu0 %v6678
    %9303 = vmatpush1.bf16.msra.mxu0 %v6677
    %9304 = vmatprep.subr.bf16.mxu0 %v6706
    %9305 = vmatpush1.bf16.msra.mxu0 %v6705
    %9306 = vmatprep.mubr.bf16.mxu0 %v1703
    %9307 = vmatmul.mubr.bf16.gmra.mrb[0].mxu0 %v1702
    %v9308 = vpop.f32.mrb[0].mxu0
    %v9309 = vadd.f32 %v9268, %v9308
    %v9310 = vpop.f32.mrb[0].mxu0
    %v9311 = vadd.f32 %v9270, %v9310
    %v9312 = vpop.f32.mrb[0].mxu0
    %v9313 = vpop.f32.mrb[0].mxu0
    %9314 = vdwg.mxu0
    %9315 = vmatprep.subr.bf16.mxu0 %v6734
    %9316 = vmatpush1.bf16.msra.mxu0 %v6733
    %9317 = vmatprep.subr.bf16.mxu0 %v6762
    %9318 = vmatpush1.bf16.msra.mxu0 %v6761
    %9319 = vmatprep.subr.bf16.mxu0 %v6790
    %9320 = vmatpush1.bf16.msra.mxu0 %v6789
    %9321 = vmatprep.subr.bf16.mxu0 %v6818
    %9322 = vmatpush1.bf16.msra.mxu0 %v6817
    %9323 = vmatprep.subr.bf16.mxu0 %v6846
    %9324 = vmatpush1.bf16.msra.mxu0 %v6845
    %9325 = vmatprep.subr.bf16.mxu0 %v6874
    %9326 = vmatpush1.bf16.msra.mxu0 %v6873
    %9327 = vmatprep.subr.bf16.mxu0 %v6902
    %9328 = vmatpush1.bf16.msra.mxu0 %v6901
    %9329 = vmatprep.subr.bf16.mxu0 %v6930
    %9330 = vmatpush1.bf16.msra.mxu0 %v6929
    %9331 = vmatprep.subr.bf16.mxu0 %v6958
    %9332 = vmatpush1.bf16.msra.mxu0 %v6957
    %9333 = vmatprep.subr.bf16.mxu0 %v6986
    %9334 = vmatpush1.bf16.msra.mxu0 %v6985
    %9335 = vmatprep.subr.bf16.mxu0 %v7014
    %9336 = vmatpush1.bf16.msra.mxu0 %v7013
    %9337 = vmatprep.subr.bf16.mxu0 %v7042
    %9338 = vmatpush1.bf16.msra.mxu0 %v7041
    %9339 = vmatprep.subr.bf16.mxu0 %v7070
    %9340 = vmatpush1.bf16.msra.mxu0 %v7069
    %9341 = vmatprep.subr.bf16.mxu0 %v7098
    %9342 = vmatpush1.bf16.msra.mxu0 %v7097
    %9343 = vmatprep.subr.bf16.mxu0 %v7126
    %9344 = vmatpush1.bf16.msra.mxu0 %v7125
    %9345 = vmatprep.subr.bf16.mxu0 %v7154
    %9346 = vmatpush1.bf16.msra.mxu0 %v7153
    %9347 = vmatprep.mubr.bf16.mxu0 %v1705
    %9348 = vmatmul.mubr.bf16.gmra.mrb[0].mxu0 %v1704
    %v9349 = vpop.f32.mrb[0].mxu0
    %v9350 = vadd.f32 %v9309, %v9349
    %v9351 = vpop.f32.mrb[0].mxu0
    %v9352 = vadd.f32 %v9311, %v9351
    %v9353 = vpop.f32.mrb[0].mxu0
    %v9354 = vpop.f32.mrb[0].mxu0
    %9355 = vdwg.mxu0
    %9356 = vmatprep.subr.bf16.mxu0 %v7182
    %9357 = vmatpush1.bf16.msra.mxu0 %v7181
    %9358 = vmatprep.subr.bf16.mxu0 0
    %9359 = vmatpush1.bf16.msra.mxu0 0
    %9360 = vmatprep.subr.bf16.mxu0 0
    %9361 = vmatpush1.bf16.msra.mxu0 0
    %9362 = vmatprep.subr.bf16.mxu0 0
    %9363 = vmatpush1.bf16.msra.mxu0 0
    %9364 = vmatprep.subr.bf16.mxu0 0
    %9365 = vmatpush1.bf16.msra.mxu0 0
    %9366 = vmatprep.subr.bf16.mxu0 0
    %9367 = vmatpush1.bf16.msra.mxu0 0
    %9368 = vmatprep.subr.bf16.mxu0 0
    %9369 = vmatpush1.bf16.msra.mxu0 0
    %9370 = vmatprep.subr.bf16.mxu0 0
    %9371 = vmatpush1.bf16.msra.mxu0 0
    %9372 = vmatprep.subr.bf16.mxu0 0
    %9373 = vmatpush1.bf16.msra.mxu0 0
    %9374 = vmatprep.subr.bf16.mxu0 0
    %9375 = vmatpush1.bf16.msra.mxu0 0
    %9376 = vmatprep.subr.bf16.mxu0 0
    %9377 = vmatpush1.bf16.msra.mxu0 0
    %9378 = vmatprep.subr.bf16.mxu0 0
    %9379 = vmatpush1.bf16.msra.mxu0 0
    %9380 = vmatprep.subr.bf16.mxu0 0
    %9381 = vmatpush1.bf16.msra.mxu0 0
    %9382 = vmatprep.subr.bf16.mxu0 0
    %9383 = vmatpush1.bf16.msra.mxu0 0
    %9384 = vmatprep.subr.bf16.mxu0 0
    %9385 = vmatpush1.bf16.msra.mxu0 0
    %9386 = vmatprep.subr.bf16.mxu0 0
    %9387 = vmatpush1.bf16.msra.mxu0 0
    %9388 = vmatprep.mubr.bf16.mxu0 0
    %9389 = vmatmul.mubr.bf16.gmra.mrb[0].mxu0 %v8575
    %v9390 = vpop.f32.mrb[0].mxu0
    %v9391 = vadd.f32 %v9350, %v9390
    %v9392 = vpop.f32.mrb[0].mxu0
    %v9393 = vadd.f32 %v9352, %v9392
    %v9394 = vpop.f32.mrb[0].mxu0
    %v9395 = vpop.f32.mrb[0].mxu0
    %9396 = vdwg.mxu0
    %9397 = vmatprep.subr.bf16.mxu0 %v5840
    %9398 = vmatpush1.bf16.msra.mxu0 %v5839
    %9399 = vmatprep.subr.bf16.mxu0 %v5868
    %9400 = vmatpush1.bf16.msra.mxu0 %v5867
    %9401 = vmatprep.subr.bf16.mxu0 %v5896
    %9402 = vmatpush1.bf16.msra.mxu0 %v5895
    %9403 = vmatprep.subr.bf16.mxu0 %v5924
    %9404 = vmatpush1.bf16.msra.mxu0 %v5923
    %9405 = vmatprep.subr.bf16.mxu0 %v5952
    %9406 = vmatpush1.bf16.msra.mxu0 %v5951
    %9407 = vmatprep.subr.bf16.mxu0 %v5980
    %9408 = vmatpush1.bf16.msra.mxu0 %v5979
    %9409 = vmatprep.subr.bf16.mxu0 %v6008
    %9410 = vmatpush1.bf16.msra.mxu0 %v6007
    %9411 = vmatprep.subr.bf16.mxu0 %v6036
    %9412 = vmatpush1.bf16.msra.mxu0 %v6035
    %9413 = vmatprep.subr.bf16.mxu0 %v6064
    %9414 = vmatpush1.bf16.msra.mxu0 %v6063
    %9415 = vmatprep.subr.bf16.mxu0 %v6092
    %9416 = vmatpush1.bf16.msra.mxu0 %v6091
    %9417 = vmatprep.subr.bf16.mxu0 %v6120
    %9418 = vmatpush1.bf16.msra.mxu0 %v6119
    %9419 = vmatprep.subr.bf16.mxu0 %v6148
    %9420 = vmatpush1.bf16.msra.mxu0 %v6147
    %9421 = vmatprep.subr.bf16.mxu0 %v6176
    %9422 = vmatpush1.bf16.msra.mxu0 %v6175
    %9423 = vmatprep.subr.bf16.mxu0 %v6204
    %9424 = vmatpush1.bf16.msra.mxu0 %v6203
    %9425 = vmatprep.subr.bf16.mxu0 %v6232
    %9426 = vmatpush1.bf16.msra.mxu0 %v6231
    %9427 = vmatprep.subr.bf16.mxu0 %v6260
    %9428 = vmatpush1.bf16.msra.mxu0 %v6259
    %9429 = vmatprep.mubr.bf16.mxu0 %v1701
    %9430 = vmatmul.mubr.bf16.gmra.mrb[0].mxu0 %v1700
    %v9431 = vpop.f32.mrb[0].mxu0
    %v9432 = vadd.f32 %v1592, %v9431
    %v9433 = vpop.f32.mrb[0].mxu0
    %v9434 = vadd.f32 %v1596, %v9433
    %v9435 = vpop.f32.mrb[0].mxu0
    %v9436 = vpop.f32.mrb[0].mxu0
    %9437 = vdwg.mxu0
    %9438 = vmatprep.subr.bf16.mxu0 %v6288
    %9439 = vmatpush1.bf16.msra.mxu0 %v6287
    %9440 = vmatprep.subr.bf16.mxu0 %v6316
    %9441 = vmatpush1.bf16.msra.mxu0 %v6315
    %9442 = vmatprep.subr.bf16.mxu0 %v6344
    %9443 = vmatpush1.bf16.msra.mxu0 %v6343
    %9444 = vmatprep.subr.bf16.mxu0 %v6372
    %9445 = vmatpush1.bf16.msra.mxu0 %v6371
    %9446 = vmatprep.subr.bf16.mxu0 %v6400
    %9447 = vmatpush1.bf16.msra.mxu0 %v6399
    %9448 = vmatprep.subr.bf16.mxu0 %v6428
    %9449 = vmatpush1.bf16.msra.mxu0 %v6427
    %9450 = vmatprep.subr.bf16.mxu0 %v6456
    %9451 = vmatpush1.bf16.msra.mxu0 %v6455
    %9452 = vmatprep.subr.bf16.mxu0 %v6484
    %9453 = vmatpush1.bf16.msra.mxu0 %v6483
    %9454 = vmatprep.subr.bf16.mxu0 %v6512
    %9455 = vmatpush1.bf16.msra.mxu0 %v6511
    %9456 = vmatprep.subr.bf16.mxu0 %v6540
    %9457 = vmatpush1.bf16.msra.mxu0 %v6539
    %9458 = vmatprep.subr.bf16.mxu0 %v6568
    %9459 = vmatpush1.bf16.msra.mxu0 %v6567
    %9460 = vmatprep.subr.bf16.mxu0 %v6596
    %9461 = vmatpush1.bf16.msra.mxu0 %v6595
    %9462 = vmatprep.subr.bf16.mxu0 %v6624
    %9463 = vmatpush1.bf16.msra.mxu0 %v6623
    %9464 = vmatprep.subr.bf16.mxu0 %v6652
    %9465 = vmatpush1.bf16.msra.mxu0 %v6651
    %9466 = vmatprep.subr.bf16.mxu0 %v6680
    %9467 = vmatpush1.bf16.msra.mxu0 %v6679
    %9468 = vmatprep.subr.bf16.mxu0 %v6708
    %9469 = vmatpush1.bf16.msra.mxu0 %v6707
    %9470 = vmatprep.mubr.bf16.mxu0 %v1703
    %9471 = vmatmul.mubr.bf16.gmra.mrb[0].mxu0 %v1702
    %v9472 = vpop.f32.mrb[0].mxu0
    %v9473 = vadd.f32 %v9432, %v9472
    %v9474 = vpop.f32.mrb[0].mxu0
    %v9475 = vadd.f32 %v9434, %v9474
    %v9476 = vpop.f32.mrb[0].mxu0
    %v9477 = vpop.f32.mrb[0].mxu0
    %9478 = vdwg.mxu0
    %9479 = vmatprep.subr.bf16.mxu0 %v6736
    %9480 = vmatpush1.bf16.msra.mxu0 %v6735
    %9481 = vmatprep.subr.bf16.mxu0 %v6764
    %9482 = vmatpush1.bf16.msra.mxu0 %v6763
    %9483 = vmatprep.subr.bf16.mxu0 %v6792
    %9484 = vmatpush1.bf16.msra.mxu0 %v6791
    %9485 = vmatprep.subr.bf16.mxu0 %v6820
    %9486 = vmatpush1.bf16.msra.mxu0 %v6819
    %9487 = vmatprep.subr.bf16.mxu0 %v6848
    %9488 = vmatpush1.bf16.msra.mxu0 %v6847
    %9489 = vmatprep.subr.bf16.mxu0 %v6876
    %9490 = vmatpush1.bf16.msra.mxu0 %v6875
    %9491 = vmatprep.subr.bf16.mxu0 %v6904
    %9492 = vmatpush1.bf16.msra.mxu0 %v6903
    %9493 = vmatprep.subr.bf16.mxu0 %v6932
    %9494 = vmatpush1.bf16.msra.mxu0 %v6931
    %9495 = vmatprep.subr.bf16.mxu0 %v6960
    %9496 = vmatpush1.bf16.msra.mxu0 %v6959
    %9497 = vmatprep.subr.bf16.mxu0 %v6988
    %9498 = vmatpush1.bf16.msra.mxu0 %v6987
    %9499 = vmatprep.subr.bf16.mxu0 %v7016
    %9500 = vmatpush1.bf16.msra.mxu0 %v7015
    %9501 = vmatprep.subr.bf16.mxu0 %v7044
    %9502 = vmatpush1.bf16.msra.mxu0 %v7043
    %9503 = vmatprep.subr.bf16.mxu0 %v7072
    %9504 = vmatpush1.bf16.msra.mxu0 %v7071
    %9505 = vmatprep.subr.bf16.mxu0 %v7100
    %9506 = vmatpush1.bf16.msra.mxu0 %v7099
    %9507 = vmatprep.subr.bf16.mxu0 %v7128
    %9508 = vmatpush1.bf16.msra.mxu0 %v7127
    %9509 = vmatprep.subr.bf16.mxu0 %v7156
    %9510 = vmatpush1.bf16.msra.mxu0 %v7155
    %9511 = vmatprep.mubr.bf16.mxu0 %v1705
    %9512 = vmatmul.mubr.bf16.gmra.mrb[0].mxu0 %v1704
    %v9513 = vpop.f32.mrb[0].mxu0
    %v9514 = vadd.f32 %v9473, %v9513
    %v9515 = vpop.f32.mrb[0].mxu0
    %v9516 = vadd.f32 %v9475, %v9515
    %v9517 = vpop.f32.mrb[0].mxu0
    %v9518 = vpop.f32.mrb[0].mxu0
    %9519 = vdwg.mxu0
    %9520 = vmatprep.subr.bf16.mxu0 %v7184
    %9521 = vmatpush1.bf16.msra.mxu0 %v7183
    %9522 = vmatprep.subr.bf16.mxu0 0
    %9523 = vmatpush1.bf16.msra.mxu0 0
    %9524 = vmatprep.subr.bf16.mxu0 0
    %9525 = vmatpush1.bf16.msra.mxu0 0
    %9526 = vmatprep.subr.bf16.mxu0 0
    %9527 = vmatpush1.bf16.msra.mxu0 0
    %9528 = vmatprep.subr.bf16.mxu0 0
    %9529 = vmatpush1.bf16.msra.mxu0 0
    %9530 = vmatprep.subr.bf16.mxu0 0
    %9531 = vmatpush1.bf16.msra.mxu0 0
    %9532 = vmatprep.subr.bf16.mxu0 0
    %9533 = vmatpush1.bf16.msra.mxu0 0
    %9534 = vmatprep.subr.bf16.mxu0 0
    %9535 = vmatpush1.bf16.msra.mxu0 0
    %9536 = vmatprep.subr.bf16.mxu0 0
    %9537 = vmatpush1.bf16.msra.mxu0 0
    %9538 = vmatprep.subr.bf16.mxu0 0
    %9539 = vmatpush1.bf16.msra.mxu0 0
    %9540 = vmatprep.subr.bf16.mxu0 0
    %9541 = vmatpush1.bf16.msra.mxu0 0
    %9542 = vmatprep.subr.bf16.mxu0 0
    %9543 = vmatpush1.bf16.msra.mxu0 0
    %9544 = vmatprep.subr.bf16.mxu0 0
    %9545 = vmatpush1.bf16.msra.mxu0 0
    %9546 = vmatprep.subr.bf16.mxu0 0
    %9547 = vmatpush1.bf16.msra.mxu0 0
    %9548 = vmatprep.subr.bf16.mxu0 0
    %9549 = vmatpush1.bf16.msra.mxu0 0
    %9550 = vmatprep.subr.bf16.mxu0 0
    %9551 = vmatpush1.bf16.msra.mxu0 0
    %9552 = vmatprep.mubr.bf16.mxu0 0
    %9553 = vmatmul.mubr.bf16.gmra.mrb[0].mxu0 %v8575
    %v9554 = vpop.f32.mrb[0].mxu0
    %v9555 = vadd.f32 %v9514, %v9554
    %v9556 = vpop.f32.mrb[0].mxu0
    %v9557 = vadd.f32 %v9516, %v9556
    %v9558 = vpop.f32.mrb[0].mxu0
    %v9559 = vpop.f32.mrb[0].mxu0
    %9560 = vdwg.mxu0
    %9561 = vmatprep.subr.bf16.mxu0 %v5842
    %9562 = vmatpush1.bf16.msra.mxu0 %v5841
    %9563 = vmatprep.subr.bf16.mxu0 %v5870
    %9564 = vmatpush1.bf16.msra.mxu0 %v5869
    %9565 = vmatprep.subr.bf16.mxu0 %v5898
    %9566 = vmatpush1.bf16.msra.mxu0 %v5897
    %9567 = vmatprep.subr.bf16.mxu0 %v5926
    %9568 = vmatpush1.bf16.msra.mxu0 %v5925
    %9569 = vmatprep.subr.bf16.mxu0 %v5954
    %9570 = vmatpush1.bf16.msra.mxu0 %v5953
    %9571 = vmatprep.subr.bf16.mxu0 %v5982
    %9572 = vmatpush1.bf16.msra.mxu0 %v5981
    %9573 = vmatprep.subr.bf16.mxu0 %v6010
    %9574 = vmatpush1.bf16.msra.mxu0 %v6009
    %9575 = vmatprep.subr.bf16.mxu0 %v6038
    %9576 = vmatpush1.bf16.msra.mxu0 %v6037
    %9577 = vmatprep.subr.bf16.mxu0 %v6066
    %9578 = vmatpush1.bf16.msra.mxu0 %v6065
    %9579 = vmatprep.subr.bf16.mxu0 %v6094
    %9580 = vmatpush1.bf16.msra.mxu0 %v6093
    %9581 = vmatprep.subr.bf16.mxu0 %v6122
    %9582 = vmatpush1.bf16.msra.mxu0 %v6121
    %9583 = vmatprep.subr.bf16.mxu0 %v6150
    %9584 = vmatpush1.bf16.msra.mxu0 %v6149
    %9585 = vmatprep.subr.bf16.mxu0 %v6178
    %9586 = vmatpush1.bf16.msra.mxu0 %v6177
    %9587 = vmatprep.subr.bf16.mxu0 %v6206
    %9588 = vmatpush1.bf16.msra.mxu0 %v6205
    %9589 = vmatprep.subr.bf16.mxu0 %v6234
    %9590 = vmatpush1.bf16.msra.mxu0 %v6233
    %9591 = vmatprep.subr.bf16.mxu0 %v6262
    %9592 = vmatpush1.bf16.msra.mxu0 %v6261
    %9593 = vmatprep.mubr.bf16.mxu0 %v1701
    %9594 = vmatmul.mubr.bf16.gmra.mrb[0].mxu0 %v1700
    %v9595 = vpop.f32.mrb[0].mxu0
    %v9596 = vadd.f32 %v1600, %v9595
    %v9597 = vpop.f32.mrb[0].mxu0
    %v9598 = vadd.f32 %v1604, %v9597
    %v9599 = vpop.f32.mrb[0].mxu0
    %v9600 = vpop.f32.mrb[0].mxu0
    %9601 = vdwg.mxu0
    %9602 = vmatprep.subr.bf16.mxu0 %v6290
    %9603 = vmatpush1.bf16.msra.mxu0 %v6289
    %9604 = vmatprep.subr.bf16.mxu0 %v6318
    %9605 = vmatpush1.bf16.msra.mxu0 %v6317
    %9606 = vmatprep.subr.bf16.mxu0 %v6346
    %9607 = vmatpush1.bf16.msra.mxu0 %v6345
    %9608 = vmatprep.subr.bf16.mxu0 %v6374
    %9609 = vmatpush1.bf16.msra.mxu0 %v6373
    %9610 = vmatprep.subr.bf16.mxu0 %v6402
    %9611 = vmatpush1.bf16.msra.mxu0 %v6401
    %9612 = vmatprep.subr.bf16.mxu0 %v6430
    %9613 = vmatpush1.bf16.msra.mxu0 %v6429
    %9614 = vmatprep.subr.bf16.mxu0 %v6458
    %9615 = vmatpush1.bf16.msra.mxu0 %v6457
    %9616 = vmatprep.subr.bf16.mxu0 %v6486
    %9617 = vmatpush1.bf16.msra.mxu0 %v6485
    %9618 = vmatprep.subr.bf16.mxu0 %v6514
    %9619 = vmatpush1.bf16.msra.mxu0 %v6513
    %9620 = vmatprep.subr.bf16.mxu0 %v6542
    %9621 = vmatpush1.bf16.msra.mxu0 %v6541
    %9622 = vmatprep.subr.bf16.mxu0 %v6570
    %9623 = vmatpush1.bf16.msra.mxu0 %v6569
    %9624 = vmatprep.subr.bf16.mxu0 %v6598
    %9625 = vmatpush1.bf16.msra.mxu0 %v6597
    %9626 = vmatprep.subr.bf16.mxu0 %v6626
    %9627 = vmatpush1.bf16.msra.mxu0 %v6625
    %9628 = vmatprep.subr.bf16.mxu0 %v6654
    %9629 = vmatpush1.bf16.msra.mxu0 %v6653
    %9630 = vmatprep.subr.bf16.mxu0 %v6682
    %9631 = vmatpush1.bf16.msra.mxu0 %v6681
    %9632 = vmatprep.subr.bf16.mxu0 %v6710
    %9633 = vmatpush1.bf16.msra.mxu0 %v6709
    %9634 = vmatprep.mubr.bf16.mxu0 %v1703
    %9635 = vmatmul.mubr.bf16.gmra.mrb[0].mxu0 %v1702
    %v9636 = vpop.f32.mrb[0].mxu0
    %v9637 = vadd.f32 %v9596, %v9636
    %v9638 = vpop.f32.mrb[0].mxu0
    %v9639 = vadd.f32 %v9598, %v9638
    %v9640 = vpop.f32.mrb[0].mxu0
    %v9641 = vpop.f32.mrb[0].mxu0
    %9642 = vdwg.mxu0
    %9643 = vmatprep.subr.bf16.mxu0 %v6738
    %9644 = vmatpush1.bf16.msra.mxu0 %v6737
    %9645 = vmatprep.subr.bf16.mxu0 %v6766
    %9646 = vmatpush1.bf16.msra.mxu0 %v6765
    %9647 = vmatprep.subr.bf16.mxu0 %v6794
    %9648 = vmatpush1.bf16.msra.mxu0 %v6793
    %9649 = vmatprep.subr.bf16.mxu0 %v6822
    %9650 = vmatpush1.bf16.msra.mxu0 %v6821
    %9651 = vmatprep.subr.bf16.mxu0 %v6850
    %9652 = vmatpush1.bf16.msra.mxu0 %v6849
    %9653 = vmatprep.subr.bf16.mxu0 %v6878
    %9654 = vmatpush1.bf16.msra.mxu0 %v6877
    %9655 = vmatprep.subr.bf16.mxu0 %v6906
    %9656 = vmatpush1.bf16.msra.mxu0 %v6905
    %9657 = vmatprep.subr.bf16.mxu0 %v6934
    %9658 = vmatpush1.bf16.msra.mxu0 %v6933
    %9659 = vmatprep.subr.bf16.mxu0 %v6962
    %9660 = vmatpush1.bf16.msra.mxu0 %v6961
    %9661 = vmatprep.subr.bf16.mxu0 %v6990
    %9662 = vmatpush1.bf16.msra.mxu0 %v6989
    %9663 = vmatprep.subr.bf16.mxu0 %v7018
    %9664 = vmatpush1.bf16.msra.mxu0 %v7017
    %9665 = vmatprep.subr.bf16.mxu0 %v7046
    %9666 = vmatpush1.bf16.msra.mxu0 %v7045
    %9667 = vmatprep.subr.bf16.mxu0 %v7074
    %9668 = vmatpush1.bf16.msra.mxu0 %v7073
    %9669 = vmatprep.subr.bf16.mxu0 %v7102
    %9670 = vmatpush1.bf16.msra.mxu0 %v7101
    %9671 = vmatprep.subr.bf16.mxu0 %v7130
    %9672 = vmatpush1.bf16.msra.mxu0 %v7129
    %9673 = vmatprep.subr.bf16.mxu0 %v7158
    %9674 = vmatpush1.bf16.msra.mxu0 %v7157
    %9675 = vmatprep.mubr.bf16.mxu0 %v1705
    %9676 = vmatmul.mubr.bf16.gmra.mrb[0].mxu0 %v1704
    %v9677 = vpop.f32.mrb[0].mxu0
    %v9678 = vadd.f32 %v9637, %v9677
    %v9679 = vpop.f32.mrb[0].mxu0
    %v9680 = vadd.f32 %v9639, %v9679
    %v9681 = vpop.f32.mrb[0].mxu0
    %v9682 = vpop.f32.mrb[0].mxu0
    %9683 = vdwg.mxu0
    %9684 = vmatprep.subr.bf16.mxu0 %v7186
    %9685 = vmatpush1.bf16.msra.mxu0 %v7185
    %9686 = vmatprep.subr.bf16.mxu0 0
    %9687 = vmatpush1.bf16.msra.mxu0 0
    %9688 = vmatprep.subr.bf16.mxu0 0
    %9689 = vmatpush1.bf16.msra.mxu0 0
    %9690 = vmatprep.subr.bf16.mxu0 0
    %9691 = vmatpush1.bf16.msra.mxu0 0
    %9692 = vmatprep.subr.bf16.mxu0 0
    %9693 = vmatpush1.bf16.msra.mxu0 0
    %9694 = vmatprep.subr.bf16.mxu0 0
    %9695 = vmatpush1.bf16.msra.mxu0 0
    %9696 = vmatprep.subr.bf16.mxu0 0
    %9697 = vmatpush1.bf16.msra.mxu0 0
    %9698 = vmatprep.subr.bf16.mxu0 0
    %9699 = vmatpush1.bf16.msra.mxu0 0
    %9700 = vmatprep.subr.bf16.mxu0 0
    %9701 = vmatpush1.bf16.msra.mxu0 0
    %9702 = vmatprep.subr.bf16.mxu0 0
    %9703 = vmatpush1.bf16.msra.mxu0 0
    %9704 = vmatprep.subr.bf16.mxu0 0
    %9705 = vmatpush1.bf16.msra.mxu0 0
    %9706 = vmatprep.subr.bf16.mxu0 0
    %9707 = vmatpush1.bf16.msra.mxu0 0
    %9708 = vmatprep.subr.bf16.mxu0 0
    %9709 = vmatpush1.bf16.msra.mxu0 0
    %9710 = vmatprep.subr.bf16.mxu0 0
    %9711 = vmatpush1.bf16.msra.mxu0 0
    %9712 = vmatprep.subr.bf16.mxu0 0
    %9713 = vmatpush1.bf16.msra.mxu0 0
    %9714 = vmatprep.subr.bf16.mxu0 0
    %9715 = vmatpush1.bf16.msra.mxu0 0
    %9716 = vmatprep.mubr.bf16.mxu0 0
    %9717 = vmatmul.mubr.bf16.gmra.mrb[0].mxu0 %v8575
    %v9718 = vpop.f32.mrb[0].mxu0
    %v9719 = vadd.f32 %v9678, %v9718
    %v9720 = vpop.f32.mrb[0].mxu0
    %v9721 = vadd.f32 %v9680, %v9720
    %v9722 = vpop.f32.mrb[0].mxu0
    %v9723 = vpop.f32.mrb[0].mxu0
    %9724 = vdwg.mxu0
    %9725 = vmatprep.subr.bf16.mxu0 %v5844
    %9726 = vmatpush1.bf16.msra.mxu0 %v5843
    %9727 = vmatprep.subr.bf16.mxu0 %v5872
    %9728 = vmatpush1.bf16.msra.mxu0 %v5871
    %9729 = vmatprep.subr.bf16.mxu0 %v5900
    %9730 = vmatpush1.bf16.msra.mxu0 %v5899
    %9731 = vmatprep.subr.bf16.mxu0 %v5928
    %9732 = vmatpush1.bf16.msra.mxu0 %v5927
    %9733 = vmatprep.subr.bf16.mxu0 %v5956
    %9734 = vmatpush1.bf16.msra.mxu0 %v5955
    %9735 = vmatprep.subr.bf16.mxu0 %v5984
    %9736 = vmatpush1.bf16.msra.mxu0 %v5983
    %9737 = vmatprep.subr.bf16.mxu0 %v6012
    %9738 = vmatpush1.bf16.msra.mxu0 %v6011
    %9739 = vmatprep.subr.bf16.mxu0 %v6040
    %9740 = vmatpush1.bf16.msra.mxu0 %v6039
    %9741 = vmatprep.subr.bf16.mxu0 %v6068
    %9742 = vmatpush1.bf16.msra.mxu0 %v6067
    %9743 = vmatprep.subr.bf16.mxu0 %v6096
    %9744 = vmatpush1.bf16.msra.mxu0 %v6095
    %9745 = vmatprep.subr.bf16.mxu0 %v6124
    %9746 = vmatpush1.bf16.msra.mxu0 %v6123
    %9747 = vmatprep.subr.bf16.mxu0 %v6152
    %9748 = vmatpush1.bf16.msra.mxu0 %v6151
    %9749 = vmatprep.subr.bf16.mxu0 %v6180
    %9750 = vmatpush1.bf16.msra.mxu0 %v6179
    %9751 = vmatprep.subr.bf16.mxu0 %v6208
    %9752 = vmatpush1.bf16.msra.mxu0 %v6207
    %9753 = vmatprep.subr.bf16.mxu0 %v6236
    %9754 = vmatpush1.bf16.msra.mxu0 %v6235
    %9755 = vmatprep.subr.bf16.mxu0 %v6264
    %9756 = vmatpush1.bf16.msra.mxu0 %v6263
    %9757 = vmatprep.mubr.bf16.mxu0 %v1701
    %9758 = vmatmul.mubr.bf16.gmra.mrb[0].mxu0 %v1700
    %v9759 = vpop.f32.mrb[0].mxu0
    %v9760 = vadd.f32 %v1608, %v9759
    %v9761 = vpop.f32.mrb[0].mxu0
    %v9762 = vadd.f32 %v1612, %v9761
    %v9763 = vpop.f32.mrb[0].mxu0
    %v9764 = vpop.f32.mrb[0].mxu0
    %9765 = vdwg.mxu0
    %9766 = vmatprep.subr.bf16.mxu0 %v6292
    %9767 = vmatpush1.bf16.msra.mxu0 %v6291
    %9768 = vmatprep.subr.bf16.mxu0 %v6320
    %9769 = vmatpush1.bf16.msra.mxu0 %v6319
    %9770 = vmatprep.subr.bf16.mxu0 %v6348
    %9771 = vmatpush1.bf16.msra.mxu0 %v6347
    %9772 = vmatprep.subr.bf16.mxu0 %v6376
    %9773 = vmatpush1.bf16.msra.mxu0 %v6375
    %9774 = vmatprep.subr.bf16.mxu0 %v6404
    %9775 = vmatpush1.bf16.msra.mxu0 %v6403
    %9776 = vmatprep.subr.bf16.mxu0 %v6432
    %9777 = vmatpush1.bf16.msra.mxu0 %v6431
    %9778 = vmatprep.subr.bf16.mxu0 %v6460
    %9779 = vmatpush1.bf16.msra.mxu0 %v6459
    %9780 = vmatprep.subr.bf16.mxu0 %v6488
    %9781 = vmatpush1.bf16.msra.mxu0 %v6487
    %9782 = vmatprep.subr.bf16.mxu0 %v6516
    %9783 = vmatpush1.bf16.msra.mxu0 %v6515
    %9784 = vmatprep.subr.bf16.mxu0 %v6544
    %9785 = vmatpush1.bf16.msra.mxu0 %v6543
    %9786 = vmatprep.subr.bf16.mxu0 %v6572
    %9787 = vmatpush1.bf16.msra.mxu0 %v6571
    %9788 = vmatprep.subr.bf16.mxu0 %v6600
    %9789 = vmatpush1.bf16.msra.mxu0 %v6599
    %9790 = vmatprep.subr.bf16.mxu0 %v6628
    %9791 = vmatpush1.bf16.msra.mxu0 %v6627
    %9792 = vmatprep.subr.bf16.mxu0 %v6656
    %9793 = vmatpush1.bf16.msra.mxu0 %v6655
    %9794 = vmatprep.subr.bf16.mxu0 %v6684
    %9795 = vmatpush1.bf16.msra.mxu0 %v6683
    %9796 = vmatprep.subr.bf16.mxu0 %v6712
    %9797 = vmatpush1.bf16.msra.mxu0 %v6711
    %9798 = vmatprep.mubr.bf16.mxu0 %v1703
    %9799 = vmatmul.mubr.bf16.gmra.mrb[0].mxu0 %v1702
    %v9800 = vpop.f32.mrb[0].mxu0
    %v9801 = vadd.f32 %v9760, %v9800
    %v9802 = vpop.f32.mrb[0].mxu0
    %v9803 = vadd.f32 %v9762, %v9802
    %v9804 = vpop.f32.mrb[0].mxu0
    %v9805 = vpop.f32.mrb[0].mxu0
    %9806 = vdwg.mxu0
    %9807 = vmatprep.subr.bf16.mxu0 %v6740
    %9808 = vmatpush1.bf16.msra.mxu0 %v6739
    %9809 = vmatprep.subr.bf16.mxu0 %v6768
    %9810 = vmatpush1.bf16.msra.mxu0 %v6767
    %9811 = vmatprep.subr.bf16.mxu0 %v6796
    %9812 = vmatpush1.bf16.msra.mxu0 %v6795
    %9813 = vmatprep.subr.bf16.mxu0 %v6824
    %9814 = vmatpush1.bf16.msra.mxu0 %v6823
    %9815 = vmatprep.subr.bf16.mxu0 %v6852
    %9816 = vmatpush1.bf16.msra.mxu0 %v6851
    %9817 = vmatprep.subr.bf16.mxu0 %v6880
    %9818 = vmatpush1.bf16.msra.mxu0 %v6879
    %9819 = vmatprep.subr.bf16.mxu0 %v6908
    %9820 = vmatpush1.bf16.msra.mxu0 %v6907
    %9821 = vmatprep.subr.bf16.mxu0 %v6936
    %9822 = vmatpush1.bf16.msra.mxu0 %v6935
    %9823 = vmatprep.subr.bf16.mxu0 %v6964
    %9824 = vmatpush1.bf16.msra.mxu0 %v6963
    %9825 = vmatprep.subr.bf16.mxu0 %v6992
    %9826 = vmatpush1.bf16.msra.mxu0 %v6991
    %9827 = vmatprep.subr.bf16.mxu0 %v7020
    %9828 = vmatpush1.bf16.msra.mxu0 %v7019
    %9829 = vmatprep.subr.bf16.mxu0 %v7048
    %9830 = vmatpush1.bf16.msra.mxu0 %v7047
    %9831 = vmatprep.subr.bf16.mxu0 %v7076
    %9832 = vmatpush1.bf16.msra.mxu0 %v7075
    %9833 = vmatprep.subr.bf16.mxu0 %v7104
    %9834 = vmatpush1.bf16.msra.mxu0 %v7103
    %9835 = vmatprep.subr.bf16.mxu0 %v7132
    %9836 = vmatpush1.bf16.msra.mxu0 %v7131
    %9837 = vmatprep.subr.bf16.mxu0 %v7160
    %9838 = vmatpush1.bf16.msra.mxu0 %v7159
    %9839 = vmatprep.mubr.bf16.mxu0 %v1705
    %9840 = vmatmul.mubr.bf16.gmra.mrb[0].mxu0 %v1704
    %v9841 = vpop.f32.mrb[0].mxu0
    %v9842 = vadd.f32 %v9801, %v9841
    %v9843 = vpop.f32.mrb[0].mxu0
    %v9844 = vadd.f32 %v9803, %v9843
    %v9845 = vpop.f32.mrb[0].mxu0
    %v9846 = vpop.f32.mrb[0].mxu0
    %9847 = vdwg.mxu0
    %9848 = vmatprep.subr.bf16.mxu0 %v7188
    %9849 = vmatpush1.bf16.msra.mxu0 %v7187
    %9850 = vmatprep.subr.bf16.mxu0 0
    %9851 = vmatpush1.bf16.msra.mxu0 0
    %9852 = vmatprep.subr.bf16.mxu0 0
    %9853 = vmatpush1.bf16.msra.mxu0 0
    %9854 = vmatprep.subr.bf16.mxu0 0
    %9855 = vmatpush1.bf16.msra.mxu0 0
    %9856 = vmatprep.subr.bf16.mxu0 0
    %9857 = vmatpush1.bf16.msra.mxu0 0
    %9858 = vmatprep.subr.bf16.mxu0 0
    %9859 = vmatpush1.bf16.msra.mxu0 0
    %9860 = vmatprep.subr.bf16.mxu0 0
    %9861 = vmatpush1.bf16.msra.mxu0 0
    %9862 = vmatprep.subr.bf16.mxu0 0
    %9863 = vmatpush1.bf16.msra.mxu0 0
    %9864 = vmatprep.subr.bf16.mxu0 0
    %9865 = vmatpush1.bf16.msra.mxu0 0
    %9866 = vmatprep.subr.bf16.mxu0 0
    %9867 = vmatpush1.bf16.msra.mxu0 0
    %9868 = vmatprep.subr.bf16.mxu0 0
    %9869 = vmatpush1.bf16.msra.mxu0 0
    %9870 = vmatprep.subr.bf16.mxu0 0
    %9871 = vmatpush1.bf16.msra.mxu0 0
    %9872 = vmatprep.subr.bf16.mxu0 0
    %9873 = vmatpush1.bf16.msra.mxu0 0
    %9874 = vmatprep.subr.bf16.mxu0 0
    %9875 = vmatpush1.bf16.msra.mxu0 0
    %9876 = vmatprep.subr.bf16.mxu0 0
    %9877 = vmatpush1.bf16.msra.mxu0 0
    %9878 = vmatprep.subr.bf16.mxu0 0
    %9879 = vmatpush1.bf16.msra.mxu0 0
    %9880 = vmatprep.mubr.bf16.mxu0 0
    %9881 = vmatmul.mubr.bf16.gmra.mrb[0].mxu0 %v8575
    %v9882 = vpop.f32.mrb[0].mxu0
    %v9883 = vadd.f32 %v9842, %v9882
    %v9884 = vpop.f32.mrb[0].mxu0
    %v9885 = vadd.f32 %v9844, %v9884
    %v9886 = vpop.f32.mrb[0].mxu0
    %v9887 = vpop.f32.mrb[0].mxu0
    %9888 = vdwg.mxu0
    %9889 = vmatprep.subr.bf16.mxu0 %v5846
    %9890 = vmatpush1.bf16.msra.mxu0 %v5845
    %9891 = vmatprep.subr.bf16.mxu0 %v5874
    %9892 = vmatpush1.bf16.msra.mxu0 %v5873
    %9893 = vmatprep.subr.bf16.mxu0 %v5902
    %9894 = vmatpush1.bf16.msra.mxu0 %v5901
    %9895 = vmatprep.subr.bf16.mxu0 %v5930
    %9896 = vmatpush1.bf16.msra.mxu0 %v5929
    %9897 = vmatprep.subr.bf16.mxu0 %v5958
    %9898 = vmatpush1.bf16.msra.mxu0 %v5957
    %9899 = vmatprep.subr.bf16.mxu0 %v5986
    %9900 = vmatpush1.bf16.msra.mxu0 %v5985
    %9901 = vmatprep.subr.bf16.mxu0 %v6014
    %9902 = vmatpush1.bf16.msra.mxu0 %v6013
    %9903 = vmatprep.subr.bf16.mxu0 %v6042
    %9904 = vmatpush1.bf16.msra.mxu0 %v6041
    %9905 = vmatprep.subr.bf16.mxu0 %v6070
    %9906 = vmatpush1.bf16.msra.mxu0 %v6069
    %9907 = vmatprep.subr.bf16.mxu0 %v6098
    %9908 = vmatpush1.bf16.msra.mxu0 %v6097
    %9909 = vmatprep.subr.bf16.mxu0 %v6126
    %9910 = vmatpush1.bf16.msra.mxu0 %v6125
    %9911 = vmatprep.subr.bf16.mxu0 %v6154
    %9912 = vmatpush1.bf16.msra.mxu0 %v6153
    %9913 = vmatprep.subr.bf16.mxu0 %v6182
    %9914 = vmatpush1.bf16.msra.mxu0 %v6181
    %9915 = vmatprep.subr.bf16.mxu0 %v6210
    %9916 = vmatpush1.bf16.msra.mxu0 %v6209
    %9917 = vmatprep.subr.bf16.mxu0 %v6238
    %9918 = vmatpush1.bf16.msra.mxu0 %v6237
    %9919 = vmatprep.subr.bf16.mxu0 %v6266
    %9920 = vmatpush1.bf16.msra.mxu0 %v6265
    %9921 = vmatprep.mubr.bf16.mxu0 %v1701
    %9922 = vmatmul.mubr.bf16.gmra.mrb[0].mxu0 %v1700
    %v9923 = vpop.f32.mrb[0].mxu0
    %v9924 = vadd.f32 %v1616, %v9923
    %v9925 = vpop.f32.mrb[0].mxu0
    %v9926 = vadd.f32 %v1620, %v9925
    %v9927 = vpop.f32.mrb[0].mxu0
    %v9928 = vpop.f32.mrb[0].mxu0
    %9929 = vdwg.mxu0
    %9930 = vmatprep.subr.bf16.mxu0 %v6294
    %9931 = vmatpush1.bf16.msra.mxu0 %v6293
    %9932 = vmatprep.subr.bf16.mxu0 %v6322
    %9933 = vmatpush1.bf16.msra.mxu0 %v6321
    %9934 = vmatprep.subr.bf16.mxu0 %v6350
    %9935 = vmatpush1.bf16.msra.mxu0 %v6349
    %9936 = vmatprep.subr.bf16.mxu0 %v6378
    %9937 = vmatpush1.bf16.msra.mxu0 %v6377
    %9938 = vmatprep.subr.bf16.mxu0 %v6406
    %9939 = vmatpush1.bf16.msra.mxu0 %v6405
    %9940 = vmatprep.subr.bf16.mxu0 %v6434
    %9941 = vmatpush1.bf16.msra.mxu0 %v6433
    %9942 = vmatprep.subr.bf16.mxu0 %v6462
    %9943 = vmatpush1.bf16.msra.mxu0 %v6461
    %9944 = vmatprep.subr.bf16.mxu0 %v6490
    %9945 = vmatpush1.bf16.msra.mxu0 %v6489
    %9946 = vmatprep.subr.bf16.mxu0 %v6518
    %9947 = vmatpush1.bf16.msra.mxu0 %v6517
    %9948 = vmatprep.subr.bf16.mxu0 %v6546
    %9949 = vmatpush1.bf16.msra.mxu0 %v6545
    %9950 = vmatprep.subr.bf16.mxu0 %v6574
    %9951 = vmatpush1.bf16.msra.mxu0 %v6573
    %9952 = vmatprep.subr.bf16.mxu0 %v6602
    %9953 = vmatpush1.bf16.msra.mxu0 %v6601
    %9954 = vmatprep.subr.bf16.mxu0 %v6630
    %9955 = vmatpush1.bf16.msra.mxu0 %v6629
    %9956 = vmatprep.subr.bf16.mxu0 %v6658
    %9957 = vmatpush1.bf16.msra.mxu0 %v6657
    %9958 = vmatprep.subr.bf16.mxu0 %v6686
    %9959 = vmatpush1.bf16.msra.mxu0 %v6685
    %9960 = vmatprep.subr.bf16.mxu0 %v6714
    %9961 = vmatpush1.bf16.msra.mxu0 %v6713
    %9962 = vmatprep.mubr.bf16.mxu0 %v1703
    %9963 = vmatmul.mubr.bf16.gmra.mrb[0].mxu0 %v1702
    %v9964 = vpop.f32.mrb[0].mxu0
    %v9965 = vadd.f32 %v9924, %v9964
    %v9966 = vpop.f32.mrb[0].mxu0
    %v9967 = vadd.f32 %v9926, %v9966
    %v9968 = vpop.f32.mrb[0].mxu0
    %v9969 = vpop.f32.mrb[0].mxu0
    %9970 = vdwg.mxu0
    %9971 = vmatprep.subr.bf16.mxu0 %v6742
    %9972 = vmatpush1.bf16.msra.mxu0 %v6741
    %9973 = vmatprep.subr.bf16.mxu0 %v6770
    %9974 = vmatpush1.bf16.msra.mxu0 %v6769
    %9975 = vmatprep.subr.bf16.mxu0 %v6798
    %9976 = vmatpush1.bf16.msra.mxu0 %v6797
    %9977 = vmatprep.subr.bf16.mxu0 %v6826
    %9978 = vmatpush1.bf16.msra.mxu0 %v6825
    %9979 = vmatprep.subr.bf16.mxu0 %v6854
    %9980 = vmatpush1.bf16.msra.mxu0 %v6853
    %9981 = vmatprep.subr.bf16.mxu0 %v6882
    %9982 = vmatpush1.bf16.msra.mxu0 %v6881
    %9983 = vmatprep.subr.bf16.mxu0 %v6910
    %9984 = vmatpush1.bf16.msra.mxu0 %v6909
    %9985 = vmatprep.subr.bf16.mxu0 %v6938
    %9986 = vmatpush1.bf16.msra.mxu0 %v6937
    %9987 = vmatprep.subr.bf16.mxu0 %v6966
    %9988 = vmatpush1.bf16.msra.mxu0 %v6965
    %9989 = vmatprep.subr.bf16.mxu0 %v6994
    %9990 = vmatpush1.bf16.msra.mxu0 %v6993
    %9991 = vmatprep.subr.bf16.mxu0 %v7022
    %9992 = vmatpush1.bf16.msra.mxu0 %v7021
    %9993 = vmatprep.subr.bf16.mxu0 %v7050
    %9994 = vmatpush1.bf16.msra.mxu0 %v7049
    %9995 = vmatprep.subr.bf16.mxu0 %v7078
    %9996 = vmatpush1.bf16.msra.mxu0 %v7077
    %9997 = vmatprep.subr.bf16.mxu0 %v7106
    %9998 = vmatpush1.bf16.msra.mxu0 %v7105
    %9999 = vmatprep.subr.bf16.mxu0 %v7134
    %10000 = vmatpush1.bf16.msra.mxu0 %v7133
    %10001 = vmatprep.subr.bf16.mxu0 %v7162
    %10002 = vmatpush1.bf16.msra.mxu0 %v7161
    %10003 = vmatprep.mubr.bf16.mxu0 %v1705
    %10004 = vmatmul.mubr.bf16.gmra.mrb[0].mxu0 %v1704
    %v10005 = vpop.f32.mrb[0].mxu0
    %v10006 = vadd.f32 %v9965, %v10005
    %v10007 = vpop.f32.mrb[0].mxu0
    %v10008 = vadd.f32 %v9967, %v10007
    %v10009 = vpop.f32.mrb[0].mxu0
    %v10010 = vpop.f32.mrb[0].mxu0
    %10011 = vdwg.mxu0
    %10012 = vmatprep.subr.bf16.mxu0 %v7190
    %10013 = vmatpush1.bf16.msra.mxu0 %v7189
    %10014 = vmatprep.subr.bf16.mxu0 0
    %10015 = vmatpush1.bf16.msra.mxu0 0
    %10016 = vmatprep.subr.bf16.mxu0 0
    %10017 = vmatpush1.bf16.msra.mxu0 0
    %10018 = vmatprep.subr.bf16.mxu0 0
    %10019 = vmatpush1.bf16.msra.mxu0 0
    %10020 = vmatprep.subr.bf16.mxu0 0
    %10021 = vmatpush1.bf16.msra.mxu0 0
    %10022 = vmatprep.subr.bf16.mxu0 0
    %10023 = vmatpush1.bf16.msra.mxu0 0
    %10024 = vmatprep.subr.bf16.mxu0 0
    %10025 = vmatpush1.bf16.msra.mxu0 0
    %10026 = vmatprep.subr.bf16.mxu0 0
    %10027 = vmatpush1.bf16.msra.mxu0 0
    %10028 = vmatprep.subr.bf16.mxu0 0
    %10029 = vmatpush1.bf16.msra.mxu0 0
    %10030 = vmatprep.subr.bf16.mxu0 0
    %10031 = vmatpush1.bf16.msra.mxu0 0
    %10032 = vmatprep.subr.bf16.mxu0 0
    %10033 = vmatpush1.bf16.msra.mxu0 0
    %10034 = vmatprep.subr.bf16.mxu0 0
    %10035 = vmatpush1.bf16.msra.mxu0 0
    %10036 = vmatprep.subr.bf16.mxu0 0
    %10037 = vmatpush1.bf16.msra.mxu0 0
    %10038 = vmatprep.subr.bf16.mxu0 0
    %10039 = vmatpush1.bf16.msra.mxu0 0
    %10040 = vmatprep.subr.bf16.mxu0 0
    %10041 = vmatpush1.bf16.msra.mxu0 0
    %10042 = vmatprep.subr.bf16.mxu0 0
    %10043 = vmatpush1.bf16.msra.mxu0 0
    %10044 = vmatprep.mubr.bf16.mxu0 0
    %10045 = vmatmul.mubr.bf16.gmra.mrb[0].mxu0 %v8575
    %v10046 = vpop.f32.mrb[0].mxu0
    %v10047 = vadd.f32 %v10006, %v10046
    %v10048 = vpop.f32.mrb[0].mxu0
    %v10049 = vadd.f32 %v10008, %v10048
    %v10050 = vpop.f32.mrb[0].mxu0
    %v10051 = vpop.f32.mrb[0].mxu0
    %10052 = vdwg.mxu0
    %10053 = vmatprep.subr.bf16.mxu0 %v5848
    %10054 = vmatpush1.bf16.msra.mxu0 %v5847
    %10055 = vmatprep.subr.bf16.mxu0 %v5876
    %10056 = vmatpush1.bf16.msra.mxu0 %v5875
    %10057 = vmatprep.subr.bf16.mxu0 %v5904
    %10058 = vmatpush1.bf16.msra.mxu0 %v5903
    %10059 = vmatprep.subr.bf16.mxu0 %v5932
    %10060 = vmatpush1.bf16.msra.mxu0 %v5931
    %10061 = vmatprep.subr.bf16.mxu0 %v5960
    %10062 = vmatpush1.bf16.msra.mxu0 %v5959
    %10063 = vmatprep.subr.bf16.mxu0 %v5988
    %10064 = vmatpush1.bf16.msra.mxu0 %v5987
    %10065 = vmatprep.subr.bf16.mxu0 %v6016
    %10066 = vmatpush1.bf16.msra.mxu0 %v6015
    %10067 = vmatprep.subr.bf16.mxu0 %v6044
    %10068 = vmatpush1.bf16.msra.mxu0 %v6043
    %10069 = vmatprep.subr.bf16.mxu0 %v6072
    %10070 = vmatpush1.bf16.msra.mxu0 %v6071
    %10071 = vmatprep.subr.bf16.mxu0 %v6100
    %10072 = vmatpush1.bf16.msra.mxu0 %v6099
    %10073 = vmatprep.subr.bf16.mxu0 %v6128
    %10074 = vmatpush1.bf16.msra.mxu0 %v6127
    %10075 = vmatprep.subr.bf16.mxu0 %v6156
    %10076 = vmatpush1.bf16.msra.mxu0 %v6155
    %10077 = vmatprep.subr.bf16.mxu0 %v6184
    %10078 = vmatpush1.bf16.msra.mxu0 %v6183
    %10079 = vmatprep.subr.bf16.mxu0 %v6212
    %10080 = vmatpush1.bf16.msra.mxu0 %v6211
    %10081 = vmatprep.subr.bf16.mxu0 %v6240
    %10082 = vmatpush1.bf16.msra.mxu0 %v6239
    %10083 = vmatprep.subr.bf16.mxu0 %v6268
    %10084 = vmatpush1.bf16.msra.mxu0 %v6267
    %10085 = vmatprep.mubr.bf16.mxu0 %v1701
    %10086 = vmatmul.mubr.bf16.gmra.mrb[0].mxu0 %v1700
    %v10087 = vpop.f32.mrb[0].mxu0
    %v10088 = vadd.f32 %v1624, %v10087
    %v10089 = vpop.f32.mrb[0].mxu0
    %v10090 = vadd.f32 %v1628, %v10089
    %v10091 = vpop.f32.mrb[0].mxu0
    %v10092 = vpop.f32.mrb[0].mxu0
    %10093 = vdwg.mxu0
    %10094 = vmatprep.subr.bf16.mxu0 %v6296
    %10095 = vmatpush1.bf16.msra.mxu0 %v6295
    %10096 = vmatprep.subr.bf16.mxu0 %v6324
    %10097 = vmatpush1.bf16.msra.mxu0 %v6323
    %10098 = vmatprep.subr.bf16.mxu0 %v6352
    %10099 = vmatpush1.bf16.msra.mxu0 %v6351
    %10100 = vmatprep.subr.bf16.mxu0 %v6380
    %10101 = vmatpush1.bf16.msra.mxu0 %v6379
    %10102 = vmatprep.subr.bf16.mxu0 %v6408
    %10103 = vmatpush1.bf16.msra.mxu0 %v6407
    %10104 = vmatprep.subr.bf16.mxu0 %v6436
    %10105 = vmatpush1.bf16.msra.mxu0 %v6435
    %10106 = vmatprep.subr.bf16.mxu0 %v6464
    %10107 = vmatpush1.bf16.msra.mxu0 %v6463
    %10108 = vmatprep.subr.bf16.mxu0 %v6492
    %10109 = vmatpush1.bf16.msra.mxu0 %v6491
    %10110 = vmatprep.subr.bf16.mxu0 %v6520
    %10111 = vmatpush1.bf16.msra.mxu0 %v6519
    %10112 = vmatprep.subr.bf16.mxu0 %v6548
    %10113 = vmatpush1.bf16.msra.mxu0 %v6547
    %10114 = vmatprep.subr.bf16.mxu0 %v6576
    %10115 = vmatpush1.bf16.msra.mxu0 %v6575
    %10116 = vmatprep.subr.bf16.mxu0 %v6604
    %10117 = vmatpush1.bf16.msra.mxu0 %v6603
    %10118 = vmatprep.subr.bf16.mxu0 %v6632
    %10119 = vmatpush1.bf16.msra.mxu0 %v6631
    %10120 = vmatprep.subr.bf16.mxu0 %v6660
    %10121 = vmatpush1.bf16.msra.mxu0 %v6659
    %10122 = vmatprep.subr.bf16.mxu0 %v6688
    %10123 = vmatpush1.bf16.msra.mxu0 %v6687
    %10124 = vmatprep.subr.bf16.mxu0 %v6716
    %10125 = vmatpush1.bf16.msra.mxu0 %v6715
    %10126 = vmatprep.mubr.bf16.mxu0 %v1703
    %10127 = vmatmul.mubr.bf16.gmra.mrb[0].mxu0 %v1702
    %v10128 = vpop.f32.mrb[0].mxu0
    %v10129 = vadd.f32 %v10088, %v10128
    %v10130 = vpop.f32.mrb[0].mxu0
    %v10131 = vadd.f32 %v10090, %v10130
    %v10132 = vpop.f32.mrb[0].mxu0
    %v10133 = vpop.f32.mrb[0].mxu0
    %10134 = vdwg.mxu0
    %10135 = vmatprep.subr.bf16.mxu0 %v6744
    %10136 = vmatpush1.bf16.msra.mxu0 %v6743
    %10137 = vmatprep.subr.bf16.mxu0 %v6772
    %10138 = vmatpush1.bf16.msra.mxu0 %v6771
    %10139 = vmatprep.subr.bf16.mxu0 %v6800
    %10140 = vmatpush1.bf16.msra.mxu0 %v6799
    %10141 = vmatprep.subr.bf16.mxu0 %v6828
    %10142 = vmatpush1.bf16.msra.mxu0 %v6827
    %10143 = vmatprep.subr.bf16.mxu0 %v6856
    %10144 = vmatpush1.bf16.msra.mxu0 %v6855
    %10145 = vmatprep.subr.bf16.mxu0 %v6884
    %10146 = vmatpush1.bf16.msra.mxu0 %v6883
    %10147 = vmatprep.subr.bf16.mxu0 %v6912
    %10148 = vmatpush1.bf16.msra.mxu0 %v6911
    %10149 = vmatprep.subr.bf16.mxu0 %v6940
    %10150 = vmatpush1.bf16.msra.mxu0 %v6939
    %10151 = vmatprep.subr.bf16.mxu0 %v6968
    %10152 = vmatpush1.bf16.msra.mxu0 %v6967
    %10153 = vmatprep.subr.bf16.mxu0 %v6996
    %10154 = vmatpush1.bf16.msra.mxu0 %v6995
    %10155 = vmatprep.subr.bf16.mxu0 %v7024
    %10156 = vmatpush1.bf16.msra.mxu0 %v7023
    %10157 = vmatprep.subr.bf16.mxu0 %v7052
    %10158 = vmatpush1.bf16.msra.mxu0 %v7051
    %10159 = vmatprep.subr.bf16.mxu0 %v7080
    %10160 = vmatpush1.bf16.msra.mxu0 %v7079
    %10161 = vmatprep.subr.bf16.mxu0 %v7108
    %10162 = vmatpush1.bf16.msra.mxu0 %v7107
    %10163 = vmatprep.subr.bf16.mxu0 %v7136
    %10164 = vmatpush1.bf16.msra.mxu0 %v7135
    %10165 = vmatprep.subr.bf16.mxu0 %v7164
    %10166 = vmatpush1.bf16.msra.mxu0 %v7163
    %10167 = vmatprep.mubr.bf16.mxu0 %v1705
    %10168 = vmatmul.mubr.bf16.gmra.mrb[0].mxu0 %v1704
    %v10169 = vpop.f32.mrb[0].mxu0
    %v10170 = vadd.f32 %v10129, %v10169
    %v10171 = vpop.f32.mrb[0].mxu0
    %v10172 = vadd.f32 %v10131, %v10171
    %v10173 = vpop.f32.mrb[0].mxu0
    %v10174 = vpop.f32.mrb[0].mxu0
    %10175 = vdwg.mxu0
    %10176 = vmatprep.subr.bf16.mxu0 %v7192
    %10177 = vmatpush1.bf16.msra.mxu0 %v7191
    %10178 = vmatprep.subr.bf16.mxu0 0
    %10179 = vmatpush1.bf16.msra.mxu0 0
    %10180 = vmatprep.subr.bf16.mxu0 0
    %10181 = vmatpush1.bf16.msra.mxu0 0
    %10182 = vmatprep.subr.bf16.mxu0 0
    %10183 = vmatpush1.bf16.msra.mxu0 0
    %10184 = vmatprep.subr.bf16.mxu0 0
    %10185 = vmatpush1.bf16.msra.mxu0 0
    %10186 = vmatprep.subr.bf16.mxu0 0
    %10187 = vmatpush1.bf16.msra.mxu0 0
    %10188 = vmatprep.subr.bf16.mxu0 0
    %10189 = vmatpush1.bf16.msra.mxu0 0
    %10190 = vmatprep.subr.bf16.mxu0 0
    %10191 = vmatpush1.bf16.msra.mxu0 0
    %10192 = vmatprep.subr.bf16.mxu0 0
    %10193 = vmatpush1.bf16.msra.mxu0 0
    %10194 = vmatprep.subr.bf16.mxu0 0
    %10195 = vmatpush1.bf16.msra.mxu0 0
    %10196 = vmatprep.subr.bf16.mxu0 0
    %10197 = vmatpush1.bf16.msra.mxu0 0
    %10198 = vmatprep.subr.bf16.mxu0 0
    %10199 = vmatpush1.bf16.msra.mxu0 0
    %10200 = vmatprep.subr.bf16.mxu0 0
    %10201 = vmatpush1.bf16.msra.mxu0 0
    %10202 = vmatprep.subr.bf16.mxu0 0
    %10203 = vmatpush1.bf16.msra.mxu0 0
    %10204 = vmatprep.subr.bf16.mxu0 0
    %10205 = vmatpush1.bf16.msra.mxu0 0
    %10206 = vmatprep.subr.bf16.mxu0 0
    %10207 = vmatpush1.bf16.msra.mxu0 0
    %10208 = vmatprep.mubr.bf16.mxu0 0
    %10209 = vmatmul.mubr.bf16.gmra.mrb[0].mxu0 %v8575
    %v10210 = vpop.f32.mrb[0].mxu0
    %v10211 = vadd.f32 %v10170, %v10210
    %v10212 = vpop.f32.mrb[0].mxu0
    %v10213 = vadd.f32 %v10172, %v10212
    %v10214 = vpop.f32.mrb[0].mxu0
    %v10215 = vpop.f32.mrb[0].mxu0
    %10216 = vdwg.mxu0
    %10217 = vmatprep.subr.bf16.mxu0 %v5850
    %10218 = vmatpush1.bf16.msra.mxu0 %v5849
    %10219 = vmatprep.subr.bf16.mxu0 %v5878
    %10220 = vmatpush1.bf16.msra.mxu0 %v5877
    %10221 = vmatprep.subr.bf16.mxu0 %v5906
    %10222 = vmatpush1.bf16.msra.mxu0 %v5905
    %10223 = vmatprep.subr.bf16.mxu0 %v5934
    %10224 = vmatpush1.bf16.msra.mxu0 %v5933
    %10225 = vmatprep.subr.bf16.mxu0 %v5962
    %10226 = vmatpush1.bf16.msra.mxu0 %v5961
    %10227 = vmatprep.subr.bf16.mxu0 %v5990
    %10228 = vmatpush1.bf16.msra.mxu0 %v5989
    %10229 = vmatprep.subr.bf16.mxu0 %v6018
    %10230 = vmatpush1.bf16.msra.mxu0 %v6017
    %10231 = vmatprep.subr.bf16.mxu0 %v6046
    %10232 = vmatpush1.bf16.msra.mxu0 %v6045
    %10233 = vmatprep.subr.bf16.mxu0 %v6074
    %10234 = vmatpush1.bf16.msra.mxu0 %v6073
    %10235 = vmatprep.subr.bf16.mxu0 %v6102
    %10236 = vmatpush1.bf16.msra.mxu0 %v6101
    %10237 = vmatprep.subr.bf16.mxu0 %v6130
    %10238 = vmatpush1.bf16.msra.mxu0 %v6129
    %10239 = vmatprep.subr.bf16.mxu0 %v6158
    %10240 = vmatpush1.bf16.msra.mxu0 %v6157
    %10241 = vmatprep.subr.bf16.mxu0 %v6186
    %10242 = vmatpush1.bf16.msra.mxu0 %v6185
    %10243 = vmatprep.subr.bf16.mxu0 %v6214
    %10244 = vmatpush1.bf16.msra.mxu0 %v6213
    %10245 = vmatprep.subr.bf16.mxu0 %v6242
    %10246 = vmatpush1.bf16.msra.mxu0 %v6241
    %10247 = vmatprep.subr.bf16.mxu0 %v6270
    %10248 = vmatpush1.bf16.msra.mxu0 %v6269
    %10249 = vmatprep.mubr.bf16.mxu0 %v1701
    %10250 = vmatmul.mubr.bf16.gmra.mrb[0].mxu0 %v1700
    %v10251 = vpop.f32.mrb[0].mxu0
    %v10252 = vadd.f32 %v1632, %v10251
    %v10253 = vpop.f32.mrb[0].mxu0
    %v10254 = vadd.f32 %v1636, %v10253
    %v10255 = vpop.f32.mrb[0].mxu0
    %v10256 = vpop.f32.mrb[0].mxu0
    %10257 = vdwg.mxu0
    %10258 = vmatprep.subr.bf16.mxu0 %v6298
    %10259 = vmatpush1.bf16.msra.mxu0 %v6297
    %10260 = vmatprep.subr.bf16.mxu0 %v6326
    %10261 = vmatpush1.bf16.msra.mxu0 %v6325
    %10262 = vmatprep.subr.bf16.mxu0 %v6354
    %10263 = vmatpush1.bf16.msra.mxu0 %v6353
    %10264 = vmatprep.subr.bf16.mxu0 %v6382
    %10265 = vmatpush1.bf16.msra.mxu0 %v6381
    %10266 = vmatprep.subr.bf16.mxu0 %v6410
    %10267 = vmatpush1.bf16.msra.mxu0 %v6409
    %10268 = vmatprep.subr.bf16.mxu0 %v6438
    %10269 = vmatpush1.bf16.msra.mxu0 %v6437
    %10270 = vmatprep.subr.bf16.mxu0 %v6466
    %10271 = vmatpush1.bf16.msra.mxu0 %v6465
    %10272 = vmatprep.subr.bf16.mxu0 %v6494
    %10273 = vmatpush1.bf16.msra.mxu0 %v6493
    %10274 = vmatprep.subr.bf16.mxu0 %v6522
    %10275 = vmatpush1.bf16.msra.mxu0 %v6521
    %10276 = vmatprep.subr.bf16.mxu0 %v6550
    %10277 = vmatpush1.bf16.msra.mxu0 %v6549
    %10278 = vmatprep.subr.bf16.mxu0 %v6578
    %10279 = vmatpush1.bf16.msra.mxu0 %v6577
    %10280 = vmatprep.subr.bf16.mxu0 %v6606
    %10281 = vmatpush1.bf16.msra.mxu0 %v6605
    %10282 = vmatprep.subr.bf16.mxu0 %v6634
    %10283 = vmatpush1.bf16.msra.mxu0 %v6633
    %10284 = vmatprep.subr.bf16.mxu0 %v6662
    %10285 = vmatpush1.bf16.msra.mxu0 %v6661
    %10286 = vmatprep.subr.bf16.mxu0 %v6690
    %10287 = vmatpush1.bf16.msra.mxu0 %v6689
    %10288 = vmatprep.subr.bf16.mxu0 %v6718
    %10289 = vmatpush1.bf16.msra.mxu0 %v6717
    %10290 = vmatprep.mubr.bf16.mxu0 %v1703
    %10291 = vmatmul.mubr.bf16.gmra.mrb[0].mxu0 %v1702
    %v10292 = vpop.f32.mrb[0].mxu0
    %v10293 = vadd.f32 %v10252, %v10292
    %v10294 = vpop.f32.mrb[0].mxu0
    %v10295 = vadd.f32 %v10254, %v10294
    %v10296 = vpop.f32.mrb[0].mxu0
    %v10297 = vpop.f32.mrb[0].mxu0
    %10298 = vdwg.mxu0
    %10299 = vmatprep.subr.bf16.mxu0 %v6746
    %10300 = vmatpush1.bf16.msra.mxu0 %v6745
    %10301 = vmatprep.subr.bf16.mxu0 %v6774
    %10302 = vmatpush1.bf16.msra.mxu0 %v6773
    %10303 = vmatprep.subr.bf16.mxu0 %v6802
    %10304 = vmatpush1.bf16.msra.mxu0 %v6801
    %10305 = vmatprep.subr.bf16.mxu0 %v6830
    %10306 = vmatpush1.bf16.msra.mxu0 %v6829
    %10307 = vmatprep.subr.bf16.mxu0 %v6858
    %10308 = vmatpush1.bf16.msra.mxu0 %v6857
    %10309 = vmatprep.subr.bf16.mxu0 %v6886
    %10310 = vmatpush1.bf16.msra.mxu0 %v6885
    %10311 = vmatprep.subr.bf16.mxu0 %v6914
    %10312 = vmatpush1.bf16.msra.mxu0 %v6913
    %10313 = vmatprep.subr.bf16.mxu0 %v6942
    %10314 = vmatpush1.bf16.msra.mxu0 %v6941
    %10315 = vmatprep.subr.bf16.mxu0 %v6970
    %10316 = vmatpush1.bf16.msra.mxu0 %v6969
    %10317 = vmatprep.subr.bf16.mxu0 %v6998
    %10318 = vmatpush1.bf16.msra.mxu0 %v6997
    %10319 = vmatprep.subr.bf16.mxu0 %v7026
    %10320 = vmatpush1.bf16.msra.mxu0 %v7025
    %10321 = vmatprep.subr.bf16.mxu0 %v7054
    %10322 = vmatpush1.bf16.msra.mxu0 %v7053
    %10323 = vmatprep.subr.bf16.mxu0 %v7082
    %10324 = vmatpush1.bf16.msra.mxu0 %v7081
    %10325 = vmatprep.subr.bf16.mxu0 %v7110
    %10326 = vmatpush1.bf16.msra.mxu0 %v7109
    %10327 = vmatprep.subr.bf16.mxu0 %v7138
    %10328 = vmatpush1.bf16.msra.mxu0 %v7137
    %10329 = vmatprep.subr.bf16.mxu0 %v7166
    %10330 = vmatpush1.bf16.msra.mxu0 %v7165
    %10331 = vmatprep.mubr.bf16.mxu0 %v1705
    %10332 = vmatmul.mubr.bf16.gmra.mrb[0].mxu0 %v1704
    %v10333 = vpop.f32.mrb[0].mxu0
    %v10334 = vadd.f32 %v10293, %v10333
    %v10335 = vpop.f32.mrb[0].mxu0
    %v10336 = vadd.f32 %v10295, %v10335
    %v10337 = vpop.f32.mrb[0].mxu0
    %v10338 = vpop.f32.mrb[0].mxu0
    %10339 = vdwg.mxu0
    %10340 = vmatprep.subr.bf16.mxu0 %v7194
    %10341 = vmatpush1.bf16.msra.mxu0 %v7193
    %10342 = vmatprep.subr.bf16.mxu0 0
    %10343 = vmatpush1.bf16.msra.mxu0 0
    %10344 = vmatprep.subr.bf16.mxu0 0
    %10345 = vmatpush1.bf16.msra.mxu0 0
    %10346 = vmatprep.subr.bf16.mxu0 0
    %10347 = vmatpush1.bf16.msra.mxu0 0
    %10348 = vmatprep.subr.bf16.mxu0 0
    %10349 = vmatpush1.bf16.msra.mxu0 0
    %10350 = vmatprep.subr.bf16.mxu0 0
    %10351 = vmatpush1.bf16.msra.mxu0 0
    %10352 = vmatprep.subr.bf16.mxu0 0
    %10353 = vmatpush1.bf16.msra.mxu0 0
    %10354 = vmatprep.subr.bf16.mxu0 0
    %10355 = vmatpush1.bf16.msra.mxu0 0
    %10356 = vmatprep.subr.bf16.mxu0 0
    %10357 = vmatpush1.bf16.msra.mxu0 0
    %10358 = vmatprep.subr.bf16.mxu0 0
    %10359 = vmatpush1.bf16.msra.mxu0 0
    %10360 = vmatprep.subr.bf16.mxu0 0
    %10361 = vmatpush1.bf16.msra.mxu0 0
    %10362 = vmatprep.subr.bf16.mxu0 0
    %10363 = vmatpush1.bf16.msra.mxu0 0
    %10364 = vmatprep.subr.bf16.mxu0 0
    %10365 = vmatpush1.bf16.msra.mxu0 0
    %10366 = vmatprep.subr.bf16.mxu0 0
    %10367 = vmatpush1.bf16.msra.mxu0 0
    %10368 = vmatprep.subr.bf16.mxu0 0
    %10369 = vmatpush1.bf16.msra.mxu0 0
    %10370 = vmatprep.subr.bf16.mxu0 0
    %10371 = vmatpush1.bf16.msra.mxu0 0
    %10372 = vmatprep.mubr.bf16.mxu0 0
    %10373 = vmatmul.mubr.bf16.gmra.mrb[0].mxu0 %v8575
    %v10374 = vpop.f32.mrb[0].mxu0
    %v10375 = vadd.f32 %v10334, %v10374
    %v10376 = vpop.f32.mrb[0].mxu0
    %v10377 = vadd.f32 %v10336, %v10376
    %v10378 = vpop.f32.mrb[0].mxu0
    %v10379 = vpop.f32.mrb[0].mxu0
    %10380 = vdwg.mxu0
    %10381 = vmatprep.subr.bf16.mxu0 %v5852
    %10382 = vmatpush1.bf16.msra.mxu0 %v5851
    %10383 = vmatprep.subr.bf16.mxu0 %v5880
    %10384 = vmatpush1.bf16.msra.mxu0 %v5879
    %10385 = vmatprep.subr.bf16.mxu0 %v5908
    %10386 = vmatpush1.bf16.msra.mxu0 %v5907
    %10387 = vmatprep.subr.bf16.mxu0 %v5936
    %10388 = vmatpush1.bf16.msra.mxu0 %v5935
    %10389 = vmatprep.subr.bf16.mxu0 %v5964
    %10390 = vmatpush1.bf16.msra.mxu0 %v5963
    %10391 = vmatprep.subr.bf16.mxu0 %v5992
    %10392 = vmatpush1.bf16.msra.mxu0 %v5991
    %10393 = vmatprep.subr.bf16.mxu0 %v6020
    %10394 = vmatpush1.bf16.msra.mxu0 %v6019
    %10395 = vmatprep.subr.bf16.mxu0 %v6048
    %10396 = vmatpush1.bf16.msra.mxu0 %v6047
    %10397 = vmatprep.subr.bf16.mxu0 %v6076
    %10398 = vmatpush1.bf16.msra.mxu0 %v6075
    %10399 = vmatprep.subr.bf16.mxu0 %v6104
    %10400 = vmatpush1.bf16.msra.mxu0 %v6103
    %10401 = vmatprep.subr.bf16.mxu0 %v6132
    %10402 = vmatpush1.bf16.msra.mxu0 %v6131
    %10403 = vmatprep.subr.bf16.mxu0 %v6160
    %10404 = vmatpush1.bf16.msra.mxu0 %v6159
    %10405 = vmatprep.subr.bf16.mxu0 %v6188
    %10406 = vmatpush1.bf16.msra.mxu0 %v6187
    %10407 = vmatprep.subr.bf16.mxu0 %v6216
    %10408 = vmatpush1.bf16.msra.mxu0 %v6215
    %10409 = vmatprep.subr.bf16.mxu0 %v6244
    %10410 = vmatpush1.bf16.msra.mxu0 %v6243
    %10411 = vmatprep.subr.bf16.mxu0 %v6272
    %10412 = vmatpush1.bf16.msra.mxu0 %v6271
    %10413 = vmatprep.mubr.bf16.mxu0 %v1701
    %10414 = vmatmul.mubr.bf16.gmra.mrb[0].mxu0 %v1700
    %v10415 = vpop.f32.mrb[0].mxu0
    %v10416 = vadd.f32 %v1640, %v10415
    %v10417 = vpop.f32.mrb[0].mxu0
    %v10418 = vadd.f32 %v1644, %v10417
    %v10419 = vpop.f32.mrb[0].mxu0
    %v10420 = vpop.f32.mrb[0].mxu0
    %10421 = vdwg.mxu0
    %10422 = vmatprep.subr.bf16.mxu0 %v6300
    %10423 = vmatpush1.bf16.msra.mxu0 %v6299
    %10424 = vmatprep.subr.bf16.mxu0 %v6328
    %10425 = vmatpush1.bf16.msra.mxu0 %v6327
    %10426 = vmatprep.subr.bf16.mxu0 %v6356
    %10427 = vmatpush1.bf16.msra.mxu0 %v6355
    %10428 = vmatprep.subr.bf16.mxu0 %v6384
    %10429 = vmatpush1.bf16.msra.mxu0 %v6383
    %10430 = vmatprep.subr.bf16.mxu0 %v6412
    %10431 = vmatpush1.bf16.msra.mxu0 %v6411
    %10432 = vmatprep.subr.bf16.mxu0 %v6440
    %10433 = vmatpush1.bf16.msra.mxu0 %v6439
    %10434 = vmatprep.subr.bf16.mxu0 %v6468
    %10435 = vmatpush1.bf16.msra.mxu0 %v6467
    %10436 = vmatprep.subr.bf16.mxu0 %v6496
    %10437 = vmatpush1.bf16.msra.mxu0 %v6495
    %10438 = vmatprep.subr.bf16.mxu0 %v6524
    %10439 = vmatpush1.bf16.msra.mxu0 %v6523
    %10440 = vmatprep.subr.bf16.mxu0 %v6552
    %10441 = vmatpush1.bf16.msra.mxu0 %v6551
    %10442 = vmatprep.subr.bf16.mxu0 %v6580
    %10443 = vmatpush1.bf16.msra.mxu0 %v6579
    %10444 = vmatprep.subr.bf16.mxu0 %v6608
    %10445 = vmatpush1.bf16.msra.mxu0 %v6607
    %10446 = vmatprep.subr.bf16.mxu0 %v6636
    %10447 = vmatpush1.bf16.msra.mxu0 %v6635
    %10448 = vmatprep.subr.bf16.mxu0 %v6664
    %10449 = vmatpush1.bf16.msra.mxu0 %v6663
    %10450 = vmatprep.subr.bf16.mxu0 %v6692
    %10451 = vmatpush1.bf16.msra.mxu0 %v6691
    %10452 = vmatprep.subr.bf16.mxu0 %v6720
    %10453 = vmatpush1.bf16.msra.mxu0 %v6719
    %10454 = vmatprep.mubr.bf16.mxu0 %v1703
    %10455 = vmatmul.mubr.bf16.gmra.mrb[0].mxu0 %v1702
    %v10456 = vpop.f32.mrb[0].mxu0
    %v10457 = vadd.f32 %v10416, %v10456
    %v10458 = vpop.f32.mrb[0].mxu0
    %v10459 = vadd.f32 %v10418, %v10458
    %v10460 = vpop.f32.mrb[0].mxu0
    %v10461 = vpop.f32.mrb[0].mxu0
    %10462 = vdwg.mxu0
    %10463 = vmatprep.subr.bf16.mxu0 %v6748
    %10464 = vmatpush1.bf16.msra.mxu0 %v6747
    %10465 = vmatprep.subr.bf16.mxu0 %v6776
    %10466 = vmatpush1.bf16.msra.mxu0 %v6775
    %10467 = vmatprep.subr.bf16.mxu0 %v6804
    %10468 = vmatpush1.bf16.msra.mxu0 %v6803
    %10469 = vmatprep.subr.bf16.mxu0 %v6832
    %10470 = vmatpush1.bf16.msra.mxu0 %v6831
    %10471 = vmatprep.subr.bf16.mxu0 %v6860
    %10472 = vmatpush1.bf16.msra.mxu0 %v6859
    %10473 = vmatprep.subr.bf16.mxu0 %v6888
    %10474 = vmatpush1.bf16.msra.mxu0 %v6887
    %10475 = vmatprep.subr.bf16.mxu0 %v6916
    %10476 = vmatpush1.bf16.msra.mxu0 %v6915
    %10477 = vmatprep.subr.bf16.mxu0 %v6944
    %10478 = vmatpush1.bf16.msra.mxu0 %v6943
    %10479 = vmatprep.subr.bf16.mxu0 %v6972
    %10480 = vmatpush1.bf16.msra.mxu0 %v6971
    %10481 = vmatprep.subr.bf16.mxu0 %v7000
    %10482 = vmatpush1.bf16.msra.mxu0 %v6999
    %10483 = vmatprep.subr.bf16.mxu0 %v7028
    %10484 = vmatpush1.bf16.msra.mxu0 %v7027
    %10485 = vmatprep.subr.bf16.mxu0 %v7056
    %10486 = vmatpush1.bf16.msra.mxu0 %v7055
    %10487 = vmatprep.subr.bf16.mxu0 %v7084
    %10488 = vmatpush1.bf16.msra.mxu0 %v7083
    %10489 = vmatprep.subr.bf16.mxu0 %v7112
    %10490 = vmatpush1.bf16.msra.mxu0 %v7111
    %10491 = vmatprep.subr.bf16.mxu0 %v7140
    %10492 = vmatpush1.bf16.msra.mxu0 %v7139
    %10493 = vmatprep.subr.bf16.mxu0 %v7168
    %10494 = vmatpush1.bf16.msra.mxu0 %v7167
    %10495 = vmatprep.mubr.bf16.mxu0 %v1705
    %10496 = vmatmul.mubr.bf16.gmra.mrb[0].mxu0 %v1704
    %v10497 = vpop.f32.mrb[0].mxu0
    %v10498 = vadd.f32 %v10457, %v10497
    %v10499 = vpop.f32.mrb[0].mxu0
    %v10500 = vadd.f32 %v10459, %v10499
    %v10501 = vpop.f32.mrb[0].mxu0
    %v10502 = vpop.f32.mrb[0].mxu0
    %10503 = vdwg.mxu0
    %10504 = vmatprep.subr.bf16.mxu0 %v7196
    %10505 = vmatpush1.bf16.msra.mxu0 %v7195
    %10506 = vmatprep.subr.bf16.mxu0 0
    %10507 = vmatpush1.bf16.msra.mxu0 0
    %10508 = vmatprep.subr.bf16.mxu0 0
    %10509 = vmatpush1.bf16.msra.mxu0 0
    %10510 = vmatprep.subr.bf16.mxu0 0
    %10511 = vmatpush1.bf16.msra.mxu0 0
    %10512 = vmatprep.subr.bf16.mxu0 0
    %10513 = vmatpush1.bf16.msra.mxu0 0
    %10514 = vmatprep.subr.bf16.mxu0 0
    %10515 = vmatpush1.bf16.msra.mxu0 0
    %10516 = vmatprep.subr.bf16.mxu0 0
    %10517 = vmatpush1.bf16.msra.mxu0 0
    %10518 = vmatprep.subr.bf16.mxu0 0
    %10519 = vmatpush1.bf16.msra.mxu0 0
    %10520 = vmatprep.subr.bf16.mxu0 0
    %10521 = vmatpush1.bf16.msra.mxu0 0
    %10522 = vmatprep.subr.bf16.mxu0 0
    %10523 = vmatpush1.bf16.msra.mxu0 0
    %10524 = vmatprep.subr.bf16.mxu0 0
    %10525 = vmatpush1.bf16.msra.mxu0 0
    %10526 = vmatprep.subr.bf16.mxu0 0
    %10527 = vmatpush1.bf16.msra.mxu0 0
    %10528 = vmatprep.subr.bf16.mxu0 0
    %10529 = vmatpush1.bf16.msra.mxu0 0
    %10530 = vmatprep.subr.bf16.mxu0 0
    %10531 = vmatpush1.bf16.msra.mxu0 0
    %10532 = vmatprep.subr.bf16.mxu0 0
    %10533 = vmatpush1.bf16.msra.mxu0 0
    %10534 = vmatprep.subr.bf16.mxu0 0
    %10535 = vmatpush1.bf16.msra.mxu0 0
    %10536 = vmatprep.mubr.bf16.mxu0 0
    %10537 = vmatmul.mubr.bf16.gmra.mrb[0].mxu0 %v8575
    %v10538 = vpop.f32.mrb[0].mxu0
    %v10539 = vadd.f32 %v10498, %v10538
    %v10540 = vpop.f32.mrb[0].mxu0
    %v10541 = vadd.f32 %v10500, %v10540
    %v10542 = vpop.f32.mrb[0].mxu0
    %v10543 = vpop.f32.mrb[0].mxu0
    %10544 = vdwg.mxu0
    %10545 = vmatprep.subr.bf16.mxu0 %v5854
    %10546 = vmatpush1.bf16.msra.mxu0 %v5853
    %10547 = vmatprep.subr.bf16.mxu0 %v5882
    %10548 = vmatpush1.bf16.msra.mxu0 %v5881
    %10549 = vmatprep.subr.bf16.mxu0 %v5910
    %10550 = vmatpush1.bf16.msra.mxu0 %v5909
    %10551 = vmatprep.subr.bf16.mxu0 %v5938
    %10552 = vmatpush1.bf16.msra.mxu0 %v5937
    %10553 = vmatprep.subr.bf16.mxu0 %v5966
    %10554 = vmatpush1.bf16.msra.mxu0 %v5965
    %10555 = vmatprep.subr.bf16.mxu0 %v5994
    %10556 = vmatpush1.bf16.msra.mxu0 %v5993
    %10557 = vmatprep.subr.bf16.mxu0 %v6022
    %10558 = vmatpush1.bf16.msra.mxu0 %v6021
    %10559 = vmatprep.subr.bf16.mxu0 %v6050
    %10560 = vmatpush1.bf16.msra.mxu0 %v6049
    %10561 = vmatprep.subr.bf16.mxu0 %v6078
    %10562 = vmatpush1.bf16.msra.mxu0 %v6077
    %10563 = vmatprep.subr.bf16.mxu0 %v6106
    %10564 = vmatpush1.bf16.msra.mxu0 %v6105
    %10565 = vmatprep.subr.bf16.mxu0 %v6134
    %10566 = vmatpush1.bf16.msra.mxu0 %v6133
    %10567 = vmatprep.subr.bf16.mxu0 %v6162
    %10568 = vmatpush1.bf16.msra.mxu0 %v6161
    %10569 = vmatprep.subr.bf16.mxu0 %v6190
    %10570 = vmatpush1.bf16.msra.mxu0 %v6189
    %10571 = vmatprep.subr.bf16.mxu0 %v6218
    %10572 = vmatpush1.bf16.msra.mxu0 %v6217
    %10573 = vmatprep.subr.bf16.mxu0 %v6246
    %10574 = vmatpush1.bf16.msra.mxu0 %v6245
    %10575 = vmatprep.subr.bf16.mxu0 %v6274
    %10576 = vmatpush1.bf16.msra.mxu0 %v6273
    %10577 = vmatprep.mubr.bf16.mxu0 %v1701
    %10578 = vmatmul.mubr.bf16.gmra.mrb[0].mxu0 %v1700
    %v10579 = vpop.f32.mrb[0].mxu0
    %v10580 = vadd.f32 %v1648, %v10579
    %v10581 = vpop.f32.mrb[0].mxu0
    %v10582 = vadd.f32 %v1652, %v10581
    %v10583 = vpop.f32.mrb[0].mxu0
    %v10584 = vpop.f32.mrb[0].mxu0
    %10585 = vdwg.mxu0
    %10586 = vmatprep.subr.bf16.mxu0 %v6302
    %10587 = vmatpush1.bf16.msra.mxu0 %v6301
    %10588 = vmatprep.subr.bf16.mxu0 %v6330
    %10589 = vmatpush1.bf16.msra.mxu0 %v6329
    %10590 = vmatprep.subr.bf16.mxu0 %v6358
    %10591 = vmatpush1.bf16.msra.mxu0 %v6357
    %10592 = vmatprep.subr.bf16.mxu0 %v6386
    %10593 = vmatpush1.bf16.msra.mxu0 %v6385
    %10594 = vmatprep.subr.bf16.mxu0 %v6414
    %10595 = vmatpush1.bf16.msra.mxu0 %v6413
    %10596 = vmatprep.subr.bf16.mxu0 %v6442
    %10597 = vmatpush1.bf16.msra.mxu0 %v6441
    %10598 = vmatprep.subr.bf16.mxu0 %v6470
    %10599 = vmatpush1.bf16.msra.mxu0 %v6469
    %10600 = vmatprep.subr.bf16.mxu0 %v6498
    %10601 = vmatpush1.bf16.msra.mxu0 %v6497
    %10602 = vmatprep.subr.bf16.mxu0 %v6526
    %10603 = vmatpush1.bf16.msra.mxu0 %v6525
    %10604 = vmatprep.subr.bf16.mxu0 %v6554
    %10605 = vmatpush1.bf16.msra.mxu0 %v6553
    %10606 = vmatprep.subr.bf16.mxu0 %v6582
    %10607 = vmatpush1.bf16.msra.mxu0 %v6581
    %10608 = vmatprep.subr.bf16.mxu0 %v6610
    %10609 = vmatpush1.bf16.msra.mxu0 %v6609
    %10610 = vmatprep.subr.bf16.mxu0 %v6638
    %10611 = vmatpush1.bf16.msra.mxu0 %v6637
    %10612 = vmatprep.subr.bf16.mxu0 %v6666
    %10613 = vmatpush1.bf16.msra.mxu0 %v6665
    %10614 = vmatprep.subr.bf16.mxu0 %v6694
    %10615 = vmatpush1.bf16.msra.mxu0 %v6693
    %10616 = vmatprep.subr.bf16.mxu0 %v6722
    %10617 = vmatpush1.bf16.msra.mxu0 %v6721
    %10618 = vmatprep.mubr.bf16.mxu0 %v1703
    %10619 = vmatmul.mubr.bf16.gmra.mrb[0].mxu0 %v1702
    %v10620 = vpop.f32.mrb[0].mxu0
    %v10621 = vadd.f32 %v10580, %v10620
    %v10622 = vpop.f32.mrb[0].mxu0
    %v10623 = vadd.f32 %v10582, %v10622
    %v10624 = vpop.f32.mrb[0].mxu0
    %v10625 = vpop.f32.mrb[0].mxu0
    %10626 = vdwg.mxu0
    %10627 = vmatprep.subr.bf16.mxu0 %v6750
    %10628 = vmatpush1.bf16.msra.mxu0 %v6749
    %10629 = vmatprep.subr.bf16.mxu0 %v6778
    %10630 = vmatpush1.bf16.msra.mxu0 %v6777
    %10631 = vmatprep.subr.bf16.mxu0 %v6806
    %10632 = vmatpush1.bf16.msra.mxu0 %v6805
    %10633 = vmatprep.subr.bf16.mxu0 %v6834
    %10634 = vmatpush1.bf16.msra.mxu0 %v6833
    %10635 = vmatprep.subr.bf16.mxu0 %v6862
    %10636 = vmatpush1.bf16.msra.mxu0 %v6861
    %10637 = vmatprep.subr.bf16.mxu0 %v6890
    %10638 = vmatpush1.bf16.msra.mxu0 %v6889
    %10639 = vmatprep.subr.bf16.mxu0 %v6918
    %10640 = vmatpush1.bf16.msra.mxu0 %v6917
    %10641 = vmatprep.subr.bf16.mxu0 %v6946
    %10642 = vmatpush1.bf16.msra.mxu0 %v6945
    %10643 = vmatprep.subr.bf16.mxu0 %v6974
    %10644 = vmatpush1.bf16.msra.mxu0 %v6973
    %10645 = vmatprep.subr.bf16.mxu0 %v7002
    %10646 = vmatpush1.bf16.msra.mxu0 %v7001
    %10647 = vmatprep.subr.bf16.mxu0 %v7030
    %10648 = vmatpush1.bf16.msra.mxu0 %v7029
    %10649 = vmatprep.subr.bf16.mxu0 %v7058
    %10650 = vmatpush1.bf16.msra.mxu0 %v7057
    %10651 = vmatprep.subr.bf16.mxu0 %v7086
    %10652 = vmatpush1.bf16.msra.mxu0 %v7085
    %10653 = vmatprep.subr.bf16.mxu0 %v7114
    %10654 = vmatpush1.bf16.msra.mxu0 %v7113
    %10655 = vmatprep.subr.bf16.mxu0 %v7142
    %10656 = vmatpush1.bf16.msra.mxu0 %v7141
    %10657 = vmatprep.subr.bf16.mxu0 %v7170
    %10658 = vmatpush1.bf16.msra.mxu0 %v7169
    %10659 = vmatprep.mubr.bf16.mxu0 %v1705
    %10660 = vmatmul.mubr.bf16.gmra.mrb[0].mxu0 %v1704
    %v10661 = vpop.f32.mrb[0].mxu0
    %v10662 = vadd.f32 %v10621, %v10661
    %v10663 = vpop.f32.mrb[0].mxu0
    %v10664 = vadd.f32 %v10623, %v10663
    %v10665 = vpop.f32.mrb[0].mxu0
    %v10666 = vpop.f32.mrb[0].mxu0
    %10667 = vdwg.mxu0
    %10668 = vmatprep.subr.bf16.mxu0 %v7198
    %10669 = vmatpush1.bf16.msra.mxu0 %v7197
    %10670 = vmatprep.subr.bf16.mxu0 0
    %10671 = vmatpush1.bf16.msra.mxu0 0
    %10672 = vmatprep.subr.bf16.mxu0 0
    %10673 = vmatpush1.bf16.msra.mxu0 0
    %10674 = vmatprep.subr.bf16.mxu0 0
    %10675 = vmatpush1.bf16.msra.mxu0 0
    %10676 = vmatprep.subr.bf16.mxu0 0
    %10677 = vmatpush1.bf16.msra.mxu0 0
    %10678 = vmatprep.subr.bf16.mxu0 0
    %10679 = vmatpush1.bf16.msra.mxu0 0
    %10680 = vmatprep.subr.bf16.mxu0 0
    %10681 = vmatpush1.bf16.msra.mxu0 0
    %10682 = vmatprep.subr.bf16.mxu0 0
    %10683 = vmatpush1.bf16.msra.mxu0 0
    %10684 = vmatprep.subr.bf16.mxu0 0
    %10685 = vmatpush1.bf16.msra.mxu0 0
    %10686 = vmatprep.subr.bf16.mxu0 0
    %10687 = vmatpush1.bf16.msra.mxu0 0
    %10688 = vmatprep.subr.bf16.mxu0 0
    %10689 = vmatpush1.bf16.msra.mxu0 0
    %10690 = vmatprep.subr.bf16.mxu0 0
    %10691 = vmatpush1.bf16.msra.mxu0 0
    %10692 = vmatprep.subr.bf16.mxu0 0
    %10693 = vmatpush1.bf16.msra.mxu0 0
    %10694 = vmatprep.subr.bf16.mxu0 0
    %10695 = vmatpush1.bf16.msra.mxu0 0
    %10696 = vmatprep.subr.bf16.mxu0 0
    %10697 = vmatpush1.bf16.msra.mxu0 0
    %10698 = vmatprep.subr.bf16.mxu0 0
    %10699 = vmatpush1.bf16.msra.mxu0 0
    %10700 = vmatprep.mubr.bf16.mxu0 0
    %10701 = vmatmul.mubr.bf16.gmra.mrb[0].mxu0 %v8575
    %v10702 = vpop.f32.mrb[0].mxu0
    %v10703 = vadd.f32 %v10662, %v10702
    %v10704 = vpop.f32.mrb[0].mxu0
    %v10705 = vadd.f32 %v10664, %v10704
    %v10706 = vpop.f32.mrb[0].mxu0
    %v10707 = vpop.f32.mrb[0].mxu0
    %10708 = vdwg.mxu0
    %10709 = vmatprep.subr.bf16.mxu0 %v5856
    %10710 = vmatpush1.bf16.msra.mxu0 %v5855
    %10711 = vmatprep.subr.bf16.mxu0 %v5884
    %10712 = vmatpush1.bf16.msra.mxu0 %v5883
    %10713 = vmatprep.subr.bf16.mxu0 %v5912
    %10714 = vmatpush1.bf16.msra.mxu0 %v5911
    %10715 = vmatprep.subr.bf16.mxu0 %v5940
    %10716 = vmatpush1.bf16.msra.mxu0 %v5939
    %10717 = vmatprep.subr.bf16.mxu0 %v5968
    %10718 = vmatpush1.bf16.msra.mxu0 %v5967
    %10719 = vmatprep.subr.bf16.mxu0 %v5996
    %10720 = vmatpush1.bf16.msra.mxu0 %v5995
    %10721 = vmatprep.subr.bf16.mxu0 %v6024
    %10722 = vmatpush1.bf16.msra.mxu0 %v6023
    %10723 = vmatprep.subr.bf16.mxu0 %v6052
    %10724 = vmatpush1.bf16.msra.mxu0 %v6051
    %10725 = vmatprep.subr.bf16.mxu0 %v6080
    %10726 = vmatpush1.bf16.msra.mxu0 %v6079
    %10727 = vmatprep.subr.bf16.mxu0 %v6108
    %10728 = vmatpush1.bf16.msra.mxu0 %v6107
    %10729 = vmatprep.subr.bf16.mxu0 %v6136
    %10730 = vmatpush1.bf16.msra.mxu0 %v6135
    %10731 = vmatprep.subr.bf16.mxu0 %v6164
    %10732 = vmatpush1.bf16.msra.mxu0 %v6163
    %10733 = vmatprep.subr.bf16.mxu0 %v6192
    %10734 = vmatpush1.bf16.msra.mxu0 %v6191
    %10735 = vmatprep.subr.bf16.mxu0 %v6220
    %10736 = vmatpush1.bf16.msra.mxu0 %v6219
    %10737 = vmatprep.subr.bf16.mxu0 %v6248
    %10738 = vmatpush1.bf16.msra.mxu0 %v6247
    %10739 = vmatprep.subr.bf16.mxu0 %v6276
    %10740 = vmatpush1.bf16.msra.mxu0 %v6275
    %10741 = vmatprep.mubr.bf16.mxu0 %v1701
    %10742 = vmatmul.mubr.bf16.gmra.mrb[0].mxu0 %v1700
    %v10743 = vpop.f32.mrb[0].mxu0
    %v10744 = vadd.f32 %v1656, %v10743
    %v10745 = vpop.f32.mrb[0].mxu0
    %v10746 = vadd.f32 %v1660, %v10745
    %v10747 = vpop.f32.mrb[0].mxu0
    %v10748 = vpop.f32.mrb[0].mxu0
    %10749 = vdwg.mxu0
    %10750 = vmatprep.subr.bf16.mxu0 %v6304
    %10751 = vmatpush1.bf16.msra.mxu0 %v6303
    %10752 = vmatprep.subr.bf16.mxu0 %v6332
    %10753 = vmatpush1.bf16.msra.mxu0 %v6331
    %10754 = vmatprep.subr.bf16.mxu0 %v6360
    %10755 = vmatpush1.bf16.msra.mxu0 %v6359
    %10756 = vmatprep.subr.bf16.mxu0 %v6388
    %10757 = vmatpush1.bf16.msra.mxu0 %v6387
    %10758 = vmatprep.subr.bf16.mxu0 %v6416
    %10759 = vmatpush1.bf16.msra.mxu0 %v6415
    %10760 = vmatprep.subr.bf16.mxu0 %v6444
    %10761 = vmatpush1.bf16.msra.mxu0 %v6443
    %10762 = vmatprep.subr.bf16.mxu0 %v6472
    %10763 = vmatpush1.bf16.msra.mxu0 %v6471
    %10764 = vmatprep.subr.bf16.mxu0 %v6500
    %10765 = vmatpush1.bf16.msra.mxu0 %v6499
    %10766 = vmatprep.subr.bf16.mxu0 %v6528
    %10767 = vmatpush1.bf16.msra.mxu0 %v6527
    %10768 = vmatprep.subr.bf16.mxu0 %v6556
    %10769 = vmatpush1.bf16.msra.mxu0 %v6555
    %10770 = vmatprep.subr.bf16.mxu0 %v6584
    %10771 = vmatpush1.bf16.msra.mxu0 %v6583
    %10772 = vmatprep.subr.bf16.mxu0 %v6612
    %10773 = vmatpush1.bf16.msra.mxu0 %v6611
    %10774 = vmatprep.subr.bf16.mxu0 %v6640
    %10775 = vmatpush1.bf16.msra.mxu0 %v6639
    %10776 = vmatprep.subr.bf16.mxu0 %v6668
    %10777 = vmatpush1.bf16.msra.mxu0 %v6667
    %10778 = vmatprep.subr.bf16.mxu0 %v6696
    %10779 = vmatpush1.bf16.msra.mxu0 %v6695
    %10780 = vmatprep.subr.bf16.mxu0 %v6724
    %10781 = vmatpush1.bf16.msra.mxu0 %v6723
    %10782 = vmatprep.mubr.bf16.mxu0 %v1703
    %10783 = vmatmul.mubr.bf16.gmra.mrb[0].mxu0 %v1702
    %v10784 = vpop.f32.mrb[0].mxu0
    %v10785 = vadd.f32 %v10744, %v10784
    %v10786 = vpop.f32.mrb[0].mxu0
    %v10787 = vadd.f32 %v10746, %v10786
    %v10788 = vpop.f32.mrb[0].mxu0
    %v10789 = vpop.f32.mrb[0].mxu0
    %10790 = vdwg.mxu0
    %10791 = vmatprep.subr.bf16.mxu0 %v6752
    %10792 = vmatpush1.bf16.msra.mxu0 %v6751
    %10793 = vmatprep.subr.bf16.mxu0 %v6780
    %10794 = vmatpush1.bf16.msra.mxu0 %v6779
    %10795 = vmatprep.subr.bf16.mxu0 %v6808
    %10796 = vmatpush1.bf16.msra.mxu0 %v6807
    %10797 = vmatprep.subr.bf16.mxu0 %v6836
    %10798 = vmatpush1.bf16.msra.mxu0 %v6835
    %10799 = vmatprep.subr.bf16.mxu0 %v6864
    %10800 = vmatpush1.bf16.msra.mxu0 %v6863
    %10801 = vmatprep.subr.bf16.mxu0 %v6892
    %10802 = vmatpush1.bf16.msra.mxu0 %v6891
    %10803 = vmatprep.subr.bf16.mxu0 %v6920
    %10804 = vmatpush1.bf16.msra.mxu0 %v6919
    %10805 = vmatprep.subr.bf16.mxu0 %v6948
    %10806 = vmatpush1.bf16.msra.mxu0 %v6947
    %10807 = vmatprep.subr.bf16.mxu0 %v6976
    %10808 = vmatpush1.bf16.msra.mxu0 %v6975
    %10809 = vmatprep.subr.bf16.mxu0 %v7004
    %10810 = vmatpush1.bf16.msra.mxu0 %v7003
    %10811 = vmatprep.subr.bf16.mxu0 %v7032
    %10812 = vmatpush1.bf16.msra.mxu0 %v7031
    %10813 = vmatprep.subr.bf16.mxu0 %v7060
    %10814 = vmatpush1.bf16.msra.mxu0 %v7059
    %10815 = vmatprep.subr.bf16.mxu0 %v7088
    %10816 = vmatpush1.bf16.msra.mxu0 %v7087
    %10817 = vmatprep.subr.bf16.mxu0 %v7116
    %10818 = vmatpush1.bf16.msra.mxu0 %v7115
    %10819 = vmatprep.subr.bf16.mxu0 %v7144
    %10820 = vmatpush1.bf16.msra.mxu0 %v7143
    %10821 = vmatprep.subr.bf16.mxu0 %v7172
    %10822 = vmatpush1.bf16.msra.mxu0 %v7171
    %10823 = vmatprep.mubr.bf16.mxu0 %v1705
    %10824 = vmatmul.mubr.bf16.gmra.mrb[0].mxu0 %v1704
    %v10825 = vpop.f32.mrb[0].mxu0
    %v10826 = vadd.f32 %v10785, %v10825
    %v10827 = vpop.f32.mrb[0].mxu0
    %v10828 = vadd.f32 %v10787, %v10827
    %v10829 = vpop.f32.mrb[0].mxu0
    %v10830 = vpop.f32.mrb[0].mxu0
    %10831 = vdwg.mxu0
    %10832 = vmatprep.subr.bf16.mxu0 %v7200
    %10833 = vmatpush1.bf16.msra.mxu0 %v7199
    %10834 = vmatprep.subr.bf16.mxu0 0
    %10835 = vmatpush1.bf16.msra.mxu0 0
    %10836 = vmatprep.subr.bf16.mxu0 0
    %10837 = vmatpush1.bf16.msra.mxu0 0
    %10838 = vmatprep.subr.bf16.mxu0 0
    %10839 = vmatpush1.bf16.msra.mxu0 0
    %10840 = vmatprep.subr.bf16.mxu0 0
    %10841 = vmatpush1.bf16.msra.mxu0 0
    %10842 = vmatprep.subr.bf16.mxu0 0
    %10843 = vmatpush1.bf16.msra.mxu0 0
    %10844 = vmatprep.subr.bf16.mxu0 0
    %10845 = vmatpush1.bf16.msra.mxu0 0
    %10846 = vmatprep.subr.bf16.mxu0 0
    %10847 = vmatpush1.bf16.msra.mxu0 0
    %10848 = vmatprep.subr.bf16.mxu0 0
    %10849 = vmatpush1.bf16.msra.mxu0 0
    %10850 = vmatprep.subr.bf16.mxu0 0
    %10851 = vmatpush1.bf16.msra.mxu0 0
    %10852 = vmatprep.subr.bf16.mxu0 0
    %10853 = vmatpush1.bf16.msra.mxu0 0
    %10854 = vmatprep.subr.bf16.mxu0 0
    %10855 = vmatpush1.bf16.msra.mxu0 0
    %10856 = vmatprep.subr.bf16.mxu0 0
    %10857 = vmatpush1.bf16.msra.mxu0 0
    %10858 = vmatprep.subr.bf16.mxu0 0
    %10859 = vmatpush1.bf16.msra.mxu0 0
    %10860 = vmatprep.subr.bf16.mxu0 0
    %10861 = vmatpush1.bf16.msra.mxu0 0
    %10862 = vmatprep.subr.bf16.mxu0 0
    %10863 = vmatpush1.bf16.msra.mxu0 0
    %10864 = vmatprep.mubr.bf16.mxu0 0
    %10865 = vmatmul.mubr.bf16.gmra.mrb[0].mxu0 %v8575
    %v10866 = vpop.f32.mrb[0].mxu0
    %v10867 = vadd.f32 %v10826, %v10866
    %v10868 = vpop.f32.mrb[0].mxu0
    %v10869 = vadd.f32 %v10828, %v10868
    %v10870 = vpop.f32.mrb[0].mxu0
    %v10871 = vpop.f32.mrb[0].mxu0
    %10872 = vdwg.mxu0
    %v10873 = vtanh.pop %v8735
    %v10874 = vtanh.pop %v8737
    %v10875 = vtanh.pop %v8899
    %v10876 = vtanh.pop %v8901
    %v10877 = vtanh.pop %v9063
    %v10878 = vtanh.pop %v9065
    %v10879 = vtanh.pop %v9227
    %v10880 = vtanh.pop %v9229
    %v10881 = vtanh.pop %v9391
    %v10882 = vtanh.pop %v9393
    %v10883 = vtanh.pop %v9555
    %v10884 = vtanh.pop %v9557
    %v10885 = vtanh.pop %v9719
    %v10886 = vtanh.pop %v9721
    %v10887 = vtanh.pop %v9883
    %v10888 = vtanh.pop %v9885
    %v10889 = vtanh.pop %v10047
    %v10890 = vtanh.pop %v10049
    %v10891 = vtanh.pop %v10211
    %v10892 = vtanh.pop %v10213
    %v10893 = vtanh.pop %v10375
    %v10894 = vtanh.pop %v10377
    %v10895 = vtanh.pop %v10539
    %v10896 = vtanh.pop %v10541
    %v10897 = vtanh.pop %v10703
    %v10898 = vtanh.pop %v10705
    %v10899 = vtanh.pop %v10867
    %v10900 = vtanh.pop %v10869
    %v10901 = vadd.f32 %v10873, %v10880
    %v10902 = vadd.f32 %v10874, %v10881
    %v10903 = vadd.f32 %v10875, %v10882
    %v10904 = vadd.f32 %v10876, %v10883
    %v10905 = vadd.f32 %v10877, %v10884
    %v10906 = vadd.f32 %v10878, %v10885
    %v10907 = vadd.f32 %v10879, %v10886
    %v10908 = vadd.f32 %v10901, %v10887
    %v10909 = vadd.f32 %v10902, %v10888
    %v10910 = vadd.f32 %v10903, %v10889
    %v10911 = vadd.f32 %v10904, %v10890
    %v10912 = vadd.f32 %v10905, %v10891
    %v10913 = vadd.f32 %v10906, %v10892
    %v10914 = vadd.f32 %v10907, %v10893
    %v10915 = vadd.f32 %v10908, %v10894
    %v10916 = vadd.f32 %v10909, %v10895
    %v10917 = vadd.f32 %v10910, %v10896
    %v10918 = vadd.f32 %v10911, %v10897
    %v10919 = vadd.f32 %v10912, %v10898
    %v10920 = vadd.f32 %v10913, %v10899
    %v10921 = vadd.f32 %v10914, %v10900
    %v10922 = vmul.f32 %v10915, 0.25
    %v10923 = vmul.f32 %v10916, 0.25
    %v10924 = vmul.f32 %v10917, 0.25
    %v10925 = vmul.f32 %v10918, 0.25
    %v10926 = vmul.f32 %v10919, 0.25
    %v10927 = vmul.f32 %v10920, 0.25
    %v10928 = vmul.f32 %v10921, 0.25
    %v10929 = vpack.c.bf16 %v10922, %v10922
    %v10930 = vpack.c.bf16 %v10923, %v10923
    %v10931 = vpack.c.bf16 %v10924, %v10924
    %v10932 = vpack.c.bf16 %v10925, %v10925
    %v10933 = vpack.c.bf16 %v10926, %v10926
    %v10934 = vpack.c.bf16 %v10927, %v10927
    %v10935 = vpack.c.bf16 %v10928, %v10928
    %v10936 = vld [vmem:[#allocation6] sm:$0xff]
    %v10937 = vld [vmem:[#allocation6 + $0x8] sm:$0xff]
    %v10938 = vld [vmem:[#allocation6 + $0x10] sm:$0xff]
    %v10939 = vld [vmem:[#allocation6 + $0x18] sm:$0xff]
    %v10940 = vld [vmem:[#allocation6 + $0x20] sm:$0xff]
    %v10941 = vld [vmem:[#allocation6 + $0x28] sm:$0xff]
    %v10942 = vld [vmem:[#allocation6 + $0x30] sm:$0xff]
    %v10943 = vld [vmem:[#allocation6 + $0x38] sm:$0xff]
    %v10944 = vld [vmem:[#allocation6 + $0x40] sm:$0xff]
    %v10945 = vld [vmem:[#allocation6 + $0x48] sm:$0xff]
    %v10946 = vld [vmem:[#allocation6 + $0x50] sm:$0xff]
    %v10947 = vld [vmem:[#allocation6 + $0x58] sm:$0xff]
    %v10948 = vld [vmem:[#allocation6 + $0x60] sm:$0xff]
    %v10949 = vld [vmem:[#allocation6 + $0x68] sm:$0xff]
    %v10950 = vld [vmem:[#allocation6 + $0x70] sm:$0xff]
    %v10951 = vld [vmem:[#allocation6 + $0x78] sm:$0xff]
    %v10952 = vld [vmem:[#allocation6 + $0x80] sm:$0xff]
    %v10953 = vld [vmem:[#allocation6 + $0x88] sm:$0xff]
    %v10954 = vld [vmem:[#allocation6 + $0x90] sm:$0xff]
    %v10955 = vld [vmem:[#allocation6 + $0x98] sm:$0xff]
    %v10956 = vld [vmem:[#allocation6 + $0xa0] sm:$0xff]
    %v10957 = vld [vmem:[#allocation6 + $0xa8] sm:$0xff]
    %v10958 = vld [vmem:[#allocation6 + $0xb0] sm:$0xff]
    %v10959 = vld [vmem:[#allocation6 + $0xb8] sm:$0xff]
    %v10960 = vld [vmem:[#allocation6 + $0xc0] sm:$0xff]
    %v10961 = vld [vmem:[#allocation6 + $0xc8] sm:$0xff]
    %v10962 = vld [vmem:[#allocation6 + $0xd0] sm:$0xff]
    %v10963 = vld [vmem:[#allocation6 + $0xd8] sm:$0xff]
    %v10964 = vld [vmem:[#allocation6 + $0xe0] sm:$0xff]
    %v10965 = vld [vmem:[#allocation6 + $0xe8] sm:$0xff]
    %v10966 = vld [vmem:[#allocation6 + $0xf0] sm:$0xff]
    %v10967 = vld [vmem:[#allocation6 + $0xf8] sm:$0xff]
    %v10968 = vld [vmem:[#allocation6 + $0x100] sm:$0xff]
    %v10969 = vld [vmem:[#allocation6 + $0x108] sm:$0xff]
    %v10970 = vld [vmem:[#allocation6 + $0x110] sm:$0xff]
    %v10971 = vld [vmem:[#allocation6 + $0x118] sm:$0xff]
    %v10972 = vld [vmem:[#allocation6 + $0x120] sm:$0xff]
    %v10973 = vld [vmem:[#allocation6 + $0x128] sm:$0xff]
    %v10974 = vld [vmem:[#allocation6 + $0x130] sm:$0xff]
    %v10975 = vld [vmem:[#allocation6 + $0x138] sm:$0xff]
    %v10976 = vld [vmem:[#allocation6 + $0x140] sm:$0xff]
    %v10977 = vld [vmem:[#allocation6 + $0x148] sm:$0xff]
    %v10978 = vld [vmem:[#allocation6 + $0x150] sm:$0xff]
    %v10979 = vld [vmem:[#allocation6 + $0x158] sm:$0xff]
    %v10980 = vld [vmem:[#allocation6 + $0x160] sm:$0xff]
    %v10981 = vld [vmem:[#allocation6 + $0x168] sm:$0xff]
    %v10982 = vld [vmem:[#allocation6 + $0x170] sm:$0xff]
    %v10983 = vld [vmem:[#allocation6 + $0x178] sm:$0xff]
    %v10984 = vld [vmem:[#allocation6 + $0x180] sm:$0xff]
    %v10985 = vld [vmem:[#allocation6 + $0x188] sm:$0xff]
    %v10986 = vld [vmem:[#allocation6 + $0x190] sm:$0xff]
    %v10987 = vld [vmem:[#allocation6 + $0x198] sm:$0xff]
    %v10988 = vld [vmem:[#allocation6 + $0x1a0] sm:$0xff]
    %v10989 = vld [vmem:[#allocation6 + $0x1a8] sm:$0xff]
    %v10990 = vld [vmem:[#allocation6 + $0x1b0] sm:$0xff]
    %v10991 = vld [vmem:[#allocation6 + $0x1b8] sm:$0xff]
    %v10992 = vld [vmem:[#allocation6 + $0x1c0] sm:$0xff]
    %v10993 = vld [vmem:[#allocation6 + $0x1c8] sm:$0xff]
    %v10994 = vld [vmem:[#allocation6 + $0x1d0] sm:$0xff]
    %v10995 = vld [vmem:[#allocation6 + $0x1d8] sm:$0xff]
    %v10996 = vld [vmem:[#allocation6 + $0x1e0] sm:$0xff]
    %v10997 = vld [vmem:[#allocation6 + $0x1e8] sm:$0xff]
    %v10998 = vld [vmem:[#allocation6 + $0x1f0] sm:$0xff]
    %v10999 = vld [vmem:[#allocation6 + $0x1f8] sm:$0xff]
    %v11000 = vld [vmem:[#allocation6 + $0x200] sm:$0xff]
    %v11001 = vld [vmem:[#allocation6 + $0x208] sm:$0xff]
    %v11002 = vld [vmem:[#allocation6 + $0x210] sm:$0xff]
    %v11003 = vld [vmem:[#allocation6 + $0x218] sm:$0xff]
    %v11004 = vld [vmem:[#allocation6 + $0x220] sm:$0xff]
    %v11005 = vld [vmem:[#allocation6 + $0x228] sm:$0xff]
    %v11006 = vld [vmem:[#allocation6 + $0x230] sm:$0xff]
    %v11007 = vld [vmem:[#allocation6 + $0x238] sm:$0xff]
    %v11008 = vld [vmem:[#allocation6 + $0x240] sm:$0xff]
    %v11009 = vld [vmem:[#allocation6 + $0x248] sm:$0xff]
    %v11010 = vld [vmem:[#allocation6 + $0x250] sm:$0xff]
    %v11011 = vld [vmem:[#allocation6 + $0x258] sm:$0xff]
    %v11012 = vld [vmem:[#allocation6 + $0x260] sm:$0xff]
    %v11013 = vld [vmem:[#allocation6 + $0x268] sm:$0xff]
    %v11014 = vld [vmem:[#allocation6 + $0x270] sm:$0xff]
    %v11015 = vld [vmem:[#allocation6 + $0x278] sm:$0xff]
    %v11016 = vld [vmem:[#allocation6 + $0x280] sm:$0xff]
    %v11017 = vld [vmem:[#allocation6 + $0x288] sm:$0xff]
    %v11018 = vld [vmem:[#allocation6 + $0x290] sm:$0xff]
    %v11019 = vld [vmem:[#allocation6 + $0x298] sm:$0xff]
    %v11020 = vld [vmem:[#allocation6 + $0x2a0] sm:$0xff]
    %v11021 = vld [vmem:[#allocation6 + $0x2a8] sm:$0xff]
    %v11022 = vld [vmem:[#allocation6 + $0x2b0] sm:$0xff]
    %v11023 = vld [vmem:[#allocation6 + $0x2b8] sm:$0xff]
    %v11024 = vld [vmem:[#allocation6 + $0x2c0] sm:$0xff]
    %v11025 = vld [vmem:[#allocation6 + $0x2c8] sm:$0xff]
    %v11026 = vld [vmem:[#allocation6 + $0x2d0] sm:$0xff]
    %v11027 = vld [vmem:[#allocation6 + $0x2d8] sm:$0xff]
    %v11028 = vld [vmem:[#allocation6 + $0x2e0] sm:$0xff]
    %v11029 = vld [vmem:[#allocation6 + $0x2e8] sm:$0xff]
    %v11030 = vld [vmem:[#allocation6 + $0x2f0] sm:$0xff]
    %v11031 = vld [vmem:[#allocation6 + $0x2f8] sm:$0xff]
    %v11032 = vld [vmem:[#allocation6 + $0x300] sm:$0xff]
    %v11033 = vld [vmem:[#allocation6 + $0x308] sm:$0xff]
    %v11034 = vld [vmem:[#allocation6 + $0x310] sm:$0xff]
    %v11035 = vld [vmem:[#allocation6 + $0x318] sm:$0xff]
    %v11036 = vld [vmem:[#allocation6 + $0x320] sm:$0xff]
    %v11037 = vld [vmem:[#allocation6 + $0x328] sm:$0xff]
    %v11038 = vld [vmem:[#allocation6 + $0x330] sm:$0xff]
    %v11039 = vld [vmem:[#allocation6 + $0x338] sm:$0xff]
    %v11040 = vld [vmem:[#allocation6 + $0x340] sm:$0xff]
    %v11041 = vld [vmem:[#allocation6 + $0x348] sm:$0xff]
    %v11042 = vld [vmem:[#allocation6 + $0x350] sm:$0xff]
    %v11043 = vld [vmem:[#allocation6 + $0x358] sm:$0xff]
    %v11044 = vld [vmem:[#allocation6 + $0x360] sm:$0xff]
    %v11045 = vld [vmem:[#allocation6 + $0x368] sm:$0xff]
    %v11046 = vld [vmem:[#allocation6 + $0x370] sm:$0xff]
    %v11047 = vld [vmem:[#allocation6 + $0x378] sm:$0xff]
    %v11048 = vld [vmem:[#allocation6 + $0x380] sm:$0xff]
    %v11049 = vld [vmem:[#allocation6 + $0x388] sm:$0xff]
    %v11050 = vld [vmem:[#allocation6 + $0x390] sm:$0xff]
    %v11051 = vld [vmem:[#allocation6 + $0x398] sm:$0xff]
    %v11052 = vld [vmem:[#allocation6 + $0x3a0] sm:$0xff]
    %v11053 = vld [vmem:[#allocation6 + $0x3a8] sm:$0xff]
    %v11054 = vld [vmem:[#allocation6 + $0x3b0] sm:$0xff]
    %v11055 = vld [vmem:[#allocation6 + $0x3b8] sm:$0xff]
    %v11056 = vld [vmem:[#allocation6 + $0x3c0] sm:$0xff]
    %v11057 = vld [vmem:[#allocation6 + $0x3c8] sm:$0xff]
    %v11058 = vld [vmem:[#allocation6 + $0x3d0] sm:$0xff]
    %v11059 = vld [vmem:[#allocation6 + $0x3d8] sm:$0xff]
    %v11060 = vld [vmem:[#allocation6 + $0x3e0] sm:$0xff]
    %v11061 = vld [vmem:[#allocation6 + $0x3e8] sm:$0xff]
    %v11062 = vld [vmem:[#allocation6 + $0x3f0] sm:$0xff]
    %v11063 = vld [vmem:[#allocation6 + $0x3f8] sm:$0xff]
    %v11064 = vld [vmem:[#allocation6 + $0x400] sm:$0xff]
    %v11065 = vld [vmem:[#allocation6 + $0x408] sm:$0xff]
    %v11066 = vld [vmem:[#allocation6 + $0x410] sm:$0xff]
    %v11067 = vld [vmem:[#allocation6 + $0x418] sm:$0xff]
    %v11068 = vld [vmem:[#allocation6 + $0x420] sm:$0xff]
    %v11069 = vld [vmem:[#allocation6 + $0x428] sm:$0xff]
    %v11070 = vld [vmem:[#allocation6 + $0x430] sm:$0xff]
    %v11071 = vld [vmem:[#allocation6 + $0x438] sm:$0xff]
    %v11072 = vld [vmem:[#allocation6 + $0x440] sm:$0xff]
    %v11073 = vld [vmem:[#allocation6 + $0x448] sm:$0xff]
    %v11074 = vld [vmem:[#allocation6 + $0x450] sm:$0xff]
    %v11075 = vld [vmem:[#allocation6 + $0x458] sm:$0xff]
    %v11076 = vld [vmem:[#allocation6 + $0x460] sm:$0xff]
    %v11077 = vld [vmem:[#allocation6 + $0x468] sm:$0xff]
    %v11078 = vld [vmem:[#allocation6 + $0x470] sm:$0xff]
    %v11079 = vld [vmem:[#allocation6 + $0x478] sm:$0xff]
    %v11080 = vld [vmem:[#allocation6 + $0x480] sm:$0xff]
    %v11081 = vld [vmem:[#allocation6 + $0x488] sm:$0xff]
    %v11082 = vld [vmem:[#allocation6 + $0x490] sm:$0xff]
    %v11083 = vld [vmem:[#allocation6 + $0x498] sm:$0xff]
    %v11084 = vld [vmem:[#allocation6 + $0x4a0] sm:$0xff]
    %v11085 = vld [vmem:[#allocation6 + $0x4a8] sm:$0xff]
    %v11086 = vld [vmem:[#allocation6 + $0x4b0] sm:$0xff]
    %v11087 = vld [vmem:[#allocation6 + $0x4b8] sm:$0xff]
    %v11088 = vld [vmem:[#allocation6 + $0x4c0] sm:$0xff]
    %v11089 = vld [vmem:[#allocation6 + $0x4c8] sm:$0xff]
    %v11090 = vld [vmem:[#allocation6 + $0x4d0] sm:$0xff]
    %v11091 = vld [vmem:[#allocation6 + $0x4d8] sm:$0xff]
    %v11092 = vld [vmem:[#allocation6 + $0x4e0] sm:$0xff]
    %v11093 = vld [vmem:[#allocation6 + $0x4e8] sm:$0xff]
    %v11094 = vld [vmem:[#allocation6 + $0x4f0] sm:$0xff]
    %v11095 = vld [vmem:[#allocation6 + $0x4f8] sm:$0xff]
    %v11096 = vld [vmem:[#allocation6 + $0x500] sm:$0xff]
    %v11097 = vld [vmem:[#allocation6 + $0x508] sm:$0xff]
    %v11098 = vld [vmem:[#allocation6 + $0x510] sm:$0xff]
    %v11099 = vld [vmem:[#allocation6 + $0x518] sm:$0xff]
    %v11100 = vld [vmem:[#allocation6 + $0x520] sm:$0xff]
    %v11101 = vld [vmem:[#allocation6 + $0x528] sm:$0xff]
    %v11102 = vld [vmem:[#allocation6 + $0x530] sm:$0xff]
    %v11103 = vld [vmem:[#allocation6 + $0x538] sm:$0xff]
    %v11104 = vld [vmem:[#allocation6 + $0x540] sm:$0xff]
    %v11105 = vld [vmem:[#allocation6 + $0x548] sm:$0xff]
    %v11106 = vld [vmem:[#allocation6 + $0x550] sm:$0xff]
    %v11107 = vld [vmem:[#allocation6 + $0x558] sm:$0xff]
    %v11108 = vld [vmem:[#allocation6 + $0x560] sm:$0xff]
    %v11109 = vld [vmem:[#allocation6 + $0x568] sm:$0xff]
    %v11110 = vld [vmem:[#allocation6 + $0x570] sm:$0xff]
    %v11111 = vld [vmem:[#allocation6 + $0x578] sm:$0xff]
    %v11112 = vld [vmem:[#allocation6 + $0x580] sm:$0xff]
    %v11113 = vld [vmem:[#allocation6 + $0x588] sm:$0xff]
    %v11114 = vld [vmem:[#allocation6 + $0x590] sm:$0xff]
    %v11115 = vld [vmem:[#allocation6 + $0x598] sm:$0xff]
    %v11116 = vld [vmem:[#allocation6 + $0x5a0] sm:$0xff]
    %v11117 = vld [vmem:[#allocation6 + $0x5a8] sm:$0xff]
    %v11118 = vld [vmem:[#allocation6 + $0x5b0] sm:$0xff]
    %v11119 = vld [vmem:[#allocation6 + $0x5b8] sm:$0xff]
    %v11120 = vld [vmem:[#allocation6 + $0x5c0] sm:$0xff]
    %v11121 = vld [vmem:[#allocation6 + $0x5c8] sm:$0xff]
    %v11122 = vld [vmem:[#allocation6 + $0x5d0] sm:$0xff]
    %v11123 = vld [vmem:[#allocation6 + $0x5d8] sm:$0xff]
    %v11124 = vld [vmem:[#allocation6 + $0x5e0] sm:$0xff]
    %v11125 = vld [vmem:[#allocation6 + $0x5e8] sm:$0xff]
    %v11126 = vld [vmem:[#allocation6 + $0x5f0] sm:$0xff]
    %v11127 = vld [vmem:[#allocation6 + $0x5f8] sm:$0xff]
    %v11128 = vld [vmem:[#allocation6 + $0x600] sm:$0xff]
    %v11129 = vld [vmem:[#allocation6 + $0x608] sm:$0xff]
    %v11130 = vld [vmem:[#allocation6 + $0x610] sm:$0xff]
    %v11131 = vld [vmem:[#allocation6 + $0x618] sm:$0xff]
    %v11132 = vld [vmem:[#allocation6 + $0x620] sm:$0xff]
    %v11133 = vld [vmem:[#allocation6 + $0x628] sm:$0xff]
    %v11134 = vld [vmem:[#allocation6 + $0x630] sm:$0xff]
    %v11135 = vld [vmem:[#allocation6 + $0x638] sm:$0xff]
    %v11136 = vld [vmem:[#allocation6 + $0x640] sm:$0xff]
    %v11137 = vld [vmem:[#allocation6 + $0x648] sm:$0xff]
    %v11138 = vld [vmem:[#allocation6 + $0x650] sm:$0xff]
    %v11139 = vld [vmem:[#allocation6 + $0x658] sm:$0xff]
    %v11140 = vld [vmem:[#allocation6 + $0x660] sm:$0xff]
    %v11141 = vld [vmem:[#allocation6 + $0x668] sm:$0xff]
    %v11142 = vld [vmem:[#allocation6 + $0x670] sm:$0xff]
    %v11143 = vld [vmem:[#allocation6 + $0x678] sm:$0xff]
    %v11144 = vld [vmem:[#allocation6 + $0x680] sm:$0xff]
    %v11145 = vld [vmem:[#allocation6 + $0x688] sm:$0xff]
    %v11146 = vld [vmem:[#allocation6 + $0x690] sm:$0xff]
    %v11147 = vld [vmem:[#allocation6 + $0x698] sm:$0xff]
    %v11148 = vld [vmem:[#allocation6 + $0x6a0] sm:$0xff]
    %v11149 = vld [vmem:[#allocation6 + $0x6a8] sm:$0xff]
    %v11150 = vld [vmem:[#allocation6 + $0x6b0] sm:$0xff]
    %v11151 = vld [vmem:[#allocation6 + $0x6b8] sm:$0xff]
    %v11152 = vld [vmem:[#allocation6 + $0x6c0] sm:$0xff]
    %v11153 = vld [vmem:[#allocation6 + $0x6c8] sm:$0xff]
    %v11154 = vld [vmem:[#allocation6 + $0x6d0] sm:$0xff]
    %v11155 = vld [vmem:[#allocation6 + $0x6d8] sm:$0xff]
    %v11156 = vld [vmem:[#allocation6 + $0x6e0] sm:$0xff]
    %v11157 = vld [vmem:[#allocation6 + $0x6e8] sm:$0xff]
    %v11158 = vld [vmem:[#allocation6 + $0x6f0] sm:$0xff]
    %v11159 = vld [vmem:[#allocation6 + $0x6f8] sm:$0xff]
    %v11160 = vld [vmem:[#allocation6 + $0x700] sm:$0xff]
    %v11161 = vld [vmem:[#allocation6 + $0x708] sm:$0xff]
    %v11162 = vld [vmem:[#allocation6 + $0x710] sm:$0xff]
    %v11163 = vld [vmem:[#allocation6 + $0x718] sm:$0xff]
    %v11164 = vld [vmem:[#allocation6 + $0x720] sm:$0xff]
    %v11165 = vld [vmem:[#allocation6 + $0x728] sm:$0xff]
    %v11166 = vld [vmem:[#allocation6 + $0x730] sm:$0xff]
    %v11167 = vld [vmem:[#allocation6 + $0x738] sm:$0xff]
    %v11168 = vld [vmem:[#allocation6 + $0x740] sm:$0xff]
    %v11169 = vld [vmem:[#allocation6 + $0x748] sm:$0xff]
    %v11170 = vld [vmem:[#allocation6 + $0x750] sm:$0xff]
    %v11171 = vld [vmem:[#allocation6 + $0x758] sm:$0xff]
    %v11172 = vld [vmem:[#allocation6 + $0x760] sm:$0xff]
    %v11173 = vld [vmem:[#allocation6 + $0x768] sm:$0xff]
    %v11174 = vld [vmem:[#allocation6 + $0x770] sm:$0xff]
    %v11175 = vld [vmem:[#allocation6 + $0x778] sm:$0xff]
    %v11176 = vld [vmem:[#allocation6 + $0x780] sm:$0xff]
    %v11177 = vld [vmem:[#allocation6 + $0x788] sm:$0xff]
    %v11178 = vld [vmem:[#allocation6 + $0x790] sm:$0xff]
    %v11179 = vld [vmem:[#allocation6 + $0x798] sm:$0xff]
    %v11180 = vld [vmem:[#allocation6 + $0x7a0] sm:$0xff]
    %v11181 = vld [vmem:[#allocation6 + $0x7a8] sm:$0xff]
    %v11182 = vld [vmem:[#allocation6 + $0x7b0] sm:$0xff]
    %v11183 = vld [vmem:[#allocation6 + $0x7b8] sm:$0xff]
    %v11184 = vld [vmem:[#allocation6 + $0x7c0] sm:$0xff]
    %v11185 = vld [vmem:[#allocation6 + $0x7c8] sm:$0xff]
    %v11186 = vld [vmem:[#allocation6 + $0x7d0] sm:$0xff]
    %v11187 = vld [vmem:[#allocation6 + $0x7d8] sm:$0xff]
    %v11188 = vld [vmem:[#allocation6 + $0x7e0] sm:$0xff]
    %v11189 = vld [vmem:[#allocation6 + $0x7e8] sm:$0xff]
    %v11190 = vld [vmem:[#allocation6 + $0x7f0] sm:$0xff]
    %v11191 = vld [vmem:[#allocation6 + $0x7f8] sm:$0xff]
    %v11192 = vld [vmem:[#allocation6 + $0x800] sm:$0xff]
    %v11193 = vld [vmem:[#allocation6 + $0x808] sm:$0xff]
    %v11194 = vld [vmem:[#allocation6 + $0x810] sm:$0xff]
    %v11195 = vld [vmem:[#allocation6 + $0x818] sm:$0xff]
    %v11196 = vld [vmem:[#allocation6 + $0x820] sm:$0xff]
    %v11197 = vld [vmem:[#allocation6 + $0x828] sm:$0xff]
    %v11198 = vld [vmem:[#allocation6 + $0x830] sm:$0xff]
    %v11199 = vld [vmem:[#allocation6 + $0x838] sm:$0xff]
    %v11200 = vld [vmem:[#allocation6 + $0x840] sm:$0xff]
    %v11201 = vld [vmem:[#allocation6 + $0x848] sm:$0xff]
    %v11202 = vld [vmem:[#allocation6 + $0x850] sm:$0xff]
    %v11203 = vld [vmem:[#allocation6 + $0x858] sm:$0xff]
    %v11204 = vld [vmem:[#allocation6 + $0x860] sm:$0xff]
    %v11205 = vld [vmem:[#allocation6 + $0x868] sm:$0xff]
    %v11206 = vld [vmem:[#allocation6 + $0x870] sm:$0xff]
    %v11207 = vld [vmem:[#allocation6 + $0x878] sm:$0xff]
    %v11208 = vld [vmem:[#allocation6 + $0x880] sm:$0xff]
    %v11209 = vld [vmem:[#allocation6 + $0x888] sm:$0xff]
    %v11210 = vld [vmem:[#allocation6 + $0x890] sm:$0xff]
    %v11211 = vld [vmem:[#allocation6 + $0x898] sm:$0xff]
    %v11212 = vld [vmem:[#allocation6 + $0x8a0] sm:$0xff]
    %v11213 = vld [vmem:[#allocation6 + $0x8a8] sm:$0xff]
    %v11214 = vld [vmem:[#allocation6 + $0x8b0] sm:$0xff]
    %v11215 = vld [vmem:[#allocation6 + $0x8b8] sm:$0xff]
    %v11216 = vld [vmem:[#allocation6 + $0x8c0] sm:$0xff]
    %v11217 = vld [vmem:[#allocation6 + $0x8c8] sm:$0xff]
    %v11218 = vld [vmem:[#allocation6 + $0x8d0] sm:$0xff]
    %v11219 = vld [vmem:[#allocation6 + $0x8d8] sm:$0xff]
    %v11220 = vld [vmem:[#allocation6 + $0x8e0] sm:$0xff]
    %v11221 = vld [vmem:[#allocation6 + $0x8e8] sm:$0xff]
    %v11222 = vld [vmem:[#allocation6 + $0x8f0] sm:$0xff]
    %v11223 = vld [vmem:[#allocation6 + $0x8f8] sm:$0xff]
    %v11224 = vld [vmem:[#allocation6 + $0x900] sm:$0xff]
    %v11225 = vld [vmem:[#allocation6 + $0x908] sm:$0xff]
    %v11226 = vld [vmem:[#allocation6 + $0x910] sm:$0xff]
    %v11227 = vld [vmem:[#allocation6 + $0x918] sm:$0xff]
    %v11228 = vld [vmem:[#allocation6 + $0x920] sm:$0xff]
    %v11229 = vld [vmem:[#allocation6 + $0x928] sm:$0xff]
    %v11230 = vld [vmem:[#allocation6 + $0x930] sm:$0xff]
    %v11231 = vld [vmem:[#allocation6 + $0x938] sm:$0xff]
    %v11232 = vld [vmem:[#allocation6 + $0x940] sm:$0xff]
    %v11233 = vld [vmem:[#allocation6 + $0x948] sm:$0xff]
    %v11234 = vld [vmem:[#allocation6 + $0x950] sm:$0xff]
    %v11235 = vld [vmem:[#allocation6 + $0x958] sm:$0xff]
    %v11236 = vld [vmem:[#allocation6 + $0x960] sm:$0xff]
    %v11237 = vld [vmem:[#allocation6 + $0x968] sm:$0xff]
    %v11238 = vld [vmem:[#allocation6 + $0x970] sm:$0xff]
    %v11239 = vld [vmem:[#allocation6 + $0x978] sm:$0xff]
    %v11240 = vld [vmem:[#allocation6 + $0x980] sm:$0xff]
    %v11241 = vld [vmem:[#allocation6 + $0x988] sm:$0xff]
    %v11242 = vld [vmem:[#allocation6 + $0x990] sm:$0xff]
    %v11243 = vld [vmem:[#allocation6 + $0x998] sm:$0xff]
    %v11244 = vld [vmem:[#allocation6 + $0x9a0] sm:$0xff]
    %v11245 = vld [vmem:[#allocation6 + $0x9a8] sm:$0xff]
    %v11246 = vld [vmem:[#allocation6 + $0x9b0] sm:$0xff]
    %v11247 = vld [vmem:[#allocation6 + $0x9b8] sm:$0xff]
    %v11248 = vld [vmem:[#allocation6 + $0x9c0] sm:$0xff]
    %v11249 = vld [vmem:[#allocation6 + $0x9c8] sm:$0xff]
    %v11250 = vld [vmem:[#allocation6 + $0x9d0] sm:$0xff]
    %v11251 = vld [vmem:[#allocation6 + $0x9d8] sm:$0xff]
    %v11252 = vld [vmem:[#allocation6 + $0x9e0] sm:$0xff]
    %v11253 = vld [vmem:[#allocation6 + $0x9e8] sm:$0xff]
    %v11254 = vld [vmem:[#allocation6 + $0x9f0] sm:$0xff]
    %v11255 = vld [vmem:[#allocation6 + $0x9f8] sm:$0xff]
    %v11256 = vld [vmem:[#allocation6 + $0xa00] sm:$0xff]
    %v11257 = vld [vmem:[#allocation6 + $0xa08] sm:$0xff]
    %v11258 = vld [vmem:[#allocation6 + $0xa10] sm:$0xff]
    %v11259 = vld [vmem:[#allocation6 + $0xa18] sm:$0xff]
    %v11260 = vld [vmem:[#allocation6 + $0xa20] sm:$0xff]
    %v11261 = vld [vmem:[#allocation6 + $0xa28] sm:$0xff]
    %v11262 = vld [vmem:[#allocation6 + $0xa30] sm:$0xff]
    %v11263 = vld [vmem:[#allocation6 + $0xa38] sm:$0xff]
    %v11264 = vld [vmem:[#allocation6 + $0xa40] sm:$0xff]
    %v11265 = vld [vmem:[#allocation6 + $0xa48] sm:$0xff]
    %v11266 = vld [vmem:[#allocation6 + $0xa50] sm:$0xff]
    %v11267 = vld [vmem:[#allocation6 + $0xa58] sm:$0xff]
    %v11268 = vld [vmem:[#allocation6 + $0xa60] sm:$0xff]
    %v11269 = vld [vmem:[#allocation6 + $0xa68] sm:$0xff]
    %v11270 = vld [vmem:[#allocation6 + $0xa70] sm:$0xff]
    %v11271 = vld [vmem:[#allocation6 + $0xa78] sm:$0xff]
    %v11272 = vld [vmem:[#allocation6 + $0xa80] sm:$0xff]
    %v11273 = vld [vmem:[#allocation6 + $0xa88] sm:$0xff]
    %v11274 = vld [vmem:[#allocation6 + $0xa90] sm:$0xff]
    %v11275 = vld [vmem:[#allocation6 + $0xa98] sm:$0xff]
    %v11276 = vld [vmem:[#allocation6 + $0xaa0] sm:$0xff]
    %v11277 = vld [vmem:[#allocation6 + $0xaa8] sm:$0xff]
    %v11278 = vld [vmem:[#allocation6 + $0xab0] sm:$0xff]
    %v11279 = vld [vmem:[#allocation6 + $0xab8] sm:$0xff]
    %v11280 = vld [vmem:[#allocation6 + $0xac0] sm:$0xff]
    %v11281 = vld [vmem:[#allocation6 + $0xac8] sm:$0xff]
    %v11282 = vld [vmem:[#allocation6 + $0xad0] sm:$0xff]
    %v11283 = vld [vmem:[#allocation6 + $0xad8] sm:$0xff]
    %v11284 = vld [vmem:[#allocation6 + $0xae0] sm:$0xff]
    %v11285 = vld [vmem:[#allocation6 + $0xae8] sm:$0xff]
    %v11286 = vld [vmem:[#allocation6 + $0xaf0] sm:$0xff]
    %v11287 = vld [vmem:[#allocation6 + $0xaf8] sm:$0xff]
    %v11288 = vld [vmem:[#allocation6 + $0xb00] sm:$0xff]
    %v11289 = vld [vmem:[#allocation6 + $0xb08] sm:$0xff]
    %v11290 = vld [vmem:[#allocation6 + $0xb10] sm:$0xff]
    %v11291 = vld [vmem:[#allocation6 + $0xb18] sm:$0xff]
    %v11292 = vld [vmem:[#allocation6 + $0xb20] sm:$0xff]
    %v11293 = vld [vmem:[#allocation6 + $0xb28] sm:$0xff]
    %v11294 = vld [vmem:[#allocation6 + $0xb30] sm:$0xff]
    %v11295 = vld [vmem:[#allocation6 + $0xb38] sm:$0xff]
    %v11296 = vld [vmem:[#allocation6 + $0xb40] sm:$0xff]
    %v11297 = vld [vmem:[#allocation6 + $0xb48] sm:$0xff]
    %v11298 = vld [vmem:[#allocation6 + $0xb50] sm:$0xff]
    %v11299 = vld [vmem:[#allocation6 + $0xb58] sm:$0xff]
    %v11300 = vld [vmem:[#allocation6 + $0xb60] sm:$0xff]
    %v11301 = vld [vmem:[#allocation6 + $0xb68] sm:$0xff]
    %v11302 = vld [vmem:[#allocation6 + $0xb70] sm:$0xff]
    %v11303 = vld [vmem:[#allocation6 + $0xb78] sm:$0xff]
    %v11304 = vld [vmem:[#allocation6 + $0xb80] sm:$0xff]
    %v11305 = vld [vmem:[#allocation6 + $0xb88] sm:$0xff]
    %v11306 = vld [vmem:[#allocation6 + $0xb90] sm:$0xff]
    %v11307 = vld [vmem:[#allocation6 + $0xb98] sm:$0xff]
    %v11308 = vld [vmem:[#allocation6 + $0xba0] sm:$0xff]
    %v11309 = vld [vmem:[#allocation6 + $0xba8] sm:$0xff]
    %v11310 = vld [vmem:[#allocation6 + $0xbb0] sm:$0xff]
    %v11311 = vld [vmem:[#allocation6 + $0xbb8] sm:$0xff]
    %v11312 = vld [vmem:[#allocation6 + $0xbc0] sm:$0xff]
    %v11313 = vld [vmem:[#allocation6 + $0xbc8] sm:$0xff]
    %v11314 = vld [vmem:[#allocation6 + $0xbd0] sm:$0xff]
    %v11315 = vld [vmem:[#allocation6 + $0xbd8] sm:$0xff]
    %v11316 = vld [vmem:[#allocation6 + $0xbe0] sm:$0xff]
    %v11317 = vld [vmem:[#allocation6 + $0xbe8] sm:$0xff]
    %v11318 = vld [vmem:[#allocation6 + $0xbf0] sm:$0xff]
    %v11319 = vld [vmem:[#allocation6 + $0xbf8] sm:$0xff]
    %v11320 = vld [vmem:[#allocation6 + $0xc00] sm:$0xff]
    %v11321 = vld [vmem:[#allocation6 + $0xc08] sm:$0xff]
    %v11322 = vld [vmem:[#allocation6 + $0xc10] sm:$0xff]
    %v11323 = vld [vmem:[#allocation6 + $0xc18] sm:$0xff]
    %v11324 = vld [vmem:[#allocation6 + $0xc20] sm:$0xff]
    %v11325 = vld [vmem:[#allocation6 + $0xc28] sm:$0xff]
    %v11326 = vld [vmem:[#allocation6 + $0xc30] sm:$0xff]
    %v11327 = vld [vmem:[#allocation6 + $0xc38] sm:$0xff]
    %v11328 = vld [vmem:[#allocation6 + $0xc40] sm:$0xff]
    %v11329 = vld [vmem:[#allocation6 + $0xc48] sm:$0xff]
    %v11330 = vld [vmem:[#allocation6 + $0xc50] sm:$0xff]
    %v11331 = vld [vmem:[#allocation6 + $0xc58] sm:$0xff]
    %v11332 = vld [vmem:[#allocation6 + $0xc60] sm:$0xff]
    %v11333 = vld [vmem:[#allocation6 + $0xc68] sm:$0xff]
    %v11334 = vld [vmem:[#allocation6 + $0xc70] sm:$0xff]
    %v11335 = vld [vmem:[#allocation6 + $0xc78] sm:$0xff]
    %v11336 = vld [vmem:[#allocation6 + $0xc80] sm:$0xff]
    %v11337 = vld [vmem:[#allocation6 + $0xc88] sm:$0xff]
    %v11338 = vld [vmem:[#allocation6 + $0xc90] sm:$0xff]
    %v11339 = vld [vmem:[#allocation6 + $0xc98] sm:$0xff]
    %v11340 = vld [vmem:[#allocation6 + $0xca0] sm:$0xff]
    %v11341 = vld [vmem:[#allocation6 + $0xca8] sm:$0xff]
    %v11342 = vld [vmem:[#allocation6 + $0xcb0] sm:$0xff]
    %v11343 = vld [vmem:[#allocation6 + $0xcb8] sm:$0xff]
    %v11344 = vld [vmem:[#allocation6 + $0xcc0] sm:$0xff]
    %v11345 = vld [vmem:[#allocation6 + $0xcc8] sm:$0xff]
    %v11346 = vld [vmem:[#allocation6 + $0xcd0] sm:$0xff]
    %v11347 = vld [vmem:[#allocation6 + $0xcd8] sm:$0xff]
    %v11348 = vld [vmem:[#allocation6 + $0xce0] sm:$0xff]
    %v11349 = vld [vmem:[#allocation6 + $0xce8] sm:$0xff]
    %v11350 = vld [vmem:[#allocation6 + $0xcf0] sm:$0xff]
    %v11351 = vld [vmem:[#allocation6 + $0xcf8] sm:$0xff]
    %v11352 = vld [vmem:[#allocation6 + $0xd00] sm:$0xff]
    %v11353 = vld [vmem:[#allocation6 + $0xd08] sm:$0xff]
    %v11354 = vld [vmem:[#allocation6 + $0xd10] sm:$0xff]
    %v11355 = vld [vmem:[#allocation6 + $0xd18] sm:$0xff]
    %v11356 = vld [vmem:[#allocation6 + $0xd20] sm:$0xff]
    %v11357 = vld [vmem:[#allocation6 + $0xd28] sm:$0xff]
    %v11358 = vld [vmem:[#allocation6 + $0xd30] sm:$0xff]
    %v11359 = vld [vmem:[#allocation6 + $0xd38] sm:$0xff]
    %v11360 = vld [vmem:[#allocation6 + $0xd40] sm:$0xff]
    %v11361 = vld [vmem:[#allocation6 + $0xd48] sm:$0xff]
    %v11362 = vld [vmem:[#allocation6 + $0xd50] sm:$0xff]
    %v11363 = vld [vmem:[#allocation6 + $0xd58] sm:$0xff]
    %v11364 = vld [vmem:[#allocation6 + $0xd60] sm:$0xff]
    %v11365 = vld [vmem:[#allocation6 + $0xd68] sm:$0xff]
    %v11366 = vld [vmem:[#allocation6 + $0xd70] sm:$0xff]
    %v11367 = vld [vmem:[#allocation6 + $0xd78] sm:$0xff]
    %v11368 = vld [vmem:[#allocation6 + $0xd80] sm:$0xff]
    %v11369 = vld [vmem:[#allocation6 + $0xd88] sm:$0xff]
    %v11370 = vld [vmem:[#allocation6 + $0xd90] sm:$0xff]
    %v11371 = vld [vmem:[#allocation6 + $0xd98] sm:$0xff]
    %v11372 = vld [vmem:[#allocation6 + $0xda0] sm:$0xff]
    %v11373 = vld [vmem:[#allocation6 + $0xda8] sm:$0xff]
    %v11374 = vld [vmem:[#allocation6 + $0xdb0] sm:$0xff]
    %v11375 = vld [vmem:[#allocation6 + $0xdb8] sm:$0xff]
    %v11376 = vld [vmem:[#allocation6 + $0xdc0] sm:$0xff]
    %v11377 = vld [vmem:[#allocation6 + $0xdc8] sm:$0xff]
    %v11378 = vld [vmem:[#allocation6 + $0xdd0] sm:$0xff]
    %v11379 = vld [vmem:[#allocation6 + $0xdd8] sm:$0xff]
    %v11380 = vld [vmem:[#allocation6 + $0xde0] sm:$0xff]
    %v11381 = vld [vmem:[#allocation6 + $0xde8] sm:$0xff]
    %v11382 = vld [vmem:[#allocation6 + $0xdf0] sm:$0xff]
    %v11383 = vld [vmem:[#allocation6 + $0xdf8] sm:$0xff]
    %v11384 = vld [vmem:[#allocation7] sm:$0xff]
    %v11386 = vlaneseq
    %v11387 = vshrl.u32 %v11386, 7
    %v11388 = vsub.s32 0, %v11387
    %v11389 = vrot.slane %v11384, %v11388
    %v11390 = vlaneseq
    %v11391 = vshrl.u32 %v11390, 7
    %v11392 = vsub.s32 1, %v11391
    %v11393 = vrot.slane %v11384, %v11392
    %v11394 = vlaneseq
    %v11395 = vshrl.u32 %v11394, 7
    %v11396 = vsub.s32 2, %v11395
    %v11397 = vrot.slane %v11384, %v11396
    %v11398 = vlaneseq
    %v11399 = vshrl.u32 %v11398, 7
    %v11400 = vsub.s32 3, %v11399
    %v11401 = vrot.slane %v11384, %v11400
    %v11402 = vlaneseq
    %v11403 = vshrl.u32 %v11402, 7
    %v11404 = vsub.s32 4, %v11403
    %v11405 = vrot.slane %v11384, %v11404
    %v11406 = vlaneseq
    %v11407 = vshrl.u32 %v11406, 7
    %v11408 = vsub.s32 5, %v11407
    %v11409 = vrot.slane %v11384, %v11408
    %v11410 = vlaneseq
    %v11411 = vshrl.u32 %v11410, 7
    %v11412 = vsub.s32 6, %v11411
    %v11413 = vrot.slane %v11384, %v11412
    %v11414 = vlaneseq
    %v11415 = vshrl.u32 %v11414, 7
    %v11416 = vsub.s32 7, %v11415
    %v11417 = vrot.slane %v11384, %v11416
    %v11874 = vunpack.c.l.b16 %v10936
    %v11875 = vunpack.c.h.b16 %v10936
    %v11876 = vunpack.c.l.b16 %v10937
    %v11877 = vunpack.c.h.b16 %v10937
    %v11878 = vunpack.c.l.b16 %v10938
    %v11879 = vunpack.c.h.b16 %v10938
    %v11880 = vunpack.c.l.b16 %v10939
    %v11881 = vunpack.c.h.b16 %v10939
    %v11882 = vunpack.c.l.b16 %v10940
    %v11883 = vunpack.c.h.b16 %v10940
    %v11884 = vunpack.c.l.b16 %v10941
    %v11885 = vunpack.c.h.b16 %v10941
    %v11886 = vunpack.c.l.b16 %v10942
    %v11887 = vunpack.c.h.b16 %v10942
    %v11888 = vunpack.c.l.b16 %v10943
    %v11889 = vunpack.c.h.b16 %v10943
    %v11890 = vunpack.c.l.b16 %v10944
    %v11891 = vunpack.c.h.b16 %v10944
    %v11892 = vunpack.c.l.b16 %v10945
    %v11893 = vunpack.c.h.b16 %v10945
    %v11894 = vunpack.c.l.b16 %v10946
    %v11895 = vunpack.c.h.b16 %v10946
    %v11896 = vunpack.c.l.b16 %v10947
    %v11897 = vunpack.c.h.b16 %v10947
    %v11898 = vunpack.c.l.b16 %v10948
    %v11899 = vunpack.c.h.b16 %v10948
    %v11900 = vunpack.c.l.b16 %v10949
    %v11901 = vunpack.c.h.b16 %v10949
    %v11902 = vunpack.c.l.b16 %v10950
    %v11903 = vunpack.c.h.b16 %v10950
    %v11904 = vunpack.c.l.b16 %v10951
    %v11905 = vunpack.c.h.b16 %v10951
    %v11906 = vunpack.c.l.b16 %v10952
    %v11907 = vunpack.c.h.b16 %v10952
    %v11908 = vunpack.c.l.b16 %v10953
    %v11909 = vunpack.c.h.b16 %v10953
    %v11910 = vunpack.c.l.b16 %v10954
    %v11911 = vunpack.c.h.b16 %v10954
    %v11912 = vunpack.c.l.b16 %v10955
    %v11913 = vunpack.c.h.b16 %v10955
    %v11914 = vunpack.c.l.b16 %v10956
    %v11915 = vunpack.c.h.b16 %v10956
    %v11916 = vunpack.c.l.b16 %v10957
    %v11917 = vunpack.c.h.b16 %v10957
    %v11918 = vunpack.c.l.b16 %v10958
    %v11919 = vunpack.c.h.b16 %v10958
    %v11920 = vunpack.c.l.b16 %v10959
    %v11921 = vunpack.c.h.b16 %v10959
    %v11922 = vunpack.c.l.b16 %v10960
    %v11923 = vunpack.c.h.b16 %v10960
    %v11924 = vunpack.c.l.b16 %v10961
    %v11925 = vunpack.c.h.b16 %v10961
    %v11926 = vunpack.c.l.b16 %v10962
    %v11927 = vunpack.c.h.b16 %v10962
    %v11928 = vunpack.c.l.b16 %v10963
    %v11929 = vunpack.c.h.b16 %v10963
    %v11930 = vunpack.c.l.b16 %v10964
    %v11931 = vunpack.c.h.b16 %v10964
    %v11932 = vunpack.c.l.b16 %v10965
    %v11933 = vunpack.c.h.b16 %v10965
    %v11934 = vunpack.c.l.b16 %v10966
    %v11935 = vunpack.c.h.b16 %v10966
    %v11936 = vunpack.c.l.b16 %v10967
    %v11937 = vunpack.c.h.b16 %v10967
    %v11938 = vunpack.c.l.b16 %v10968
    %v11939 = vunpack.c.h.b16 %v10968
    %v11940 = vunpack.c.l.b16 %v10969
    %v11941 = vunpack.c.h.b16 %v10969
    %v11942 = vunpack.c.l.b16 %v10970
    %v11943 = vunpack.c.h.b16 %v10970
    %v11944 = vunpack.c.l.b16 %v10971
    %v11945 = vunpack.c.h.b16 %v10971
    %v11946 = vunpack.c.l.b16 %v10972
    %v11947 = vunpack.c.h.b16 %v10972
    %v11948 = vunpack.c.l.b16 %v10973
    %v11949 = vunpack.c.h.b16 %v10973
    %v11950 = vunpack.c.l.b16 %v10974
    %v11951 = vunpack.c.h.b16 %v10974
    %v11952 = vunpack.c.l.b16 %v10975
    %v11953 = vunpack.c.h.b16 %v10975
    %v11954 = vunpack.c.l.b16 %v10976
    %v11955 = vunpack.c.h.b16 %v10976
    %v11956 = vunpack.c.l.b16 %v10977
    %v11957 = vunpack.c.h.b16 %v10977
    %v11958 = vunpack.c.l.b16 %v10978
    %v11959 = vunpack.c.h.b16 %v10978
    %v11960 = vunpack.c.l.b16 %v10979
    %v11961 = vunpack.c.h.b16 %v10979
    %v11962 = vunpack.c.l.b16 %v10980
    %v11963 = vunpack.c.h.b16 %v10980
    %v11964 = vunpack.c.l.b16 %v10981
    %v11965 = vunpack.c.h.b16 %v10981
    %v11966 = vunpack.c.l.b16 %v10982
    %v11967 = vunpack.c.h.b16 %v10982
    %v11968 = vunpack.c.l.b16 %v10983
    %v11969 = vunpack.c.h.b16 %v10983
    %v11970 = vunpack.c.l.b16 %v10984
    %v11971 = vunpack.c.h.b16 %v10984
    %v11972 = vunpack.c.l.b16 %v10985
    %v11973 = vunpack.c.h.b16 %v10985
    %v11974 = vunpack.c.l.b16 %v10986
    %v11975 = vunpack.c.h.b16 %v10986
    %v11976 = vunpack.c.l.b16 %v10987
    %v11977 = vunpack.c.h.b16 %v10987
    %v11978 = vunpack.c.l.b16 %v10988
    %v11979 = vunpack.c.h.b16 %v10988
    %v11980 = vunpack.c.l.b16 %v10989
    %v11981 = vunpack.c.h.b16 %v10989
    %v11982 = vunpack.c.l.b16 %v10990
    %v11983 = vunpack.c.h.b16 %v10990
    %v11984 = vunpack.c.l.b16 %v10991
    %v11985 = vunpack.c.h.b16 %v10991
    %v11986 = vunpack.c.l.b16 %v10992
    %v11987 = vunpack.c.h.b16 %v10992
    %v11988 = vunpack.c.l.b16 %v10993
    %v11989 = vunpack.c.h.b16 %v10993
    %v11990 = vunpack.c.l.b16 %v10994
    %v11991 = vunpack.c.h.b16 %v10994
    %v11992 = vunpack.c.l.b16 %v10995
    %v11993 = vunpack.c.h.b16 %v10995
    %v11994 = vunpack.c.l.b16 %v10996
    %v11995 = vunpack.c.h.b16 %v10996
    %v11996 = vunpack.c.l.b16 %v10997
    %v11997 = vunpack.c.h.b16 %v10997
    %v11998 = vunpack.c.l.b16 %v10998
    %v11999 = vunpack.c.h.b16 %v10998
    %v12000 = vunpack.c.l.b16 %v10999
    %v12001 = vunpack.c.h.b16 %v10999
    %v12002 = vunpack.c.l.b16 %v11000
    %v12003 = vunpack.c.h.b16 %v11000
    %v12004 = vunpack.c.l.b16 %v11001
    %v12005 = vunpack.c.h.b16 %v11001
    %v12006 = vunpack.c.l.b16 %v11002
    %v12007 = vunpack.c.h.b16 %v11002
    %v12008 = vunpack.c.l.b16 %v11003
    %v12009 = vunpack.c.h.b16 %v11003
    %v12010 = vunpack.c.l.b16 %v11004
    %v12011 = vunpack.c.h.b16 %v11004
    %v12012 = vunpack.c.l.b16 %v11005
    %v12013 = vunpack.c.h.b16 %v11005
    %v12014 = vunpack.c.l.b16 %v11006
    %v12015 = vunpack.c.h.b16 %v11006
    %v12016 = vunpack.c.l.b16 %v11007
    %v12017 = vunpack.c.h.b16 %v11007
    %v12018 = vunpack.c.l.b16 %v11008
    %v12019 = vunpack.c.h.b16 %v11008
    %v12020 = vunpack.c.l.b16 %v11009
    %v12021 = vunpack.c.h.b16 %v11009
    %v12022 = vunpack.c.l.b16 %v11010
    %v12023 = vunpack.c.h.b16 %v11010
    %v12024 = vunpack.c.l.b16 %v11011
    %v12025 = vunpack.c.h.b16 %v11011
    %v12026 = vunpack.c.l.b16 %v11012
    %v12027 = vunpack.c.h.b16 %v11012
    %v12028 = vunpack.c.l.b16 %v11013
    %v12029 = vunpack.c.h.b16 %v11013
    %v12030 = vunpack.c.l.b16 %v11014
    %v12031 = vunpack.c.h.b16 %v11014
    %v12032 = vunpack.c.l.b16 %v11015
    %v12033 = vunpack.c.h.b16 %v11015
    %v12034 = vunpack.c.l.b16 %v11016
    %v12035 = vunpack.c.h.b16 %v11016
    %v12036 = vunpack.c.l.b16 %v11017
    %v12037 = vunpack.c.h.b16 %v11017
    %v12038 = vunpack.c.l.b16 %v11018
    %v12039 = vunpack.c.h.b16 %v11018
    %v12040 = vunpack.c.l.b16 %v11019
    %v12041 = vunpack.c.h.b16 %v11019
    %v12042 = vunpack.c.l.b16 %v11020
    %v12043 = vunpack.c.h.b16 %v11020
    %v12044 = vunpack.c.l.b16 %v11021
    %v12045 = vunpack.c.h.b16 %v11021
    %v12046 = vunpack.c.l.b16 %v11022
    %v12047 = vunpack.c.h.b16 %v11022
    %v12048 = vunpack.c.l.b16 %v11023
    %v12049 = vunpack.c.h.b16 %v11023
    %v12050 = vunpack.c.l.b16 %v11024
    %v12051 = vunpack.c.h.b16 %v11024
    %v12052 = vunpack.c.l.b16 %v11025
    %v12053 = vunpack.c.h.b16 %v11025
    %v12054 = vunpack.c.l.b16 %v11026
    %v12055 = vunpack.c.h.b16 %v11026
    %v12056 = vunpack.c.l.b16 %v11027
    %v12057 = vunpack.c.h.b16 %v11027
    %v12058 = vunpack.c.l.b16 %v11028
    %v12059 = vunpack.c.h.b16 %v11028
    %v12060 = vunpack.c.l.b16 %v11029
    %v12061 = vunpack.c.h.b16 %v11029
    %v12062 = vunpack.c.l.b16 %v11030
    %v12063 = vunpack.c.h.b16 %v11030
    %v12064 = vunpack.c.l.b16 %v11031
    %v12065 = vunpack.c.h.b16 %v11031
    %v12066 = vunpack.c.l.b16 %v11032
    %v12067 = vunpack.c.h.b16 %v11032
    %v12068 = vunpack.c.l.b16 %v11033
    %v12069 = vunpack.c.h.b16 %v11033
    %v12070 = vunpack.c.l.b16 %v11034
    %v12071 = vunpack.c.h.b16 %v11034
    %v12072 = vunpack.c.l.b16 %v11035
    %v12073 = vunpack.c.h.b16 %v11035
    %v12074 = vunpack.c.l.b16 %v11036
    %v12075 = vunpack.c.h.b16 %v11036
    %v12076 = vunpack.c.l.b16 %v11037
    %v12077 = vunpack.c.h.b16 %v11037
    %v12078 = vunpack.c.l.b16 %v11038
    %v12079 = vunpack.c.h.b16 %v11038
    %v12080 = vunpack.c.l.b16 %v11039
    %v12081 = vunpack.c.h.b16 %v11039
    %v12082 = vunpack.c.l.b16 %v11040
    %v12083 = vunpack.c.h.b16 %v11040
    %v12084 = vunpack.c.l.b16 %v11041
    %v12085 = vunpack.c.h.b16 %v11041
    %v12086 = vunpack.c.l.b16 %v11042
    %v12087 = vunpack.c.h.b16 %v11042
    %v12088 = vunpack.c.l.b16 %v11043
    %v12089 = vunpack.c.h.b16 %v11043
    %v12090 = vunpack.c.l.b16 %v11044
    %v12091 = vunpack.c.h.b16 %v11044
    %v12092 = vunpack.c.l.b16 %v11045
    %v12093 = vunpack.c.h.b16 %v11045
    %v12094 = vunpack.c.l.b16 %v11046
    %v12095 = vunpack.c.h.b16 %v11046
    %v12096 = vunpack.c.l.b16 %v11047
    %v12097 = vunpack.c.h.b16 %v11047
    %v12098 = vunpack.c.l.b16 %v11048
    %v12099 = vunpack.c.h.b16 %v11048
    %v12100 = vunpack.c.l.b16 %v11049
    %v12101 = vunpack.c.h.b16 %v11049
    %v12102 = vunpack.c.l.b16 %v11050
    %v12103 = vunpack.c.h.b16 %v11050
    %v12104 = vunpack.c.l.b16 %v11051
    %v12105 = vunpack.c.h.b16 %v11051
    %v12106 = vunpack.c.l.b16 %v11052
    %v12107 = vunpack.c.h.b16 %v11052
    %v12108 = vunpack.c.l.b16 %v11053
    %v12109 = vunpack.c.h.b16 %v11053
    %v12110 = vunpack.c.l.b16 %v11054
    %v12111 = vunpack.c.h.b16 %v11054
    %v12112 = vunpack.c.l.b16 %v11055
    %v12113 = vunpack.c.h.b16 %v11055
    %v12114 = vunpack.c.l.b16 %v11056
    %v12115 = vunpack.c.h.b16 %v11056
    %v12116 = vunpack.c.l.b16 %v11057
    %v12117 = vunpack.c.h.b16 %v11057
    %v12118 = vunpack.c.l.b16 %v11058
    %v12119 = vunpack.c.h.b16 %v11058
    %v12120 = vunpack.c.l.b16 %v11059
    %v12121 = vunpack.c.h.b16 %v11059
    %v12122 = vunpack.c.l.b16 %v11060
    %v12123 = vunpack.c.h.b16 %v11060
    %v12124 = vunpack.c.l.b16 %v11061
    %v12125 = vunpack.c.h.b16 %v11061
    %v12126 = vunpack.c.l.b16 %v11062
    %v12127 = vunpack.c.h.b16 %v11062
    %v12128 = vunpack.c.l.b16 %v11063
    %v12129 = vunpack.c.h.b16 %v11063
    %v12130 = vunpack.c.l.b16 %v11064
    %v12131 = vunpack.c.h.b16 %v11064
    %v12132 = vunpack.c.l.b16 %v11065
    %v12133 = vunpack.c.h.b16 %v11065
    %v12134 = vunpack.c.l.b16 %v11066
    %v12135 = vunpack.c.h.b16 %v11066
    %v12136 = vunpack.c.l.b16 %v11067
    %v12137 = vunpack.c.h.b16 %v11067
    %v12138 = vunpack.c.l.b16 %v11068
    %v12139 = vunpack.c.h.b16 %v11068
    %v12140 = vunpack.c.l.b16 %v11069
    %v12141 = vunpack.c.h.b16 %v11069
    %v12142 = vunpack.c.l.b16 %v11070
    %v12143 = vunpack.c.h.b16 %v11070
    %v12144 = vunpack.c.l.b16 %v11071
    %v12145 = vunpack.c.h.b16 %v11071
    %v12146 = vunpack.c.l.b16 %v11072
    %v12147 = vunpack.c.h.b16 %v11072
    %v12148 = vunpack.c.l.b16 %v11073
    %v12149 = vunpack.c.h.b16 %v11073
    %v12150 = vunpack.c.l.b16 %v11074
    %v12151 = vunpack.c.h.b16 %v11074
    %v12152 = vunpack.c.l.b16 %v11075
    %v12153 = vunpack.c.h.b16 %v11075
    %v12154 = vunpack.c.l.b16 %v11076
    %v12155 = vunpack.c.h.b16 %v11076
    %v12156 = vunpack.c.l.b16 %v11077
    %v12157 = vunpack.c.h.b16 %v11077
    %v12158 = vunpack.c.l.b16 %v11078
    %v12159 = vunpack.c.h.b16 %v11078
    %v12160 = vunpack.c.l.b16 %v11079
    %v12161 = vunpack.c.h.b16 %v11079
    %v12162 = vunpack.c.l.b16 %v11080
    %v12163 = vunpack.c.h.b16 %v11080
    %v12164 = vunpack.c.l.b16 %v11081
    %v12165 = vunpack.c.h.b16 %v11081
    %v12166 = vunpack.c.l.b16 %v11082
    %v12167 = vunpack.c.h.b16 %v11082
    %v12168 = vunpack.c.l.b16 %v11083
    %v12169 = vunpack.c.h.b16 %v11083
    %v12170 = vunpack.c.l.b16 %v11084
    %v12171 = vunpack.c.h.b16 %v11084
    %v12172 = vunpack.c.l.b16 %v11085
    %v12173 = vunpack.c.h.b16 %v11085
    %v12174 = vunpack.c.l.b16 %v11086
    %v12175 = vunpack.c.h.b16 %v11086
    %v12176 = vunpack.c.l.b16 %v11087
    %v12177 = vunpack.c.h.b16 %v11087
    %v12178 = vunpack.c.l.b16 %v11088
    %v12179 = vunpack.c.h.b16 %v11088
    %v12180 = vunpack.c.l.b16 %v11089
    %v12181 = vunpack.c.h.b16 %v11089
    %v12182 = vunpack.c.l.b16 %v11090
    %v12183 = vunpack.c.h.b16 %v11090
    %v12184 = vunpack.c.l.b16 %v11091
    %v12185 = vunpack.c.h.b16 %v11091
    %v12186 = vunpack.c.l.b16 %v11092
    %v12187 = vunpack.c.h.b16 %v11092
    %v12188 = vunpack.c.l.b16 %v11093
    %v12189 = vunpack.c.h.b16 %v11093
    %v12190 = vunpack.c.l.b16 %v11094
    %v12191 = vunpack.c.h.b16 %v11094
    %v12192 = vunpack.c.l.b16 %v11095
    %v12193 = vunpack.c.h.b16 %v11095
    %v12194 = vunpack.c.l.b16 %v11096
    %v12195 = vunpack.c.h.b16 %v11096
    %v12196 = vunpack.c.l.b16 %v11097
    %v12197 = vunpack.c.h.b16 %v11097
    %v12198 = vunpack.c.l.b16 %v11098
    %v12199 = vunpack.c.h.b16 %v11098
    %v12200 = vunpack.c.l.b16 %v11099
    %v12201 = vunpack.c.h.b16 %v11099
    %v12202 = vunpack.c.l.b16 %v11100
    %v12203 = vunpack.c.h.b16 %v11100
    %v12204 = vunpack.c.l.b16 %v11101
    %v12205 = vunpack.c.h.b16 %v11101
    %v12206 = vunpack.c.l.b16 %v11102
    %v12207 = vunpack.c.h.b16 %v11102
    %v12208 = vunpack.c.l.b16 %v11103
    %v12209 = vunpack.c.h.b16 %v11103
    %v12210 = vunpack.c.l.b16 %v11104
    %v12211 = vunpack.c.h.b16 %v11104
    %v12212 = vunpack.c.l.b16 %v11105
    %v12213 = vunpack.c.h.b16 %v11105
    %v12214 = vunpack.c.l.b16 %v11106
    %v12215 = vunpack.c.h.b16 %v11106
    %v12216 = vunpack.c.l.b16 %v11107
    %v12217 = vunpack.c.h.b16 %v11107
    %v12218 = vunpack.c.l.b16 %v11108
    %v12219 = vunpack.c.h.b16 %v11108
    %v12220 = vunpack.c.l.b16 %v11109
    %v12221 = vunpack.c.h.b16 %v11109
    %v12222 = vunpack.c.l.b16 %v11110
    %v12223 = vunpack.c.h.b16 %v11110
    %v12224 = vunpack.c.l.b16 %v11111
    %v12225 = vunpack.c.h.b16 %v11111
    %v12226 = vunpack.c.l.b16 %v11112
    %v12227 = vunpack.c.h.b16 %v11112
    %v12228 = vunpack.c.l.b16 %v11113
    %v12229 = vunpack.c.h.b16 %v11113
    %v12230 = vunpack.c.l.b16 %v11114
    %v12231 = vunpack.c.h.b16 %v11114
    %v12232 = vunpack.c.l.b16 %v11115
    %v12233 = vunpack.c.h.b16 %v11115
    %v12234 = vunpack.c.l.b16 %v11116
    %v12235 = vunpack.c.h.b16 %v11116
    %v12236 = vunpack.c.l.b16 %v11117
    %v12237 = vunpack.c.h.b16 %v11117
    %v12238 = vunpack.c.l.b16 %v11118
    %v12239 = vunpack.c.h.b16 %v11118
    %v12240 = vunpack.c.l.b16 %v11119
    %v12241 = vunpack.c.h.b16 %v11119
    %v12242 = vunpack.c.l.b16 %v11120
    %v12243 = vunpack.c.h.b16 %v11120
    %v12244 = vunpack.c.l.b16 %v11121
    %v12245 = vunpack.c.h.b16 %v11121
    %v12246 = vunpack.c.l.b16 %v11122
    %v12247 = vunpack.c.h.b16 %v11122
    %v12248 = vunpack.c.l.b16 %v11123
    %v12249 = vunpack.c.h.b16 %v11123
    %v12250 = vunpack.c.l.b16 %v11124
    %v12251 = vunpack.c.h.b16 %v11124
    %v12252 = vunpack.c.l.b16 %v11125
    %v12253 = vunpack.c.h.b16 %v11125
    %v12254 = vunpack.c.l.b16 %v11126
    %v12255 = vunpack.c.h.b16 %v11126
    %v12256 = vunpack.c.l.b16 %v11127
    %v12257 = vunpack.c.h.b16 %v11127
    %v12258 = vunpack.c.l.b16 %v11128
    %v12259 = vunpack.c.h.b16 %v11128
    %v12260 = vunpack.c.l.b16 %v11129
    %v12261 = vunpack.c.h.b16 %v11129
    %v12262 = vunpack.c.l.b16 %v11130
    %v12263 = vunpack.c.h.b16 %v11130
    %v12264 = vunpack.c.l.b16 %v11131
    %v12265 = vunpack.c.h.b16 %v11131
    %v12266 = vunpack.c.l.b16 %v11132
    %v12267 = vunpack.c.h.b16 %v11132
    %v12268 = vunpack.c.l.b16 %v11133
    %v12269 = vunpack.c.h.b16 %v11133
    %v12270 = vunpack.c.l.b16 %v11134
    %v12271 = vunpack.c.h.b16 %v11134
    %v12272 = vunpack.c.l.b16 %v11135
    %v12273 = vunpack.c.h.b16 %v11135
    %v12274 = vunpack.c.l.b16 %v11136
    %v12275 = vunpack.c.h.b16 %v11136
    %v12276 = vunpack.c.l.b16 %v11137
    %v12277 = vunpack.c.h.b16 %v11137
    %v12278 = vunpack.c.l.b16 %v11138
    %v12279 = vunpack.c.h.b16 %v11138
    %v12280 = vunpack.c.l.b16 %v11139
    %v12281 = vunpack.c.h.b16 %v11139
    %v12282 = vunpack.c.l.b16 %v11140
    %v12283 = vunpack.c.h.b16 %v11140
    %v12284 = vunpack.c.l.b16 %v11141
    %v12285 = vunpack.c.h.b16 %v11141
    %v12286 = vunpack.c.l.b16 %v11142
    %v12287 = vunpack.c.h.b16 %v11142
    %v12288 = vunpack.c.l.b16 %v11143
    %v12289 = vunpack.c.h.b16 %v11143
    %v12290 = vunpack.c.l.b16 %v11144
    %v12291 = vunpack.c.h.b16 %v11144
    %v12292 = vunpack.c.l.b16 %v11145
    %v12293 = vunpack.c.h.b16 %v11145
    %v12294 = vunpack.c.l.b16 %v11146
    %v12295 = vunpack.c.h.b16 %v11146
    %v12296 = vunpack.c.l.b16 %v11147
    %v12297 = vunpack.c.h.b16 %v11147
    %v12298 = vunpack.c.l.b16 %v11148
    %v12299 = vunpack.c.h.b16 %v11148
    %v12300 = vunpack.c.l.b16 %v11149
    %v12301 = vunpack.c.h.b16 %v11149
    %v12302 = vunpack.c.l.b16 %v11150
    %v12303 = vunpack.c.h.b16 %v11150
    %v12304 = vunpack.c.l.b16 %v11151
    %v12305 = vunpack.c.h.b16 %v11151
    %v12306 = vunpack.c.l.b16 %v11152
    %v12307 = vunpack.c.h.b16 %v11152
    %v12308 = vunpack.c.l.b16 %v11153
    %v12309 = vunpack.c.h.b16 %v11153
    %v12310 = vunpack.c.l.b16 %v11154
    %v12311 = vunpack.c.h.b16 %v11154
    %v12312 = vunpack.c.l.b16 %v11155
    %v12313 = vunpack.c.h.b16 %v11155
    %v12314 = vunpack.c.l.b16 %v11156
    %v12315 = vunpack.c.h.b16 %v11156
    %v12316 = vunpack.c.l.b16 %v11157
    %v12317 = vunpack.c.h.b16 %v11157
    %v12318 = vunpack.c.l.b16 %v11158
    %v12319 = vunpack.c.h.b16 %v11158
    %v12320 = vunpack.c.l.b16 %v11159
    %v12321 = vunpack.c.h.b16 %v11159
    %v12322 = vunpack.c.l.b16 %v11160
    %v12323 = vunpack.c.h.b16 %v11160
    %v12324 = vunpack.c.l.b16 %v11161
    %v12325 = vunpack.c.h.b16 %v11161
    %v12326 = vunpack.c.l.b16 %v11162
    %v12327 = vunpack.c.h.b16 %v11162
    %v12328 = vunpack.c.l.b16 %v11163
    %v12329 = vunpack.c.h.b16 %v11163
    %v12330 = vunpack.c.l.b16 %v11164
    %v12331 = vunpack.c.h.b16 %v11164
    %v12332 = vunpack.c.l.b16 %v11165
    %v12333 = vunpack.c.h.b16 %v11165
    %v12334 = vunpack.c.l.b16 %v11166
    %v12335 = vunpack.c.h.b16 %v11166
    %v12336 = vunpack.c.l.b16 %v11167
    %v12337 = vunpack.c.h.b16 %v11167
    %v12338 = vunpack.c.l.b16 %v11168
    %v12339 = vunpack.c.h.b16 %v11168
    %v12340 = vunpack.c.l.b16 %v11169
    %v12341 = vunpack.c.h.b16 %v11169
    %v12342 = vunpack.c.l.b16 %v11170
    %v12343 = vunpack.c.h.b16 %v11170
    %v12344 = vunpack.c.l.b16 %v11171
    %v12345 = vunpack.c.h.b16 %v11171
    %v12346 = vunpack.c.l.b16 %v11172
    %v12347 = vunpack.c.h.b16 %v11172
    %v12348 = vunpack.c.l.b16 %v11173
    %v12349 = vunpack.c.h.b16 %v11173
    %v12350 = vunpack.c.l.b16 %v11174
    %v12351 = vunpack.c.h.b16 %v11174
    %v12352 = vunpack.c.l.b16 %v11175
    %v12353 = vunpack.c.h.b16 %v11175
    %v12354 = vunpack.c.l.b16 %v11176
    %v12355 = vunpack.c.h.b16 %v11176
    %v12356 = vunpack.c.l.b16 %v11177
    %v12357 = vunpack.c.h.b16 %v11177
    %v12358 = vunpack.c.l.b16 %v11178
    %v12359 = vunpack.c.h.b16 %v11178
    %v12360 = vunpack.c.l.b16 %v11179
    %v12361 = vunpack.c.h.b16 %v11179
    %v12362 = vunpack.c.l.b16 %v11180
    %v12363 = vunpack.c.h.b16 %v11180
    %v12364 = vunpack.c.l.b16 %v11181
    %v12365 = vunpack.c.h.b16 %v11181
    %v12366 = vunpack.c.l.b16 %v11182
    %v12367 = vunpack.c.h.b16 %v11182
    %v12368 = vunpack.c.l.b16 %v11183
    %v12369 = vunpack.c.h.b16 %v11183
    %v12370 = vunpack.c.l.b16 %v11184
    %v12371 = vunpack.c.h.b16 %v11184
    %v12372 = vunpack.c.l.b16 %v11185
    %v12373 = vunpack.c.h.b16 %v11185
    %v12374 = vunpack.c.l.b16 %v11186
    %v12375 = vunpack.c.h.b16 %v11186
    %v12376 = vunpack.c.l.b16 %v11187
    %v12377 = vunpack.c.h.b16 %v11187
    %v12378 = vunpack.c.l.b16 %v11188
    %v12379 = vunpack.c.h.b16 %v11188
    %v12380 = vunpack.c.l.b16 %v11189
    %v12381 = vunpack.c.h.b16 %v11189
    %v12382 = vunpack.c.l.b16 %v11190
    %v12383 = vunpack.c.h.b16 %v11190
    %v12384 = vunpack.c.l.b16 %v11191
    %v12385 = vunpack.c.h.b16 %v11191
    %v12386 = vunpack.c.l.b16 %v11192
    %v12387 = vunpack.c.h.b16 %v11192
    %v12388 = vunpack.c.l.b16 %v11193
    %v12389 = vunpack.c.h.b16 %v11193
    %v12390 = vunpack.c.l.b16 %v11194
    %v12391 = vunpack.c.h.b16 %v11194
    %v12392 = vunpack.c.l.b16 %v11195
    %v12393 = vunpack.c.h.b16 %v11195
    %v12394 = vunpack.c.l.b16 %v11196
    %v12395 = vunpack.c.h.b16 %v11196
    %v12396 = vunpack.c.l.b16 %v11197
    %v12397 = vunpack.c.h.b16 %v11197
    %v12398 = vunpack.c.l.b16 %v11198
    %v12399 = vunpack.c.h.b16 %v11198
    %v12400 = vunpack.c.l.b16 %v11199
    %v12401 = vunpack.c.h.b16 %v11199
    %v12402 = vunpack.c.l.b16 %v11200
    %v12403 = vunpack.c.h.b16 %v11200
    %v12404 = vunpack.c.l.b16 %v11201
    %v12405 = vunpack.c.h.b16 %v11201
    %v12406 = vunpack.c.l.b16 %v11202
    %v12407 = vunpack.c.h.b16 %v11202
    %v12408 = vunpack.c.l.b16 %v11203
    %v12409 = vunpack.c.h.b16 %v11203
    %v12410 = vunpack.c.l.b16 %v11204
    %v12411 = vunpack.c.h.b16 %v11204
    %v12412 = vunpack.c.l.b16 %v11205
    %v12413 = vunpack.c.h.b16 %v11205
    %v12414 = vunpack.c.l.b16 %v11206
    %v12415 = vunpack.c.h.b16 %v11206
    %v12416 = vunpack.c.l.b16 %v11207
    %v12417 = vunpack.c.h.b16 %v11207
    %v12418 = vunpack.c.l.b16 %v11208
    %v12419 = vunpack.c.h.b16 %v11208
    %v12420 = vunpack.c.l.b16 %v11209
    %v12421 = vunpack.c.h.b16 %v11209
    %v12422 = vunpack.c.l.b16 %v11210
    %v12423 = vunpack.c.h.b16 %v11210
    %v12424 = vunpack.c.l.b16 %v11211
    %v12425 = vunpack.c.h.b16 %v11211
    %v12426 = vunpack.c.l.b16 %v11212
    %v12427 = vunpack.c.h.b16 %v11212
    %v12428 = vunpack.c.l.b16 %v11213
    %v12429 = vunpack.c.h.b16 %v11213
    %v12430 = vunpack.c.l.b16 %v11214
    %v12431 = vunpack.c.h.b16 %v11214
    %v12432 = vunpack.c.l.b16 %v11215
    %v12433 = vunpack.c.h.b16 %v11215
    %v12434 = vunpack.c.l.b16 %v11216
    %v12435 = vunpack.c.h.b16 %v11216
    %v12436 = vunpack.c.l.b16 %v11217
    %v12437 = vunpack.c.h.b16 %v11217
    %v12438 = vunpack.c.l.b16 %v11218
    %v12439 = vunpack.c.h.b16 %v11218
    %v12440 = vunpack.c.l.b16 %v11219
    %v12441 = vunpack.c.h.b16 %v11219
    %v12442 = vunpack.c.l.b16 %v11220
    %v12443 = vunpack.c.h.b16 %v11220
    %v12444 = vunpack.c.l.b16 %v11221
    %v12445 = vunpack.c.h.b16 %v11221
    %v12446 = vunpack.c.l.b16 %v11222
    %v12447 = vunpack.c.h.b16 %v11222
    %v12448 = vunpack.c.l.b16 %v11223
    %v12449 = vunpack.c.h.b16 %v11223
    %v12450 = vunpack.c.l.b16 %v11224
    %v12451 = vunpack.c.h.b16 %v11224
    %v12452 = vunpack.c.l.b16 %v11225
    %v12453 = vunpack.c.h.b16 %v11225
    %v12454 = vunpack.c.l.b16 %v11226
    %v12455 = vunpack.c.h.b16 %v11226
    %v12456 = vunpack.c.l.b16 %v11227
    %v12457 = vunpack.c.h.b16 %v11227
    %v12458 = vunpack.c.l.b16 %v11228
    %v12459 = vunpack.c.h.b16 %v11228
    %v12460 = vunpack.c.l.b16 %v11229
    %v12461 = vunpack.c.h.b16 %v11229
    %v12462 = vunpack.c.l.b16 %v11230
    %v12463 = vunpack.c.h.b16 %v11230
    %v12464 = vunpack.c.l.b16 %v11231
    %v12465 = vunpack.c.h.b16 %v11231
    %v12466 = vunpack.c.l.b16 %v11232
    %v12467 = vunpack.c.h.b16 %v11232
    %v12468 = vunpack.c.l.b16 %v11233
    %v12469 = vunpack.c.h.b16 %v11233
    %v12470 = vunpack.c.l.b16 %v11234
    %v12471 = vunpack.c.h.b16 %v11234
    %v12472 = vunpack.c.l.b16 %v11235
    %v12473 = vunpack.c.h.b16 %v11235
    %v12474 = vunpack.c.l.b16 %v11236
    %v12475 = vunpack.c.h.b16 %v11236
    %v12476 = vunpack.c.l.b16 %v11237
    %v12477 = vunpack.c.h.b16 %v11237
    %v12478 = vunpack.c.l.b16 %v11238
    %v12479 = vunpack.c.h.b16 %v11238
    %v12480 = vunpack.c.l.b16 %v11239
    %v12481 = vunpack.c.h.b16 %v11239
    %v12482 = vunpack.c.l.b16 %v11240
    %v12483 = vunpack.c.h.b16 %v11240
    %v12484 = vunpack.c.l.b16 %v11241
    %v12485 = vunpack.c.h.b16 %v11241
    %v12486 = vunpack.c.l.b16 %v11242
    %v12487 = vunpack.c.h.b16 %v11242
    %v12488 = vunpack.c.l.b16 %v11243
    %v12489 = vunpack.c.h.b16 %v11243
    %v12490 = vunpack.c.l.b16 %v11244
    %v12491 = vunpack.c.h.b16 %v11244
    %v12492 = vunpack.c.l.b16 %v11245
    %v12493 = vunpack.c.h.b16 %v11245
    %v12494 = vunpack.c.l.b16 %v11246
    %v12495 = vunpack.c.h.b16 %v11246
    %v12496 = vunpack.c.l.b16 %v11247
    %v12497 = vunpack.c.h.b16 %v11247
    %v12498 = vunpack.c.l.b16 %v11248
    %v12499 = vunpack.c.h.b16 %v11248
    %v12500 = vunpack.c.l.b16 %v11249
    %v12501 = vunpack.c.h.b16 %v11249
    %v12502 = vunpack.c.l.b16 %v11250
    %v12503 = vunpack.c.h.b16 %v11250
    %v12504 = vunpack.c.l.b16 %v11251
    %v12505 = vunpack.c.h.b16 %v11251
    %v12506 = vunpack.c.l.b16 %v11252
    %v12507 = vunpack.c.h.b16 %v11252
    %v12508 = vunpack.c.l.b16 %v11253
    %v12509 = vunpack.c.h.b16 %v11253
    %v12510 = vunpack.c.l.b16 %v11254
    %v12511 = vunpack.c.h.b16 %v11254
    %v12512 = vunpack.c.l.b16 %v11255
    %v12513 = vunpack.c.h.b16 %v11255
    %v12514 = vunpack.c.l.b16 %v11256
    %v12515 = vunpack.c.h.b16 %v11256
    %v12516 = vunpack.c.l.b16 %v11257
    %v12517 = vunpack.c.h.b16 %v11257
    %v12518 = vunpack.c.l.b16 %v11258
    %v12519 = vunpack.c.h.b16 %v11258
    %v12520 = vunpack.c.l.b16 %v11259
    %v12521 = vunpack.c.h.b16 %v11259
    %v12522 = vunpack.c.l.b16 %v11260
    %v12523 = vunpack.c.h.b16 %v11260
    %v12524 = vunpack.c.l.b16 %v11261
    %v12525 = vunpack.c.h.b16 %v11261
    %v12526 = vunpack.c.l.b16 %v11262
    %v12527 = vunpack.c.h.b16 %v11262
    %v12528 = vunpack.c.l.b16 %v11263
    %v12529 = vunpack.c.h.b16 %v11263
    %v12530 = vunpack.c.l.b16 %v11264
    %v12531 = vunpack.c.h.b16 %v11264
    %v12532 = vunpack.c.l.b16 %v11265
    %v12533 = vunpack.c.h.b16 %v11265
    %v12534 = vunpack.c.l.b16 %v11266
    %v12535 = vunpack.c.h.b16 %v11266
    %v12536 = vunpack.c.l.b16 %v11267
    %v12537 = vunpack.c.h.b16 %v11267
    %v12538 = vunpack.c.l.b16 %v11268
    %v12539 = vunpack.c.h.b16 %v11268
    %v12540 = vunpack.c.l.b16 %v11269
    %v12541 = vunpack.c.h.b16 %v11269
    %v12542 = vunpack.c.l.b16 %v11270
    %v12543 = vunpack.c.h.b16 %v11270
    %v12544 = vunpack.c.l.b16 %v11271
    %v12545 = vunpack.c.h.b16 %v11271
    %v12546 = vunpack.c.l.b16 %v11272
    %v12547 = vunpack.c.h.b16 %v11272
    %v12548 = vunpack.c.l.b16 %v11273
    %v12549 = vunpack.c.h.b16 %v11273
    %v12550 = vunpack.c.l.b16 %v11274
    %v12551 = vunpack.c.h.b16 %v11274
    %v12552 = vunpack.c.l.b16 %v11275
    %v12553 = vunpack.c.h.b16 %v11275
    %v12554 = vunpack.c.l.b16 %v11276
    %v12555 = vunpack.c.h.b16 %v11276
    %v12556 = vunpack.c.l.b16 %v11277
    %v12557 = vunpack.c.h.b16 %v11277
    %v12558 = vunpack.c.l.b16 %v11278
    %v12559 = vunpack.c.h.b16 %v11278
    %v12560 = vunpack.c.l.b16 %v11279
    %v12561 = vunpack.c.h.b16 %v11279
    %v12562 = vunpack.c.l.b16 %v11280
    %v12563 = vunpack.c.h.b16 %v11280
    %v12564 = vunpack.c.l.b16 %v11281
    %v12565 = vunpack.c.h.b16 %v11281
    %v12566 = vunpack.c.l.b16 %v11282
    %v12567 = vunpack.c.h.b16 %v11282
    %v12568 = vunpack.c.l.b16 %v11283
    %v12569 = vunpack.c.h.b16 %v11283
    %v12570 = vunpack.c.l.b16 %v11284
    %v12571 = vunpack.c.h.b16 %v11284
    %v12572 = vunpack.c.l.b16 %v11285
    %v12573 = vunpack.c.h.b16 %v11285
    %v12574 = vunpack.c.l.b16 %v11286
    %v12575 = vunpack.c.h.b16 %v11286
    %v12576 = vunpack.c.l.b16 %v11287
    %v12577 = vunpack.c.h.b16 %v11287
    %v12578 = vunpack.c.l.b16 %v11288
    %v12579 = vunpack.c.h.b16 %v11288
    %v12580 = vunpack.c.l.b16 %v11289
    %v12581 = vunpack.c.h.b16 %v11289
    %v12582 = vunpack.c.l.b16 %v11290
    %v12583 = vunpack.c.h.b16 %v11290
    %v12584 = vunpack.c.l.b16 %v11291
    %v12585 = vunpack.c.h.b16 %v11291
    %v12586 = vunpack.c.l.b16 %v11292
    %v12587 = vunpack.c.h.b16 %v11292
    %v12588 = vunpack.c.l.b16 %v11293
    %v12589 = vunpack.c.h.b16 %v11293
    %v12590 = vunpack.c.l.b16 %v11294
    %v12591 = vunpack.c.h.b16 %v11294
    %v12592 = vunpack.c.l.b16 %v11295
    %v12593 = vunpack.c.h.b16 %v11295
    %v12594 = vunpack.c.l.b16 %v11296
    %v12595 = vunpack.c.h.b16 %v11296
    %v12596 = vunpack.c.l.b16 %v11297
    %v12597 = vunpack.c.h.b16 %v11297
    %v12598 = vunpack.c.l.b16 %v11298
    %v12599 = vunpack.c.h.b16 %v11298
    %v12600 = vunpack.c.l.b16 %v11299
    %v12601 = vunpack.c.h.b16 %v11299
    %v12602 = vunpack.c.l.b16 %v11300
    %v12603 = vunpack.c.h.b16 %v11300
    %v12604 = vunpack.c.l.b16 %v11301
    %v12605 = vunpack.c.h.b16 %v11301
    %v12606 = vunpack.c.l.b16 %v11302
    %v12607 = vunpack.c.h.b16 %v11302
    %v12608 = vunpack.c.l.b16 %v11303
    %v12609 = vunpack.c.h.b16 %v11303
    %v12610 = vunpack.c.l.b16 %v11304
    %v12611 = vunpack.c.h.b16 %v11304
    %v12612 = vunpack.c.l.b16 %v11305
    %v12613 = vunpack.c.h.b16 %v11305
    %v12614 = vunpack.c.l.b16 %v11306
    %v12615 = vunpack.c.h.b16 %v11306
    %v12616 = vunpack.c.l.b16 %v11307
    %v12617 = vunpack.c.h.b16 %v11307
    %v12618 = vunpack.c.l.b16 %v11308
    %v12619 = vunpack.c.h.b16 %v11308
    %v12620 = vunpack.c.l.b16 %v11309
    %v12621 = vunpack.c.h.b16 %v11309
    %v12622 = vunpack.c.l.b16 %v11310
    %v12623 = vunpack.c.h.b16 %v11310
    %v12624 = vunpack.c.l.b16 %v11311
    %v12625 = vunpack.c.h.b16 %v11311
    %v12626 = vunpack.c.l.b16 %v11312
    %v12627 = vunpack.c.h.b16 %v11312
    %v12628 = vunpack.c.l.b16 %v11313
    %v12629 = vunpack.c.h.b16 %v11313
    %v12630 = vunpack.c.l.b16 %v11314
    %v12631 = vunpack.c.h.b16 %v11314
    %v12632 = vunpack.c.l.b16 %v11315
    %v12633 = vunpack.c.h.b16 %v11315
    %v12634 = vunpack.c.l.b16 %v11316
    %v12635 = vunpack.c.h.b16 %v11316
    %v12636 = vunpack.c.l.b16 %v11317
    %v12637 = vunpack.c.h.b16 %v11317
    %v12638 = vunpack.c.l.b16 %v11318
    %v12639 = vunpack.c.h.b16 %v11318
    %v12640 = vunpack.c.l.b16 %v11319
    %v12641 = vunpack.c.h.b16 %v11319
    %v12642 = vunpack.c.l.b16 %v11320
    %v12643 = vunpack.c.h.b16 %v11320
    %v12644 = vunpack.c.l.b16 %v11321
    %v12645 = vunpack.c.h.b16 %v11321
    %v12646 = vunpack.c.l.b16 %v11322
    %v12647 = vunpack.c.h.b16 %v11322
    %v12648 = vunpack.c.l.b16 %v11323
    %v12649 = vunpack.c.h.b16 %v11323
    %v12650 = vunpack.c.l.b16 %v11324
    %v12651 = vunpack.c.h.b16 %v11324
    %v12652 = vunpack.c.l.b16 %v11325
    %v12653 = vunpack.c.h.b16 %v11325
    %v12654 = vunpack.c.l.b16 %v11326
    %v12655 = vunpack.c.h.b16 %v11326
    %v12656 = vunpack.c.l.b16 %v11327
    %v12657 = vunpack.c.h.b16 %v11327
    %v12658 = vunpack.c.l.b16 %v11328
    %v12659 = vunpack.c.h.b16 %v11328
    %v12660 = vunpack.c.l.b16 %v11329
    %v12661 = vunpack.c.h.b16 %v11329
    %v12662 = vunpack.c.l.b16 %v11330
    %v12663 = vunpack.c.h.b16 %v11330
    %v12664 = vunpack.c.l.b16 %v11331
    %v12665 = vunpack.c.h.b16 %v11331
    %v12666 = vunpack.c.l.b16 %v11332
    %v12667 = vunpack.c.h.b16 %v11332
    %v12668 = vunpack.c.l.b16 %v11333
    %v12669 = vunpack.c.h.b16 %v11333
    %v12670 = vunpack.c.l.b16 %v11334
    %v12671 = vunpack.c.h.b16 %v11334
    %v12672 = vunpack.c.l.b16 %v11335
    %v12673 = vunpack.c.h.b16 %v11335
    %v12674 = vunpack.c.l.b16 %v11336
    %v12675 = vunpack.c.h.b16 %v11336
    %v12676 = vunpack.c.l.b16 %v11337
    %v12677 = vunpack.c.h.b16 %v11337
    %v12678 = vunpack.c.l.b16 %v11338
    %v12679 = vunpack.c.h.b16 %v11338
    %v12680 = vunpack.c.l.b16 %v11339
    %v12681 = vunpack.c.h.b16 %v11339
    %v12682 = vunpack.c.l.b16 %v11340
    %v12683 = vunpack.c.h.b16 %v11340
    %v12684 = vunpack.c.l.b16 %v11341
    %v12685 = vunpack.c.h.b16 %v11341
    %v12686 = vunpack.c.l.b16 %v11342
    %v12687 = vunpack.c.h.b16 %v11342
    %v12688 = vunpack.c.l.b16 %v11343
    %v12689 = vunpack.c.h.b16 %v11343
    %v12690 = vunpack.c.l.b16 %v11344
    %v12691 = vunpack.c.h.b16 %v11344
    %v12692 = vunpack.c.l.b16 %v11345
    %v12693 = vunpack.c.h.b16 %v11345
    %v12694 = vunpack.c.l.b16 %v11346
    %v12695 = vunpack.c.h.b16 %v11346
    %v12696 = vunpack.c.l.b16 %v11347
    %v12697 = vunpack.c.h.b16 %v11347
    %v12698 = vunpack.c.l.b16 %v11348
    %v12699 = vunpack.c.h.b16 %v11348
    %v12700 = vunpack.c.l.b16 %v11349
    %v12701 = vunpack.c.h.b16 %v11349
    %v12702 = vunpack.c.l.b16 %v11350
    %v12703 = vunpack.c.h.b16 %v11350
    %v12704 = vunpack.c.l.b16 %v11351
    %v12705 = vunpack.c.h.b16 %v11351
    %v12706 = vunpack.c.l.b16 %v11352
    %v12707 = vunpack.c.h.b16 %v11352
    %v12708 = vunpack.c.l.b16 %v11353
    %v12709 = vunpack.c.h.b16 %v11353
    %v12710 = vunpack.c.l.b16 %v11354
    %v12711 = vunpack.c.h.b16 %v11354
    %v12712 = vunpack.c.l.b16 %v11355
    %v12713 = vunpack.c.h.b16 %v11355
    %v12714 = vunpack.c.l.b16 %v11356
    %v12715 = vunpack.c.h.b16 %v11356
    %v12716 = vunpack.c.l.b16 %v11357
    %v12717 = vunpack.c.h.b16 %v11357
    %v12718 = vunpack.c.l.b16 %v11358
    %v12719 = vunpack.c.h.b16 %v11358
    %v12720 = vunpack.c.l.b16 %v11359
    %v12721 = vunpack.c.h.b16 %v11359
    %v12722 = vunpack.c.l.b16 %v11360
    %v12723 = vunpack.c.h.b16 %v11360
    %v12724 = vunpack.c.l.b16 %v11361
    %v12725 = vunpack.c.h.b16 %v11361
    %v12726 = vunpack.c.l.b16 %v11362
    %v12727 = vunpack.c.h.b16 %v11362
    %v12728 = vunpack.c.l.b16 %v11363
    %v12729 = vunpack.c.h.b16 %v11363
    %v12730 = vunpack.c.l.b16 %v11364
    %v12731 = vunpack.c.h.b16 %v11364
    %v12732 = vunpack.c.l.b16 %v11365
    %v12733 = vunpack.c.h.b16 %v11365
    %v12734 = vunpack.c.l.b16 %v11366
    %v12735 = vunpack.c.h.b16 %v11366
    %v12736 = vunpack.c.l.b16 %v11367
    %v12737 = vunpack.c.h.b16 %v11367
    %v12738 = vunpack.c.l.b16 %v11368
    %v12739 = vunpack.c.h.b16 %v11368
    %v12740 = vunpack.c.l.b16 %v11369
    %v12741 = vunpack.c.h.b16 %v11369
    %v12742 = vunpack.c.l.b16 %v11370
    %v12743 = vunpack.c.h.b16 %v11370
    %v12744 = vunpack.c.l.b16 %v11371
    %v12745 = vunpack.c.h.b16 %v11371
    %v12746 = vunpack.c.l.b16 %v11372
    %v12747 = vunpack.c.h.b16 %v11372
    %v12748 = vunpack.c.l.b16 %v11373
    %v12749 = vunpack.c.h.b16 %v11373
    %v12750 = vunpack.c.l.b16 %v11374
    %v12751 = vunpack.c.h.b16 %v11374
    %v12752 = vunpack.c.l.b16 %v11375
    %v12753 = vunpack.c.h.b16 %v11375
    %v12754 = vunpack.c.l.b16 %v11376
    %v12755 = vunpack.c.h.b16 %v11376
    %v12756 = vunpack.c.l.b16 %v11377
    %v12757 = vunpack.c.h.b16 %v11377
    %v12758 = vunpack.c.l.b16 %v11378
    %v12759 = vunpack.c.h.b16 %v11378
    %v12760 = vunpack.c.l.b16 %v11379
    %v12761 = vunpack.c.h.b16 %v11379
    %v12762 = vunpack.c.l.b16 %v11380
    %v12763 = vunpack.c.h.b16 %v11380
    %v12764 = vunpack.c.l.b16 %v11381
    %v12765 = vunpack.c.h.b16 %v11381
    %v12766 = vunpack.c.l.b16 %v11382
    %v12767 = vunpack.c.h.b16 %v11382
    %v12768 = vunpack.c.l.b16 %v11383
    %v12769 = vunpack.c.h.b16 %v11383
    %v12770 = vpack.c.b16 %v11882, %v11874
    %v12771 = vpack.c.b16 %v11883, %v11875
    %v12772 = vpack.c.b16 %v11884, %v11876
    %v12773 = vpack.c.b16 %v11885, %v11877
    %v12774 = vpack.c.b16 %v11886, %v11878
    %v12775 = vpack.c.b16 %v11887, %v11879
    %v12776 = vpack.c.b16 %v11888, %v11880
    %v12777 = vpack.c.b16 %v11889, %v11881
    %v12778 = vpack.c.b16 %v11898, %v11890
    %v12779 = vpack.c.b16 %v11899, %v11891
    %v12780 = vpack.c.b16 %v11900, %v11892
    %v12781 = vpack.c.b16 %v11901, %v11893
    %v12782 = vpack.c.b16 %v11902, %v11894
    %v12783 = vpack.c.b16 %v11903, %v11895
    %v12784 = vpack.c.b16 %v11904, %v11896
    %v12785 = vpack.c.b16 %v11905, %v11897
    %v12786 = vpack.c.b16 %v11914, %v11906
    %v12787 = vpack.c.b16 %v11915, %v11907
    %v12788 = vpack.c.b16 %v11916, %v11908
    %v12789 = vpack.c.b16 %v11917, %v11909
    %v12790 = vpack.c.b16 %v11918, %v11910
    %v12791 = vpack.c.b16 %v11919, %v11911
    %v12792 = vpack.c.b16 %v11920, %v11912
    %v12793 = vpack.c.b16 %v11921, %v11913
    %v12794 = vpack.c.b16 %v11930, %v11922
    %v12795 = vpack.c.b16 %v11931, %v11923
    %v12796 = vpack.c.b16 %v11932, %v11924
    %v12797 = vpack.c.b16 %v11933, %v11925
    %v12798 = vpack.c.b16 %v11934, %v11926
    %v12799 = vpack.c.b16 %v11935, %v11927
    %v12800 = vpack.c.b16 %v11936, %v11928
    %v12801 = vpack.c.b16 %v11937, %v11929
    %v12802 = vpack.c.b16 %v11946, %v11938
    %v12803 = vpack.c.b16 %v11947, %v11939
    %v12804 = vpack.c.b16 %v11948, %v11940
    %v12805 = vpack.c.b16 %v11949, %v11941
    %v12806 = vpack.c.b16 %v11950, %v11942
    %v12807 = vpack.c.b16 %v11951, %v11943
    %v12808 = vpack.c.b16 %v11952, %v11944
    %v12809 = vpack.c.b16 %v11953, %v11945
    %v12810 = vpack.c.b16 %v11962, %v11954
    %v12811 = vpack.c.b16 %v11963, %v11955
    %v12812 = vpack.c.b16 %v11964, %v11956
    %v12813 = vpack.c.b16 %v11965, %v11957
    %v12814 = vpack.c.b16 %v11966, %v11958
    %v12815 = vpack.c.b16 %v11967, %v11959
    %v12816 = vpack.c.b16 %v11968, %v11960
    %v12817 = vpack.c.b16 %v11969, %v11961
    %v12818 = vpack.c.b16 %v11978, %v11970
    %v12819 = vpack.c.b16 %v11979, %v11971
    %v12820 = vpack.c.b16 %v11980, %v11972
    %v12821 = vpack.c.b16 %v11981, %v11973
    %v12822 = vpack.c.b16 %v11982, %v11974
    %v12823 = vpack.c.b16 %v11983, %v11975
    %v12824 = vpack.c.b16 %v11984, %v11976
    %v12825 = vpack.c.b16 %v11985, %v11977
    %v12826 = vpack.c.b16 %v11994, %v11986
    %v12827 = vpack.c.b16 %v11995, %v11987
    %v12828 = vpack.c.b16 %v11996, %v11988
    %v12829 = vpack.c.b16 %v11997, %v11989
    %v12830 = vpack.c.b16 %v11998, %v11990
    %v12831 = vpack.c.b16 %v11999, %v11991
    %v12832 = vpack.c.b16 %v12000, %v11992
    %v12833 = vpack.c.b16 %v12001, %v11993
    %v12834 = vpack.c.b16 %v12010, %v12002
    %v12835 = vpack.c.b16 %v12011, %v12003
    %v12836 = vpack.c.b16 %v12012, %v12004
    %v12837 = vpack.c.b16 %v12013, %v12005
    %v12838 = vpack.c.b16 %v12014, %v12006
    %v12839 = vpack.c.b16 %v12015, %v12007
    %v12840 = vpack.c.b16 %v12016, %v12008
    %v12841 = vpack.c.b16 %v12017, %v12009
    %v12842 = vpack.c.b16 %v12026, %v12018
    %v12843 = vpack.c.b16 %v12027, %v12019
    %v12844 = vpack.c.b16 %v12028, %v12020
    %v12845 = vpack.c.b16 %v12029, %v12021
    %v12846 = vpack.c.b16 %v12030, %v12022
    %v12847 = vpack.c.b16 %v12031, %v12023
    %v12848 = vpack.c.b16 %v12032, %v12024
    %v12849 = vpack.c.b16 %v12033, %v12025
    %v12850 = vpack.c.b16 %v12042, %v12034
    %v12851 = vpack.c.b16 %v12043, %v12035
    %v12852 = vpack.c.b16 %v12044, %v12036
    %v12853 = vpack.c.b16 %v12045, %v12037
    %v12854 = vpack.c.b16 %v12046, %v12038
    %v12855 = vpack.c.b16 %v12047, %v12039
    %v12856 = vpack.c.b16 %v12048, %v12040
    %v12857 = vpack.c.b16 %v12049, %v12041
    %v12858 = vpack.c.b16 %v12058, %v12050
    %v12859 = vpack.c.b16 %v12059, %v12051
    %v12860 = vpack.c.b16 %v12060, %v12052
    %v12861 = vpack.c.b16 %v12061, %v12053
    %v12862 = vpack.c.b16 %v12062, %v12054
    %v12863 = vpack.c.b16 %v12063, %v12055
    %v12864 = vpack.c.b16 %v12064, %v12056
    %v12865 = vpack.c.b16 %v12065, %v12057
    %v12866 = vpack.c.b16 %v12074, %v12066
    %v12867 = vpack.c.b16 %v12075, %v12067
    %v12868 = vpack.c.b16 %v12076, %v12068
    %v12869 = vpack.c.b16 %v12077, %v12069
    %v12870 = vpack.c.b16 %v12078, %v12070
    %v12871 = vpack.c.b16 %v12079, %v12071
    %v12872 = vpack.c.b16 %v12080, %v12072
    %v12873 = vpack.c.b16 %v12081, %v12073
    %v12874 = vpack.c.b16 %v12090, %v12082
    %v12875 = vpack.c.b16 %v12091, %v12083
    %v12876 = vpack.c.b16 %v12092, %v12084
    %v12877 = vpack.c.b16 %v12093, %v12085
    %v12878 = vpack.c.b16 %v12094, %v12086
    %v12879 = vpack.c.b16 %v12095, %v12087
    %v12880 = vpack.c.b16 %v12096, %v12088
    %v12881 = vpack.c.b16 %v12097, %v12089
    %v12882 = vpack.c.b16 %v12106, %v12098
    %v12883 = vpack.c.b16 %v12107, %v12099
    %v12884 = vpack.c.b16 %v12108, %v12100
    %v12885 = vpack.c.b16 %v12109, %v12101
    %v12886 = vpack.c.b16 %v12110, %v12102
    %v12887 = vpack.c.b16 %v12111, %v12103
    %v12888 = vpack.c.b16 %v12112, %v12104
    %v12889 = vpack.c.b16 %v12113, %v12105
    %v12890 = vpack.c.b16 %v12122, %v12114
    %v12891 = vpack.c.b16 %v12123, %v12115
    %v12892 = vpack.c.b16 %v12124, %v12116
    %v12893 = vpack.c.b16 %v12125, %v12117
    %v12894 = vpack.c.b16 %v12126, %v12118
    %v12895 = vpack.c.b16 %v12127, %v12119
    %v12896 = vpack.c.b16 %v12128, %v12120
    %v12897 = vpack.c.b16 %v12129, %v12121
    %v12898 = vpack.c.b16 %v12138, %v12130
    %v12899 = vpack.c.b16 %v12139, %v12131
    %v12900 = vpack.c.b16 %v12140, %v12132
    %v12901 = vpack.c.b16 %v12141, %v12133
    %v12902 = vpack.c.b16 %v12142, %v12134
    %v12903 = vpack.c.b16 %v12143, %v12135
    %v12904 = vpack.c.b16 %v12144, %v12136
    %v12905 = vpack.c.b16 %v12145, %v12137
    %v12906 = vpack.c.b16 %v12154, %v12146
    %v12907 = vpack.c.b16 %v12155, %v12147
    %v12908 = vpack.c.b16 %v12156, %v12148
    %v12909 = vpack.c.b16 %v12157, %v12149
    %v12910 = vpack.c.b16 %v12158, %v12150
    %v12911 = vpack.c.b16 %v12159, %v12151
    %v12912 = vpack.c.b16 %v12160, %v12152
    %v12913 = vpack.c.b16 %v12161, %v12153
    %v12914 = vpack.c.b16 %v12170, %v12162
    %v12915 = vpack.c.b16 %v12171, %v12163
    %v12916 = vpack.c.b16 %v12172, %v12164
    %v12917 = vpack.c.b16 %v12173, %v12165
    %v12918 = vpack.c.b16 %v12174, %v12166
    %v12919 = vpack.c.b16 %v12175, %v12167
    %v12920 = vpack.c.b16 %v12176, %v12168
    %v12921 = vpack.c.b16 %v12177, %v12169
    %v12922 = vpack.c.b16 %v12186, %v12178
    %v12923 = vpack.c.b16 %v12187, %v12179
    %v12924 = vpack.c.b16 %v12188, %v12180
    %v12925 = vpack.c.b16 %v12189, %v12181
    %v12926 = vpack.c.b16 %v12190, %v12182
    %v12927 = vpack.c.b16 %v12191, %v12183
    %v12928 = vpack.c.b16 %v12192, %v12184
    %v12929 = vpack.c.b16 %v12193, %v12185
    %v12930 = vpack.c.b16 %v12202, %v12194
    %v12931 = vpack.c.b16 %v12203, %v12195
    %v12932 = vpack.c.b16 %v12204, %v12196
    %v12933 = vpack.c.b16 %v12205, %v12197
    %v12934 = vpack.c.b16 %v12206, %v12198
    %v12935 = vpack.c.b16 %v12207, %v12199
    %v12936 = vpack.c.b16 %v12208, %v12200
    %v12937 = vpack.c.b16 %v12209, %v12201
    %v12938 = vpack.c.b16 %v12218, %v12210
    %v12939 = vpack.c.b16 %v12219, %v12211
    %v12940 = vpack.c.b16 %v12220, %v12212
    %v12941 = vpack.c.b16 %v12221, %v12213
    %v12942 = vpack.c.b16 %v12222, %v12214
    %v12943 = vpack.c.b16 %v12223, %v12215
    %v12944 = vpack.c.b16 %v12224, %v12216
    %v12945 = vpack.c.b16 %v12225, %v12217
    %v12946 = vpack.c.b16 %v12234, %v12226
    %v12947 = vpack.c.b16 %v12235, %v12227
    %v12948 = vpack.c.b16 %v12236, %v12228
    %v12949 = vpack.c.b16 %v12237, %v12229
    %v12950 = vpack.c.b16 %v12238, %v12230
    %v12951 = vpack.c.b16 %v12239, %v12231
    %v12952 = vpack.c.b16 %v12240, %v12232
    %v12953 = vpack.c.b16 %v12241, %v12233
    %v12954 = vpack.c.b16 %v12250, %v12242
    %v12955 = vpack.c.b16 %v12251, %v12243
    %v12956 = vpack.c.b16 %v12252, %v12244
    %v12957 = vpack.c.b16 %v12253, %v12245
    %v12958 = vpack.c.b16 %v12254, %v12246
    %v12959 = vpack.c.b16 %v12255, %v12247
    %v12960 = vpack.c.b16 %v12256, %v12248
    %v12961 = vpack.c.b16 %v12257, %v12249
    %v12962 = vpack.c.b16 %v12266, %v12258
    %v12963 = vpack.c.b16 %v12267, %v12259
    %v12964 = vpack.c.b16 %v12268, %v12260
    %v12965 = vpack.c.b16 %v12269, %v12261
    %v12966 = vpack.c.b16 %v12270, %v12262
    %v12967 = vpack.c.b16 %v12271, %v12263
    %v12968 = vpack.c.b16 %v12272, %v12264
    %v12969 = vpack.c.b16 %v12273, %v12265
    %v12970 = vpack.c.b16 %v12282, %v12274
    %v12971 = vpack.c.b16 %v12283, %v12275
    %v12972 = vpack.c.b16 %v12284, %v12276
    %v12973 = vpack.c.b16 %v12285, %v12277
    %v12974 = vpack.c.b16 %v12286, %v12278
    %v12975 = vpack.c.b16 %v12287, %v12279
    %v12976 = vpack.c.b16 %v12288, %v12280
    %v12977 = vpack.c.b16 %v12289, %v12281
    %v12978 = vpack.c.b16 %v12298, %v12290
    %v12979 = vpack.c.b16 %v12299, %v12291
    %v12980 = vpack.c.b16 %v12300, %v12292
    %v12981 = vpack.c.b16 %v12301, %v12293
    %v12982 = vpack.c.b16 %v12302, %v12294
    %v12983 = vpack.c.b16 %v12303, %v12295
    %v12984 = vpack.c.b16 %v12304, %v12296
    %v12985 = vpack.c.b16 %v12305, %v12297
    %v12986 = vpack.c.b16 %v12314, %v12306
    %v12987 = vpack.c.b16 %v12315, %v12307
    %v12988 = vpack.c.b16 %v12316, %v12308
    %v12989 = vpack.c.b16 %v12317, %v12309
    %v12990 = vpack.c.b16 %v12318, %v12310
    %v12991 = vpack.c.b16 %v12319, %v12311
    %v12992 = vpack.c.b16 %v12320, %v12312
    %v12993 = vpack.c.b16 %v12321, %v12313
    %v12994 = vpack.c.b16 %v12330, %v12322
    %v12995 = vpack.c.b16 %v12331, %v12323
    %v12996 = vpack.c.b16 %v12332, %v12324
    %v12997 = vpack.c.b16 %v12333, %v12325
    %v12998 = vpack.c.b16 %v12334, %v12326
    %v12999 = vpack.c.b16 %v12335, %v12327
    %v13000 = vpack.c.b16 %v12336, %v12328
    %v13001 = vpack.c.b16 %v12337, %v12329
    %v13002 = vpack.c.b16 %v12346, %v12338
    %v13003 = vpack.c.b16 %v12347, %v12339
    %v13004 = vpack.c.b16 %v12348, %v12340
    %v13005 = vpack.c.b16 %v12349, %v12341
    %v13006 = vpack.c.b16 %v12350, %v12342
    %v13007 = vpack.c.b16 %v12351, %v12343
    %v13008 = vpack.c.b16 %v12352, %v12344
    %v13009 = vpack.c.b16 %v12353, %v12345
    %v13010 = vpack.c.b16 %v12362, %v12354
    %v13011 = vpack.c.b16 %v12363, %v12355
    %v13012 = vpack.c.b16 %v12364, %v12356
    %v13013 = vpack.c.b16 %v12365, %v12357
    %v13014 = vpack.c.b16 %v12366, %v12358
    %v13015 = vpack.c.b16 %v12367, %v12359
    %v13016 = vpack.c.b16 %v12368, %v12360
    %v13017 = vpack.c.b16 %v12369, %v12361
    %v13018 = vpack.c.b16 %v12378, %v12370
    %v13019 = vpack.c.b16 %v12379, %v12371
    %v13020 = vpack.c.b16 %v12380, %v12372
    %v13021 = vpack.c.b16 %v12381, %v12373
    %v13022 = vpack.c.b16 %v12382, %v12374
    %v13023 = vpack.c.b16 %v12383, %v12375
    %v13024 = vpack.c.b16 %v12384, %v12376
    %v13025 = vpack.c.b16 %v12385, %v12377
    %v13026 = vpack.c.b16 %v12394, %v12386
    %v13027 = vpack.c.b16 %v12395, %v12387
    %v13028 = vpack.c.b16 %v12396, %v12388
    %v13029 = vpack.c.b16 %v12397, %v12389
    %v13030 = vpack.c.b16 %v12398, %v12390
    %v13031 = vpack.c.b16 %v12399, %v12391
    %v13032 = vpack.c.b16 %v12400, %v12392
    %v13033 = vpack.c.b16 %v12401, %v12393
    %v13034 = vpack.c.b16 %v12410, %v12402
    %v13035 = vpack.c.b16 %v12411, %v12403
    %v13036 = vpack.c.b16 %v12412, %v12404
    %v13037 = vpack.c.b16 %v12413, %v12405
    %v13038 = vpack.c.b16 %v12414, %v12406
    %v13039 = vpack.c.b16 %v12415, %v12407
    %v13040 = vpack.c.b16 %v12416, %v12408
    %v13041 = vpack.c.b16 %v12417, %v12409
    %v13042 = vpack.c.b16 %v12426, %v12418
    %v13043 = vpack.c.b16 %v12427, %v12419
    %v13044 = vpack.c.b16 %v12428, %v12420
    %v13045 = vpack.c.b16 %v12429, %v12421
    %v13046 = vpack.c.b16 %v12430, %v12422
    %v13047 = vpack.c.b16 %v12431, %v12423
    %v13048 = vpack.c.b16 %v12432, %v12424
    %v13049 = vpack.c.b16 %v12433, %v12425
    %v13050 = vpack.c.b16 %v12442, %v12434
    %v13051 = vpack.c.b16 %v12443, %v12435
    %v13052 = vpack.c.b16 %v12444, %v12436
    %v13053 = vpack.c.b16 %v12445, %v12437
    %v13054 = vpack.c.b16 %v12446, %v12438
    %v13055 = vpack.c.b16 %v12447, %v12439
    %v13056 = vpack.c.b16 %v12448, %v12440
    %v13057 = vpack.c.b16 %v12449, %v12441
    %v13058 = vpack.c.b16 %v12458, %v12450
    %v13059 = vpack.c.b16 %v12459, %v12451
    %v13060 = vpack.c.b16 %v12460, %v12452
    %v13061 = vpack.c.b16 %v12461, %v12453
    %v13062 = vpack.c.b16 %v12462, %v12454
    %v13063 = vpack.c.b16 %v12463, %v12455
    %v13064 = vpack.c.b16 %v12464, %v12456
    %v13065 = vpack.c.b16 %v12465, %v12457
    %v13066 = vpack.c.b16 %v12474, %v12466
    %v13067 = vpack.c.b16 %v12475, %v12467
    %v13068 = vpack.c.b16 %v12476, %v12468
    %v13069 = vpack.c.b16 %v12477, %v12469
    %v13070 = vpack.c.b16 %v12478, %v12470
    %v13071 = vpack.c.b16 %v12479, %v12471
    %v13072 = vpack.c.b16 %v12480, %v12472
    %v13073 = vpack.c.b16 %v12481, %v12473
    %v13074 = vpack.c.b16 %v12490, %v12482
    %v13075 = vpack.c.b16 %v12491, %v12483
    %v13076 = vpack.c.b16 %v12492, %v12484
    %v13077 = vpack.c.b16 %v12493, %v12485
    %v13078 = vpack.c.b16 %v12494, %v12486
    %v13079 = vpack.c.b16 %v12495, %v12487
    %v13080 = vpack.c.b16 %v12496, %v12488
    %v13081 = vpack.c.b16 %v12497, %v12489
    %v13082 = vpack.c.b16 %v12506, %v12498
    %v13083 = vpack.c.b16 %v12507, %v12499
    %v13084 = vpack.c.b16 %v12508, %v12500
    %v13085 = vpack.c.b16 %v12509, %v12501
    %v13086 = vpack.c.b16 %v12510, %v12502
    %v13087 = vpack.c.b16 %v12511, %v12503
    %v13088 = vpack.c.b16 %v12512, %v12504
    %v13089 = vpack.c.b16 %v12513, %v12505
    %v13090 = vpack.c.b16 %v12522, %v12514
    %v13091 = vpack.c.b16 %v12523, %v12515
    %v13092 = vpack.c.b16 %v12524, %v12516
    %v13093 = vpack.c.b16 %v12525, %v12517
    %v13094 = vpack.c.b16 %v12526, %v12518
    %v13095 = vpack.c.b16 %v12527, %v12519
    %v13096 = vpack.c.b16 %v12528, %v12520
    %v13097 = vpack.c.b16 %v12529, %v12521
    %v13098 = vpack.c.b16 %v12538, %v12530
    %v13099 = vpack.c.b16 %v12539, %v12531
    %v13100 = vpack.c.b16 %v12540, %v12532
    %v13101 = vpack.c.b16 %v12541, %v12533
    %v13102 = vpack.c.b16 %v12542, %v12534
    %v13103 = vpack.c.b16 %v12543, %v12535
    %v13104 = vpack.c.b16 %v12544, %v12536
    %v13105 = vpack.c.b16 %v12545, %v12537
    %v13106 = vpack.c.b16 %v12554, %v12546
    %v13107 = vpack.c.b16 %v12555, %v12547
    %v13108 = vpack.c.b16 %v12556, %v12548
    %v13109 = vpack.c.b16 %v12557, %v12549
    %v13110 = vpack.c.b16 %v12558, %v12550
    %v13111 = vpack.c.b16 %v12559, %v12551
    %v13112 = vpack.c.b16 %v12560, %v12552
    %v13113 = vpack.c.b16 %v12561, %v12553
    %v13114 = vpack.c.b16 %v12570, %v12562
    %v13115 = vpack.c.b16 %v12571, %v12563
    %v13116 = vpack.c.b16 %v12572, %v12564
    %v13117 = vpack.c.b16 %v12573, %v12565
    %v13118 = vpack.c.b16 %v12574, %v12566
    %v13119 = vpack.c.b16 %v12575, %v12567
    %v13120 = vpack.c.b16 %v12576, %v12568
    %v13121 = vpack.c.b16 %v12577, %v12569
    %v13122 = vpack.c.b16 %v12586, %v12578
    %v13123 = vpack.c.b16 %v12587, %v12579
    %v13124 = vpack.c.b16 %v12588, %v12580
    %v13125 = vpack.c.b16 %v12589, %v12581
    %v13126 = vpack.c.b16 %v12590, %v12582
    %v13127 = vpack.c.b16 %v12591, %v12583
    %v13128 = vpack.c.b16 %v12592, %v12584
    %v13129 = vpack.c.b16 %v12593, %v12585
    %v13130 = vpack.c.b16 %v12602, %v12594
    %v13131 = vpack.c.b16 %v12603, %v12595
    %v13132 = vpack.c.b16 %v12604, %v12596
    %v13133 = vpack.c.b16 %v12605, %v12597
    %v13134 = vpack.c.b16 %v12606, %v12598
    %v13135 = vpack.c.b16 %v12607, %v12599
    %v13136 = vpack.c.b16 %v12608, %v12600
    %v13137 = vpack.c.b16 %v12609, %v12601
    %v13138 = vpack.c.b16 %v12618, %v12610
    %v13139 = vpack.c.b16 %v12619, %v12611
    %v13140 = vpack.c.b16 %v12620, %v12612
    %v13141 = vpack.c.b16 %v12621, %v12613
    %v13142 = vpack.c.b16 %v12622, %v12614
    %v13143 = vpack.c.b16 %v12623, %v12615
    %v13144 = vpack.c.b16 %v12624, %v12616
    %v13145 = vpack.c.b16 %v12625, %v12617
    %v13146 = vpack.c.b16 %v12634, %v12626
    %v13147 = vpack.c.b16 %v12635, %v12627
    %v13148 = vpack.c.b16 %v12636, %v12628
    %v13149 = vpack.c.b16 %v12637, %v12629
    %v13150 = vpack.c.b16 %v12638, %v12630
    %v13151 = vpack.c.b16 %v12639, %v12631
    %v13152 = vpack.c.b16 %v12640, %v12632
    %v13153 = vpack.c.b16 %v12641, %v12633
    %v13154 = vpack.c.b16 %v12650, %v12642
    %v13155 = vpack.c.b16 %v12651, %v12643
    %v13156 = vpack.c.b16 %v12652, %v12644
    %v13157 = vpack.c.b16 %v12653, %v12645
    %v13158 = vpack.c.b16 %v12654, %v12646
    %v13159 = vpack.c.b16 %v12655, %v12647
    %v13160 = vpack.c.b16 %v12656, %v12648
    %v13161 = vpack.c.b16 %v12657, %v12649
    %v13162 = vpack.c.b16 %v12666, %v12658
    %v13163 = vpack.c.b16 %v12667, %v12659
    %v13164 = vpack.c.b16 %v12668, %v12660
    %v13165 = vpack.c.b16 %v12669, %v12661
    %v13166 = vpack.c.b16 %v12670, %v12662
    %v13167 = vpack.c.b16 %v12671, %v12663
    %v13168 = vpack.c.b16 %v12672, %v12664
    %v13169 = vpack.c.b16 %v12673, %v12665
    %v13170 = vpack.c.b16 %v12682, %v12674
    %v13171 = vpack.c.b16 %v12683, %v12675
    %v13172 = vpack.c.b16 %v12684, %v12676
    %v13173 = vpack.c.b16 %v12685, %v12677
    %v13174 = vpack.c.b16 %v12686, %v12678
    %v13175 = vpack.c.b16 %v12687, %v12679
    %v13176 = vpack.c.b16 %v12688, %v12680
    %v13177 = vpack.c.b16 %v12689, %v12681
    %v13178 = vpack.c.b16 %v12698, %v12690
    %v13179 = vpack.c.b16 %v12699, %v12691
    %v13180 = vpack.c.b16 %v12700, %v12692
    %v13181 = vpack.c.b16 %v12701, %v12693
    %v13182 = vpack.c.b16 %v12702, %v12694
    %v13183 = vpack.c.b16 %v12703, %v12695
    %v13184 = vpack.c.b16 %v12704, %v12696
    %v13185 = vpack.c.b16 %v12705, %v12697
    %v13186 = vpack.c.b16 %v12714, %v12706
    %v13187 = vpack.c.b16 %v12715, %v12707
    %v13188 = vpack.c.b16 %v12716, %v12708
    %v13189 = vpack.c.b16 %v12717, %v12709
    %v13190 = vpack.c.b16 %v12718, %v12710
    %v13191 = vpack.c.b16 %v12719, %v12711
    %v13192 = vpack.c.b16 %v12720, %v12712
    %v13193 = vpack.c.b16 %v12721, %v12713
    %v13194 = vpack.c.b16 %v12730, %v12722
    %v13195 = vpack.c.b16 %v12731, %v12723
    %v13196 = vpack.c.b16 %v12732, %v12724
    %v13197 = vpack.c.b16 %v12733, %v12725
    %v13198 = vpack.c.b16 %v12734, %v12726
    %v13199 = vpack.c.b16 %v12735, %v12727
    %v13200 = vpack.c.b16 %v12736, %v12728
    %v13201 = vpack.c.b16 %v12737, %v12729
    %v13202 = vpack.c.b16 %v12746, %v12738
    %v13203 = vpack.c.b16 %v12747, %v12739
    %v13204 = vpack.c.b16 %v12748, %v12740
    %v13205 = vpack.c.b16 %v12749, %v12741
    %v13206 = vpack.c.b16 %v12750, %v12742
    %v13207 = vpack.c.b16 %v12751, %v12743
    %v13208 = vpack.c.b16 %v12752, %v12744
    %v13209 = vpack.c.b16 %v12753, %v12745
    %v13210 = vpack.c.b16 %v12762, %v12754
    %v13211 = vpack.c.b16 %v12763, %v12755
    %v13212 = vpack.c.b16 %v12764, %v12756
    %v13213 = vpack.c.b16 %v12765, %v12757
    %v13214 = vpack.c.b16 %v12766, %v12758
    %v13215 = vpack.c.b16 %v12767, %v12759
    %v13216 = vpack.c.b16 %v12768, %v12760
    %v13217 = vpack.c.b16 %v12769, %v12761
    %13666 = vmatprep.subr.bf16.mxu0 %v12771
    %13667 = vmatpush1.bf16.msra.mxu0 %v12770
    %13668 = vmatprep.subr.bf16.mxu0 %v12779
    %13669 = vmatpush1.bf16.msra.mxu0 %v12778
    %13670 = vmatprep.subr.bf16.mxu0 %v12787
    %13671 = vmatpush1.bf16.msra.mxu0 %v12786
    %13672 = vmatprep.subr.bf16.mxu0 %v12795
    %13673 = vmatpush1.bf16.msra.mxu0 %v12794
    %13674 = vmatprep.subr.bf16.mxu0 %v12803
    %13675 = vmatpush1.bf16.msra.mxu0 %v12802
    %13676 = vmatprep.subr.bf16.mxu0 %v12811
    %13677 = vmatpush1.bf16.msra.mxu0 %v12810
    %13678 = vmatprep.subr.bf16.mxu0 %v12819
    %13679 = vmatpush1.bf16.msra.mxu0 %v12818
    %13680 = vmatprep.subr.bf16.mxu0 %v12827
    %13681 = vmatpush1.bf16.msra.mxu0 %v12826
    %13682 = vmatprep.subr.bf16.mxu0 %v12835
    %13683 = vmatpush1.bf16.msra.mxu0 %v12834
    %13684 = vmatprep.subr.bf16.mxu0 %v12843
    %13685 = vmatpush1.bf16.msra.mxu0 %v12842
    %13686 = vmatprep.subr.bf16.mxu0 %v12851
    %13687 = vmatpush1.bf16.msra.mxu0 %v12850
    %13688 = vmatprep.subr.bf16.mxu0 %v12859
    %13689 = vmatpush1.bf16.msra.mxu0 %v12858
    %13690 = vmatprep.subr.bf16.mxu0 %v12867
    %13691 = vmatpush1.bf16.msra.mxu0 %v12866
    %13692 = vmatprep.subr.bf16.mxu0 %v12875
    %13693 = vmatpush1.bf16.msra.mxu0 %v12874
    %13694 = vmatprep.subr.bf16.mxu0 %v12883
    %13695 = vmatpush1.bf16.msra.mxu0 %v12882
    %13696 = vmatprep.subr.bf16.mxu0 %v12891
    %13697 = vmatpush1.bf16.msra.mxu0 %v12890
    %13698 = vmatprep.mubr.bf16.mxu0 %v10930
    %13699 = vmatmul.mubr.bf16.gmra.mrb[0].mxu0 %v10929
    %v13700 = vpop.f32.mrb[0].mxu0
    %v13701 = vadd.f32 %v11389, %v13700
    %v13702 = vpop.f32.mrb[0].mxu0
    %v13703 = vadd.f32 %v11393, %v13702
    %v13704 = vpop.f32.mrb[0].mxu0
    %v13705 = vpop.f32.mrb[0].mxu0
    %13706 = vdwg.mxu0
    %13707 = vmatprep.subr.bf16.mxu0 %v12899
    %13708 = vmatpush1.bf16.msra.mxu0 %v12898
    %13709 = vmatprep.subr.bf16.mxu0 %v12907
    %13710 = vmatpush1.bf16.msra.mxu0 %v12906
    %13711 = vmatprep.subr.bf16.mxu0 %v12915
    %13712 = vmatpush1.bf16.msra.mxu0 %v12914
    %13713 = vmatprep.subr.bf16.mxu0 %v12923
    %13714 = vmatpush1.bf16.msra.mxu0 %v12922
    %13715 = vmatprep.subr.bf16.mxu0 %v12931
    %13716 = vmatpush1.bf16.msra.mxu0 %v12930
    %13717 = vmatprep.subr.bf16.mxu0 %v12939
    %13718 = vmatpush1.bf16.msra.mxu0 %v12938
    %13719 = vmatprep.subr.bf16.mxu0 %v12947
    %13720 = vmatpush1.bf16.msra.mxu0 %v12946
    %13721 = vmatprep.subr.bf16.mxu0 %v12955
    %13722 = vmatpush1.bf16.msra.mxu0 %v12954
    %13723 = vmatprep.subr.bf16.mxu0 %v12963
    %13724 = vmatpush1.bf16.msra.mxu0 %v12962
    %13725 = vmatprep.subr.bf16.mxu0 %v12971
    %13726 = vmatpush1.bf16.msra.mxu0 %v12970
    %13727 = vmatprep.subr.bf16.mxu0 %v12979
    %13728 = vmatpush1.bf16.msra.mxu0 %v12978
    %13729 = vmatprep.subr.bf16.mxu0 %v12987
    %13730 = vmatpush1.bf16.msra.mxu0 %v12986
    %13731 = vmatprep.subr.bf16.mxu0 %v12995
    %13732 = vmatpush1.bf16.msra.mxu0 %v12994
    %13733 = vmatprep.subr.bf16.mxu0 %v13003
    %13734 = vmatpush1.bf16.msra.mxu0 %v13002
    %13735 = vmatprep.subr.bf16.mxu0 %v13011
    %13736 = vmatpush1.bf16.msra.mxu0 %v13010
    %13737 = vmatprep.subr.bf16.mxu0 %v13019
    %13738 = vmatpush1.bf16.msra.mxu0 %v13018
    %13739 = vmatprep.mubr.bf16.mxu0 %v10932
    %13740 = vmatmul.mubr.bf16.gmra.mrb[0].mxu0 %v10931
    %v13741 = vpop.f32.mrb[0].mxu0
    %v13742 = vadd.f32 %v13701, %v13741
    %v13743 = vpop.f32.mrb[0].mxu0
    %v13744 = vadd.f32 %v13703, %v13743
    %v13745 = vpop.f32.mrb[0].mxu0
    %v13746 = vpop.f32.mrb[0].mxu0
    %13747 = vdwg.mxu0
    %13748 = vmatprep.subr.bf16.mxu0 %v13027
    %13749 = vmatpush1.bf16.msra.mxu0 %v13026
    %13750 = vmatprep.subr.bf16.mxu0 %v13035
    %13751 = vmatpush1.bf16.msra.mxu0 %v13034
    %13752 = vmatprep.subr.bf16.mxu0 %v13043
    %13753 = vmatpush1.bf16.msra.mxu0 %v13042
    %13754 = vmatprep.subr.bf16.mxu0 %v13051
    %13755 = vmatpush1.bf16.msra.mxu0 %v13050
    %13756 = vmatprep.subr.bf16.mxu0 %v13059
    %13757 = vmatpush1.bf16.msra.mxu0 %v13058
    %13758 = vmatprep.subr.bf16.mxu0 %v13067
    %13759 = vmatpush1.bf16.msra.mxu0 %v13066
    %13760 = vmatprep.subr.bf16.mxu0 %v13075
    %13761 = vmatpush1.bf16.msra.mxu0 %v13074
    %13762 = vmatprep.subr.bf16.mxu0 %v13083
    %13763 = vmatpush1.bf16.msra.mxu0 %v13082
    %13764 = vmatprep.subr.bf16.mxu0 %v13091
    %13765 = vmatpush1.bf16.msra.mxu0 %v13090
    %13766 = vmatprep.subr.bf16.mxu0 %v13099
    %13767 = vmatpush1.bf16.msra.mxu0 %v13098
    %13768 = vmatprep.subr.bf16.mxu0 %v13107
    %13769 = vmatpush1.bf16.msra.mxu0 %v13106
    %13770 = vmatprep.subr.bf16.mxu0 %v13115
    %13771 = vmatpush1.bf16.msra.mxu0 %v13114
    %13772 = vmatprep.subr.bf16.mxu0 %v13123
    %13773 = vmatpush1.bf16.msra.mxu0 %v13122
    %13774 = vmatprep.subr.bf16.mxu0 %v13131
    %13775 = vmatpush1.bf16.msra.mxu0 %v13130
    %13776 = vmatprep.subr.bf16.mxu0 %v13139
    %13777 = vmatpush1.bf16.msra.mxu0 %v13138
    %13778 = vmatprep.subr.bf16.mxu0 %v13147
    %13779 = vmatpush1.bf16.msra.mxu0 %v13146
    %13780 = vmatprep.mubr.bf16.mxu0 %v10934
    %13781 = vmatmul.mubr.bf16.gmra.mrb[0].mxu0 %v10933
    %v13782 = vpop.f32.mrb[0].mxu0
    %v13783 = vadd.f32 %v13742, %v13782
    %v13784 = vpop.f32.mrb[0].mxu0
    %v13785 = vadd.f32 %v13744, %v13784
    %v13786 = vpop.f32.mrb[0].mxu0
    %v13787 = vpop.f32.mrb[0].mxu0
    %13788 = vdwg.mxu0
    %13789 = vmatprep.subr.bf16.mxu0 %v13155
    %13790 = vmatpush1.bf16.msra.mxu0 %v13154
    %13791 = vmatprep.subr.bf16.mxu0 %v13163
    %13792 = vmatpush1.bf16.msra.mxu0 %v13162
    %13793 = vmatprep.subr.bf16.mxu0 %v13171
    %13794 = vmatpush1.bf16.msra.mxu0 %v13170
    %13795 = vmatprep.subr.bf16.mxu0 %v13179
    %13796 = vmatpush1.bf16.msra.mxu0 %v13178
    %13797 = vmatprep.subr.bf16.mxu0 %v13187
    %13798 = vmatpush1.bf16.msra.mxu0 %v13186
    %13799 = vmatprep.subr.bf16.mxu0 %v13195
    %13800 = vmatpush1.bf16.msra.mxu0 %v13194
    %13801 = vmatprep.subr.bf16.mxu0 %v13203
    %13802 = vmatpush1.bf16.msra.mxu0 %v13202
    %13803 = vmatprep.subr.bf16.mxu0 %v13211
    %13804 = vmatpush1.bf16.msra.mxu0 %v13210
    %13805 = vmatprep.subr.bf16.mxu0 0
    %13806 = vmatpush1.bf16.msra.mxu0 0
    %13807 = vmatprep.subr.bf16.mxu0 0
    %13808 = vmatpush1.bf16.msra.mxu0 0
    %13809 = vmatprep.subr.bf16.mxu0 0
    %13810 = vmatpush1.bf16.msra.mxu0 0
    %13811 = vmatprep.subr.bf16.mxu0 0
    %13812 = vmatpush1.bf16.msra.mxu0 0
    %13813 = vmatprep.subr.bf16.mxu0 0
    %13814 = vmatpush1.bf16.msra.mxu0 0
    %13815 = vmatprep.subr.bf16.mxu0 0
    %13816 = vmatpush1.bf16.msra.mxu0 0
    %13817 = vmatprep.subr.bf16.mxu0 0
    %13818 = vmatpush1.bf16.msra.mxu0 0
    %13819 = vmatprep.subr.bf16.mxu0 0
    %13820 = vmatpush1.bf16.msra.mxu0 0
    %13821 = vmatprep.mubr.bf16.mxu0 0
    %13822 = vmatmul.mubr.bf16.gmra.mrb[0].mxu0 %v10935
    %v13823 = vpop.f32.mrb[0].mxu0
    %v13824 = vadd.f32 %v13783, %v13823
    %v13825 = vpop.f32.mrb[0].mxu0
    %v13826 = vadd.f32 %v13785, %v13825
    %v13827 = vpop.f32.mrb[0].mxu0
    %v13828 = vpop.f32.mrb[0].mxu0
    %13829 = vdwg.mxu0
    %13830 = vmatprep.subr.bf16.mxu0 %v12773
    %13831 = vmatpush1.bf16.msra.mxu0 %v12772
    %13832 = vmatprep.subr.bf16.mxu0 %v12781
    %13833 = vmatpush1.bf16.msra.mxu0 %v12780
    %13834 = vmatprep.subr.bf16.mxu0 %v12789
    %13835 = vmatpush1.bf16.msra.mxu0 %v12788
    %13836 = vmatprep.subr.bf16.mxu0 %v12797
    %13837 = vmatpush1.bf16.msra.mxu0 %v12796
    %13838 = vmatprep.subr.bf16.mxu0 %v12805
    %13839 = vmatpush1.bf16.msra.mxu0 %v12804
    %13840 = vmatprep.subr.bf16.mxu0 %v12813
    %13841 = vmatpush1.bf16.msra.mxu0 %v12812
    %13842 = vmatprep.subr.bf16.mxu0 %v12821
    %13843 = vmatpush1.bf16.msra.mxu0 %v12820
    %13844 = vmatprep.subr.bf16.mxu0 %v12829
    %13845 = vmatpush1.bf16.msra.mxu0 %v12828
    %13846 = vmatprep.subr.bf16.mxu0 %v12837
    %13847 = vmatpush1.bf16.msra.mxu0 %v12836
    %13848 = vmatprep.subr.bf16.mxu0 %v12845
    %13849 = vmatpush1.bf16.msra.mxu0 %v12844
    %13850 = vmatprep.subr.bf16.mxu0 %v12853
    %13851 = vmatpush1.bf16.msra.mxu0 %v12852
    %13852 = vmatprep.subr.bf16.mxu0 %v12861
    %13853 = vmatpush1.bf16.msra.mxu0 %v12860
    %13854 = vmatprep.subr.bf16.mxu0 %v12869
    %13855 = vmatpush1.bf16.msra.mxu0 %v12868
    %13856 = vmatprep.subr.bf16.mxu0 %v12877
    %13857 = vmatpush1.bf16.msra.mxu0 %v12876
    %13858 = vmatprep.subr.bf16.mxu0 %v12885
    %13859 = vmatpush1.bf16.msra.mxu0 %v12884
    %13860 = vmatprep.subr.bf16.mxu0 %v12893
    %13861 = vmatpush1.bf16.msra.mxu0 %v12892
    %13862 = vmatprep.mubr.bf16.mxu0 %v10930
    %13863 = vmatmul.mubr.bf16.gmra.mrb[0].mxu0 %v10929
    %v13864 = vpop.f32.mrb[0].mxu0
    %v13865 = vadd.f32 %v11397, %v13864
    %v13866 = vpop.f32.mrb[0].mxu0
    %v13867 = vadd.f32 %v11401, %v13866
    %v13868 = vpop.f32.mrb[0].mxu0
    %v13869 = vpop.f32.mrb[0].mxu0
    %13870 = vdwg.mxu0
    %13871 = vmatprep.subr.bf16.mxu0 %v12901
    %13872 = vmatpush1.bf16.msra.mxu0 %v12900
    %13873 = vmatprep.subr.bf16.mxu0 %v12909
    %13874 = vmatpush1.bf16.msra.mxu0 %v12908
    %13875 = vmatprep.subr.bf16.mxu0 %v12917
    %13876 = vmatpush1.bf16.msra.mxu0 %v12916
    %13877 = vmatprep.subr.bf16.mxu0 %v12925
    %13878 = vmatpush1.bf16.msra.mxu0 %v12924
    %13879 = vmatprep.subr.bf16.mxu0 %v12933
    %13880 = vmatpush1.bf16.msra.mxu0 %v12932
    %13881 = vmatprep.subr.bf16.mxu0 %v12941
    %13882 = vmatpush1.bf16.msra.mxu0 %v12940
    %13883 = vmatprep.subr.bf16.mxu0 %v12949
    %13884 = vmatpush1.bf16.msra.mxu0 %v12948
    %13885 = vmatprep.subr.bf16.mxu0 %v12957
    %13886 = vmatpush1.bf16.msra.mxu0 %v12956
    %13887 = vmatprep.subr.bf16.mxu0 %v12965
    %13888 = vmatpush1.bf16.msra.mxu0 %v12964
    %13889 = vmatprep.subr.bf16.mxu0 %v12973
    %13890 = vmatpush1.bf16.msra.mxu0 %v12972
    %13891 = vmatprep.subr.bf16.mxu0 %v12981
    %13892 = vmatpush1.bf16.msra.mxu0 %v12980
    %13893 = vmatprep.subr.bf16.mxu0 %v12989
    %13894 = vmatpush1.bf16.msra.mxu0 %v12988
    %13895 = vmatprep.subr.bf16.mxu0 %v12997
    %13896 = vmatpush1.bf16.msra.mxu0 %v12996
    %13897 = vmatprep.subr.bf16.mxu0 %v13005
    %13898 = vmatpush1.bf16.msra.mxu0 %v13004
    %13899 = vmatprep.subr.bf16.mxu0 %v13013
    %13900 = vmatpush1.bf16.msra.mxu0 %v13012
    %13901 = vmatprep.subr.bf16.mxu0 %v13021
    %13902 = vmatpush1.bf16.msra.mxu0 %v13020
    %13903 = vmatprep.mubr.bf16.mxu0 %v10932
    %13904 = vmatmul.mubr.bf16.gmra.mrb[0].mxu0 %v10931
    %v13905 = vpop.f32.mrb[0].mxu0
    %v13906 = vadd.f32 %v13865, %v13905
    %v13907 = vpop.f32.mrb[0].mxu0
    %v13908 = vadd.f32 %v13867, %v13907
    %v13909 = vpop.f32.mrb[0].mxu0
    %v13910 = vpop.f32.mrb[0].mxu0
    %13911 = vdwg.mxu0
    %13912 = vmatprep.subr.bf16.mxu0 %v13029
    %13913 = vmatpush1.bf16.msra.mxu0 %v13028
    %13914 = vmatprep.subr.bf16.mxu0 %v13037
    %13915 = vmatpush1.bf16.msra.mxu0 %v13036
    %13916 = vmatprep.subr.bf16.mxu0 %v13045
    %13917 = vmatpush1.bf16.msra.mxu0 %v13044
    %13918 = vmatprep.subr.bf16.mxu0 %v13053
    %13919 = vmatpush1.bf16.msra.mxu0 %v13052
    %13920 = vmatprep.subr.bf16.mxu0 %v13061
    %13921 = vmatpush1.bf16.msra.mxu0 %v13060
    %13922 = vmatprep.subr.bf16.mxu0 %v13069
    %13923 = vmatpush1.bf16.msra.mxu0 %v13068
    %13924 = vmatprep.subr.bf16.mxu0 %v13077
    %13925 = vmatpush1.bf16.msra.mxu0 %v13076
    %13926 = vmatprep.subr.bf16.mxu0 %v13085
    %13927 = vmatpush1.bf16.msra.mxu0 %v13084
    %13928 = vmatprep.subr.bf16.mxu0 %v13093
    %13929 = vmatpush1.bf16.msra.mxu0 %v13092
    %13930 = vmatprep.subr.bf16.mxu0 %v13101
    %13931 = vmatpush1.bf16.msra.mxu0 %v13100
    %13932 = vmatprep.subr.bf16.mxu0 %v13109
    %13933 = vmatpush1.bf16.msra.mxu0 %v13108
    %13934 = vmatprep.subr.bf16.mxu0 %v13117
    %13935 = vmatpush1.bf16.msra.mxu0 %v13116
    %13936 = vmatprep.subr.bf16.mxu0 %v13125
    %13937 = vmatpush1.bf16.msra.mxu0 %v13124
    %13938 = vmatprep.subr.bf16.mxu0 %v13133
    %13939 = vmatpush1.bf16.msra.mxu0 %v13132
    %13940 = vmatprep.subr.bf16.mxu0 %v13141
    %13941 = vmatpush1.bf16.msra.mxu0 %v13140
    %13942 = vmatprep.subr.bf16.mxu0 %v13149
    %13943 = vmatpush1.bf16.msra.mxu0 %v13148
    %13944 = vmatprep.mubr.bf16.mxu0 %v10934
    %13945 = vmatmul.mubr.bf16.gmra.mrb[0].mxu0 %v10933
    %v13946 = vpop.f32.mrb[0].mxu0
    %v13947 = vadd.f32 %v13906, %v13946
    %v13948 = vpop.f32.mrb[0].mxu0
    %v13949 = vadd.f32 %v13908, %v13948
    %v13950 = vpop.f32.mrb[0].mxu0
    %v13951 = vpop.f32.mrb[0].mxu0
    %13952 = vdwg.mxu0
    %13953 = vmatprep.subr.bf16.mxu0 %v13157
    %13954 = vmatpush1.bf16.msra.mxu0 %v13156
    %13955 = vmatprep.subr.bf16.mxu0 %v13165
    %13956 = vmatpush1.bf16.msra.mxu0 %v13164
    %13957 = vmatprep.subr.bf16.mxu0 %v13173
    %13958 = vmatpush1.bf16.msra.mxu0 %v13172
    %13959 = vmatprep.subr.bf16.mxu0 %v13181
    %13960 = vmatpush1.bf16.msra.mxu0 %v13180
    %13961 = vmatprep.subr.bf16.mxu0 %v13189
    %13962 = vmatpush1.bf16.msra.mxu0 %v13188
    %13963 = vmatprep.subr.bf16.mxu0 %v13197
    %13964 = vmatpush1.bf16.msra.mxu0 %v13196
    %13965 = vmatprep.subr.bf16.mxu0 %v13205
    %13966 = vmatpush1.bf16.msra.mxu0 %v13204
    %13967 = vmatprep.subr.bf16.mxu0 %v13213
    %13968 = vmatpush1.bf16.msra.mxu0 %v13212
    %13969 = vmatprep.subr.bf16.mxu0 0
    %13970 = vmatpush1.bf16.msra.mxu0 0
    %13971 = vmatprep.subr.bf16.mxu0 0
    %13972 = vmatpush1.bf16.msra.mxu0 0
    %13973 = vmatprep.subr.bf16.mxu0 0
    %13974 = vmatpush1.bf16.msra.mxu0 0
    %13975 = vmatprep.subr.bf16.mxu0 0
    %13976 = vmatpush1.bf16.msra.mxu0 0
    %13977 = vmatprep.subr.bf16.mxu0 0
    %13978 = vmatpush1.bf16.msra.mxu0 0
    %13979 = vmatprep.subr.bf16.mxu0 0
    %13980 = vmatpush1.bf16.msra.mxu0 0
    %13981 = vmatprep.subr.bf16.mxu0 0
    %13982 = vmatpush1.bf16.msra.mxu0 0
    %13983 = vmatprep.subr.bf16.mxu0 0
    %13984 = vmatpush1.bf16.msra.mxu0 0
    %13985 = vmatprep.mubr.bf16.mxu0 0
    %13986 = vmatmul.mubr.bf16.gmra.mrb[0].mxu0 %v10935
    %v13987 = vpop.f32.mrb[0].mxu0
    %v13988 = vadd.f32 %v13947, %v13987
    %v13989 = vpop.f32.mrb[0].mxu0
    %v13990 = vadd.f32 %v13949, %v13989
    %v13991 = vpop.f32.mrb[0].mxu0
    %v13992 = vpop.f32.mrb[0].mxu0
    %13993 = vdwg.mxu0
    %13994 = vmatprep.subr.bf16.mxu0 %v12775
    %13995 = vmatpush1.bf16.msra.mxu0 %v12774
    %13996 = vmatprep.subr.bf16.mxu0 %v12783
    %13997 = vmatpush1.bf16.msra.mxu0 %v12782
    %13998 = vmatprep.subr.bf16.mxu0 %v12791
    %13999 = vmatpush1.bf16.msra.mxu0 %v12790
    %14000 = vmatprep.subr.bf16.mxu0 %v12799
    %14001 = vmatpush1.bf16.msra.mxu0 %v12798
    %14002 = vmatprep.subr.bf16.mxu0 %v12807
    %14003 = vmatpush1.bf16.msra.mxu0 %v12806
    %14004 = vmatprep.subr.bf16.mxu0 %v12815
    %14005 = vmatpush1.bf16.msra.mxu0 %v12814
    %14006 = vmatprep.subr.bf16.mxu0 %v12823
    %14007 = vmatpush1.bf16.msra.mxu0 %v12822
    %14008 = vmatprep.subr.bf16.mxu0 %v12831
    %14009 = vmatpush1.bf16.msra.mxu0 %v12830
    %14010 = vmatprep.subr.bf16.mxu0 %v12839
    %14011 = vmatpush1.bf16.msra.mxu0 %v12838
    %14012 = vmatprep.subr.bf16.mxu0 %v12847
    %14013 = vmatpush1.bf16.msra.mxu0 %v12846
    %14014 = vmatprep.subr.bf16.mxu0 %v12855
    %14015 = vmatpush1.bf16.msra.mxu0 %v12854
    %14016 = vmatprep.subr.bf16.mxu0 %v12863
    %14017 = vmatpush1.bf16.msra.mxu0 %v12862
    %14018 = vmatprep.subr.bf16.mxu0 %v12871
    %14019 = vmatpush1.bf16.msra.mxu0 %v12870
    %14020 = vmatprep.subr.bf16.mxu0 %v12879
    %14021 = vmatpush1.bf16.msra.mxu0 %v12878
    %14022 = vmatprep.subr.bf16.mxu0 %v12887
    %14023 = vmatpush1.bf16.msra.mxu0 %v12886
    %14024 = vmatprep.subr.bf16.mxu0 %v12895
    %14025 = vmatpush1.bf16.msra.mxu0 %v12894
    %14026 = vmatprep.mubr.bf16.mxu0 %v10930
    %14027 = vmatmul.mubr.bf16.gmra.mrb[0].mxu0 %v10929
    %v14028 = vpop.f32.mrb[0].mxu0
    %v14029 = vadd.f32 %v11405, %v14028
    %v14030 = vpop.f32.mrb[0].mxu0
    %v14031 = vadd.f32 %v11409, %v14030
    %v14032 = vpop.f32.mrb[0].mxu0
    %v14033 = vpop.f32.mrb[0].mxu0
    %14034 = vdwg.mxu0
    %14035 = vmatprep.subr.bf16.mxu0 %v12903
    %14036 = vmatpush1.bf16.msra.mxu0 %v12902
    %14037 = vmatprep.subr.bf16.mxu0 %v12911
    %14038 = vmatpush1.bf16.msra.mxu0 %v12910
    %14039 = vmatprep.subr.bf16.mxu0 %v12919
    %14040 = vmatpush1.bf16.msra.mxu0 %v12918
    %14041 = vmatprep.subr.bf16.mxu0 %v12927
    %14042 = vmatpush1.bf16.msra.mxu0 %v12926
    %14043 = vmatprep.subr.bf16.mxu0 %v12935
    %14044 = vmatpush1.bf16.msra.mxu0 %v12934
    %14045 = vmatprep.subr.bf16.mxu0 %v12943
    %14046 = vmatpush1.bf16.msra.mxu0 %v12942
    %14047 = vmatprep.subr.bf16.mxu0 %v12951
    %14048 = vmatpush1.bf16.msra.mxu0 %v12950
    %14049 = vmatprep.subr.bf16.mxu0 %v12959
    %14050 = vmatpush1.bf16.msra.mxu0 %v12958
    %14051 = vmatprep.subr.bf16.mxu0 %v12967
    %14052 = vmatpush1.bf16.msra.mxu0 %v12966
    %14053 = vmatprep.subr.bf16.mxu0 %v12975
    %14054 = vmatpush1.bf16.msra.mxu0 %v12974
    %14055 = vmatprep.subr.bf16.mxu0 %v12983
    %14056 = vmatpush1.bf16.msra.mxu0 %v12982
    %14057 = vmatprep.subr.bf16.mxu0 %v12991
    %14058 = vmatpush1.bf16.msra.mxu0 %v12990
    %14059 = vmatprep.subr.bf16.mxu0 %v12999
    %14060 = vmatpush1.bf16.msra.mxu0 %v12998
    %14061 = vmatprep.subr.bf16.mxu0 %v13007
    %14062 = vmatpush1.bf16.msra.mxu0 %v13006
    %14063 = vmatprep.subr.bf16.mxu0 %v13015
    %14064 = vmatpush1.bf16.msra.mxu0 %v13014
    %14065 = vmatprep.subr.bf16.mxu0 %v13023
    %14066 = vmatpush1.bf16.msra.mxu0 %v13022
    %14067 = vmatprep.mubr.bf16.mxu0 %v10932
    %14068 = vmatmul.mubr.bf16.gmra.mrb[0].mxu0 %v10931
    %v14069 = vpop.f32.mrb[0].mxu0
    %v14070 = vadd.f32 %v14029, %v14069
    %v14071 = vpop.f32.mrb[0].mxu0
    %v14072 = vadd.f32 %v14031, %v14071
    %v14073 = vpop.f32.mrb[0].mxu0
    %v14074 = vpop.f32.mrb[0].mxu0
    %14075 = vdwg.mxu0
    %14076 = vmatprep.subr.bf16.mxu0 %v13031
    %14077 = vmatpush1.bf16.msra.mxu0 %v13030
    %14078 = vmatprep.subr.bf16.mxu0 %v13039
    %14079 = vmatpush1.bf16.msra.mxu0 %v13038
    %14080 = vmatprep.subr.bf16.mxu0 %v13047
    %14081 = vmatpush1.bf16.msra.mxu0 %v13046
    %14082 = vmatprep.subr.bf16.mxu0 %v13055
    %14083 = vmatpush1.bf16.msra.mxu0 %v13054
    %14084 = vmatprep.subr.bf16.mxu0 %v13063
    %14085 = vmatpush1.bf16.msra.mxu0 %v13062
    %14086 = vmatprep.subr.bf16.mxu0 %v13071
    %14087 = vmatpush1.bf16.msra.mxu0 %v13070
    %14088 = vmatprep.subr.bf16.mxu0 %v13079
    %14089 = vmatpush1.bf16.msra.mxu0 %v13078
    %14090 = vmatprep.subr.bf16.mxu0 %v13087
    %14091 = vmatpush1.bf16.msra.mxu0 %v13086
    %14092 = vmatprep.subr.bf16.mxu0 %v13095
    %14093 = vmatpush1.bf16.msra.mxu0 %v13094
    %14094 = vmatprep.subr.bf16.mxu0 %v13103
    %14095 = vmatpush1.bf16.msra.mxu0 %v13102
    %14096 = vmatprep.subr.bf16.mxu0 %v13111
    %14097 = vmatpush1.bf16.msra.mxu0 %v13110
    %14098 = vmatprep.subr.bf16.mxu0 %v13119
    %14099 = vmatpush1.bf16.msra.mxu0 %v13118
    %14100 = vmatprep.subr.bf16.mxu0 %v13127
    %14101 = vmatpush1.bf16.msra.mxu0 %v13126
    %14102 = vmatprep.subr.bf16.mxu0 %v13135
    %14103 = vmatpush1.bf16.msra.mxu0 %v13134
    %14104 = vmatprep.subr.bf16.mxu0 %v13143
    %14105 = vmatpush1.bf16.msra.mxu0 %v13142
    %14106 = vmatprep.subr.bf16.mxu0 %v13151
    %14107 = vmatpush1.bf16.msra.mxu0 %v13150
    %14108 = vmatprep.mubr.bf16.mxu0 %v10934
    %14109 = vmatmul.mubr.bf16.gmra.mrb[0].mxu0 %v10933
    %v14110 = vpop.f32.mrb[0].mxu0
    %v14111 = vadd.f32 %v14070, %v14110
    %v14112 = vpop.f32.mrb[0].mxu0
    %v14113 = vadd.f32 %v14072, %v14112
    %v14114 = vpop.f32.mrb[0].mxu0
    %v14115 = vpop.f32.mrb[0].mxu0
    %14116 = vdwg.mxu0
    %14117 = vmatprep.subr.bf16.mxu0 %v13159
    %14118 = vmatpush1.bf16.msra.mxu0 %v13158
    %14119 = vmatprep.subr.bf16.mxu0 %v13167
    %14120 = vmatpush1.bf16.msra.mxu0 %v13166
    %14121 = vmatprep.subr.bf16.mxu0 %v13175
    %14122 = vmatpush1.bf16.msra.mxu0 %v13174
    %14123 = vmatprep.subr.bf16.mxu0 %v13183
    %14124 = vmatpush1.bf16.msra.mxu0 %v13182
    %14125 = vmatprep.subr.bf16.mxu0 %v13191
    %14126 = vmatpush1.bf16.msra.mxu0 %v13190
    %14127 = vmatprep.subr.bf16.mxu0 %v13199
    %14128 = vmatpush1.bf16.msra.mxu0 %v13198
    %14129 = vmatprep.subr.bf16.mxu0 %v13207
    %14130 = vmatpush1.bf16.msra.mxu0 %v13206
    %14131 = vmatprep.subr.bf16.mxu0 %v13215
    %14132 = vmatpush1.bf16.msra.mxu0 %v13214
    %14133 = vmatprep.subr.bf16.mxu0 0
    %14134 = vmatpush1.bf16.msra.mxu0 0
    %14135 = vmatprep.subr.bf16.mxu0 0
    %14136 = vmatpush1.bf16.msra.mxu0 0
    %14137 = vmatprep.subr.bf16.mxu0 0
    %14138 = vmatpush1.bf16.msra.mxu0 0
    %14139 = vmatprep.subr.bf16.mxu0 0
    %14140 = vmatpush1.bf16.msra.mxu0 0
    %14141 = vmatprep.subr.bf16.mxu0 0
    %14142 = vmatpush1.bf16.msra.mxu0 0
    %14143 = vmatprep.subr.bf16.mxu0 0
    %14144 = vmatpush1.bf16.msra.mxu0 0
    %14145 = vmatprep.subr.bf16.mxu0 0
    %14146 = vmatpush1.bf16.msra.mxu0 0
    %14147 = vmatprep.subr.bf16.mxu0 0
    %14148 = vmatpush1.bf16.msra.mxu0 0
    %14149 = vmatprep.mubr.bf16.mxu0 0
    %14150 = vmatmul.mubr.bf16.gmra.mrb[0].mxu0 %v10935
    %v14151 = vpop.f32.mrb[0].mxu0
    %v14152 = vadd.f32 %v14111, %v14151
    %v14153 = vpop.f32.mrb[0].mxu0
    %v14154 = vadd.f32 %v14113, %v14153
    %v14155 = vpop.f32.mrb[0].mxu0
    %v14156 = vpop.f32.mrb[0].mxu0
    %14157 = vdwg.mxu0
    %14158 = vmatprep.subr.bf16.mxu0 %v12777
    %14159 = vmatpush1.bf16.msra.mxu0 %v12776
    %14160 = vmatprep.subr.bf16.mxu0 %v12785
    %14161 = vmatpush1.bf16.msra.mxu0 %v12784
    %14162 = vmatprep.subr.bf16.mxu0 %v12793
    %14163 = vmatpush1.bf16.msra.mxu0 %v12792
    %14164 = vmatprep.subr.bf16.mxu0 %v12801
    %14165 = vmatpush1.bf16.msra.mxu0 %v12800
    %14166 = vmatprep.subr.bf16.mxu0 %v12809
    %14167 = vmatpush1.bf16.msra.mxu0 %v12808
    %14168 = vmatprep.subr.bf16.mxu0 %v12817
    %14169 = vmatpush1.bf16.msra.mxu0 %v12816
    %14170 = vmatprep.subr.bf16.mxu0 %v12825
    %14171 = vmatpush1.bf16.msra.mxu0 %v12824
    %14172 = vmatprep.subr.bf16.mxu0 %v12833
    %14173 = vmatpush1.bf16.msra.mxu0 %v12832
    %14174 = vmatprep.subr.bf16.mxu0 %v12841
    %14175 = vmatpush1.bf16.msra.mxu0 %v12840
    %14176 = vmatprep.subr.bf16.mxu0 %v12849
    %14177 = vmatpush1.bf16.msra.mxu0 %v12848
    %14178 = vmatprep.subr.bf16.mxu0 %v12857
    %14179 = vmatpush1.bf16.msra.mxu0 %v12856
    %14180 = vmatprep.subr.bf16.mxu0 %v12865
    %14181 = vmatpush1.bf16.msra.mxu0 %v12864
    %14182 = vmatprep.subr.bf16.mxu0 %v12873
    %14183 = vmatpush1.bf16.msra.mxu0 %v12872
    %14184 = vmatprep.subr.bf16.mxu0 %v12881
    %14185 = vmatpush1.bf16.msra.mxu0 %v12880
    %14186 = vmatprep.subr.bf16.mxu0 %v12889
    %14187 = vmatpush1.bf16.msra.mxu0 %v12888
    %14188 = vmatprep.subr.bf16.mxu0 %v12897
    %14189 = vmatpush1.bf16.msra.mxu0 %v12896
    %14190 = vmatprep.mubr.bf16.mxu0 %v10930
    %14191 = vmatmul.mubr.bf16.gmra.mrb[0].mxu0 %v10929
    %v14192 = vpop.f32.mrb[0].mxu0
    %v14193 = vadd.f32 %v11413, %v14192
    %v14194 = vpop.f32.mrb[0].mxu0
    %v14195 = vadd.f32 %v11417, %v14194
    %v14196 = vpop.f32.mrb[0].mxu0
    %v14197 = vpop.f32.mrb[0].mxu0
    %14198 = vdwg.mxu0
    %14199 = vmatprep.subr.bf16.mxu0 %v12905
    %14200 = vmatpush1.bf16.msra.mxu0 %v12904
    %14201 = vmatprep.subr.bf16.mxu0 %v12913
    %14202 = vmatpush1.bf16.msra.mxu0 %v12912
    %14203 = vmatprep.subr.bf16.mxu0 %v12921
    %14204 = vmatpush1.bf16.msra.mxu0 %v12920
    %14205 = vmatprep.subr.bf16.mxu0 %v12929
    %14206 = vmatpush1.bf16.msra.mxu0 %v12928
    %14207 = vmatprep.subr.bf16.mxu0 %v12937
    %14208 = vmatpush1.bf16.msra.mxu0 %v12936
    %14209 = vmatprep.subr.bf16.mxu0 %v12945
    %14210 = vmatpush1.bf16.msra.mxu0 %v12944
    %14211 = vmatprep.subr.bf16.mxu0 %v12953
    %14212 = vmatpush1.bf16.msra.mxu0 %v12952
    %14213 = vmatprep.subr.bf16.mxu0 %v12961
    %14214 = vmatpush1.bf16.msra.mxu0 %v12960
    %14215 = vmatprep.subr.bf16.mxu0 %v12969
    %14216 = vmatpush1.bf16.msra.mxu0 %v12968
    %14217 = vmatprep.subr.bf16.mxu0 %v12977
    %14218 = vmatpush1.bf16.msra.mxu0 %v12976
    %14219 = vmatprep.subr.bf16.mxu0 %v12985
    %14220 = vmatpush1.bf16.msra.mxu0 %v12984
    %14221 = vmatprep.subr.bf16.mxu0 %v12993
    %14222 = vmatpush1.bf16.msra.mxu0 %v12992
    %14223 = vmatprep.subr.bf16.mxu0 %v13001
    %14224 = vmatpush1.bf16.msra.mxu0 %v13000
    %14225 = vmatprep.subr.bf16.mxu0 %v13009
    %14226 = vmatpush1.bf16.msra.mxu0 %v13008
    %14227 = vmatprep.subr.bf16.mxu0 %v13017
    %14228 = vmatpush1.bf16.msra.mxu0 %v13016
    %14229 = vmatprep.subr.bf16.mxu0 %v13025
    %14230 = vmatpush1.bf16.msra.mxu0 %v13024
    %14231 = vmatprep.mubr.bf16.mxu0 %v10932
    %14232 = vmatmul.mubr.bf16.gmra.mrb[0].mxu0 %v10931
    %v14233 = vpop.f32.mrb[0].mxu0
    %v14234 = vadd.f32 %v14193, %v14233
    %v14235 = vpop.f32.mrb[0].mxu0
    %v14236 = vadd.f32 %v14195, %v14235
    %v14237 = vpop.f32.mrb[0].mxu0
    %v14238 = vpop.f32.mrb[0].mxu0
    %14239 = vdwg.mxu0
    %14240 = vmatprep.subr.bf16.mxu0 %v13033
    %14241 = vmatpush1.bf16.msra.mxu0 %v13032
    %14242 = vmatprep.subr.bf16.mxu0 %v13041
    %14243 = vmatpush1.bf16.msra.mxu0 %v13040
    %14244 = vmatprep.subr.bf16.mxu0 %v13049
    %14245 = vmatpush1.bf16.msra.mxu0 %v13048
    %14246 = vmatprep.subr.bf16.mxu0 %v13057
    %14247 = vmatpush1.bf16.msra.mxu0 %v13056
    %14248 = vmatprep.subr.bf16.mxu0 %v13065
    %14249 = vmatpush1.bf16.msra.mxu0 %v13064
    %14250 = vmatprep.subr.bf16.mxu0 %v13073
    %14251 = vmatpush1.bf16.msra.mxu0 %v13072
    %14252 = vmatprep.subr.bf16.mxu0 %v13081
    %14253 = vmatpush1.bf16.msra.mxu0 %v13080
    %14254 = vmatprep.subr.bf16.mxu0 %v13089
    %14255 = vmatpush1.bf16.msra.mxu0 %v13088
    %14256 = vmatprep.subr.bf16.mxu0 %v13097
    %14257 = vmatpush1.bf16.msra.mxu0 %v13096
    %14258 = vmatprep.subr.bf16.mxu0 %v13105
    %14259 = vmatpush1.bf16.msra.mxu0 %v13104
    %14260 = vmatprep.subr.bf16.mxu0 %v13113
    %14261 = vmatpush1.bf16.msra.mxu0 %v13112
    %14262 = vmatprep.subr.bf16.mxu0 %v13121
    %14263 = vmatpush1.bf16.msra.mxu0 %v13120
    %14264 = vmatprep.subr.bf16.mxu0 %v13129
    %14265 = vmatpush1.bf16.msra.mxu0 %v13128
    %14266 = vmatprep.subr.bf16.mxu0 %v13137
    %14267 = vmatpush1.bf16.msra.mxu0 %v13136
    %14268 = vmatprep.subr.bf16.mxu0 %v13145
    %14269 = vmatpush1.bf16.msra.mxu0 %v13144
    %14270 = vmatprep.subr.bf16.mxu0 %v13153
    %14271 = vmatpush1.bf16.msra.mxu0 %v13152
    %14272 = vmatprep.mubr.bf16.mxu0 %v10934
    %14273 = vmatmul.mubr.bf16.gmra.mrb[0].mxu0 %v10933
    %v14274 = vpop.f32.mrb[0].mxu0
    %v14275 = vadd.f32 %v14234, %v14274
    %v14276 = vpop.f32.mrb[0].mxu0
    %v14277 = vadd.f32 %v14236, %v14276
    %v14278 = vpop.f32.mrb[0].mxu0
    %v14279 = vpop.f32.mrb[0].mxu0
    %14280 = vdwg.mxu0
    %14281 = vmatprep.subr.bf16.mxu0 %v13161
    %14282 = vmatpush1.bf16.msra.mxu0 %v13160
    %14283 = vmatprep.subr.bf16.mxu0 %v13169
    %14284 = vmatpush1.bf16.msra.mxu0 %v13168
    %14285 = vmatprep.subr.bf16.mxu0 %v13177
    %14286 = vmatpush1.bf16.msra.mxu0 %v13176
    %14287 = vmatprep.subr.bf16.mxu0 %v13185
    %14288 = vmatpush1.bf16.msra.mxu0 %v13184
    %14289 = vmatprep.subr.bf16.mxu0 %v13193
    %14290 = vmatpush1.bf16.msra.mxu0 %v13192
    %14291 = vmatprep.subr.bf16.mxu0 %v13201
    %14292 = vmatpush1.bf16.msra.mxu0 %v13200
    %14293 = vmatprep.subr.bf16.mxu0 %v13209
    %14294 = vmatpush1.bf16.msra.mxu0 %v13208
    %14295 = vmatprep.subr.bf16.mxu0 %v13217
    %14296 = vmatpush1.bf16.msra.mxu0 %v13216
    %14297 = vmatprep.subr.bf16.mxu0 0
    %14298 = vmatpush1.bf16.msra.mxu0 0
    %14299 = vmatprep.subr.bf16.mxu0 0
    %14300 = vmatpush1.bf16.msra.mxu0 0
    %14301 = vmatprep.subr.bf16.mxu0 0
    %14302 = vmatpush1.bf16.msra.mxu0 0
    %14303 = vmatprep.subr.bf16.mxu0 0
    %14304 = vmatpush1.bf16.msra.mxu0 0
    %14305 = vmatprep.subr.bf16.mxu0 0
    %14306 = vmatpush1.bf16.msra.mxu0 0
    %14307 = vmatprep.subr.bf16.mxu0 0
    %14308 = vmatpush1.bf16.msra.mxu0 0
    %14309 = vmatprep.subr.bf16.mxu0 0
    %14310 = vmatpush1.bf16.msra.mxu0 0
    %14311 = vmatprep.subr.bf16.mxu0 0
    %14312 = vmatpush1.bf16.msra.mxu0 0
    %14313 = vmatprep.mubr.bf16.mxu0 0
    %14314 = vmatmul.mubr.bf16.gmra.mrb[0].mxu0 %v10935
    %v14315 = vpop.f32.mrb[0].mxu0
    %v14316 = vadd.f32 %v14275, %v14315
    %v14317 = vpop.f32.mrb[0].mxu0
    %v14318 = vadd.f32 %v14277, %v14317
    %v14319 = vpop.f32.mrb[0].mxu0
    %v14320 = vpop.f32.mrb[0].mxu0
    %14321 = vdwg.mxu0
    %v14322 = vtanh.pop %v13824
    %v14323 = vtanh.pop %v13826
    %v14324 = vtanh.pop %v13988
    %v14325 = vtanh.pop %v13990
    %v14326 = vtanh.pop %v14152
    %v14327 = vtanh.pop %v14154
    %v14328 = vtanh.pop %v14316
    %v14329 = vtanh.pop %v14318
    %v14330 = vadd.f32 %v14322, %v14324
    %v14331 = vadd.f32 %v14323, %v14325
    %v14332 = vadd.f32 %v14330, %v14326
    %v14333 = vadd.f32 %v14331, %v14327
    %v14334 = vadd.f32 %v14332, %v14328
    %v14335 = vadd.f32 %v14333, %v14329
    %v14336 = vmul.f32 %v14334, 0.25
    %v14337 = vmul.f32 %v14335, 0.25
    %v14338 = vpack.c.bf16 %v14336, %v14336
    %v14339 = vpack.c.bf16 %v14337, %v14337
    %v14340 = vld [vmem:[#allocation9] sm:$0xf]
    %v14341 = vld [vmem:[#allocation9 + $0x4] sm:$0xf]
    %v14342 = vld [vmem:[#allocation9 + $0x8] sm:$0xf]
    %v14343 = vld [vmem:[#allocation9 + $0xc] sm:$0xf]
    %v14344 = vld [vmem:[#allocation9 + $0x10] sm:$0xf]
    %v14345 = vld [vmem:[#allocation9 + $0x14] sm:$0xf]
    %v14346 = vld [vmem:[#allocation9 + $0x18] sm:$0xf]
    %v14347 = vld [vmem:[#allocation9 + $0x1c] sm:$0xf]
    %v14348 = vld [vmem:[#allocation9 + $0x20] sm:$0xf]
    %v14349 = vld [vmem:[#allocation9 + $0x24] sm:$0xf]
    %v14350 = vld [vmem:[#allocation9 + $0x28] sm:$0xf]
    %v14351 = vld [vmem:[#allocation9 + $0x2c] sm:$0xf]
    %v14352 = vld [vmem:[#allocation9 + $0x30] sm:$0xf]
    %v14353 = vld [vmem:[#allocation9 + $0x34] sm:$0xf]
    %v14354 = vld [vmem:[#allocation9 + $0x38] sm:$0xf]
    %v14355 = vld [vmem:[#allocation9 + $0x3c] sm:$0xf]
    %v14356 = vld [vmem:[#allocation9 + $0x40] sm:$0xf]
    %v14357 = vld [vmem:[#allocation9 + $0x44] sm:$0xf]
    %v14358 = vld [vmem:[#allocation9 + $0x48] sm:$0xf]
    %v14359 = vld [vmem:[#allocation9 + $0x4c] sm:$0xf]
    %v14360 = vld [vmem:[#allocation9 + $0x50] sm:$0xf]
    %v14361 = vld [vmem:[#allocation9 + $0x54] sm:$0xf]
    %v14362 = vld [vmem:[#allocation9 + $0x58] sm:$0xf]
    %v14363 = vld [vmem:[#allocation9 + $0x5c] sm:$0xf]
    %v14364 = vld [vmem:[#allocation9 + $0x60] sm:$0xf]
    %v14365 = vld [vmem:[#allocation9 + $0x64] sm:$0xf]
    %v14366 = vld [vmem:[#allocation9 + $0x68] sm:$0xf]
    %v14367 = vld [vmem:[#allocation9 + $0x6c] sm:$0xf]
    %v14368 = vld [vmem:[#allocation9 + $0x70] sm:$0xf]
    %v14369 = vld [vmem:[#allocation9 + $0x74] sm:$0xf]
    %v14370 = vld [vmem:[#allocation9 + $0x78] sm:$0xf]
    %v14371 = vld [vmem:[#allocation9 + $0x7c] sm:$0xf]
    %v14372 = vld [vmem:[#allocation10] sm:$0x1]
    %v14374 = vlaneseq
    %v14375 = vshrl.u32 %v14374, 7
    %v14376 = vsub.s32 0, %v14375
    %v14377 = vrot.slane %v14372, %v14376
    %v14411 = vunpack.c.l.b16 %v14340
    %v14412 = vunpack.c.l.b16 %v14341
    %v14413 = vunpack.c.l.b16 %v14342
    %v14414 = vunpack.c.l.b16 %v14343
    %v14415 = vunpack.c.l.b16 %v14344
    %v14416 = vunpack.c.l.b16 %v14345
    %v14417 = vunpack.c.l.b16 %v14346
    %v14418 = vunpack.c.l.b16 %v14347
    %v14419 = vunpack.c.l.b16 %v14348
    %v14420 = vunpack.c.l.b16 %v14349
    %v14421 = vunpack.c.l.b16 %v14350
    %v14422 = vunpack.c.l.b16 %v14351
    %v14423 = vunpack.c.l.b16 %v14352
    %v14424 = vunpack.c.l.b16 %v14353
    %v14425 = vunpack.c.l.b16 %v14354
    %v14426 = vunpack.c.l.b16 %v14355
    %v14427 = vunpack.c.l.b16 %v14356
    %v14428 = vunpack.c.l.b16 %v14357
    %v14429 = vunpack.c.l.b16 %v14358
    %v14430 = vunpack.c.l.b16 %v14359
    %v14431 = vunpack.c.l.b16 %v14360
    %v14432 = vunpack.c.l.b16 %v14361
    %v14433 = vunpack.c.l.b16 %v14362
    %v14434 = vunpack.c.l.b16 %v14363
    %v14435 = vunpack.c.l.b16 %v14364
    %v14436 = vunpack.c.l.b16 %v14365
    %v14437 = vunpack.c.l.b16 %v14366
    %v14438 = vunpack.c.l.b16 %v14367
    %v14439 = vunpack.c.l.b16 %v14368
    %v14440 = vunpack.c.l.b16 %v14369
    %v14441 = vunpack.c.l.b16 %v14370
    %v14442 = vunpack.c.l.b16 %v14371
    %v14443 = vpack.c.b16 %v14412, %v14411
    %v14444 = vpack.c.b16 %v14414, %v14413
    %v14445 = vpack.c.b16 %v14416, %v14415
    %v14446 = vpack.c.b16 %v14418, %v14417
    %v14447 = vpack.c.b16 %v14420, %v14419
    %v14448 = vpack.c.b16 %v14422, %v14421
    %v14449 = vpack.c.b16 %v14424, %v14423
    %v14450 = vpack.c.b16 %v14426, %v14425
    %v14451 = vpack.c.b16 %v14428, %v14427
    %v14452 = vpack.c.b16 %v14430, %v14429
    %v14453 = vpack.c.b16 %v14432, %v14431
    %v14454 = vpack.c.b16 %v14434, %v14433
    %v14455 = vpack.c.b16 %v14436, %v14435
    %v14456 = vpack.c.b16 %v14438, %v14437
    %v14457 = vpack.c.b16 %v14440, %v14439
    %v14458 = vpack.c.b16 %v14442, %v14441
    %14475 = vmatprep.subr.bf16.mxu0 0
    %14476 = vmatpush1.bf16.msra.mxu0 %v14443
    %14477 = vmatprep.subr.bf16.mxu0 0
    %14478 = vmatpush1.bf16.msra.mxu0 %v14444
    %14479 = vmatprep.subr.bf16.mxu0 0
    %14480 = vmatpush1.bf16.msra.mxu0 %v14445
    %14481 = vmatprep.subr.bf16.mxu0 0
    %14482 = vmatpush1.bf16.msra.mxu0 %v14446
    %14483 = vmatprep.subr.bf16.mxu0 0
    %14484 = vmatpush1.bf16.msra.mxu0 %v14447
    %14485 = vmatprep.subr.bf16.mxu0 0
    %14486 = vmatpush1.bf16.msra.mxu0 %v14448
    %14487 = vmatprep.subr.bf16.mxu0 0
    %14488 = vmatpush1.bf16.msra.mxu0 %v14449
    %14489 = vmatprep.subr.bf16.mxu0 0
    %14490 = vmatpush1.bf16.msra.mxu0 %v14450
    %14491 = vmatprep.subr.bf16.mxu0 0
    %14492 = vmatpush1.bf16.msra.mxu0 %v14451
    %14493 = vmatprep.subr.bf16.mxu0 0
    %14494 = vmatpush1.bf16.msra.mxu0 %v14452
    %14495 = vmatprep.subr.bf16.mxu0 0
    %14496 = vmatpush1.bf16.msra.mxu0 %v14453
    %14497 = vmatprep.subr.bf16.mxu0 0
    %14498 = vmatpush1.bf16.msra.mxu0 %v14454
    %14499 = vmatprep.subr.bf16.mxu0 0
    %14500 = vmatpush1.bf16.msra.mxu0 %v14455
    %14501 = vmatprep.subr.bf16.mxu0 0
    %14502 = vmatpush1.bf16.msra.mxu0 %v14456
    %14503 = vmatprep.subr.bf16.mxu0 0
    %14504 = vmatpush1.bf16.msra.mxu0 %v14457
    %14505 = vmatprep.subr.bf16.mxu0 0
    %14506 = vmatpush1.bf16.msra.mxu0 %v14458
    %14507 = vmatprep.mubr.bf16.mxu0 %v14339
    %14508 = vmatmul.mubr.bf16.gmra.mrb[0].mxu0 %v14338
    %v14509 = vpop.f32.mrb[0].mxu0
    %v14510 = vadd.f32 %v14377, %v14509
    %v14511 = vpop.f32.mrb[0].mxu0
    %v14512 = vpop.f32.mrb[0].mxu0
    %v14513 = vpop.f32.mrb[0].mxu0
    %14514 = vdwg.mxu0
    %v14515 = vtanh.pop %v14510
    %v14516 = vpack.c.bf16 %v14515, %v14515
    %v14517 = vld [vmem:[#allocation12] sm:$0xf]
    %v14518 = vld [vmem:[#allocation12 + $0x4] sm:$0xf]
    %v14519 = vld [vmem:[#allocation12 + $0x8] sm:$0xf]
    %v14520 = vld [vmem:[#allocation12 + $0xc] sm:$0xf]
    %v14521 = vld [vmem:[#allocation12 + $0x10] sm:$0xf]
    %v14522 = vld [vmem:[#allocation12 + $0x14] sm:$0xf]
    %v14523 = vld [vmem:[#allocation12 + $0x18] sm:$0xf]
    %v14524 = vld [vmem:[#allocation12 + $0x1c] sm:$0xf]
    %v14525 = vld [vmem:[#allocation12 + $0x20] sm:$0xf]
    %v14526 = vld [vmem:[#allocation12 + $0x24] sm:$0xf]
    %v14527 = vld [vmem:[#allocation12 + $0x28] sm:$0xf]
    %v14528 = vld [vmem:[#allocation12 + $0x2c] sm:$0xf]
    %v14529 = vld [vmem:[#allocation12 + $0x30] sm:$0xf]
    %v14530 = vld [vmem:[#allocation12 + $0x34] sm:$0xf]
    %v14531 = vld [vmem:[#allocation12 + $0x38] sm:$0xf]
    %v14532 = vld [vmem:[#allocation12 + $0x3c] sm:$0xf]
    %v14533 = vld [vmem:[#allocation13] sm:$0x1]
    %v14535 = vlaneseq
    %v14536 = vshrl.u32 %v14535, 7
    %v14537 = vsub.s32 0, %v14536
    %v14538 = vrot.slane %v14533, %v14537
    %v14556 = vunpack.c.l.b16 %v14517
    %v14557 = vunpack.c.l.b16 %v14518
    %v14558 = vunpack.c.l.b16 %v14519
    %v14559 = vunpack.c.l.b16 %v14520
    %v14560 = vunpack.c.l.b16 %v14521
    %v14561 = vunpack.c.l.b16 %v14522
    %v14562 = vunpack.c.l.b16 %v14523
    %v14563 = vunpack.c.l.b16 %v14524
    %v14564 = vunpack.c.l.b16 %v14525
    %v14565 = vunpack.c.l.b16 %v14526
    %v14566 = vunpack.c.l.b16 %v14527
    %v14567 = vunpack.c.l.b16 %v14528
    %v14568 = vunpack.c.l.b16 %v14529
    %v14569 = vunpack.c.l.b16 %v14530
    %v14570 = vunpack.c.l.b16 %v14531
    %v14571 = vunpack.c.l.b16 %v14532
    %v14572 = vpack.c.b16 %v14557, %v14556
    %v14573 = vpack.c.b16 %v14559, %v14558
    %v14574 = vpack.c.b16 %v14561, %v14560
    %v14575 = vpack.c.b16 %v14563, %v14562
    %v14576 = vpack.c.b16 %v14565, %v14564
    %v14577 = vpack.c.b16 %v14567, %v14566
    %v14578 = vpack.c.b16 %v14569, %v14568
    %v14579 = vpack.c.b16 %v14571, %v14570
    %14588 = vmatprep.subr.bf16.mxu0 0
    %14589 = vmatpush1.bf16.msra.mxu0 %v14572
    %14590 = vmatprep.subr.bf16.mxu0 0
    %14591 = vmatpush1.bf16.msra.mxu0 %v14573
    %14592 = vmatprep.subr.bf16.mxu0 0
    %14593 = vmatpush1.bf16.msra.mxu0 %v14574
    %14594 = vmatprep.subr.bf16.mxu0 0
    %14595 = vmatpush1.bf16.msra.mxu0 %v14575
    %14596 = vmatprep.subr.bf16.mxu0 0
    %14597 = vmatpush1.bf16.msra.mxu0 %v14576
    %14598 = vmatprep.subr.bf16.mxu0 0
    %14599 = vmatpush1.bf16.msra.mxu0 %v14577
    %14600 = vmatprep.subr.bf16.mxu0 0
    %14601 = vmatpush1.bf16.msra.mxu0 %v14578
    %14602 = vmatprep.subr.bf16.mxu0 0
    %14603 = vmatpush1.bf16.msra.mxu0 %v14579
    %14604 = vmatprep.subr.bf16.mxu0 0
    %14605 = vmatpush1.bf16.msra.mxu0 0
    %14606 = vmatprep.subr.bf16.mxu0 0
    %14607 = vmatpush1.bf16.msra.mxu0 0
    %14608 = vmatprep.subr.bf16.mxu0 0
    %14609 = vmatpush1.bf16.msra.mxu0 0
    %14610 = vmatprep.subr.bf16.mxu0 0
    %14611 = vmatpush1.bf16.msra.mxu0 0
    %14612 = vmatprep.subr.bf16.mxu0 0
    %14613 = vmatpush1.bf16.msra.mxu0 0
    %14614 = vmatprep.subr.bf16.mxu0 0
    %14615 = vmatpush1.bf16.msra.mxu0 0
    %14616 = vmatprep.subr.bf16.mxu0 0
    %14617 = vmatpush1.bf16.msra.mxu0 0
    %14618 = vmatprep.subr.bf16.mxu0 0
    %14619 = vmatpush1.bf16.msra.mxu0 0
    %14620 = vmatprep.mubr.bf16.mxu0 0
    %14621 = vmatmul.mubr.bf16.gmra.mrb[0].mxu0 %v14516
    %v14622 = vpop.f32.mrb[0].mxu0
    %v14623 = vadd.f32 %v14538, %v14622
    %v14624 = vpop.f32.mrb[0].mxu0
    %v14625 = vpop.f32.mrb[0].mxu0
    %v14626 = vpop.f32.mrb[0].mxu0
    %14627 = vdwg.mxu0
    %v14628 = vtanh.pop %v14623
    %v14629 = vpack.c.bf16 %v14628, %v14628
    %v14630 = vld [vmem:[#allocation15] sm:$0xf]
    %v14631 = vld [vmem:[#allocation15 + $0x4] sm:$0xf]
    %v14632 = vld [vmem:[#allocation15 + $0x8] sm:$0xf]
    %v14633 = vld [vmem:[#allocation15 + $0xc] sm:$0xf]
    %v14634 = vld [vmem:[#allocation15 + $0x10] sm:$0xf]
    %v14635 = vld [vmem:[#allocation15 + $0x14] sm:$0xf]
    %v14636 = vld [vmem:[#allocation15 + $0x18] sm:$0xf]
    %v14637 = vld [vmem:[#allocation15 + $0x1c] sm:$0xf]
    %v14638 = vld [vmem:[#allocation15 + $0x20] sm:$0xf]
    %v14639 = vld [vmem:[#allocation15 + $0x24] sm:$0xf]
    %v14640 = vld [vmem:[#allocation15 + $0x28] sm:$0xf]
    %v14641 = vld [vmem:[#allocation15 + $0x2c] sm:$0xf]
    %v14642 = vld [vmem:[#allocation15 + $0x30] sm:$0xf]
    %v14643 = vld [vmem:[#allocation15 + $0x34] sm:$0xf]
    %v14644 = vld [vmem:[#allocation15 + $0x38] sm:$0xf]
    %v14645 = vld [vmem:[#allocation15 + $0x3c] sm:$0xf]
    %v14646 = vld [vmem:[#allocation16] sm:$0x1]
    %v14648 = vlaneseq
    %v14649 = vshrl.u32 %v14648, 7
    %v14650 = vsub.s32 0, %v14649
    %v14651 = vrot.slane %v14646, %v14650
    %v14669 = vunpack.c.l.b16 %v14630
    %v14670 = vunpack.c.l.b16 %v14631
    %v14671 = vunpack.c.l.b16 %v14632
    %v14672 = vunpack.c.l.b16 %v14633
    %v14673 = vunpack.c.l.b16 %v14634
    %v14674 = vunpack.c.l.b16 %v14635
    %v14675 = vunpack.c.l.b16 %v14636
    %v14676 = vunpack.c.l.b16 %v14637
    %v14677 = vunpack.c.l.b16 %v14638
    %v14678 = vunpack.c.l.b16 %v14639
    %v14679 = vunpack.c.l.b16 %v14640
    %v14680 = vunpack.c.l.b16 %v14641
    %v14681 = vunpack.c.l.b16 %v14642
    %v14682 = vunpack.c.l.b16 %v14643
    %v14683 = vunpack.c.l.b16 %v14644
    %v14684 = vunpack.c.l.b16 %v14645
    %v14685 = vpack.c.b16 %v14670, %v14669
    %v14686 = vpack.c.b16 %v14672, %v14671
    %v14687 = vpack.c.b16 %v14674, %v14673
    %v14688 = vpack.c.b16 %v14676, %v14675
    %v14689 = vpack.c.b16 %v14678, %v14677
    %v14690 = vpack.c.b16 %v14680, %v14679
    %v14691 = vpack.c.b16 %v14682, %v14681
    %v14692 = vpack.c.b16 %v14684, %v14683
    %14701 = vmatprep.subr.bf16.mxu0 0
    %14702 = vmatpush1.bf16.msra.mxu0 %v14685
    %14703 = vmatprep.subr.bf16.mxu0 0
    %14704 = vmatpush1.bf16.msra.mxu0 %v14686
    %14705 = vmatprep.subr.bf16.mxu0 0
    %14706 = vmatpush1.bf16.msra.mxu0 %v14687
    %14707 = vmatprep.subr.bf16.mxu0 0
    %14708 = vmatpush1.bf16.msra.mxu0 %v14688
    %14709 = vmatprep.subr.bf16.mxu0 0
    %14710 = vmatpush1.bf16.msra.mxu0 %v14689
    %14711 = vmatprep.subr.bf16.mxu0 0
    %14712 = vmatpush1.bf16.msra.mxu0 %v14690
    %14713 = vmatprep.subr.bf16.mxu0 0
    %14714 = vmatpush1.bf16.msra.mxu0 %v14691
    %14715 = vmatprep.subr.bf16.mxu0 0
    %14716 = vmatpush1.bf16.msra.mxu0 %v14692
    %14717 = vmatprep.subr.bf16.mxu0 0
    %14718 = vmatpush1.bf16.msra.mxu0 0
    %14719 = vmatprep.subr.bf16.mxu0 0
    %14720 = vmatpush1.bf16.msra.mxu0 0
    %14721 = vmatprep.subr.bf16.mxu0 0
    %14722 = vmatpush1.bf16.msra.mxu0 0
    %14723 = vmatprep.subr.bf16.mxu0 0
    %14724 = vmatpush1.bf16.msra.mxu0 0
    %14725 = vmatprep.subr.bf16.mxu0 0
    %14726 = vmatpush1.bf16.msra.mxu0 0
    %14727 = vmatprep.subr.bf16.mxu0 0
    %14728 = vmatpush1.bf16.msra.mxu0 0
    %14729 = vmatprep.subr.bf16.mxu0 0
    %14730 = vmatpush1.bf16.msra.mxu0 0
    %14731 = vmatprep.subr.bf16.mxu0 0
    %14732 = vmatpush1.bf16.msra.mxu0 0
    %14733 = vmatprep.mubr.bf16.mxu0 0
    %14734 = vmatmul.mubr.bf16.gmra.mrb[0].mxu0 %v14629
    %v14735 = vpop.f32.mrb[0].mxu0
    %v14736 = vadd.f32 %v14651, %v14735
    %v14737 = vpop.f32.mrb[0].mxu0
    %v14738 = vpop.f32.mrb[0].mxu0
    %v14739 = vpop.f32.mrb[0].mxu0
    %14740 = vdwg.mxu0
    %14741 = vst [vmem:[%s11] sm:$0xff] %v14736
    // Predicated region
    $region86: #{lenet5_forward.1} parent=1 // pred_check
      _
    $region87: #{lenet5_forward.1} parent=1 // pred_check_branch
      %14743 = sbr.rel (0) target = $region89
    $region88: #{lenet5_forward.1} parent=1 // pred_region
      _
    $region89: #{lenet5_forward.1} parent=1 // pred_fallthru
      _
    // Predicated region
    $region90: #{lenet5_forward.1} parent=1 // pred_check
      _
    $region91: #{lenet5_forward.1} parent=1 // pred_check_branch
      %14745 = sbr.rel (0) target = $region93
    $region92: #{lenet5_forward.1} parent=1 // pred_region
      _
    $region93: #{lenet5_forward.1} parent=1 // pred_fallthru
      _
    %14746 = vsyncpa [#allocation3], 1
    %14747 = vsyncpa [#allocation5], 1
    %14748 = vsyncpa [#allocation8], 1
    %14749 = vsyncpa [#allocation11], 1
    %14750 = vsyncpa [#allocation14], 1
    %14751 = vsyncpa [#allocation17], 1

</llo_original>
